<compile_context>
chip_gen: v7x
topology: tpu7x:2x2x1
jax: 0.10.0
libtpu: 0.0.40
codegen_flags: <defaults>
</compile_context>

<pallas_src>
import functools

import numpy as np
import jax
import jax.numpy as jnp
from jax import lax
from jax.experimental import pallas as pl
from jax.experimental.pallas import tpu as pltpu


def _bottle_block_kernel(x_ref, w_in_ref, b_in_ref, wqkv_ref, emb_ref,
                         b2_ref, wf_ref, b3_ref, o_ref, qkv_bf, acc,
                         *, dim_out, heads, dim_head, n, bt):
    inner = heads * dim_head

    # ---- fused shortcut-conv + pre-attention conv (BN scales folded) --------
    # x is (C_in, Bt*N) bf16 (cast in the wrapper); one wide MXU matmul.
    pre = jnp.dot(w_in_ref[...], x_ref[...], preferred_element_type=jnp.float32)
    pre = jnp.maximum(pre + b_in_ref[...], 0.0)                # BN shift + ReLU
    shortcut = pre[:dim_out]                                   # (dim_out, Bt*N) f32
    x1 = pre[dim_out:].astype(jnp.bfloat16)                    # (attn_dim_in, Bt*N)

    # ---- fused QKV 1x1 conv (q pre-scaled, v carries BN2 scale) -------------
    qkv = jnp.dot(wqkv_ref[...], x1, preferred_element_type=jnp.float32)

    # Hoisted per-head work: add the (head/batch-tiled) abs-pos embedding to k
    # once and cast q / k_aug / v to bf16 in three full-width passes into a
    # VMEM scratch; the head loop below only takes zero-cost ref slices.
    qkv_bf[0:inner, :] = qkv[0:inner].astype(jnp.bfloat16)
    qkv_bf[inner:2 * inner, :] = (qkv[inner:2 * inner]
                                  + emb_ref[...]).astype(jnp.bfloat16)
    qkv_bf[2 * inner:3 * inner, :] = qkv[2 * inner:3 * inner].astype(jnp.bfloat16)

    # ---- per-(head, batch) attention ----------------------------------------
    # sim computed transposed:  simT[j, i] = (k_j + emb_j) . q_i
    # so AV is v(d, Nj) @ attnT(Nj, Ni) — natural MXU orientation, no (N, N)
    # transpose; only the small (d, N) k tile is transposed inside the QK push.
    # Unrolled Python loop keeps back-to-back vmatmul pushes (hides MXU
    # fill/drain with the K=dim_head-shallow QK matmuls).
    for h in range(heads):
        lo = h * dim_head
        hi = lo + dim_head
        for bb in range(bt):
            s = bb * n
            q_hb = qkv_bf[lo:hi, s:s + n]                        # (d, N) bf16
            k_hb = qkv_bf[inner + lo:inner + hi, s:s + n]        # (d, N) bf16
            v_hb = qkv_bf[2 * inner + lo:2 * inner + hi, s:s + n]

            simT = lax.dot_general(k_hb, q_hb, (((0,), (0,)), ((), ())),
                                   preferred_element_type=jnp.float32)  # (Nj, Ni)
            simT = simT - jnp.max(simT, axis=0, keepdims=True)
            p = jnp.exp(simT)
            attnT = (p * pl.reciprocal(jnp.sum(p, axis=0, keepdims=True),
                                       approx=True)).astype(jnp.bfloat16)

            # Head output goes straight into the (inner, Bt*N) scratch slice:
            # no head_outs list, no concatenate relayout.
            acc[lo:hi, s:s + n] = jnp.dot(v_hb, attnT,
                                          preferred_element_type=jnp.float32)

    # ---- post-attention BN shift + ReLU, output projection, residual --------
    h2 = jnp.maximum(acc[...] + b2_ref[...], 0.0).astype(jnp.bfloat16)
    y = jnp.dot(wf_ref[...], h2, preferred_element_type=jnp.float32)  # (dim_out, Bt*N)
    o_ref[...] = jnp.maximum(y + b3_ref[...] + shortcut, 0.0)  # lane-dense store


def _pick_batch_tile(b, n, max_lanes=4096):
    """Largest batch tile that still leaves >= 2 grid steps (v7x has 2
    TensorCores to shard the 'parallel' axis over) and keeps the lane width /
    VMEM footprint bounded.  On 1-TC chips one extra grid step costs ~0.35us,
    so this choice is near-optimal there too."""
    if b <= 1:
        return 1
    best = 1
    for bt in range(1, b // 2 + 1):
        if b % bt == 0 and bt * n <= max_lanes:
            best = bt
    return best


def bottle_block_pallas(x_nchw, params, *, heads, dim_head, eps=1e-5,
                        batch_tile=None):
    b, c_in, hh, ww = x_nchw.shape
    n = hh * ww
    inner = heads * dim_head
    dim_out = params['w_sc'].shape[0]

    bt = _pick_batch_tile(b, n) if batch_tile is None else batch_tile
    assert b % bt == 0, "batch must be divisible by batch_tile"

    def fold(prefix):
        scale = params[prefix + '_gamma'] / jnp.sqrt(params[prefix + '_var'] + eps)
        shift = params[prefix + '_beta'] - params[prefix + '_mean'] * scale
        return scale, shift

    s_sc, b_sc = fold('bn_sc')
    s1, b1 = fold('bn1')
    s2, b2 = fold('bn2')
    s3, b3 = fold('bn3')

    # Fused shortcut + pre-attention conv weights (BN scales folded in).
    w_in = jnp.concatenate([params['w_sc'] * s_sc[:, None],
                            params['w1'] * s1[:, None]], axis=0)
    b_in = jnp.concatenate([b_sc, b1])[:, None].astype(jnp.float32)

    # Fused QKV weights: q rows pre-scaled by dim_head**-0.5, v rows carry s2.
    scale_q = dim_head ** -0.5
    wqkv = jnp.concatenate([params['w_qkv'][:inner] * scale_q,
                            params['w_qkv'][inner:2 * inner],
                            params['w_qkv'][2 * inner:] * s2[:, None]], axis=0)

    # Absolute position embedding, channels-first emb[d, j] with j = y*W + x,
    # pre-tiled over heads (shared) and over the batch tile along lanes so the
    # kernel does a single full-width add (no per-head emb adds).
    emb = (params['pos_h'][:, None, :] +
           params['pos_w'][None, :, :]).reshape(n, dim_head).T      # (dim_head, N)
    emb_full = jnp.tile(emb, (heads, bt)).astype(jnp.float32)        # (inner, Bt*N)

    wf = params['w_f'] * s3[:, None]

    # Channels-first slab with batch folded onto the lane axis, bf16 in the
    # wrapper (halves the input DMA and removes the in-kernel cast pass).
    x_cn = jnp.transpose(x_nchw.reshape(b, c_in, n), (1, 0, 2)) \
              .reshape(c_in, b * n).astype(jnp.bfloat16)

    kernel = functools.partial(_bottle_block_kernel, dim_out=dim_out,
                               heads=heads, dim_head=dim_head, n=n, bt=bt)

    def rep(arr):  # replicated weight: same block every step -> fetched once
        return pl.BlockSpec(arr.shape, lambda i: (0, 0))

    args = (x_cn,
            w_in.astype(jnp.bfloat16), b_in,
            wqkv.astype(jnp.bfloat16), emb_full,
            b2[:, None].astype(jnp.float32),
            wf.astype(jnp.bfloat16), b3[:, None].astype(jnp.float32))

    out = pl.pallas_call(
        kernel,
        out_shape=jax.ShapeDtypeStruct((dim_out, b * n), jnp.float32),
        grid_spec=pltpu.PrefetchScalarGridSpec(
            num_scalar_prefetch=0,
            grid=(b // bt,),
            in_specs=[pl.BlockSpec((c_in, bt * n), lambda i: (0, i))]
                     + [rep(a) for a in args[1:]],
            out_specs=pl.BlockSpec((dim_out, bt * n), lambda i: (0, i)),
            scratch_shapes=[pltpu.VMEM((3 * inner, bt * n), jnp.bfloat16),
                            pltpu.VMEM((inner, bt * n), jnp.float32)]),
        compiler_params=pltpu.CompilerParams(
            dimension_semantics=("parallel",),
            # Live set is ~2 MiB at this shape; re-derive (<= ~48 MiB on v7x)
            # if batch_tile or N grows.
            vmem_limit_bytes=32 * 1024 * 1024),
    )(*args)

    return (out.reshape(dim_out, b, n).transpose(1, 0, 2)
               .reshape(b, dim_out, hh, ww))


def bottle_block_ref(x, params, *, heads, dim_head, eps=1e-5):
    """Pure-JAX reference mirroring the PyTorch forward (eval-mode BatchNorm,
    downsample=False, dim != dim_out so the shortcut is conv1x1+BN+ReLU)."""
    b, c, hh, ww = x.shape
    n = hh * ww
    inner = heads * dim_head
    hp = lax.Precision.HIGHEST
    relu = jax.nn.relu

    def bn(t, prefix):
        g = params[prefix + '_gamma'][None, :, None, None]
        bt = params[prefix + '_beta'][None, :, None, None]
        m = params[prefix + '_mean'][None, :, None, None]
        v = params[prefix + '_var'][None, :, None, None]
        return (t - m) / jnp.sqrt(v + eps) * g + bt

    sc = jnp.einsum('oc,bchw->bohw', params['w_sc'], x, precision=hp)
    sc = relu(bn(sc, 'bn_sc'))

    x1 = jnp.einsum('oc,bchw->bohw', params['w1'], x, precision=hp)
    x1 = relu(bn(x1, 'bn1'))

    qkv = jnp.einsum('oc,bchw->bohw', params['w_qkv'], x1, precision=hp)
    qkv = qkv.reshape(b, 3, heads, dim_head, n)
    q, k, v = qkv[:, 0], qkv[:, 1], qkv[:, 2]          # (b, heads, dim_head, n)
    q = q * (dim_head ** -0.5)

    emb = (params['pos_h'][:, None, :] + params['pos_w'][None, :, :]).reshape(n, dim_head)
    sim = jnp.einsum('bhdi,bhdj->bhij', q, k, precision=hp)
    sim = sim + jnp.einsum('bhdi,jd->bhij', q, emb, precision=hp)
    attn = jax.nn.softmax(sim, axis=-1)
    out = jnp.einsum('bhij,bhdj->bhdi', attn, v, precision=hp)   # (b, heads, d, n)
    out = out.reshape(b, inner, hh, ww)
    out = relu(bn(out, 'bn2'))

    y = jnp.einsum('oc,bchw->bohw', params['w_f'], out, precision=hp)
    y = bn(y, 'bn3')
    return relu(y + sc)


if __name__ == "__main__":
    # BottleBlock(dim=8, fmap_size=16, dim_out=16, proj_factor=2,
    #             downsample=False, heads=4, dim_head=32, rel_pos_emb=False)
    B, C_in, H, W = 4, 8, 16, 16          # B=4 -> batch_tile=2, grid=(2,)
    dim_out, proj_factor = 16, 2
    heads, dim_head = 4, 32
    attn_dim_in = dim_out // proj_factor          # 8
    inner = heads * dim_head                      # 128

    key = jax.random.PRNGKey(0)
    ks = jax.random.split(key, 16)

    def rn(k, shape, s=0.2):
        return s * jax.random.normal(k, shape, jnp.float32)

    def bn_params(k, c, name, dst):
        k1, k2, k3, k4 = jax.random.split(k, 4)
        dst[name + '_gamma'] = 1.0 + 0.1 * jax.random.normal(k1, (c,), jnp.float32)
        dst[name + '_beta'] = 0.1 * jax.random.normal(k2, (c,), jnp.float32)
        dst[name + '_mean'] = 0.1 * jax.random.normal(k3, (c,), jnp.float32)
        dst[name + '_var'] = 0.5 + jax.random.uniform(k4, (c,), jnp.float32)

    params = {
        'w_sc': rn(ks[0], (dim_out, C_in)),                 # shortcut 1x1 conv
        'w1': rn(ks[1], (attn_dim_in, C_in)),               # net[0] 1x1 conv
        'w_qkv': rn(ks[2], (3 * inner, attn_dim_in)),       # Attention.to_qkv
        # PyTorch zero-inits the final conv; random here so the test exercises it.
        'w_f': rn(ks[3], (dim_out, inner)),
        'pos_h': rn(ks[4], (H, dim_head), s=dim_head ** -0.5),   # AbsPosEmb.height
        'pos_w': rn(ks[5], (W, dim_head), s=dim_head ** -0.5),   # AbsPosEmb.width
    }
    bn_params(ks[6], dim_out, 'bn_sc', params)
    bn_params(ks[7], attn_dim_in, 'bn1', params)
    bn_params(ks[8], inner, 'bn2', params)
    bn_params(ks[9], dim_out, 'bn3', params)

    x = jax.random.normal(ks[10], (B, C_in, H, W), jnp.float32)

    out = bottle_block_pallas(x, params, heads=heads, dim_head=dim_head)
    out = jax.block_until_ready(out)
    assert out.shape == (B, dim_out, H, W)

    ref = bottle_block_ref(x, params, heads=heads, dim_head=dim_head)
    np.testing.assert_allclose(np.asarray(out), np.asarray(ref), rtol=5e-2, atol=5e-2)

    print("KERNEL_OK")
</pallas_src>

<mosaic_0001>
module attributes {stable_mosaic.version = 11 : i64} {
  func.func @_bottle_block_kernel(%arg0: i32, %arg1: memref<8x512xbf16, #tpu.memory_space<vmem>>, %arg2: memref<24x8xbf16, #tpu.memory_space<vmem>>, %arg3: memref<24x1xf32, #tpu.memory_space<vmem>>, %arg4: memref<384x8xbf16, #tpu.memory_space<vmem>>, %arg5: memref<128x512xf32, #tpu.memory_space<vmem>>, %arg6: memref<128x1xf32, #tpu.memory_space<vmem>>, %arg7: memref<16x128xbf16, #tpu.memory_space<vmem>>, %arg8: memref<16x1xf32, #tpu.memory_space<vmem>>, %arg9: memref<16x512xf32, #tpu.memory_space<vmem>>, %arg10: memref<384x512xbf16, #tpu.memory_space<vmem>>, %arg11: memref<128x512xf32, #tpu.memory_space<vmem>>) attributes {dimension_semantics = [#tpu.dimension_semantics<parallel>], iteration_bounds = array<i64: 2>, scalar_prefetch = 0 : i64, scratch_operands = 2 : i64, tpu.core_type = #tpu.core_type<tc>, window_params = [{transform_indices = @transform_0, window_bounds = array<i64: 8, 512>}, {pipeline_mode = #tpu.pipeline_mode<synchronous>, transform_indices = @transform_1, window_bounds = array<i64: 24, 8>}, {pipeline_mode = #tpu.pipeline_mode<synchronous>, transform_indices = @transform_2, window_bounds = array<i64: 24, 1>}, {pipeline_mode = #tpu.pipeline_mode<synchronous>, transform_indices = @transform_3, window_bounds = array<i64: 384, 8>}, {pipeline_mode = #tpu.pipeline_mode<synchronous>, transform_indices = @transform_4, window_bounds = array<i64: 128, 512>}, {pipeline_mode = #tpu.pipeline_mode<synchronous>, transform_indices = @transform_5, window_bounds = array<i64: 128, 1>}, {pipeline_mode = #tpu.pipeline_mode<synchronous>, transform_indices = @transform_6, window_bounds = array<i64: 16, 128>}, {pipeline_mode = #tpu.pipeline_mode<synchronous>, transform_indices = @transform_7, window_bounds = array<i64: 16, 1>}, {transform_indices = @transform_8, window_bounds = array<i64: 16, 512>}]} {
    %c0 = arith.constant 0 : index
    %c0_0 = arith.constant 0 : index
    %0 = vector.load %arg2[%c0, %c0_0] : memref<24x8xbf16, #tpu.memory_space<vmem>>, vector<24x8xbf16>
    %c0_1 = arith.constant 0 : index
    %c0_2 = arith.constant 0 : index
    %1 = vector.load %arg1[%c0_1, %c0_2] : memref<8x512xbf16, #tpu.memory_space<vmem>>, vector<8x512xbf16>
    %cst = arith.constant dense<0.000000e+00> : vector<24x512xf32>
    %2 = tpu.matmul %0, %1, %cst {dimension_numbers = #tpu.dot_dimension_numbers<[1], [0], [0], [1], [0, 0, 1, 1], [], []>} : vector<24x8xbf16>, vector<8x512xbf16>, vector<24x512xf32> -> vector<24x512xf32>
    %c0_3 = arith.constant 0 : index
    %c0_4 = arith.constant 0 : index
    %3 = vector.load %arg3[%c0_3, %c0_4] : memref<24x1xf32, #tpu.memory_space<vmem>>, vector<24x1xf32>
    %4 = vector.broadcast %3 : vector<24x1xf32> to vector<24x512xf32>
    %5 = arith.addf %2, %4 : vector<24x512xf32>
    %cst_5 = arith.constant 0.000000e+00 : f32
    %6 = vector.broadcast %cst_5 : f32 to vector<24x512xf32>
    %7 = arith.maximumf %5, %6 : vector<24x512xf32>
    %8 = vector.extract_strided_slice %7 {offsets = [0, 0], sizes = [16, 512], strides = [1, 1]} : vector<24x512xf32> to vector<16x512xf32>
    %9 = vector.extract_strided_slice %7 {offsets = [16, 0], sizes = [8, 512], strides = [1, 1]} : vector<24x512xf32> to vector<8x512xf32>
    %10 = arith.truncf %9 : vector<8x512xf32> to vector<8x512xbf16>
    %c0_6 = arith.constant 0 : index
    %c0_7 = arith.constant 0 : index
    %11 = vector.load %arg4[%c0_6, %c0_7] : memref<384x8xbf16, #tpu.memory_space<vmem>>, vector<384x8xbf16>
    %cst_8 = arith.constant dense<0.000000e+00> : vector<384x512xf32>
    %12 = tpu.matmul %11, %10, %cst_8 {dimension_numbers = #tpu.dot_dimension_numbers<[1], [0], [0], [1], [0, 0, 1, 1], [], []>} : vector<384x8xbf16>, vector<8x512xbf16>, vector<384x512xf32> -> vector<384x512xf32>
    %13 = vector.extract_strided_slice %12 {offsets = [0, 0], sizes = [128, 512], strides = [1, 1]} : vector<384x512xf32> to vector<128x512xf32>
    %14 = arith.truncf %13 : vector<128x512xf32> to vector<128x512xbf16>
    %c0_9 = arith.constant 0 : index
    %c0_10 = arith.constant 0 : index
    %15 = vector.load %arg10[%c0_9, %c0_10] : memref<384x512xbf16, #tpu.memory_space<vmem>>, vector<128x512xbf16>
    tpu.vector_store %arg10[%c0_9, %c0_10], %14 {strides = array<i32>} : memref<384x512xbf16, #tpu.memory_space<vmem>>, vector<128x512xbf16>,
    %16 = vector.extract_strided_slice %12 {offsets = [128, 0], sizes = [128, 512], strides = [1, 1]} : vector<384x512xf32> to vector<128x512xf32>
    %c0_11 = arith.constant 0 : index
    %c0_12 = arith.constant 0 : index
    %17 = vector.load %arg5[%c0_11, %c0_12] : memref<128x512xf32, #tpu.memory_space<vmem>>, vector<128x512xf32>
    %18 = arith.addf %16, %17 : vector<128x512xf32>
    %19 = arith.truncf %18 : vector<128x512xf32> to vector<128x512xbf16>
    %c128 = arith.constant 128 : index
    %c0_13 = arith.constant 0 : index
    %20 = vector.load %arg10[%c128, %c0_13] : memref<384x512xbf16, #tpu.memory_space<vmem>>, vector<128x512xbf16>
    tpu.vector_store %arg10[%c128, %c0_13], %19 {strides = array<i32>} : memref<384x512xbf16, #tpu.memory_space<vmem>>, vector<128x512xbf16>,
    %21 = vector.extract_strided_slice %12 {offsets = [256, 0], sizes = [128, 512], strides = [1, 1]} : vector<384x512xf32> to vector<128x512xf32>
    %22 = arith.truncf %21 : vector<128x512xf32> to vector<128x512xbf16>
    %c256 = arith.constant 256 : index
    %c0_14 = arith.constant 0 : index
    %23 = vector.load %arg10[%c256, %c0_14] : memref<384x512xbf16, #tpu.memory_space<vmem>>, vector<128x512xbf16>
    tpu.vector_store %arg10[%c256, %c0_14], %22 {strides = array<i32>} : memref<384x512xbf16, #tpu.memory_space<vmem>>, vector<128x512xbf16>,
    %c0_15 = arith.constant 0 : index
    %c0_16 = arith.constant 0 : index
    %24 = vector.load %arg10[%c0_15, %c0_16] : memref<384x512xbf16, #tpu.memory_space<vmem>>, vector<32x256xbf16>
    %c128_17 = arith.constant 128 : index
    %c0_18 = arith.constant 0 : index
    %25 = vector.load %arg10[%c128_17, %c0_18] : memref<384x512xbf16, #tpu.memory_space<vmem>>, vector<32x256xbf16>
    %c256_19 = arith.constant 256 : index
    %c0_20 = arith.constant 0 : index
    %26 = vector.load %arg10[%c256_19, %c0_20] : memref<384x512xbf16, #tpu.memory_space<vmem>>, vector<32x256xbf16>
    %cst_21 = arith.constant dense<0.000000e+00> : vector<256x256xf32>
    %27 = tpu.matmul %25, %24, %cst_21 {dimension_numbers = #tpu.dot_dimension_numbers<[0], [0], [1], [1], [0, 1, 1, 1], [], []>} : vector<32x256xbf16>, vector<32x256xbf16>, vector<256x256xf32> -> vector<256x256xf32>
    %cst_22 = arith.constant dense<0xFF800000> : vector<256xf32>
    %28 = vector.multi_reduction <maximumf>, %27, %cst_22 [0] : vector<256x256xf32> to vector<256xf32>
    %29 = vector.shape_cast %28 : vector<256xf32> to vector<1x256xf32>
    %30 = vector.broadcast %29 : vector<1x256xf32> to vector<256x256xf32>
    %31 = arith.subf %27, %30 : vector<256x256xf32>
    %32 = math.exp %31 : vector<256x256xf32>
    %cst_23 = arith.constant dense<0.000000e+00> : vector<256xf32>
    %33 = vector.multi_reduction <add>, %32, %cst_23 [0] : vector<256x256xf32> to vector<256xf32>
    %34 = vector.shape_cast %33 : vector<256xf32> to vector<1x256xf32>
    %35 = tpu.reciprocal %34 {approx = true} : vector<1x256xf32> -> vector<1x256xf32>
    %36 = vector.broadcast %35 : vector<1x256xf32> to vector<256x256xf32>
    %37 = arith.mulf %32, %36 : vector<256x256xf32>
    %38 = arith.truncf %37 : vector<256x256xf32> to vector<256x256xbf16>
    %cst_24 = arith.constant dense<0.000000e+00> : vector<32x256xf32>
    %39 = tpu.matmul %26, %38, %cst_24 {dimension_numbers = #tpu.dot_dimension_numbers<[1], [0], [0], [1], [0, 0, 1, 1], [], []>} : vector<32x256xbf16>, vector<256x256xbf16>, vector<32x256xf32> -> vector<32x256xf32>
    %c0_25 = arith.constant 0 : index
    %c0_26 = arith.constant 0 : index
    %40 = vector.load %arg11[%c0_25, %c0_26] : memref<128x512xf32, #tpu.memory_space<vmem>>, vector<32x256xf32>
    tpu.vector_store %arg11[%c0_25, %c0_26], %39 {strides = array<i32>} : memref<128x512xf32, #tpu.memory_space<vmem>>, vector<32x256xf32>,
    %c0_27 = arith.constant 0 : index
    %c256_28 = arith.constant 256 : index
    %41 = vector.load %arg10[%c0_27, %c256_28] : memref<384x512xbf16, #tpu.memory_space<vmem>>, vector<32x256xbf16>
    %c128_29 = arith.constant 128 : index
    %c256_30 = arith.constant 256 : index
    %42 = vector.load %arg10[%c128_29, %c256_30] : memref<384x512xbf16, #tpu.memory_space<vmem>>, vector<32x256xbf16>
    %c256_31 = arith.constant 256 : index
    %c256_32 = arith.constant 256 : index
    %43 = vector.load %arg10[%c256_31, %c256_32] : memref<384x512xbf16, #tpu.memory_space<vmem>>, vector<32x256xbf16>
    %cst_33 = arith.constant dense<0.000000e+00> : vector<256x256xf32>
    %44 = tpu.matmul %42, %41, %cst_33 {dimension_numbers = #tpu.dot_dimension_numbers<[0], [0], [1], [1], [0, 1, 1, 1], [], []>} : vector<32x256xbf16>, vector<32x256xbf16>, vector<256x256xf32> -> vector<256x256xf32>
    %cst_34 = arith.constant dense<0xFF800000> : vector<256xf32>
    %45 = vector.multi_reduction <maximumf>, %44, %cst_34 [0] : vector<256x256xf32> to vector<256xf32>
    %46 = vector.shape_cast %45 : vector<256xf32> to vector<1x256xf32>
    %47 = vector.broadcast %46 : vector<1x256xf32> to vector<256x256xf32>
    %48 = arith.subf %44, %47 : vector<256x256xf32>
    %49 = math.exp %48 : vector<256x256xf32>
    %cst_35 = arith.constant dense<0.000000e+00> : vector<256xf32>
    %50 = vector.multi_reduction <add>, %49, %cst_35 [0] : vector<256x256xf32> to vector<256xf32>
    %51 = vector.shape_cast %50 : vector<256xf32> to vector<1x256xf32>
    %52 = tpu.reciprocal %51 {approx = true} : vector<1x256xf32> -> vector<1x256xf32>
    %53 = vector.broadcast %52 : vector<1x256xf32> to vector<256x256xf32>
    %54 = arith.mulf %49, %53 : vector<256x256xf32>
    %55 = arith.truncf %54 : vector<256x256xf32> to vector<256x256xbf16>
    %cst_36 = arith.constant dense<0.000000e+00> : vector<32x256xf32>
    %56 = tpu.matmul %43, %55, %cst_36 {dimension_numbers = #tpu.dot_dimension_numbers<[1], [0], [0], [1], [0, 0, 1, 1], [], []>} : vector<32x256xbf16>, vector<256x256xbf16>, vector<32x256xf32> -> vector<32x256xf32>
    %c0_37 = arith.constant 0 : index
    %c256_38 = arith.constant 256 : index
    %57 = vector.load %arg11[%c0_37, %c256_38] : memref<128x512xf32, #tpu.memory_space<vmem>>, vector<32x256xf32>
    tpu.vector_store %arg11[%c0_37, %c256_38], %56 {strides = array<i32>} : memref<128x512xf32, #tpu.memory_space<vmem>>, vector<32x256xf32>,
    %c32 = arith.constant 32 : index
    %c0_39 = arith.constant 0 : index
    %58 = vector.load %arg10[%c32, %c0_39] : memref<384x512xbf16, #tpu.memory_space<vmem>>, vector<32x256xbf16>
    %c160 = arith.constant 160 : index
    %c0_40 = arith.constant 0 : index
    %59 = vector.load %arg10[%c160, %c0_40] : memref<384x512xbf16, #tpu.memory_space<vmem>>, vector<32x256xbf16>
    %c288 = arith.constant 288 : index
    %c0_41 = arith.constant 0 : index
    %60 = vector.load %arg10[%c288, %c0_41] : memref<384x512xbf16, #tpu.memory_space<vmem>>, vector<32x256xbf16>
    %cst_42 = arith.constant dense<0.000000e+00> : vector<256x256xf32>
    %61 = tpu.matmul %59, %58, %cst_42 {dimension_numbers = #tpu.dot_dimension_numbers<[0], [0], [1], [1], [0, 1, 1, 1], [], []>} : vector<32x256xbf16>, vector<32x256xbf16>, vector<256x256xf32> -> vector<256x256xf32>
    %cst_43 = arith.constant dense<0xFF800000> : vector<256xf32>
    %62 = vector.multi_reduction <maximumf>, %61, %cst_43 [0] : vector<256x256xf32> to vector<256xf32>
    %63 = vector.shape_cast %62 : vector<256xf32> to vector<1x256xf32>
    %64 = vector.broadcast %63 : vector<1x256xf32> to vector<256x256xf32>
    %65 = arith.subf %61, %64 : vector<256x256xf32>
    %66 = math.exp %65 : vector<256x256xf32>
    %cst_44 = arith.constant dense<0.000000e+00> : vector<256xf32>
    %67 = vector.multi_reduction <add>, %66, %cst_44 [0] : vector<256x256xf32> to vector<256xf32>
    %68 = vector.shape_cast %67 : vector<256xf32> to vector<1x256xf32>
    %69 = tpu.reciprocal %68 {approx = true} : vector<1x256xf32> -> vector<1x256xf32>
    %70 = vector.broadcast %69 : vector<1x256xf32> to vector<256x256xf32>
    %71 = arith.mulf %66, %70 : vector<256x256xf32>
    %72 = arith.truncf %71 : vector<256x256xf32> to vector<256x256xbf16>
    %cst_45 = arith.constant dense<0.000000e+00> : vector<32x256xf32>
    %73 = tpu.matmul %60, %72, %cst_45 {dimension_numbers = #tpu.dot_dimension_numbers<[1], [0], [0], [1], [0, 0, 1, 1], [], []>} : vector<32x256xbf16>, vector<256x256xbf16>, vector<32x256xf32> -> vector<32x256xf32>
    %c32_46 = arith.constant 32 : index
    %c0_47 = arith.constant 0 : index
    %74 = vector.load %arg11[%c32_46, %c0_47] : memref<128x512xf32, #tpu.memory_space<vmem>>, vector<32x256xf32>
    tpu.vector_store %arg11[%c32_46, %c0_47], %73 {strides = array<i32>} : memref<128x512xf32, #tpu.memory_space<vmem>>, vector<32x256xf32>,
    %c32_48 = arith.constant 32 : index
    %c256_49 = arith.constant 256 : index
    %75 = vector.load %arg10[%c32_48, %c256_49] : memref<384x512xbf16, #tpu.memory_space<vmem>>, vector<32x256xbf16>
    %c160_50 = arith.constant 160 : index
    %c256_51 = arith.constant 256 : index
    %76 = vector.load %arg10[%c160_50, %c256_51] : memref<384x512xbf16, #tpu.memory_space<vmem>>, vector<32x256xbf16>
    %c288_52 = arith.constant 288 : index
    %c256_53 = arith.constant 256 : index
    %77 = vector.load %arg10[%c288_52, %c256_53] : memref<384x512xbf16, #tpu.memory_space<vmem>>, vector<32x256xbf16>
    %cst_54 = arith.constant dense<0.000000e+00> : vector<256x256xf32>
    %78 = tpu.matmul %76, %75, %cst_54 {dimension_numbers = #tpu.dot_dimension_numbers<[0], [0], [1], [1], [0, 1, 1, 1], [], []>} : vector<32x256xbf16>, vector<32x256xbf16>, vector<256x256xf32> -> vector<256x256xf32>
    %cst_55 = arith.constant dense<0xFF800000> : vector<256xf32>
    %79 = vector.multi_reduction <maximumf>, %78, %cst_55 [0] : vector<256x256xf32> to vector<256xf32>
    %80 = vector.shape_cast %79 : vector<256xf32> to vector<1x256xf32>
    %81 = vector.broadcast %80 : vector<1x256xf32> to vector<256x256xf32>
    %82 = arith.subf %78, %81 : vector<256x256xf32>
    %83 = math.exp %82 : vector<256x256xf32>
    %cst_56 = arith.constant dense<0.000000e+00> : vector<256xf32>
    %84 = vector.multi_reduction <add>, %83, %cst_56 [0] : vector<256x256xf32> to vector<256xf32>
    %85 = vector.shape_cast %84 : vector<256xf32> to vector<1x256xf32>
    %86 = tpu.reciprocal %85 {approx = true} : vector<1x256xf32> -> vector<1x256xf32>
    %87 = vector.broadcast %86 : vector<1x256xf32> to vector<256x256xf32>
    %88 = arith.mulf %83, %87 : vector<256x256xf32>
    %89 = arith.truncf %88 : vector<256x256xf32> to vector<256x256xbf16>
    %cst_57 = arith.constant dense<0.000000e+00> : vector<32x256xf32>
    %90 = tpu.matmul %77, %89, %cst_57 {dimension_numbers = #tpu.dot_dimension_numbers<[1], [0], [0], [1], [0, 0, 1, 1], [], []>} : vector<32x256xbf16>, vector<256x256xbf16>, vector<32x256xf32> -> vector<32x256xf32>
    %c32_58 = arith.constant 32 : index
    %c256_59 = arith.constant 256 : index
    %91 = vector.load %arg11[%c32_58, %c256_59] : memref<128x512xf32, #tpu.memory_space<vmem>>, vector<32x256xf32>
    tpu.vector_store %arg11[%c32_58, %c256_59], %90 {strides = array<i32>} : memref<128x512xf32, #tpu.memory_space<vmem>>, vector<32x256xf32>,
    %c64 = arith.constant 64 : index
    %c0_60 = arith.constant 0 : index
    %92 = vector.load %arg10[%c64, %c0_60] : memref<384x512xbf16, #tpu.memory_space<vmem>>, vector<32x256xbf16>
    %c192 = arith.constant 192 : index
    %c0_61 = arith.constant 0 : index
    %93 = vector.load %arg10[%c192, %c0_61] : memref<384x512xbf16, #tpu.memory_space<vmem>>, vector<32x256xbf16>
    %c320 = arith.constant 320 : index
    %c0_62 = arith.constant 0 : index
    %94 = vector.load %arg10[%c320, %c0_62] : memref<384x512xbf16, #tpu.memory_space<vmem>>, vector<32x256xbf16>
    %cst_63 = arith.constant dense<0.000000e+00> : vector<256x256xf32>
    %95 = tpu.matmul %93, %92, %cst_63 {dimension_numbers = #tpu.dot_dimension_numbers<[0], [0], [1], [1], [0, 1, 1, 1], [], []>} : vector<32x256xbf16>, vector<32x256xbf16>, vector<256x256xf32> -> vector<256x256xf32>
    %cst_64 = arith.constant dense<0xFF800000> : vector<256xf32>
    %96 = vector.multi_reduction <maximumf>, %95, %cst_64 [0] : vector<256x256xf32> to vector<256xf32>
    %97 = vector.shape_cast %96 : vector<256xf32> to vector<1x256xf32>
    %98 = vector.broadcast %97 : vector<1x256xf32> to vector<256x256xf32>
    %99 = arith.subf %95, %98 : vector<256x256xf32>
    %100 = math.exp %99 : vector<256x256xf32>
    %cst_65 = arith.constant dense<0.000000e+00> : vector<256xf32>
    %101 = vector.multi_reduction <add>, %100, %cst_65 [0] : vector<256x256xf32> to vector<256xf32>
    %102 = vector.shape_cast %101 : vector<256xf32> to vector<1x256xf32>
    %103 = tpu.reciprocal %102 {approx = true} : vector<1x256xf32> -> vector<1x256xf32>
    %104 = vector.broadcast %103 : vector<1x256xf32> to vector<256x256xf32>
    %105 = arith.mulf %100, %104 : vector<256x256xf32>
    %106 = arith.truncf %105 : vector<256x256xf32> to vector<256x256xbf16>
    %cst_66 = arith.constant dense<0.000000e+00> : vector<32x256xf32>
    %107 = tpu.matmul %94, %106, %cst_66 {dimension_numbers = #tpu.dot_dimension_numbers<[1], [0], [0], [1], [0, 0, 1, 1], [], []>} : vector<32x256xbf16>, vector<256x256xbf16>, vector<32x256xf32> -> vector<32x256xf32>
    %c64_67 = arith.constant 64 : index
    %c0_68 = arith.constant 0 : index
    %108 = vector.load %arg11[%c64_67, %c0_68] : memref<128x512xf32, #tpu.memory_space<vmem>>, vector<32x256xf32>
    tpu.vector_store %arg11[%c64_67, %c0_68], %107 {strides = array<i32>} : memref<128x512xf32, #tpu.memory_space<vmem>>, vector<32x256xf32>,
    %c64_69 = arith.constant 64 : index
    %c256_70 = arith.constant 256 : index
    %109 = vector.load %arg10[%c64_69, %c256_70] : memref<384x512xbf16, #tpu.memory_space<vmem>>, vector<32x256xbf16>
    %c192_71 = arith.constant 192 : index
    %c256_72 = arith.constant 256 : index
    %110 = vector.load %arg10[%c192_71, %c256_72] : memref<384x512xbf16, #tpu.memory_space<vmem>>, vector<32x256xbf16>
    %c320_73 = arith.constant 320 : index
    %c256_74 = arith.constant 256 : index
    %111 = vector.load %arg10[%c320_73, %c256_74] : memref<384x512xbf16, #tpu.memory_space<vmem>>, vector<32x256xbf16>
    %cst_75 = arith.constant dense<0.000000e+00> : vector<256x256xf32>
    %112 = tpu.matmul %110, %109, %cst_75 {dimension_numbers = #tpu.dot_dimension_numbers<[0], [0], [1], [1], [0, 1, 1, 1], [], []>} : vector<32x256xbf16>, vector<32x256xbf16>, vector<256x256xf32> -> vector<256x256xf32>
    %cst_76 = arith.constant dense<0xFF800000> : vector<256xf32>
    %113 = vector.multi_reduction <maximumf>, %112, %cst_76 [0] : vector<256x256xf32> to vector<256xf32>
    %114 = vector.shape_cast %113 : vector<256xf32> to vector<1x256xf32>
    %115 = vector.broadcast %114 : vector<1x256xf32> to vector<256x256xf32>
    %116 = arith.subf %112, %115 : vector<256x256xf32>
    %117 = math.exp %116 : vector<256x256xf32>
    %cst_77 = arith.constant dense<0.000000e+00> : vector<256xf32>
    %118 = vector.multi_reduction <add>, %117, %cst_77 [0] : vector<256x256xf32> to vector<256xf32>
    %119 = vector.shape_cast %118 : vector<256xf32> to vector<1x256xf32>
    %120 = tpu.reciprocal %119 {approx = true} : vector<1x256xf32> -> vector<1x256xf32>
    %121 = vector.broadcast %120 : vector<1x256xf32> to vector<256x256xf32>
    %122 = arith.mulf %117, %121 : vector<256x256xf32>
    %123 = arith.truncf %122 : vector<256x256xf32> to vector<256x256xbf16>
    %cst_78 = arith.constant dense<0.000000e+00> : vector<32x256xf32>
    %124 = tpu.matmul %111, %123, %cst_78 {dimension_numbers = #tpu.dot_dimension_numbers<[1], [0], [0], [1], [0, 0, 1, 1], [], []>} : vector<32x256xbf16>, vector<256x256xbf16>, vector<32x256xf32> -> vector<32x256xf32>
    %c64_79 = arith.constant 64 : index
    %c256_80 = arith.constant 256 : index
    %125 = vector.load %arg11[%c64_79, %c256_80] : memref<128x512xf32, #tpu.memory_space<vmem>>, vector<32x256xf32>
    tpu.vector_store %arg11[%c64_79, %c256_80], %124 {strides = array<i32>} : memref<128x512xf32, #tpu.memory_space<vmem>>, vector<32x256xf32>,
    %c96 = arith.constant 96 : index
    %c0_81 = arith.constant 0 : index
    %126 = vector.load %arg10[%c96, %c0_81] : memref<384x512xbf16, #tpu.memory_space<vmem>>, vector<32x256xbf16>
    %c224 = arith.constant 224 : index
    %c0_82 = arith.constant 0 : index
    %127 = vector.load %arg10[%c224, %c0_82] : memref<384x512xbf16, #tpu.memory_space<vmem>>, vector<32x256xbf16>
    %c352 = arith.constant 352 : index
    %c0_83 = arith.constant 0 : index
    %128 = vector.load %arg10[%c352, %c0_83] : memref<384x512xbf16, #tpu.memory_space<vmem>>, vector<32x256xbf16>
    %cst_84 = arith.constant dense<0.000000e+00> : vector<256x256xf32>
    %129 = tpu.matmul %127, %126, %cst_84 {dimension_numbers = #tpu.dot_dimension_numbers<[0], [0], [1], [1], [0, 1, 1, 1], [], []>} : vector<32x256xbf16>, vector<32x256xbf16>, vector<256x256xf32> -> vector<256x256xf32>
    %cst_85 = arith.constant dense<0xFF800000> : vector<256xf32>
    %130 = vector.multi_reduction <maximumf>, %129, %cst_85 [0] : vector<256x256xf32> to vector<256xf32>
    %131 = vector.shape_cast %130 : vector<256xf32> to vector<1x256xf32>
    %132 = vector.broadcast %131 : vector<1x256xf32> to vector<256x256xf32>
    %133 = arith.subf %129, %132 : vector<256x256xf32>
    %134 = math.exp %133 : vector<256x256xf32>
    %cst_86 = arith.constant dense<0.000000e+00> : vector<256xf32>
    %135 = vector.multi_reduction <add>, %134, %cst_86 [0] : vector<256x256xf32> to vector<256xf32>
    %136 = vector.shape_cast %135 : vector<256xf32> to vector<1x256xf32>
    %137 = tpu.reciprocal %136 {approx = true} : vector<1x256xf32> -> vector<1x256xf32>
    %138 = vector.broadcast %137 : vector<1x256xf32> to vector<256x256xf32>
    %139 = arith.mulf %134, %138 : vector<256x256xf32>
    %140 = arith.truncf %139 : vector<256x256xf32> to vector<256x256xbf16>
    %cst_87 = arith.constant dense<0.000000e+00> : vector<32x256xf32>
    %141 = tpu.matmul %128, %140, %cst_87 {dimension_numbers = #tpu.dot_dimension_numbers<[1], [0], [0], [1], [0, 0, 1, 1], [], []>} : vector<32x256xbf16>, vector<256x256xbf16>, vector<32x256xf32> -> vector<32x256xf32>
    %c96_88 = arith.constant 96 : index
    %c0_89 = arith.constant 0 : index
    %142 = vector.load %arg11[%c96_88, %c0_89] : memref<128x512xf32, #tpu.memory_space<vmem>>, vector<32x256xf32>
    tpu.vector_store %arg11[%c96_88, %c0_89], %141 {strides = array<i32>} : memref<128x512xf32, #tpu.memory_space<vmem>>, vector<32x256xf32>,
    %c96_90 = arith.constant 96 : index
    %c256_91 = arith.constant 256 : index
    %143 = vector.load %arg10[%c96_90, %c256_91] : memref<384x512xbf16, #tpu.memory_space<vmem>>, vector<32x256xbf16>
    %c224_92 = arith.constant 224 : index
    %c256_93 = arith.constant 256 : index
    %144 = vector.load %arg10[%c224_92, %c256_93] : memref<384x512xbf16, #tpu.memory_space<vmem>>, vector<32x256xbf16>
    %c352_94 = arith.constant 352 : index
    %c256_95 = arith.constant 256 : index
    %145 = vector.load %arg10[%c352_94, %c256_95] : memref<384x512xbf16, #tpu.memory_space<vmem>>, vector<32x256xbf16>
    %cst_96 = arith.constant dense<0.000000e+00> : vector<256x256xf32>
    %146 = tpu.matmul %144, %143, %cst_96 {dimension_numbers = #tpu.dot_dimension_numbers<[0], [0], [1], [1], [0, 1, 1, 1], [], []>} : vector<32x256xbf16>, vector<32x256xbf16>, vector<256x256xf32> -> vector<256x256xf32>
    %cst_97 = arith.constant dense<0xFF800000> : vector<256xf32>
    %147 = vector.multi_reduction <maximumf>, %146, %cst_97 [0] : vector<256x256xf32> to vector<256xf32>
    %148 = vector.shape_cast %147 : vector<256xf32> to vector<1x256xf32>
    %149 = vector.broadcast %148 : vector<1x256xf32> to vector<256x256xf32>
    %150 = arith.subf %146, %149 : vector<256x256xf32>
    %151 = math.exp %150 : vector<256x256xf32>
    %cst_98 = arith.constant dense<0.000000e+00> : vector<256xf32>
    %152 = vector.multi_reduction <add>, %151, %cst_98 [0] : vector<256x256xf32> to vector<256xf32>
    %153 = vector.shape_cast %152 : vector<256xf32> to vector<1x256xf32>
    %154 = tpu.reciprocal %153 {approx = true} : vector<1x256xf32> -> vector<1x256xf32>
    %155 = vector.broadcast %154 : vector<1x256xf32> to vector<256x256xf32>
    %156 = arith.mulf %151, %155 : vector<256x256xf32>
    %157 = arith.truncf %156 : vector<256x256xf32> to vector<256x256xbf16>
    %cst_99 = arith.constant dense<0.000000e+00> : vector<32x256xf32>
    %158 = tpu.matmul %145, %157, %cst_99 {dimension_numbers = #tpu.dot_dimension_numbers<[1], [0], [0], [1], [0, 0, 1, 1], [], []>} : vector<32x256xbf16>, vector<256x256xbf16>, vector<32x256xf32> -> vector<32x256xf32>
    %c96_100 = arith.constant 96 : index
    %c256_101 = arith.constant 256 : index
    %159 = vector.load %arg11[%c96_100, %c256_101] : memref<128x512xf32, #tpu.memory_space<vmem>>, vector<32x256xf32>
    tpu.vector_store %arg11[%c96_100, %c256_101], %158 {strides = array<i32>} : memref<128x512xf32, #tpu.memory_space<vmem>>, vector<32x256xf32>,
    %c0_102 = arith.constant 0 : index
    %c0_103 = arith.constant 0 : index
    %160 = vector.load %arg11[%c0_102, %c0_103] : memref<128x512xf32, #tpu.memory_space<vmem>>, vector<128x512xf32>
    %c0_104 = arith.constant 0 : index
    %c0_105 = arith.constant 0 : index
    %161 = vector.load %arg6[%c0_104, %c0_105] : memref<128x1xf32, #tpu.memory_space<vmem>>, vector<128x1xf32>
    %162 = vector.broadcast %161 : vector<128x1xf32> to vector<128x512xf32>
    %163 = arith.addf %160, %162 : vector<128x512xf32>
    %cst_106 = arith.constant 0.000000e+00 : f32
    %164 = vector.broadcast %cst_106 : f32 to vector<128x512xf32>
    %165 = arith.maximumf %163, %164 : vector<128x512xf32>
    %166 = arith.truncf %165 : vector<128x512xf32> to vector<128x512xbf16>
    %c0_107 = arith.constant 0 : index
    %c0_108 = arith.constant 0 : index
    %167 = vector.load %arg7[%c0_107, %c0_108] : memref<16x128xbf16, #tpu.memory_space<vmem>>, vector<16x128xbf16>
    %cst_109 = arith.constant dense<0.000000e+00> : vector<16x512xf32>
    %168 = tpu.matmul %167, %166, %cst_109 {dimension_numbers = #tpu.dot_dimension_numbers<[1], [0], [0], [1], [0, 0, 1, 1], [], []>} : vector<16x128xbf16>, vector<128x512xbf16>, vector<16x512xf32> -> vector<16x512xf32>
    %c0_110 = arith.constant 0 : index
    %c0_111 = arith.constant 0 : index
    %169 = vector.load %arg8[%c0_110, %c0_111] : memref<16x1xf32, #tpu.memory_space<vmem>>, vector<16x1xf32>
    %170 = vector.broadcast %169 : vector<16x1xf32> to vector<16x512xf32>
    %171 = arith.addf %168, %170 : vector<16x512xf32>
    %172 = arith.addf %171, %8 : vector<16x512xf32>
    %cst_112 = arith.constant 0.000000e+00 : f32
    %173 = vector.broadcast %cst_112 : f32 to vector<16x512xf32>
    %174 = arith.maximumf %172, %173 : vector<16x512xf32>
    %c0_113 = arith.constant 0 : index
    %c0_114 = arith.constant 0 : index
    %175 = vector.load %arg9[%c0_113, %c0_114] : memref<16x512xf32, #tpu.memory_space<vmem>>, vector<16x512xf32>
    tpu.vector_store %arg9[%c0_113, %c0_114], %174 {strides = array<i32>} : memref<16x512xf32, #tpu.memory_space<vmem>>, vector<16x512xf32>,
    return
  }
  func.func @transform_0(%arg0: i32) -> (i32, i32) {
    %c0_i32 = arith.constant 0 : i32
    %c0_i32_0 = arith.constant 0 : i32
    return %c0_i32, %arg0 : i32, i32
  }
  func.func @transform_1(%arg0: i32) -> (i32, i32) {
    %c0_i32 = arith.constant 0 : i32
    %c0_i32_0 = arith.constant 0 : i32
    %c0_i32_1 = arith.constant 0 : i32
    return %c0_i32, %c0_i32_0 : i32, i32
  }
  func.func @transform_2(%arg0: i32) -> (i32, i32) {
    %c0_i32 = arith.constant 0 : i32
    %c0_i32_0 = arith.constant 0 : i32
    %c0_i32_1 = arith.constant 0 : i32
    return %c0_i32, %c0_i32_0 : i32, i32
  }
  func.func @transform_3(%arg0: i32) -> (i32, i32) {
    %c0_i32 = arith.constant 0 : i32
    %c0_i32_0 = arith.constant 0 : i32
    %c0_i32_1 = arith.constant 0 : i32
    return %c0_i32, %c0_i32_0 : i32, i32
  }
  func.func @transform_4(%arg0: i32) -> (i32, i32) {
    %c0_i32 = arith.constant 0 : i32
    %c0_i32_0 = arith.constant 0 : i32
    %c0_i32_1 = arith.constant 0 : i32
    return %c0_i32, %c0_i32_0 : i32, i32
  }
  func.func @transform_5(%arg0: i32) -> (i32, i32) {
    %c0_i32 = arith.constant 0 : i32
    %c0_i32_0 = arith.constant 0 : i32
    %c0_i32_1 = arith.constant 0 : i32
    return %c0_i32, %c0_i32_0 : i32, i32
  }
  func.func @transform_6(%arg0: i32) -> (i32, i32) {
    %c0_i32 = arith.constant 0 : i32
    %c0_i32_0 = arith.constant 0 : i32
    %c0_i32_1 = arith.constant 0 : i32
    return %c0_i32, %c0_i32_0 : i32, i32
  }
  func.func @transform_7(%arg0: i32) -> (i32, i32) {
    %c0_i32 = arith.constant 0 : i32
    %c0_i32_0 = arith.constant 0 : i32
    %c0_i32_1 = arith.constant 0 : i32
    return %c0_i32, %c0_i32_0 : i32, i32
  }
  func.func @transform_8(%arg0: i32) -> (i32, i32) {
    %c0_i32 = arith.constant 0 : i32
    %c0_i32_0 = arith.constant 0 : i32
    return %c0_i32, %arg0 : i32, i32
  }
}

</mosaic_0001>

<llo_original>
// kernel: tpu_custom_call.1
$region0: #{tpu_custom_call.1}
  #allocation0 [shape = 'u32[]', space=smem, size = 0x4, offset = 0x4, fixed_abs, tag = 'smem constant byte address 0x4 - core index']
  #allocation1 [shape = 'u32[144,128]{1,0:T(1,128)}', space=vmem, size = 0x12000, scoped, tag = 'internal scratch']
  #allocation2 [shape = 'bf16[384,512]{1,0:T(16,128)(2,1)}', space=vmem, size = 0x60000, scoped, tag = 'scratch operand']
  #allocation3 [shape = 'f32[128,512]{1,0:T(8,128)}', space=vmem, size = 0x40000, scoped, tag = 'scratch operand']
  %s0 = inlined_call_operand.vmem [shape: bf16[8,1024], index: 0, kind: input, shape index: {}]
  %s1 = inlined_call_operand.vmem [shape: bf16[24,8], index: 1, kind: input, shape index: {}]
  %s2 = inlined_call_operand.vmem [shape: f32[24,1], index: 2, kind: input, shape index: {}]
  %s3 = inlined_call_operand.vmem [shape: bf16[384,8], index: 3, kind: input, shape index: {}]
  %s4 = inlined_call_operand.hbm [shape: f32[128,512], index: 4, kind: input, shape index: {}]
  %s5 = inlined_call_operand.vmem [shape: f32[128,1], index: 5, kind: input, shape index: {}]
  %s6 = inlined_call_operand.vmem [shape: bf16[16,128], index: 6, kind: input, shape index: {}]
  %s7 = inlined_call_operand.vmem [shape: f32[16,1], index: 7, kind: input, shape index: {}]
  %s8 = inlined_call_operand.hbm [shape: f32[16,1024], index: 8, kind: output, shape index: {}]
  %s9 = sld [smem:[#allocation0]]
  $region69: #{tpu_custom_call.1} parent=0
    _
  %s11 = ssub.s32 1, %s9
  %s12 = scalar_select 0, %s11, %s9
  $region1: #{tpu_custom_call.1} parent=0
    #allocation4 [shape = 'u8[262144]{0}', space=vmem, size = 0x40000, scoped, tag = 'input window, operand 4, single buffered']
    #allocation5 [shape = 's32[2]{0}', space=sflag, size = 0x8, scoped, tag = 'scoped memory for tpu_custom_call.1']
    #allocation6 [shape = 's32[2]{0}', space=sflag, size = 0x8, scoped, tag = 'scoped memory for tpu_custom_call.1']
    #allocation7 [shape = 'u8[65536]{0}', space=vmem, size = 0x10000, scoped, tag = 'output window, operand 0']
    %13 = vsyncpa [#allocation5], 0
    %14 = vsyncpa [#allocation6], 0
    %s15 = scalar_lea.sflag [#allocation6], 1
    %16 = vsyncpa %s15, 0
    loop: start=0, step=1, limit=4
    $region2: #{tpu_custom_call.1} parent=1 // loop_pre_header
      _
    $region3: #{tpu_custom_call.1} parent=1 // loop_header
      %s18 = sphi 0, %s22
      %p19 = scmp.ge.s32.totalorder %s18, 4
      %s28 = sphi 0, %s30
      %s31 = sphi 0, %s28
      %s32 = sphi 0, %s31
      %s48 = sphi 0, %s32
      %s52 = sphi 0, %s52
      %s54 = sphi 0, %s52
      %s55 = sphi 0, %s54
      %s69 = sphi 0, %s55
      %s73 = sphi 0, %s73
      %s75 = sphi 0, %s73
      %s76 = sphi 0, %s75
      %s90 = sphi 0, %s76
      %s94 = sphi 0, %s94
      %s96 = sphi 0, %s94
      %s97 = sphi 0, %s96
      %s111 = sphi 0, %s97
      %s115 = sphi 0, %s115
      %s117 = sphi 0, %s115
      %s118 = sphi 0, %s117
      %s132 = sphi 0, %s118
      %s136 = sphi 0, %s136
      %s138 = sphi 0, %s136
      %s139 = sphi 0, %s138
      %s153 = sphi 0, %s139
      %s157 = sphi 0, %s157
      %s159 = sphi 0, %s157
      %s160 = sphi 0, %s159
      %s174 = sphi 0, %s160
      %s178 = sphi 0, %s178
      %s180 = sphi 0, %s178
      %s181 = sphi 0, %s180
      %s195 = sphi 0, %s181
      %s201 = sphi 0, %s203
      %s204 = sphi 0, %s201
      %s205 = sphi 0, %s204
      %s221 = sphi 0, %s205
    $region4: #{tpu_custom_call.1} parent=1 // loop_header_branch
      %21 = sbr.rel (%p19) target = $region8
    $region5: #{tpu_custom_call.1} parent=1 // loop_body
      %s23 = ssub.s32 %s18, 1
      %s24 = ssub.s32 %s18, 2
      %s25 = sadd.s32 %s18, 1
      %s26 = ssub.s32 %s18, %s25
      %p27 = scmp.eq.s32.totalorder %s26, 0
      %s29 = sadd.s32 %s28, 1
      %s30 = scalar_select %p27, %s28, %s29
      %p33 = pneg %p27
      %p34 = scmp.eq.s32.totalorder %s18, 1
      %p35 = por %p33, %p34
      %p36 = scmp.ne.s32.totalorder %s28, %s31
      %p37 = scmp.eq.s32.totalorder %s18, 0
      %p38 = por %p36, %p37
      %p39 = scmp.ne.s32.totalorder %s28, %s31
      %p40 = scmp.eq.s32.totalorder %s23, 1
      %p41 = por %p39, %p40
      %p42 = scmp.ne.s32.totalorder %s31, %s32
      %p43 = scmp.eq.s32.totalorder %s23, 0
      %p44 = por %p42, %p43
      %p45 = scmp.ne.s32.totalorder %s31, %s32
      %p46 = scmp.eq.s32.totalorder %s24, 1
      %p47 = por %p45, %p46
      %p49 = scmp.ne.s32.totalorder %s32, %s48
      %p50 = scmp.eq.s32.totalorder %s24, 0
      %p51 = por %p49, %p50
      %s53 = sadd.s32 %s52, 1
      %p56 = scmp.eq.s32.totalorder %s18, 1
      %p57 = scmp.ne.s32.totalorder %s52, %s54
      %p58 = scmp.eq.s32.totalorder %s18, 0
      %p59 = por %p57, %p58
      %p60 = scmp.ne.s32.totalorder %s52, %s54
      %p61 = scmp.eq.s32.totalorder %s23, 1
      %p62 = por %p60, %p61
      %p63 = scmp.ne.s32.totalorder %s54, %s55
      %p64 = scmp.eq.s32.totalorder %s23, 0
      %p65 = por %p63, %p64
      %p66 = scmp.ne.s32.totalorder %s54, %s55
      %p67 = scmp.eq.s32.totalorder %s24, 1
      %p68 = por %p66, %p67
      %p70 = scmp.ne.s32.totalorder %s55, %s69
      %p71 = scmp.eq.s32.totalorder %s24, 0
      %p72 = por %p70, %p71
      %s74 = sadd.s32 %s73, 1
      %p77 = scmp.eq.s32.totalorder %s18, 1
      %p78 = scmp.ne.s32.totalorder %s73, %s75
      %p79 = scmp.eq.s32.totalorder %s18, 0
      %p80 = por %p78, %p79
      %p81 = scmp.ne.s32.totalorder %s73, %s75
      %p82 = scmp.eq.s32.totalorder %s23, 1
      %p83 = por %p81, %p82
      %p84 = scmp.ne.s32.totalorder %s75, %s76
      %p85 = scmp.eq.s32.totalorder %s23, 0
      %p86 = por %p84, %p85
      %p87 = scmp.ne.s32.totalorder %s75, %s76
      %p88 = scmp.eq.s32.totalorder %s24, 1
      %p89 = por %p87, %p88
      %p91 = scmp.ne.s32.totalorder %s76, %s90
      %p92 = scmp.eq.s32.totalorder %s24, 0
      %p93 = por %p91, %p92
      %s95 = sadd.s32 %s94, 1
      %p98 = scmp.eq.s32.totalorder %s18, 1
      %p99 = scmp.ne.s32.totalorder %s94, %s96
      %p100 = scmp.eq.s32.totalorder %s18, 0
      %p101 = por %p99, %p100
      %p102 = scmp.ne.s32.totalorder %s94, %s96
      %p103 = scmp.eq.s32.totalorder %s23, 1
      %p104 = por %p102, %p103
      %p105 = scmp.ne.s32.totalorder %s96, %s97
      %p106 = scmp.eq.s32.totalorder %s23, 0
      %p107 = por %p105, %p106
      %p108 = scmp.ne.s32.totalorder %s96, %s97
      %p109 = scmp.eq.s32.totalorder %s24, 1
      %p110 = por %p108, %p109
      %p112 = scmp.ne.s32.totalorder %s97, %s111
      %p113 = scmp.eq.s32.totalorder %s24, 0
      %p114 = por %p112, %p113
      %s116 = sadd.s32 %s115, 1
      %p119 = scmp.eq.s32.totalorder %s18, 1
      %p120 = scmp.ne.s32.totalorder %s115, %s117
      %p121 = scmp.eq.s32.totalorder %s18, 0
      %p122 = por %p120, %p121
      %p123 = scmp.ne.s32.totalorder %s115, %s117
      %p124 = scmp.eq.s32.totalorder %s23, 1
      %p125 = por %p123, %p124
      %p126 = scmp.ne.s32.totalorder %s117, %s118
      %p127 = scmp.eq.s32.totalorder %s23, 0
      %p128 = por %p126, %p127
      %p129 = scmp.ne.s32.totalorder %s117, %s118
      %p130 = scmp.eq.s32.totalorder %s24, 1
      %p131 = por %p129, %p130
      %p133 = scmp.ne.s32.totalorder %s118, %s132
      %p134 = scmp.eq.s32.totalorder %s24, 0
      %p135 = por %p133, %p134
      %s137 = sadd.s32 %s136, 1
      %p140 = scmp.eq.s32.totalorder %s18, 1
      %p141 = scmp.ne.s32.totalorder %s136, %s138
      %p142 = scmp.eq.s32.totalorder %s18, 0
      %p143 = por %p141, %p142
      %p144 = scmp.ne.s32.totalorder %s136, %s138
      %p145 = scmp.eq.s32.totalorder %s23, 1
      %p146 = por %p144, %p145
      %p147 = scmp.ne.s32.totalorder %s138, %s139
      %p148 = scmp.eq.s32.totalorder %s23, 0
      %p149 = por %p147, %p148
      %p150 = scmp.ne.s32.totalorder %s138, %s139
      %p151 = scmp.eq.s32.totalorder %s24, 1
      %p152 = por %p150, %p151
      %p154 = scmp.ne.s32.totalorder %s139, %s153
      %p155 = scmp.eq.s32.totalorder %s24, 0
      %p156 = por %p154, %p155
      %s158 = sadd.s32 %s157, 1
      %p161 = scmp.eq.s32.totalorder %s18, 1
      %p162 = scmp.ne.s32.totalorder %s157, %s159
      %p163 = scmp.eq.s32.totalorder %s18, 0
      %p164 = por %p162, %p163
      %p165 = scmp.ne.s32.totalorder %s157, %s159
      %p166 = scmp.eq.s32.totalorder %s23, 1
      %p167 = por %p165, %p166
      %p168 = scmp.ne.s32.totalorder %s159, %s160
      %p169 = scmp.eq.s32.totalorder %s23, 0
      %p170 = por %p168, %p169
      %p171 = scmp.ne.s32.totalorder %s159, %s160
      %p172 = scmp.eq.s32.totalorder %s24, 1
      %p173 = por %p171, %p172
      %p175 = scmp.ne.s32.totalorder %s160, %s174
      %p176 = scmp.eq.s32.totalorder %s24, 0
      %p177 = por %p175, %p176
      %s179 = sadd.s32 %s178, 1
      %p182 = scmp.eq.s32.totalorder %s18, 1
      %p183 = scmp.ne.s32.totalorder %s178, %s180
      %p184 = scmp.eq.s32.totalorder %s18, 0
      %p185 = por %p183, %p184
      %p186 = scmp.ne.s32.totalorder %s178, %s180
      %p187 = scmp.eq.s32.totalorder %s23, 1
      %p188 = por %p186, %p187
      %p189 = scmp.ne.s32.totalorder %s180, %s181
      %p190 = scmp.eq.s32.totalorder %s23, 0
      %p191 = por %p189, %p190
      %p192 = scmp.ne.s32.totalorder %s180, %s181
      %p193 = scmp.eq.s32.totalorder %s24, 1
      %p194 = por %p192, %p193
      %p196 = scmp.ne.s32.totalorder %s181, %s195
      %p197 = scmp.eq.s32.totalorder %s24, 0
      %p198 = por %p196, %p197
      %s199 = ssub.s32 %s18, %s25
      %p200 = scmp.eq.s32.totalorder %s199, 0
      %s202 = sadd.s32 %s201, 1
      %s203 = scalar_select %p200, %s201, %s202
      %p206 = pneg %p200
      %p207 = scmp.eq.s32.totalorder %s18, 1
      %p208 = por %p206, %p207
      %p209 = scmp.ne.s32.totalorder %s201, %s204
      %p210 = scmp.eq.s32.totalorder %s18, 0
      %p211 = por %p209, %p210
      %p212 = scmp.ne.s32.totalorder %s201, %s204
      %p213 = scmp.eq.s32.totalorder %s23, 1
      %p214 = por %p212, %p213
      %p215 = scmp.ne.s32.totalorder %s204, %s205
      %p216 = scmp.eq.s32.totalorder %s23, 0
      %p217 = por %p215, %p216
      %p218 = scmp.ne.s32.totalorder %s204, %s205
      %p219 = scmp.eq.s32.totalorder %s24, 1
      %p220 = por %p218, %p219
      %p222 = scmp.ne.s32.totalorder %s205, %s221
      %p223 = scmp.eq.s32.totalorder %s24, 0
      %p224 = por %p222, %p223
      %p225 = scmp.le.s32.totalorder 1, %s18
      %p226 = scmp.lt.s32.totalorder %s18, 3
      %p227 = pnand %p225, %p226
      %p228 = pneg %p227
      // Predicated region
      $region9: #{tpu_custom_call.1} parent=5 // pred_check
        _
      $region10: #{tpu_custom_call.1} parent=5 // pred_check_branch
        %230 = sbr.rel (%p227) target = $region12
      $region11: #{tpu_custom_call.1} parent=5 // pred_region
        %s231 = ssub.s32 %s18, 1
        // Predicated region
        $region13: #{tpu_custom_call.1} parent=11 // pred_check
          %p232 = pneg %p65
        $region14: #{tpu_custom_call.1} parent=11 // pred_check_branch
          %234 = sbr.rel (%p232) target = $region16
        $region15: #{tpu_custom_call.1} parent=11 // pred_region
          _
        $region16: #{tpu_custom_call.1} parent=11 // pred_fallthru
          _
        // Predicated region
        $region17: #{tpu_custom_call.1} parent=11 // pred_check
          %p235 = pneg %p86
        $region18: #{tpu_custom_call.1} parent=11 // pred_check_branch
          %237 = sbr.rel (%p235) target = $region20
        $region19: #{tpu_custom_call.1} parent=11 // pred_region
          _
        $region20: #{tpu_custom_call.1} parent=11 // pred_fallthru
          _
        // Predicated region
        $region21: #{tpu_custom_call.1} parent=11 // pred_check
          %p238 = pneg %p107
        $region22: #{tpu_custom_call.1} parent=11 // pred_check_branch
          %240 = sbr.rel (%p238) target = $region24
        $region23: #{tpu_custom_call.1} parent=11 // pred_region
          _
        $region24: #{tpu_custom_call.1} parent=11 // pred_fallthru
          _
        // Predicated region
        $region25: #{tpu_custom_call.1} parent=11 // pred_check
          %p241 = pneg %p128
        $region26: #{tpu_custom_call.1} parent=11 // pred_check_branch
          %243 = sbr.rel (%p241) target = $region28
        $region27: #{tpu_custom_call.1} parent=11 // pred_region
          %s245 = ssub.s32 8192, 8192
          %246 = vsyncadd [#allocation5], %s245
          %s247 = sshll.u32 [#allocation4], 4
          %s248 = int_to_ptr.vmem [resolvable:$true] %s247
          %253 = dma.hbm_to_vmem [thread:$0]  %s4, 8192, %s248, [#allocation5], 512, 512, 32
        $region28: #{tpu_custom_call.1} parent=11 // pred_fallthru
          _
        // Predicated region
        $region29: #{tpu_custom_call.1} parent=11 // pred_check
          %p254 = pneg %p149
        $region30: #{tpu_custom_call.1} parent=11 // pred_check_branch
          %256 = sbr.rel (%p254) target = $region32
        $region31: #{tpu_custom_call.1} parent=11 // pred_region
          _
        $region32: #{tpu_custom_call.1} parent=11 // pred_fallthru
          _
        // Predicated region
        $region33: #{tpu_custom_call.1} parent=11 // pred_check
          %p257 = pneg %p170
        $region34: #{tpu_custom_call.1} parent=11 // pred_check_branch
          %259 = sbr.rel (%p257) target = $region36
        $region35: #{tpu_custom_call.1} parent=11 // pred_region
          _
        $region36: #{tpu_custom_call.1} parent=11 // pred_fallthru
          _
        // Predicated region
        $region37: #{tpu_custom_call.1} parent=11 // pred_check
          %p260 = pneg %p191
        $region38: #{tpu_custom_call.1} parent=11 // pred_check_branch
          %262 = sbr.rel (%p260) target = $region40
        $region39: #{tpu_custom_call.1} parent=11 // pred_region
          _
        $region40: #{tpu_custom_call.1} parent=11 // pred_fallthru
          _
      $region12: #{tpu_custom_call.1} parent=5 // pred_fallthru
        _
      %p263 = scmp.lt.s32.totalorder %s18, 2
      // Predicated region
      $region41: #{tpu_custom_call.1} parent=5 // pred_check
        %p264 = pneg %p263
      $region42: #{tpu_custom_call.1} parent=5 // pred_check_branch
        %266 = sbr.rel (%p264) target = $region44
      $region43: #{tpu_custom_call.1} parent=5 // pred_region
        // Predicated region
        $region45: #{tpu_custom_call.1} parent=43 // pred_check
          %p267 = pneg %p38
        $region46: #{tpu_custom_call.1} parent=43 // pred_check_branch
          %269 = sbr.rel (%p267) target = $region48
        $region47: #{tpu_custom_call.1} parent=43 // pred_region
          %s270 = smul.u32 4, %s18
          %p271 = scmp.lt.s32.totalorder %s270, 7
          %s272 = scalar_select %p271, %s270, 7
          %s273 = smul.addr %s272, 4
          %s274 = scalar_lea.vmem %s0, %s273
          %s275 = smul.u32 4, %s18
        $region48: #{tpu_custom_call.1} parent=43 // pred_fallthru
          _
      $region44: #{tpu_custom_call.1} parent=5 // pred_fallthru
        _
      %p276 = scmp.le.s32.totalorder 1, %s18
      %p277 = scmp.lt.s32.totalorder %s18, 3
      %p278 = pnand %p276, %p277
      %p279 = pneg %p278
      // Predicated region
      $region49: #{tpu_custom_call.1} parent=5 // pred_check
        _
      $region50: #{tpu_custom_call.1} parent=5 // pred_check_branch
        %281 = sbr.rel (%p278) target = $region52
      $region51: #{tpu_custom_call.1} parent=5 // pred_region
        %s282 = ssub.s32 %s18, 1
        // Predicated region
        $region53: #{tpu_custom_call.1} parent=51 // pred_check
          %p283 = pneg %p128
        $region54: #{tpu_custom_call.1} parent=51 // pred_check_branch
          %285 = sbr.rel (%p283) target = $region56
        $region55: #{tpu_custom_call.1} parent=51 // pred_region
          %286 = dma.done [#allocation5], 8192
        $region56: #{tpu_custom_call.1} parent=51 // pred_fallthru
          _
        %s287 = smul.u32 4, %s23
        %p288 = scmp.lt.s32.totalorder %s287, 7
        %s289 = scalar_select %p288, %s287, 7
        %s290 = smul.addr %s289, 4
        %s291 = scalar_lea.vmem %s0, %s290
        %p292 = pneg %p44
        %p293 = pneg %p41
        %p294 = pneg %p65
        %p295 = pneg %p62
        %p296 = pneg %p86
        %p297 = pneg %p83
        %p298 = pneg %p107
        %p299 = pneg %p104
        %p300 = pneg %p128
        %p301 = pneg %p125
        %p302 = pneg %p149
        %p303 = pneg %p146
        %p304 = pneg %p170
        %p305 = pneg %p167
        %p306 = pneg %p191
        %p307 = pneg %p188
        %p308 = pneg %p217
        %p309 = pneg %p214
        %s310 = sand.u32 %s204, 1
        %s311 = scalar_lea.sflag [#allocation6], %s310
        %s312 = sand.u32 %s204, 1
        %s313 = smul.addr %s312, 64
        %s314 = scalar_lea.vmem [#allocation7], %s313
        %s315 = smul.u32 4, %s23
        %p316 = scmp.lt.s32.totalorder %s315, 7
        %s317 = scalar_select %p316, %s315, 7
        %s318 = smul.addr %s317, 4
        %s319 = scalar_lea.vmem %s0, %s318
        %s320 = smul.u32 4, %s23
        %s321 = smul.u32 4, %s23
        %v323 = vld [vmem:[%s1] sm:$0xf]
        %v324 = vld [vmem:[%s1 + $0x4] sm:$0xf]
        %v325 = vld [vmem:[%s1 + $0x8] sm:$0xf]
        %v326 = vld [vmem:[%s319] sm:$0xff]
        %v327 = vld [vmem:[%s319 + $0x8] sm:$0xff]
        %v328 = vld [vmem:[%s2] sm:$0xff]
        %v329 = vld [vmem:[%s2 + $0x8] sm:$0xff]
        %v330 = vld [vmem:[%s2 + $0x10] sm:$0xff]
        %332 = vset.pattern.permute.xlu0 0
        %333 = vperm.xlu0 %332, %v328
        %v334 = vpop.permute.xlu0 %333
        %337 = vset.pattern.permute.xlu0 0
        %338 = vperm.xlu0 %337, %v329
        %v339 = vpop.permute.xlu0 %338
        %342 = vset.pattern.permute.xlu0 0
        %343 = vperm.xlu0 %342, %v330
        %v344 = vpop.permute.xlu0 %343
        %v349 = vunpack.c.l.b16 %v323
        %v350 = vunpack.c.l.b16 %v324
        %v351 = vunpack.c.l.b16 %v325
        %v352 = vpack.c.b16 %v350, %v349
        %v353 = vpack.c.b16 %v351, %v351
        %v356 = vunpack.c.l.b16 %v326
        %v357 = vunpack.c.h.b16 %v326
        %v358 = vunpack.c.l.b16 %v327
        %v359 = vunpack.c.h.b16 %v327
        %v360 = vpack.c.b16 %v356, %v356
        %v361 = vpack.c.b16 %v357, %v357
        %v362 = vpack.c.b16 %v358, %v358
        %v363 = vpack.c.b16 %v359, %v359
        %vm364 = vcmask 64512
        %v366 = vsel %vm364, %v352, 0
        %v369 = vsel %vm364, %v353, 0
        %vm371 = vcmask 1043456
        %v373 = vsel %vm371, %v360, 0
        %v376 = vsel %vm371, %v361, 0
        %v379 = vsel %vm371, %v362, 0
        %v382 = vsel %vm371, %v363, 0
        %384 = vmatprep.subr.bf16.mxu0 %v376
        %385 = vmatpush1.bf16.msra.mxu0 %v373
        %386 = vmatprep.subr.bf16.mxu0 0
        %387 = vmatpush1.bf16.msra.mxu0 0
        %388 = vmatprep.subr.bf16.mxu0 0
        %389 = vmatpush1.bf16.msra.mxu0 0
        %390 = vmatprep.subr.bf16.mxu0 0
        %391 = vmatpush1.bf16.msra.mxu0 0
        %392 = vmatprep.subr.bf16.mxu0 0
        %393 = vmatpush1.bf16.msra.mxu0 0
        %394 = vmatprep.subr.bf16.mxu0 0
        %395 = vmatpush1.bf16.msra.mxu0 0
        %396 = vmatprep.subr.bf16.mxu0 0
        %397 = vmatpush1.bf16.msra.mxu0 0
        %398 = vmatprep.subr.bf16.mxu0 0
        %399 = vmatpush1.bf16.msra.mxu0 0
        %400 = vmatprep.subr.bf16.mxu0 0
        %401 = vmatpush1.bf16.msra.mxu0 0
        %402 = vmatprep.subr.bf16.mxu0 0
        %403 = vmatpush1.bf16.msra.mxu0 0
        %404 = vmatprep.subr.bf16.mxu0 0
        %405 = vmatpush1.bf16.msra.mxu0 0
        %406 = vmatprep.subr.bf16.mxu0 0
        %407 = vmatpush1.bf16.msra.mxu0 0
        %408 = vmatprep.subr.bf16.mxu0 0
        %409 = vmatpush1.bf16.msra.mxu0 0
        %410 = vmatprep.subr.bf16.mxu0 0
        %411 = vmatpush1.bf16.msra.mxu0 0
        %412 = vmatprep.subr.bf16.mxu0 0
        %413 = vmatpush1.bf16.msra.mxu0 0
        %414 = vmatprep.subr.bf16.mxu0 0
        %415 = vmatpush1.bf16.msra.mxu0 0
        %416 = vmatprep.mubr.bf16.mxu0 0
        %417 = vmatmul.mubr.bf16.gmra.mrb[0].mxu0 %v366
        %v418 = vpop.f32.mrb[0].mxu0
        %v419 = vadd.f32 %v334, %v418
        %v420 = vpop.f32.mrb[0].mxu0
        %v421 = vadd.f32 %v334, %v420
        %v422 = vpop.f32.mrb[0].mxu0
        %v423 = vadd.f32 %v339, %v422
        %v424 = vpop.f32.mrb[0].mxu0
        %v425 = vadd.f32 %v339, %v424
        %426 = vmatprep.mubr.bf16.mxu0 0
        %427 = vmatmul.mubr.bf16.gmra.mrb[0].mxu0 %v369
        %v428 = vpop.f32.mrb[0].mxu0
        %v429 = vadd.f32 %v344, %v428
        %v430 = vpop.f32.mrb[0].mxu0
        %v431 = vadd.f32 %v344, %v430
        %v432 = vpop.f32.mrb[0].mxu0
        %v433 = vpop.f32.mrb[0].mxu0
        %434 = vdwg.mxu0
        %435 = vmatprep.subr.bf16.mxu0 %v382
        %436 = vmatpush1.bf16.msra.mxu0 %v379
        %437 = vmatprep.subr.bf16.mxu0 0
        %438 = vmatpush1.bf16.msra.mxu0 0
        %439 = vmatprep.subr.bf16.mxu0 0
        %440 = vmatpush1.bf16.msra.mxu0 0
        %441 = vmatprep.subr.bf16.mxu0 0
        %442 = vmatpush1.bf16.msra.mxu0 0
        %443 = vmatprep.subr.bf16.mxu0 0
        %444 = vmatpush1.bf16.msra.mxu0 0
        %445 = vmatprep.subr.bf16.mxu0 0
        %446 = vmatpush1.bf16.msra.mxu0 0
        %447 = vmatprep.subr.bf16.mxu0 0
        %448 = vmatpush1.bf16.msra.mxu0 0
        %449 = vmatprep.subr.bf16.mxu0 0
        %450 = vmatpush1.bf16.msra.mxu0 0
        %451 = vmatprep.subr.bf16.mxu0 0
        %452 = vmatpush1.bf16.msra.mxu0 0
        %453 = vmatprep.subr.bf16.mxu0 0
        %454 = vmatpush1.bf16.msra.mxu0 0
        %455 = vmatprep.subr.bf16.mxu0 0
        %456 = vmatpush1.bf16.msra.mxu0 0
        %457 = vmatprep.subr.bf16.mxu0 0
        %458 = vmatpush1.bf16.msra.mxu0 0
        %459 = vmatprep.subr.bf16.mxu0 0
        %460 = vmatpush1.bf16.msra.mxu0 0
        %461 = vmatprep.subr.bf16.mxu0 0
        %462 = vmatpush1.bf16.msra.mxu0 0
        %463 = vmatprep.subr.bf16.mxu0 0
        %464 = vmatpush1.bf16.msra.mxu0 0
        %465 = vmatprep.subr.bf16.mxu0 0
        %466 = vmatpush1.bf16.msra.mxu0 0
        %467 = vmatprep.mubr.bf16.mxu0 0
        %468 = vmatmul.mubr.bf16.gmra.mrb[0].mxu0 %v366
        %v469 = vpop.f32.mrb[0].mxu0
        %v470 = vadd.f32 %v334, %v469
        %v471 = vpop.f32.mrb[0].mxu0
        %v472 = vadd.f32 %v334, %v471
        %v473 = vpop.f32.mrb[0].mxu0
        %v474 = vadd.f32 %v339, %v473
        %v475 = vpop.f32.mrb[0].mxu0
        %v476 = vadd.f32 %v339, %v475
        %477 = vmatprep.mubr.bf16.mxu0 0
        %478 = vmatmul.mubr.bf16.gmra.mrb[0].mxu0 %v369
        %v479 = vpop.f32.mrb[0].mxu0
        %v480 = vadd.f32 %v344, %v479
        %v481 = vpop.f32.mrb[0].mxu0
        %v482 = vadd.f32 %v344, %v481
        %v483 = vpop.f32.mrb[0].mxu0
        %v484 = vpop.f32.mrb[0].mxu0
        %485 = vdwg.mxu0
        %v486 = vmax.f32 %v419, 0.0
        %v487 = vmax.f32 %v421, 0.0
        %v488 = vmax.f32 %v470, 0.0
        %v489 = vmax.f32 %v472, 0.0
        %v490 = vmax.f32 %v423, 0.0
        %v491 = vmax.f32 %v425, 0.0
        %v492 = vmax.f32 %v474, 0.0
        %v493 = vmax.f32 %v476, 0.0
        %v494 = vmax.f32 %v429, 0.0
        %v495 = vmax.f32 %v431, 0.0
        %v496 = vmax.f32 %v480, 0.0
        %v497 = vmax.f32 %v482, 0.0
        %v498 = vpack.c.bf16 %v494, %v494
        %v499 = vpack.c.bf16 %v495, %v495
        %v500 = vpack.c.bf16 %v496, %v496
        %v501 = vpack.c.bf16 %v497, %v497
        %v502 = vld [vmem:[%s3] sm:$0xf]
        %v503 = vld [vmem:[%s3 + $0x4] sm:$0xf]
        %v504 = vld [vmem:[%s3 + $0x8] sm:$0xf]
        %v505 = vld [vmem:[%s3 + $0xc] sm:$0xf]
        %v506 = vld [vmem:[%s3 + $0x10] sm:$0xf]
        %v507 = vld [vmem:[%s3 + $0x14] sm:$0xf]
        %v508 = vld [vmem:[%s3 + $0x18] sm:$0xf]
        %v509 = vld [vmem:[%s3 + $0x1c] sm:$0xf]
        %v510 = vld [vmem:[%s3 + $0x20] sm:$0xf]
        %v511 = vld [vmem:[%s3 + $0x24] sm:$0xf]
        %v512 = vld [vmem:[%s3 + $0x28] sm:$0xf]
        %v513 = vld [vmem:[%s3 + $0x2c] sm:$0xf]
        %v514 = vld [vmem:[%s3 + $0x30] sm:$0xf]
        %v515 = vld [vmem:[%s3 + $0x34] sm:$0xf]
        %v516 = vld [vmem:[%s3 + $0x38] sm:$0xf]
        %v517 = vld [vmem:[%s3 + $0x3c] sm:$0xf]
        %v518 = vld [vmem:[%s3 + $0x40] sm:$0xf]
        %v519 = vld [vmem:[%s3 + $0x44] sm:$0xf]
        %v520 = vld [vmem:[%s3 + $0x48] sm:$0xf]
        %v521 = vld [vmem:[%s3 + $0x4c] sm:$0xf]
        %v522 = vld [vmem:[%s3 + $0x50] sm:$0xf]
        %v523 = vld [vmem:[%s3 + $0x54] sm:$0xf]
        %v524 = vld [vmem:[%s3 + $0x58] sm:$0xf]
        %v525 = vld [vmem:[%s3 + $0x5c] sm:$0xf]
        %v526 = vld [vmem:[%s3 + $0x60] sm:$0xf]
        %v527 = vld [vmem:[%s3 + $0x64] sm:$0xf]
        %v528 = vld [vmem:[%s3 + $0x68] sm:$0xf]
        %v529 = vld [vmem:[%s3 + $0x6c] sm:$0xf]
        %v530 = vld [vmem:[%s3 + $0x70] sm:$0xf]
        %v531 = vld [vmem:[%s3 + $0x74] sm:$0xf]
        %v532 = vld [vmem:[%s3 + $0x78] sm:$0xf]
        %v533 = vld [vmem:[%s3 + $0x7c] sm:$0xf]
        %v534 = vld [vmem:[%s3 + $0x80] sm:$0xf]
        %v535 = vld [vmem:[%s3 + $0x84] sm:$0xf]
        %v536 = vld [vmem:[%s3 + $0x88] sm:$0xf]
        %v537 = vld [vmem:[%s3 + $0x8c] sm:$0xf]
        %v538 = vld [vmem:[%s3 + $0x90] sm:$0xf]
        %v539 = vld [vmem:[%s3 + $0x94] sm:$0xf]
        %v540 = vld [vmem:[%s3 + $0x98] sm:$0xf]
        %v541 = vld [vmem:[%s3 + $0x9c] sm:$0xf]
        %v542 = vld [vmem:[%s3 + $0xa0] sm:$0xf]
        %v543 = vld [vmem:[%s3 + $0xa4] sm:$0xf]
        %v544 = vld [vmem:[%s3 + $0xa8] sm:$0xf]
        %v545 = vld [vmem:[%s3 + $0xac] sm:$0xf]
        %v546 = vld [vmem:[%s3 + $0xb0] sm:$0xf]
        %v547 = vld [vmem:[%s3 + $0xb4] sm:$0xf]
        %v548 = vld [vmem:[%s3 + $0xb8] sm:$0xf]
        %v549 = vld [vmem:[%s3 + $0xbc] sm:$0xf]
        %v598 = vunpack.c.l.b16 %v502
        %v599 = vunpack.c.l.b16 %v503
        %v600 = vunpack.c.l.b16 %v504
        %v601 = vunpack.c.l.b16 %v505
        %v602 = vunpack.c.l.b16 %v506
        %v603 = vunpack.c.l.b16 %v507
        %v604 = vunpack.c.l.b16 %v508
        %v605 = vunpack.c.l.b16 %v509
        %v606 = vunpack.c.l.b16 %v510
        %v607 = vunpack.c.l.b16 %v511
        %v608 = vunpack.c.l.b16 %v512
        %v609 = vunpack.c.l.b16 %v513
        %v610 = vunpack.c.l.b16 %v514
        %v611 = vunpack.c.l.b16 %v515
        %v612 = vunpack.c.l.b16 %v516
        %v613 = vunpack.c.l.b16 %v517
        %v614 = vunpack.c.l.b16 %v518
        %v615 = vunpack.c.l.b16 %v519
        %v616 = vunpack.c.l.b16 %v520
        %v617 = vunpack.c.l.b16 %v521
        %v618 = vunpack.c.l.b16 %v522
        %v619 = vunpack.c.l.b16 %v523
        %v620 = vunpack.c.l.b16 %v524
        %v621 = vunpack.c.l.b16 %v525
        %v622 = vunpack.c.l.b16 %v526
        %v623 = vunpack.c.l.b16 %v527
        %v624 = vunpack.c.l.b16 %v528
        %v625 = vunpack.c.l.b16 %v529
        %v626 = vunpack.c.l.b16 %v530
        %v627 = vunpack.c.l.b16 %v531
        %v628 = vunpack.c.l.b16 %v532
        %v629 = vunpack.c.l.b16 %v533
        %v630 = vunpack.c.l.b16 %v534
        %v631 = vunpack.c.l.b16 %v535
        %v632 = vunpack.c.l.b16 %v536
        %v633 = vunpack.c.l.b16 %v537
        %v634 = vunpack.c.l.b16 %v538
        %v635 = vunpack.c.l.b16 %v539
        %v636 = vunpack.c.l.b16 %v540
        %v637 = vunpack.c.l.b16 %v541
        %v638 = vunpack.c.l.b16 %v542
        %v639 = vunpack.c.l.b16 %v543
        %v640 = vunpack.c.l.b16 %v544
        %v641 = vunpack.c.l.b16 %v545
        %v642 = vunpack.c.l.b16 %v546
        %v643 = vunpack.c.l.b16 %v547
        %v644 = vunpack.c.l.b16 %v548
        %v645 = vunpack.c.l.b16 %v549
        %v646 = vpack.c.b16 %v599, %v598
        %v647 = vpack.c.b16 %v601, %v600
        %v648 = vpack.c.b16 %v603, %v602
        %v649 = vpack.c.b16 %v605, %v604
        %v650 = vpack.c.b16 %v607, %v606
        %v651 = vpack.c.b16 %v609, %v608
        %v652 = vpack.c.b16 %v611, %v610
        %v653 = vpack.c.b16 %v613, %v612
        %v654 = vpack.c.b16 %v615, %v614
        %v655 = vpack.c.b16 %v617, %v616
        %v656 = vpack.c.b16 %v619, %v618
        %v657 = vpack.c.b16 %v621, %v620
        %v658 = vpack.c.b16 %v623, %v622
        %v659 = vpack.c.b16 %v625, %v624
        %v660 = vpack.c.b16 %v627, %v626
        %v661 = vpack.c.b16 %v629, %v628
        %v662 = vpack.c.b16 %v631, %v630
        %v663 = vpack.c.b16 %v633, %v632
        %v664 = vpack.c.b16 %v635, %v634
        %v665 = vpack.c.b16 %v637, %v636
        %v666 = vpack.c.b16 %v639, %v638
        %v667 = vpack.c.b16 %v641, %v640
        %v668 = vpack.c.b16 %v643, %v642
        %v669 = vpack.c.b16 %v645, %v644
        %v671 = vsel %vm364, %v646, 0
        %v674 = vsel %vm364, %v647, 0
        %v677 = vsel %vm364, %v648, 0
        %v680 = vsel %vm364, %v649, 0
        %v683 = vsel %vm364, %v650, 0
        %v686 = vsel %vm364, %v651, 0
        %v689 = vsel %vm364, %v652, 0
        %v692 = vsel %vm364, %v653, 0
        %v695 = vsel %vm364, %v654, 0
        %v698 = vsel %vm364, %v655, 0
        %v701 = vsel %vm364, %v656, 0
        %v704 = vsel %vm364, %v657, 0
        %v707 = vsel %vm364, %v658, 0
        %v710 = vsel %vm364, %v659, 0
        %v713 = vsel %vm364, %v660, 0
        %v716 = vsel %vm364, %v661, 0
        %v719 = vsel %vm364, %v662, 0
        %v722 = vsel %vm364, %v663, 0
        %v725 = vsel %vm364, %v664, 0
        %v728 = vsel %vm364, %v665, 0
        %v731 = vsel %vm364, %v666, 0
        %v734 = vsel %vm364, %v667, 0
        %v737 = vsel %vm364, %v668, 0
        %v740 = vsel %vm364, %v669, 0
        %v743 = vsel %vm371, %v498, 0
        %v746 = vsel %vm371, %v499, 0
        %v749 = vsel %vm371, %v500, 0
        %v752 = vsel %vm371, %v501, 0
        %754 = vmatprep.subr.bf16.mxu0 %v746
        %755 = vmatpush1.bf16.msra.mxu0 %v743
        %756 = vmatprep.subr.bf16.mxu0 0
        %757 = vmatpush1.bf16.msra.mxu0 0
        %758 = vmatprep.subr.bf16.mxu0 0
        %759 = vmatpush1.bf16.msra.mxu0 0
        %760 = vmatprep.subr.bf16.mxu0 0
        %761 = vmatpush1.bf16.msra.mxu0 0
        %762 = vmatprep.subr.bf16.mxu0 0
        %763 = vmatpush1.bf16.msra.mxu0 0
        %764 = vmatprep.subr.bf16.mxu0 0
        %765 = vmatpush1.bf16.msra.mxu0 0
        %766 = vmatprep.subr.bf16.mxu0 0
        %767 = vmatpush1.bf16.msra.mxu0 0
        %768 = vmatprep.subr.bf16.mxu0 0
        %769 = vmatpush1.bf16.msra.mxu0 0
        %770 = vmatprep.subr.bf16.mxu0 0
        %771 = vmatpush1.bf16.msra.mxu0 0
        %772 = vmatprep.subr.bf16.mxu0 0
        %773 = vmatpush1.bf16.msra.mxu0 0
        %774 = vmatprep.subr.bf16.mxu0 0
        %775 = vmatpush1.bf16.msra.mxu0 0
        %776 = vmatprep.subr.bf16.mxu0 0
        %777 = vmatpush1.bf16.msra.mxu0 0
        %778 = vmatprep.subr.bf16.mxu0 0
        %779 = vmatpush1.bf16.msra.mxu0 0
        %780 = vmatprep.subr.bf16.mxu0 0
        %781 = vmatpush1.bf16.msra.mxu0 0
        %782 = vmatprep.subr.bf16.mxu0 0
        %783 = vmatpush1.bf16.msra.mxu0 0
        %784 = vmatprep.subr.bf16.mxu0 0
        %785 = vmatpush1.bf16.msra.mxu0 0
        %786 = vmatprep.mubr.bf16.mxu0 0
        %787 = vmatmul.mubr.bf16.gmra.mrb[0].mxu0 %v671
        %v788 = vpop.f32.mrb[0].mxu0
        %v789 = vadd.f32 0.0, %v788
        %v790 = vpop.f32.mrb[0].mxu0
        %v791 = vadd.f32 0.0, %v790
        %v792 = vpop.f32.mrb[0].mxu0
        %v793 = vadd.f32 0.0, %v792
        %v794 = vpop.f32.mrb[0].mxu0
        %v795 = vadd.f32 0.0, %v794
        %796 = vmatprep.mubr.bf16.mxu0 0
        %797 = vmatmul.mubr.bf16.gmra.mrb[0].mxu0 %v674
        %v798 = vpop.f32.mrb[0].mxu0
        %v799 = vadd.f32 0.0, %v798
        %v800 = vpop.f32.mrb[0].mxu0
        %v801 = vadd.f32 0.0, %v800
        %v802 = vpop.f32.mrb[0].mxu0
        %v803 = vadd.f32 0.0, %v802
        %v804 = vpop.f32.mrb[0].mxu0
        %v805 = vadd.f32 0.0, %v804
        %806 = vmatprep.mubr.bf16.mxu0 0
        %807 = vmatmul.mubr.bf16.gmra.mrb[0].mxu0 %v677
        %v808 = vpop.f32.mrb[0].mxu0
        %v809 = vadd.f32 0.0, %v808
        %v810 = vpop.f32.mrb[0].mxu0
        %v811 = vadd.f32 0.0, %v810
        %v812 = vpop.f32.mrb[0].mxu0
        %v813 = vadd.f32 0.0, %v812
        %v814 = vpop.f32.mrb[0].mxu0
        %v815 = vadd.f32 0.0, %v814
        %816 = vmatprep.mubr.bf16.mxu0 0
        %817 = vmatmul.mubr.bf16.gmra.mrb[0].mxu0 %v680
        %v818 = vpop.f32.mrb[0].mxu0
        %v819 = vadd.f32 0.0, %v818
        %v820 = vpop.f32.mrb[0].mxu0
        %v821 = vadd.f32 0.0, %v820
        %v822 = vpop.f32.mrb[0].mxu0
        %v823 = vadd.f32 0.0, %v822
        %v824 = vpop.f32.mrb[0].mxu0
        %v825 = vadd.f32 0.0, %v824
        %826 = vmatprep.mubr.bf16.mxu0 0
        %827 = vmatmul.mubr.bf16.gmra.mrb[0].mxu0 %v683
        %v828 = vpop.f32.mrb[0].mxu0
        %v829 = vadd.f32 0.0, %v828
        %v830 = vpop.f32.mrb[0].mxu0
        %v831 = vadd.f32 0.0, %v830
        %v832 = vpop.f32.mrb[0].mxu0
        %v833 = vadd.f32 0.0, %v832
        %v834 = vpop.f32.mrb[0].mxu0
        %v835 = vadd.f32 0.0, %v834
        %836 = vmatprep.mubr.bf16.mxu0 0
        %837 = vmatmul.mubr.bf16.gmra.mrb[0].mxu0 %v686
        %v838 = vpop.f32.mrb[0].mxu0
        %v839 = vadd.f32 0.0, %v838
        %v840 = vpop.f32.mrb[0].mxu0
        %v841 = vadd.f32 0.0, %v840
        %v842 = vpop.f32.mrb[0].mxu0
        %v843 = vadd.f32 0.0, %v842
        %v844 = vpop.f32.mrb[0].mxu0
        %v845 = vadd.f32 0.0, %v844
        %846 = vmatprep.mubr.bf16.mxu0 0
        %847 = vmatmul.mubr.bf16.gmra.mrb[0].mxu0 %v689
        %v848 = vpop.f32.mrb[0].mxu0
        %v849 = vadd.f32 0.0, %v848
        %v850 = vpop.f32.mrb[0].mxu0
        %v851 = vadd.f32 0.0, %v850
        %v852 = vpop.f32.mrb[0].mxu0
        %v853 = vadd.f32 0.0, %v852
        %v854 = vpop.f32.mrb[0].mxu0
        %v855 = vadd.f32 0.0, %v854
        %856 = vmatprep.mubr.bf16.mxu0 0
        %857 = vmatmul.mubr.bf16.gmra.mrb[0].mxu0 %v692
        %v858 = vpop.f32.mrb[0].mxu0
        %v859 = vadd.f32 0.0, %v858
        %v860 = vpop.f32.mrb[0].mxu0
        %v861 = vadd.f32 0.0, %v860
        %v862 = vpop.f32.mrb[0].mxu0
        %v863 = vadd.f32 0.0, %v862
        %v864 = vpop.f32.mrb[0].mxu0
        %v865 = vadd.f32 0.0, %v864
        %866 = vmatprep.mubr.bf16.mxu0 0
        %867 = vmatmul.mubr.bf16.gmra.mrb[0].mxu0 %v695
        %v868 = vpop.f32.mrb[0].mxu0
        %v869 = vadd.f32 0.0, %v868
        %v870 = vpop.f32.mrb[0].mxu0
        %v871 = vadd.f32 0.0, %v870
        %v872 = vpop.f32.mrb[0].mxu0
        %v873 = vadd.f32 0.0, %v872
        %v874 = vpop.f32.mrb[0].mxu0
        %v875 = vadd.f32 0.0, %v874
        %876 = vmatprep.mubr.bf16.mxu0 0
        %877 = vmatmul.mubr.bf16.gmra.mrb[0].mxu0 %v698
        %v878 = vpop.f32.mrb[0].mxu0
        %v879 = vadd.f32 0.0, %v878
        %v880 = vpop.f32.mrb[0].mxu0
        %v881 = vadd.f32 0.0, %v880
        %v882 = vpop.f32.mrb[0].mxu0
        %v883 = vadd.f32 0.0, %v882
        %v884 = vpop.f32.mrb[0].mxu0
        %v885 = vadd.f32 0.0, %v884
        %886 = vmatprep.mubr.bf16.mxu0 0
        %887 = vmatmul.mubr.bf16.gmra.mrb[0].mxu0 %v701
        %v888 = vpop.f32.mrb[0].mxu0
        %v889 = vadd.f32 0.0, %v888
        %v890 = vpop.f32.mrb[0].mxu0
        %v891 = vadd.f32 0.0, %v890
        %v892 = vpop.f32.mrb[0].mxu0
        %v893 = vadd.f32 0.0, %v892
        %v894 = vpop.f32.mrb[0].mxu0
        %v895 = vadd.f32 0.0, %v894
        %896 = vmatprep.mubr.bf16.mxu0 0
        %897 = vmatmul.mubr.bf16.gmra.mrb[0].mxu0 %v704
        %v898 = vpop.f32.mrb[0].mxu0
        %v899 = vadd.f32 0.0, %v898
        %v900 = vpop.f32.mrb[0].mxu0
        %v901 = vadd.f32 0.0, %v900
        %v902 = vpop.f32.mrb[0].mxu0
        %v903 = vadd.f32 0.0, %v902
        %v904 = vpop.f32.mrb[0].mxu0
        %v905 = vadd.f32 0.0, %v904
        %906 = vmatprep.mubr.bf16.mxu0 0
        %907 = vmatmul.mubr.bf16.gmra.mrb[0].mxu0 %v707
        %v908 = vpop.f32.mrb[0].mxu0
        %v909 = vadd.f32 0.0, %v908
        %v910 = vpop.f32.mrb[0].mxu0
        %v911 = vadd.f32 0.0, %v910
        %v912 = vpop.f32.mrb[0].mxu0
        %v913 = vadd.f32 0.0, %v912
        %v914 = vpop.f32.mrb[0].mxu0
        %v915 = vadd.f32 0.0, %v914
        %916 = vmatprep.mubr.bf16.mxu0 0
        %917 = vmatmul.mubr.bf16.gmra.mrb[0].mxu0 %v710
        %v918 = vpop.f32.mrb[0].mxu0
        %v919 = vadd.f32 0.0, %v918
        %v920 = vpop.f32.mrb[0].mxu0
        %v921 = vadd.f32 0.0, %v920
        %v922 = vpop.f32.mrb[0].mxu0
        %v923 = vadd.f32 0.0, %v922
        %v924 = vpop.f32.mrb[0].mxu0
        %v925 = vadd.f32 0.0, %v924
        %926 = vmatprep.mubr.bf16.mxu0 0
        %927 = vmatmul.mubr.bf16.gmra.mrb[0].mxu0 %v713
        %v928 = vpop.f32.mrb[0].mxu0
        %v929 = vadd.f32 0.0, %v928
        %v930 = vpop.f32.mrb[0].mxu0
        %v931 = vadd.f32 0.0, %v930
        %v932 = vpop.f32.mrb[0].mxu0
        %v933 = vadd.f32 0.0, %v932
        %v934 = vpop.f32.mrb[0].mxu0
        %v935 = vadd.f32 0.0, %v934
        %936 = vmatprep.mubr.bf16.mxu0 0
        %937 = vmatmul.mubr.bf16.gmra.mrb[0].mxu0 %v716
        %v938 = vpop.f32.mrb[0].mxu0
        %v939 = vadd.f32 0.0, %v938
        %v940 = vpop.f32.mrb[0].mxu0
        %v941 = vadd.f32 0.0, %v940
        %v942 = vpop.f32.mrb[0].mxu0
        %v943 = vadd.f32 0.0, %v942
        %v944 = vpop.f32.mrb[0].mxu0
        %v945 = vadd.f32 0.0, %v944
        %946 = vmatprep.mubr.bf16.mxu0 0
        %947 = vmatmul.mubr.bf16.gmra.mrb[0].mxu0 %v719
        %v948 = vpop.f32.mrb[0].mxu0
        %v949 = vadd.f32 0.0, %v948
        %v950 = vpop.f32.mrb[0].mxu0
        %v951 = vadd.f32 0.0, %v950
        %v952 = vpop.f32.mrb[0].mxu0
        %v953 = vadd.f32 0.0, %v952
        %v954 = vpop.f32.mrb[0].mxu0
        %v955 = vadd.f32 0.0, %v954
        %956 = vmatprep.mubr.bf16.mxu0 0
        %957 = vmatmul.mubr.bf16.gmra.mrb[0].mxu0 %v722
        %v958 = vpop.f32.mrb[0].mxu0
        %v959 = vadd.f32 0.0, %v958
        %v960 = vpop.f32.mrb[0].mxu0
        %v961 = vadd.f32 0.0, %v960
        %v962 = vpop.f32.mrb[0].mxu0
        %v963 = vadd.f32 0.0, %v962
        %v964 = vpop.f32.mrb[0].mxu0
        %v965 = vadd.f32 0.0, %v964
        %966 = vmatprep.mubr.bf16.mxu0 0
        %967 = vmatmul.mubr.bf16.gmra.mrb[0].mxu0 %v725
        %v968 = vpop.f32.mrb[0].mxu0
        %v969 = vadd.f32 0.0, %v968
        %v970 = vpop.f32.mrb[0].mxu0
        %v971 = vadd.f32 0.0, %v970
        %v972 = vpop.f32.mrb[0].mxu0
        %v973 = vadd.f32 0.0, %v972
        %v974 = vpop.f32.mrb[0].mxu0
        %v975 = vadd.f32 0.0, %v974
        %976 = vmatprep.mubr.bf16.mxu0 0
        %977 = vmatmul.mubr.bf16.gmra.mrb[0].mxu0 %v728
        %v978 = vpop.f32.mrb[0].mxu0
        %v979 = vadd.f32 0.0, %v978
        %v980 = vpop.f32.mrb[0].mxu0
        %v981 = vadd.f32 0.0, %v980
        %v982 = vpop.f32.mrb[0].mxu0
        %v983 = vadd.f32 0.0, %v982
        %v984 = vpop.f32.mrb[0].mxu0
        %v985 = vadd.f32 0.0, %v984
        %986 = vmatprep.mubr.bf16.mxu0 0
        %987 = vmatmul.mubr.bf16.gmra.mrb[0].mxu0 %v731
        %v988 = vpop.f32.mrb[0].mxu0
        %v989 = vadd.f32 0.0, %v988
        %v990 = vpop.f32.mrb[0].mxu0
        %v991 = vadd.f32 0.0, %v990
        %v992 = vpop.f32.mrb[0].mxu0
        %v993 = vadd.f32 0.0, %v992
        %v994 = vpop.f32.mrb[0].mxu0
        %v995 = vadd.f32 0.0, %v994
        %996 = vmatprep.mubr.bf16.mxu0 0
        %997 = vmatmul.mubr.bf16.gmra.mrb[0].mxu0 %v734
        %v998 = vpop.f32.mrb[0].mxu0
        %v999 = vadd.f32 0.0, %v998
        %v1000 = vpop.f32.mrb[0].mxu0
        %v1001 = vadd.f32 0.0, %v1000
        %v1002 = vpop.f32.mrb[0].mxu0
        %v1003 = vadd.f32 0.0, %v1002
        %v1004 = vpop.f32.mrb[0].mxu0
        %v1005 = vadd.f32 0.0, %v1004
        %1006 = vmatprep.mubr.bf16.mxu0 0
        %1007 = vmatmul.mubr.bf16.gmra.mrb[0].mxu0 %v737
        %v1008 = vpop.f32.mrb[0].mxu0
        %v1009 = vadd.f32 0.0, %v1008
        %v1010 = vpop.f32.mrb[0].mxu0
        %v1011 = vadd.f32 0.0, %v1010
        %v1012 = vpop.f32.mrb[0].mxu0
        %v1013 = vadd.f32 0.0, %v1012
        %v1014 = vpop.f32.mrb[0].mxu0
        %v1015 = vadd.f32 0.0, %v1014
        %1016 = vmatprep.mubr.bf16.mxu0 0
        %1017 = vmatmul.mubr.bf16.gmra.mrb[0].mxu0 %v740
        %v1018 = vpop.f32.mrb[0].mxu0
        %v1019 = vadd.f32 0.0, %v1018
        %v1020 = vpop.f32.mrb[0].mxu0
        %v1021 = vadd.f32 0.0, %v1020
        %v1022 = vpop.f32.mrb[0].mxu0
        %v1023 = vadd.f32 0.0, %v1022
        %v1024 = vpop.f32.mrb[0].mxu0
        %v1025 = vadd.f32 0.0, %v1024
        %1026 = vdwg.mxu0
        %1027 = vmatprep.subr.bf16.mxu0 %v752
        %1028 = vmatpush1.bf16.msra.mxu0 %v749
        %1029 = vmatprep.subr.bf16.mxu0 0
        %1030 = vmatpush1.bf16.msra.mxu0 0
        %1031 = vmatprep.subr.bf16.mxu0 0
        %1032 = vmatpush1.bf16.msra.mxu0 0
        %1033 = vmatprep.subr.bf16.mxu0 0
        %1034 = vmatpush1.bf16.msra.mxu0 0
        %1035 = vmatprep.subr.bf16.mxu0 0
        %1036 = vmatpush1.bf16.msra.mxu0 0
        %1037 = vmatprep.subr.bf16.mxu0 0
        %1038 = vmatpush1.bf16.msra.mxu0 0
        %1039 = vmatprep.subr.bf16.mxu0 0
        %1040 = vmatpush1.bf16.msra.mxu0 0
        %1041 = vmatprep.subr.bf16.mxu0 0
        %1042 = vmatpush1.bf16.msra.mxu0 0
        %1043 = vmatprep.subr.bf16.mxu0 0
        %1044 = vmatpush1.bf16.msra.mxu0 0
        %1045 = vmatprep.subr.bf16.mxu0 0
        %1046 = vmatpush1.bf16.msra.mxu0 0
        %1047 = vmatprep.subr.bf16.mxu0 0
        %1048 = vmatpush1.bf16.msra.mxu0 0
        %1049 = vmatprep.subr.bf16.mxu0 0
        %1050 = vmatpush1.bf16.msra.mxu0 0
        %1051 = vmatprep.subr.bf16.mxu0 0
        %1052 = vmatpush1.bf16.msra.mxu0 0
        %1053 = vmatprep.subr.bf16.mxu0 0
        %1054 = vmatpush1.bf16.msra.mxu0 0
        %1055 = vmatprep.subr.bf16.mxu0 0
        %1056 = vmatpush1.bf16.msra.mxu0 0
        %1057 = vmatprep.subr.bf16.mxu0 0
        %1058 = vmatpush1.bf16.msra.mxu0 0
        %1059 = vmatprep.mubr.bf16.mxu0 0
        %1060 = vmatmul.mubr.bf16.gmra.mrb[0].mxu0 %v671
        %v1061 = vpop.f32.mrb[0].mxu0
        %v1062 = vadd.f32 0.0, %v1061
        %v1063 = vpop.f32.mrb[0].mxu0
        %v1064 = vadd.f32 0.0, %v1063
        %v1065 = vpop.f32.mrb[0].mxu0
        %v1066 = vadd.f32 0.0, %v1065
        %v1067 = vpop.f32.mrb[0].mxu0
        %v1068 = vadd.f32 0.0, %v1067
        %1069 = vmatprep.mubr.bf16.mxu0 0
        %1070 = vmatmul.mubr.bf16.gmra.mrb[0].mxu0 %v674
        %v1071 = vpop.f32.mrb[0].mxu0
        %v1072 = vadd.f32 0.0, %v1071
        %v1073 = vpop.f32.mrb[0].mxu0
        %v1074 = vadd.f32 0.0, %v1073
        %v1075 = vpop.f32.mrb[0].mxu0
        %v1076 = vadd.f32 0.0, %v1075
        %v1077 = vpop.f32.mrb[0].mxu0
        %v1078 = vadd.f32 0.0, %v1077
        %1079 = vmatprep.mubr.bf16.mxu0 0
        %1080 = vmatmul.mubr.bf16.gmra.mrb[0].mxu0 %v677
        %v1081 = vpop.f32.mrb[0].mxu0
        %v1082 = vadd.f32 0.0, %v1081
        %v1083 = vpop.f32.mrb[0].mxu0
        %v1084 = vadd.f32 0.0, %v1083
        %v1085 = vpop.f32.mrb[0].mxu0
        %v1086 = vadd.f32 0.0, %v1085
        %v1087 = vpop.f32.mrb[0].mxu0
        %v1088 = vadd.f32 0.0, %v1087
        %1089 = vmatprep.mubr.bf16.mxu0 0
        %1090 = vmatmul.mubr.bf16.gmra.mrb[0].mxu0 %v680
        %v1091 = vpop.f32.mrb[0].mxu0
        %v1092 = vadd.f32 0.0, %v1091
        %v1093 = vpop.f32.mrb[0].mxu0
        %v1094 = vadd.f32 0.0, %v1093
        %v1095 = vpop.f32.mrb[0].mxu0
        %v1096 = vadd.f32 0.0, %v1095
        %v1097 = vpop.f32.mrb[0].mxu0
        %v1098 = vadd.f32 0.0, %v1097
        %1099 = vmatprep.mubr.bf16.mxu0 0
        %1100 = vmatmul.mubr.bf16.gmra.mrb[0].mxu0 %v683
        %v1101 = vpop.f32.mrb[0].mxu0
        %v1102 = vadd.f32 0.0, %v1101
        %v1103 = vpop.f32.mrb[0].mxu0
        %v1104 = vadd.f32 0.0, %v1103
        %v1105 = vpop.f32.mrb[0].mxu0
        %v1106 = vadd.f32 0.0, %v1105
        %v1107 = vpop.f32.mrb[0].mxu0
        %v1108 = vadd.f32 0.0, %v1107
        %1109 = vmatprep.mubr.bf16.mxu0 0
        %1110 = vmatmul.mubr.bf16.gmra.mrb[0].mxu0 %v686
        %v1111 = vpop.f32.mrb[0].mxu0
        %v1112 = vadd.f32 0.0, %v1111
        %v1113 = vpop.f32.mrb[0].mxu0
        %v1114 = vadd.f32 0.0, %v1113
        %v1115 = vpop.f32.mrb[0].mxu0
        %v1116 = vadd.f32 0.0, %v1115
        %v1117 = vpop.f32.mrb[0].mxu0
        %v1118 = vadd.f32 0.0, %v1117
        %1119 = vmatprep.mubr.bf16.mxu0 0
        %1120 = vmatmul.mubr.bf16.gmra.mrb[0].mxu0 %v689
        %v1121 = vpop.f32.mrb[0].mxu0
        %v1122 = vadd.f32 0.0, %v1121
        %v1123 = vpop.f32.mrb[0].mxu0
        %v1124 = vadd.f32 0.0, %v1123
        %v1125 = vpop.f32.mrb[0].mxu0
        %v1126 = vadd.f32 0.0, %v1125
        %v1127 = vpop.f32.mrb[0].mxu0
        %v1128 = vadd.f32 0.0, %v1127
        %1129 = vmatprep.mubr.bf16.mxu0 0
        %1130 = vmatmul.mubr.bf16.gmra.mrb[0].mxu0 %v692
        %v1131 = vpop.f32.mrb[0].mxu0
        %v1132 = vadd.f32 0.0, %v1131
        %v1133 = vpop.f32.mrb[0].mxu0
        %v1134 = vadd.f32 0.0, %v1133
        %v1135 = vpop.f32.mrb[0].mxu0
        %v1136 = vadd.f32 0.0, %v1135
        %v1137 = vpop.f32.mrb[0].mxu0
        %v1138 = vadd.f32 0.0, %v1137
        %1139 = vmatprep.mubr.bf16.mxu0 0
        %1140 = vmatmul.mubr.bf16.gmra.mrb[0].mxu0 %v695
        %v1141 = vpop.f32.mrb[0].mxu0
        %v1142 = vadd.f32 0.0, %v1141
        %v1143 = vpop.f32.mrb[0].mxu0
        %v1144 = vadd.f32 0.0, %v1143
        %v1145 = vpop.f32.mrb[0].mxu0
        %v1146 = vadd.f32 0.0, %v1145
        %v1147 = vpop.f32.mrb[0].mxu0
        %v1148 = vadd.f32 0.0, %v1147
        %1149 = vmatprep.mubr.bf16.mxu0 0
        %1150 = vmatmul.mubr.bf16.gmra.mrb[0].mxu0 %v698
        %v1151 = vpop.f32.mrb[0].mxu0
        %v1152 = vadd.f32 0.0, %v1151
        %v1153 = vpop.f32.mrb[0].mxu0
        %v1154 = vadd.f32 0.0, %v1153
        %v1155 = vpop.f32.mrb[0].mxu0
        %v1156 = vadd.f32 0.0, %v1155
        %v1157 = vpop.f32.mrb[0].mxu0
        %v1158 = vadd.f32 0.0, %v1157
        %1159 = vmatprep.mubr.bf16.mxu0 0
        %1160 = vmatmul.mubr.bf16.gmra.mrb[0].mxu0 %v701
        %v1161 = vpop.f32.mrb[0].mxu0
        %v1162 = vadd.f32 0.0, %v1161
        %v1163 = vpop.f32.mrb[0].mxu0
        %v1164 = vadd.f32 0.0, %v1163
        %v1165 = vpop.f32.mrb[0].mxu0
        %v1166 = vadd.f32 0.0, %v1165
        %v1167 = vpop.f32.mrb[0].mxu0
        %v1168 = vadd.f32 0.0, %v1167
        %1169 = vmatprep.mubr.bf16.mxu0 0
        %1170 = vmatmul.mubr.bf16.gmra.mrb[0].mxu0 %v704
        %v1171 = vpop.f32.mrb[0].mxu0
        %v1172 = vadd.f32 0.0, %v1171
        %v1173 = vpop.f32.mrb[0].mxu0
        %v1174 = vadd.f32 0.0, %v1173
        %v1175 = vpop.f32.mrb[0].mxu0
        %v1176 = vadd.f32 0.0, %v1175
        %v1177 = vpop.f32.mrb[0].mxu0
        %v1178 = vadd.f32 0.0, %v1177
        %1179 = vmatprep.mubr.bf16.mxu0 0
        %1180 = vmatmul.mubr.bf16.gmra.mrb[0].mxu0 %v707
        %v1181 = vpop.f32.mrb[0].mxu0
        %v1182 = vadd.f32 0.0, %v1181
        %v1183 = vpop.f32.mrb[0].mxu0
        %v1184 = vadd.f32 0.0, %v1183
        %v1185 = vpop.f32.mrb[0].mxu0
        %v1186 = vadd.f32 0.0, %v1185
        %v1187 = vpop.f32.mrb[0].mxu0
        %v1188 = vadd.f32 0.0, %v1187
        %1189 = vmatprep.mubr.bf16.mxu0 0
        %1190 = vmatmul.mubr.bf16.gmra.mrb[0].mxu0 %v710
        %v1191 = vpop.f32.mrb[0].mxu0
        %v1192 = vadd.f32 0.0, %v1191
        %v1193 = vpop.f32.mrb[0].mxu0
        %v1194 = vadd.f32 0.0, %v1193
        %v1195 = vpop.f32.mrb[0].mxu0
        %v1196 = vadd.f32 0.0, %v1195
        %v1197 = vpop.f32.mrb[0].mxu0
        %v1198 = vadd.f32 0.0, %v1197
        %1199 = vmatprep.mubr.bf16.mxu0 0
        %1200 = vmatmul.mubr.bf16.gmra.mrb[0].mxu0 %v713
        %v1201 = vpop.f32.mrb[0].mxu0
        %v1202 = vadd.f32 0.0, %v1201
        %v1203 = vpop.f32.mrb[0].mxu0
        %v1204 = vadd.f32 0.0, %v1203
        %v1205 = vpop.f32.mrb[0].mxu0
        %v1206 = vadd.f32 0.0, %v1205
        %v1207 = vpop.f32.mrb[0].mxu0
        %v1208 = vadd.f32 0.0, %v1207
        %1209 = vmatprep.mubr.bf16.mxu0 0
        %1210 = vmatmul.mubr.bf16.gmra.mrb[0].mxu0 %v716
        %v1211 = vpop.f32.mrb[0].mxu0
        %v1212 = vadd.f32 0.0, %v1211
        %v1213 = vpop.f32.mrb[0].mxu0
        %v1214 = vadd.f32 0.0, %v1213
        %v1215 = vpop.f32.mrb[0].mxu0
        %v1216 = vadd.f32 0.0, %v1215
        %v1217 = vpop.f32.mrb[0].mxu0
        %v1218 = vadd.f32 0.0, %v1217
        %1219 = vmatprep.mubr.bf16.mxu0 0
        %1220 = vmatmul.mubr.bf16.gmra.mrb[0].mxu0 %v719
        %v1221 = vpop.f32.mrb[0].mxu0
        %v1222 = vadd.f32 0.0, %v1221
        %v1223 = vpop.f32.mrb[0].mxu0
        %v1224 = vadd.f32 0.0, %v1223
        %v1225 = vpop.f32.mrb[0].mxu0
        %v1226 = vadd.f32 0.0, %v1225
        %v1227 = vpop.f32.mrb[0].mxu0
        %v1228 = vadd.f32 0.0, %v1227
        %1229 = vmatprep.mubr.bf16.mxu0 0
        %1230 = vmatmul.mubr.bf16.gmra.mrb[0].mxu0 %v722
        %v1231 = vpop.f32.mrb[0].mxu0
        %v1232 = vadd.f32 0.0, %v1231
        %v1233 = vpop.f32.mrb[0].mxu0
        %v1234 = vadd.f32 0.0, %v1233
        %v1235 = vpop.f32.mrb[0].mxu0
        %v1236 = vadd.f32 0.0, %v1235
        %v1237 = vpop.f32.mrb[0].mxu0
        %v1238 = vadd.f32 0.0, %v1237
        %1239 = vmatprep.mubr.bf16.mxu0 0
        %1240 = vmatmul.mubr.bf16.gmra.mrb[0].mxu0 %v725
        %v1241 = vpop.f32.mrb[0].mxu0
        %v1242 = vadd.f32 0.0, %v1241
        %v1243 = vpop.f32.mrb[0].mxu0
        %v1244 = vadd.f32 0.0, %v1243
        %v1245 = vpop.f32.mrb[0].mxu0
        %v1246 = vadd.f32 0.0, %v1245
        %v1247 = vpop.f32.mrb[0].mxu0
        %v1248 = vadd.f32 0.0, %v1247
        %1249 = vmatprep.mubr.bf16.mxu0 0
        %1250 = vmatmul.mubr.bf16.gmra.mrb[0].mxu0 %v728
        %v1251 = vpop.f32.mrb[0].mxu0
        %v1252 = vadd.f32 0.0, %v1251
        %v1253 = vpop.f32.mrb[0].mxu0
        %v1254 = vadd.f32 0.0, %v1253
        %v1255 = vpop.f32.mrb[0].mxu0
        %v1256 = vadd.f32 0.0, %v1255
        %v1257 = vpop.f32.mrb[0].mxu0
        %v1258 = vadd.f32 0.0, %v1257
        %1259 = vmatprep.mubr.bf16.mxu0 0
        %1260 = vmatmul.mubr.bf16.gmra.mrb[0].mxu0 %v731
        %v1261 = vpop.f32.mrb[0].mxu0
        %v1262 = vadd.f32 0.0, %v1261
        %v1263 = vpop.f32.mrb[0].mxu0
        %v1264 = vadd.f32 0.0, %v1263
        %v1265 = vpop.f32.mrb[0].mxu0
        %v1266 = vadd.f32 0.0, %v1265
        %v1267 = vpop.f32.mrb[0].mxu0
        %v1268 = vadd.f32 0.0, %v1267
        %1269 = vmatprep.mubr.bf16.mxu0 0
        %1270 = vmatmul.mubr.bf16.gmra.mrb[0].mxu0 %v734
        %v1271 = vpop.f32.mrb[0].mxu0
        %v1272 = vadd.f32 0.0, %v1271
        %v1273 = vpop.f32.mrb[0].mxu0
        %v1274 = vadd.f32 0.0, %v1273
        %v1275 = vpop.f32.mrb[0].mxu0
        %v1276 = vadd.f32 0.0, %v1275
        %v1277 = vpop.f32.mrb[0].mxu0
        %v1278 = vadd.f32 0.0, %v1277
        %1279 = vmatprep.mubr.bf16.mxu0 0
        %1280 = vmatmul.mubr.bf16.gmra.mrb[0].mxu0 %v737
        %v1281 = vpop.f32.mrb[0].mxu0
        %v1282 = vadd.f32 0.0, %v1281
        %v1283 = vpop.f32.mrb[0].mxu0
        %v1284 = vadd.f32 0.0, %v1283
        %v1285 = vpop.f32.mrb[0].mxu0
        %v1286 = vadd.f32 0.0, %v1285
        %v1287 = vpop.f32.mrb[0].mxu0
        %v1288 = vadd.f32 0.0, %v1287
        %1289 = vmatprep.mubr.bf16.mxu0 0
        %1290 = vmatmul.mubr.bf16.gmra.mrb[0].mxu0 %v740
        %v1291 = vpop.f32.mrb[0].mxu0
        %v1292 = vadd.f32 0.0, %v1291
        %v1293 = vpop.f32.mrb[0].mxu0
        %v1294 = vadd.f32 0.0, %v1293
        %v1295 = vpop.f32.mrb[0].mxu0
        %v1296 = vadd.f32 0.0, %v1295
        %v1297 = vpop.f32.mrb[0].mxu0
        %v1298 = vadd.f32 0.0, %v1297
        %1299 = vdwg.mxu0
        %v1300 = vpack.c.bf16 %v793, %v789
        %v1301 = vpack.c.bf16 %v795, %v791
        %v1302 = vpack.c.bf16 %v1066, %v1062
        %v1303 = vpack.c.bf16 %v1068, %v1064
        %v1304 = vpack.c.bf16 %v803, %v799
        %v1305 = vpack.c.bf16 %v805, %v801
        %v1306 = vpack.c.bf16 %v1076, %v1072
        %v1307 = vpack.c.bf16 %v1078, %v1074
        %v1308 = vpack.c.bf16 %v813, %v809
        %v1309 = vpack.c.bf16 %v815, %v811
        %v1310 = vpack.c.bf16 %v1086, %v1082
        %v1311 = vpack.c.bf16 %v1088, %v1084
        %v1312 = vpack.c.bf16 %v823, %v819
        %v1313 = vpack.c.bf16 %v825, %v821
        %v1314 = vpack.c.bf16 %v1096, %v1092
        %v1315 = vpack.c.bf16 %v1098, %v1094
        %v1316 = vpack.c.bf16 %v833, %v829
        %v1317 = vpack.c.bf16 %v835, %v831
        %v1318 = vpack.c.bf16 %v1106, %v1102
        %v1319 = vpack.c.bf16 %v1108, %v1104
        %v1320 = vpack.c.bf16 %v843, %v839
        %v1321 = vpack.c.bf16 %v845, %v841
        %v1322 = vpack.c.bf16 %v1116, %v1112
        %v1323 = vpack.c.bf16 %v1118, %v1114
        %v1324 = vpack.c.bf16 %v853, %v849
        %v1325 = vpack.c.bf16 %v855, %v851
        %v1326 = vpack.c.bf16 %v1126, %v1122
        %v1327 = vpack.c.bf16 %v1128, %v1124
        %v1328 = vpack.c.bf16 %v863, %v859
        %v1329 = vpack.c.bf16 %v865, %v861
        %v1330 = vpack.c.bf16 %v1136, %v1132
        %v1331 = vpack.c.bf16 %v1138, %v1134
        %1332 = vst [vmem:[#allocation2] sm:$0xff] %v1300
        %1333 = vst [vmem:[#allocation2 + $0x8] sm:$0xff] %v1301
        %1334 = vst [vmem:[#allocation2 + $0x10] sm:$0xff] %v1302
        %1335 = vst [vmem:[#allocation2 + $0x18] sm:$0xff] %v1303
        %1336 = vst [vmem:[#allocation2 + $0x20] sm:$0xff] %v1304
        %1337 = vst [vmem:[#allocation2 + $0x28] sm:$0xff] %v1305
        %1338 = vst [vmem:[#allocation2 + $0x30] sm:$0xff] %v1306
        %1339 = vst [vmem:[#allocation2 + $0x38] sm:$0xff] %v1307
        %1340 = vst [vmem:[#allocation2 + $0x40] sm:$0xff] %v1308
        %1341 = vst [vmem:[#allocation2 + $0x48] sm:$0xff] %v1309
        %1342 = vst [vmem:[#allocation2 + $0x50] sm:$0xff] %v1310
        %1343 = vst [vmem:[#allocation2 + $0x58] sm:$0xff] %v1311
        %1344 = vst [vmem:[#allocation2 + $0x60] sm:$0xff] %v1312
        %1345 = vst [vmem:[#allocation2 + $0x68] sm:$0xff] %v1313
        %1346 = vst [vmem:[#allocation2 + $0x70] sm:$0xff] %v1314
        %1347 = vst [vmem:[#allocation2 + $0x78] sm:$0xff] %v1315
        %1348 = vst [vmem:[#allocation2 + $0x80] sm:$0xff] %v1316
        %1349 = vst [vmem:[#allocation2 + $0x88] sm:$0xff] %v1317
        %1350 = vst [vmem:[#allocation2 + $0x90] sm:$0xff] %v1318
        %1351 = vst [vmem:[#allocation2 + $0x98] sm:$0xff] %v1319
        %1352 = vst [vmem:[#allocation2 + $0xa0] sm:$0xff] %v1320
        %1353 = vst [vmem:[#allocation2 + $0xa8] sm:$0xff] %v1321
        %1354 = vst [vmem:[#allocation2 + $0xb0] sm:$0xff] %v1322
        %1355 = vst [vmem:[#allocation2 + $0xb8] sm:$0xff] %v1323
        %1356 = vst [vmem:[#allocation2 + $0xc0] sm:$0xff] %v1324
        %1357 = vst [vmem:[#allocation2 + $0xc8] sm:$0xff] %v1325
        %1358 = vst [vmem:[#allocation2 + $0xd0] sm:$0xff] %v1326
        %1359 = vst [vmem:[#allocation2 + $0xd8] sm:$0xff] %v1327
        %1360 = vst [vmem:[#allocation2 + $0xe0] sm:$0xff] %v1328
        %1361 = vst [vmem:[#allocation2 + $0xe8] sm:$0xff] %v1329
        %1362 = vst [vmem:[#allocation2 + $0xf0] sm:$0xff] %v1330
        %1363 = vst [vmem:[#allocation2 + $0xf8] sm:$0xff] %v1331
        %v1364 = vld [vmem:[#allocation4] sm:$0xff]
        %v1365 = vld [vmem:[#allocation4 + $0x8] sm:$0xff]
        %v1366 = vld [vmem:[#allocation4 + $0x10] sm:$0xff]
        %v1367 = vld [vmem:[#allocation4 + $0x18] sm:$0xff]
        %v1368 = vld [vmem:[#allocation4 + $0x20] sm:$0xff]
        %v1369 = vld [vmem:[#allocation4 + $0x28] sm:$0xff]
        %v1370 = vld [vmem:[#allocation4 + $0x30] sm:$0xff]
        %v1371 = vld [vmem:[#allocation4 + $0x38] sm:$0xff]
        %v1372 = vld [vmem:[#allocation4 + $0x40] sm:$0xff]
        %v1373 = vld [vmem:[#allocation4 + $0x48] sm:$0xff]
        %v1374 = vld [vmem:[#allocation4 + $0x50] sm:$0xff]
        %v1375 = vld [vmem:[#allocation4 + $0x58] sm:$0xff]
        %v1376 = vld [vmem:[#allocation4 + $0x60] sm:$0xff]
        %v1377 = vld [vmem:[#allocation4 + $0x68] sm:$0xff]
        %v1378 = vld [vmem:[#allocation4 + $0x70] sm:$0xff]
        %v1379 = vld [vmem:[#allocation4 + $0x78] sm:$0xff]
        %v1380 = vld [vmem:[#allocation4 + $0x80] sm:$0xff]
        %v1381 = vld [vmem:[#allocation4 + $0x88] sm:$0xff]
        %v1382 = vld [vmem:[#allocation4 + $0x90] sm:$0xff]
        %v1383 = vld [vmem:[#allocation4 + $0x98] sm:$0xff]
        %v1384 = vld [vmem:[#allocation4 + $0xa0] sm:$0xff]
        %v1385 = vld [vmem:[#allocation4 + $0xa8] sm:$0xff]
        %v1386 = vld [vmem:[#allocation4 + $0xb0] sm:$0xff]
        %v1387 = vld [vmem:[#allocation4 + $0xb8] sm:$0xff]
        %v1388 = vld [vmem:[#allocation4 + $0xc0] sm:$0xff]
        %v1389 = vld [vmem:[#allocation4 + $0xc8] sm:$0xff]
        %v1390 = vld [vmem:[#allocation4 + $0xd0] sm:$0xff]
        %v1391 = vld [vmem:[#allocation4 + $0xd8] sm:$0xff]
        %v1392 = vld [vmem:[#allocation4 + $0xe0] sm:$0xff]
        %v1393 = vld [vmem:[#allocation4 + $0xe8] sm:$0xff]
        %v1394 = vld [vmem:[#allocation4 + $0xf0] sm:$0xff]
        %v1395 = vld [vmem:[#allocation4 + $0xf8] sm:$0xff]
        %v1396 = vld [vmem:[#allocation4 + $0x100] sm:$0xff]
        %v1397 = vld [vmem:[#allocation4 + $0x108] sm:$0xff]
        %v1398 = vld [vmem:[#allocation4 + $0x110] sm:$0xff]
        %v1399 = vld [vmem:[#allocation4 + $0x118] sm:$0xff]
        %v1400 = vld [vmem:[#allocation4 + $0x120] sm:$0xff]
        %v1401 = vld [vmem:[#allocation4 + $0x128] sm:$0xff]
        %v1402 = vld [vmem:[#allocation4 + $0x130] sm:$0xff]
        %v1403 = vld [vmem:[#allocation4 + $0x138] sm:$0xff]
        %v1404 = vld [vmem:[#allocation4 + $0x140] sm:$0xff]
        %v1405 = vld [vmem:[#allocation4 + $0x148] sm:$0xff]
        %v1406 = vld [vmem:[#allocation4 + $0x150] sm:$0xff]
        %v1407 = vld [vmem:[#allocation4 + $0x158] sm:$0xff]
        %v1408 = vld [vmem:[#allocation4 + $0x160] sm:$0xff]
        %v1409 = vld [vmem:[#allocation4 + $0x168] sm:$0xff]
        %v1410 = vld [vmem:[#allocation4 + $0x170] sm:$0xff]
        %v1411 = vld [vmem:[#allocation4 + $0x178] sm:$0xff]
        %v1412 = vld [vmem:[#allocation4 + $0x180] sm:$0xff]
        %v1413 = vld [vmem:[#allocation4 + $0x188] sm:$0xff]
        %v1414 = vld [vmem:[#allocation4 + $0x190] sm:$0xff]
        %v1415 = vld [vmem:[#allocation4 + $0x198] sm:$0xff]
        %v1416 = vld [vmem:[#allocation4 + $0x1a0] sm:$0xff]
        %v1417 = vld [vmem:[#allocation4 + $0x1a8] sm:$0xff]
        %v1418 = vld [vmem:[#allocation4 + $0x1b0] sm:$0xff]
        %v1419 = vld [vmem:[#allocation4 + $0x1b8] sm:$0xff]
        %v1420 = vld [vmem:[#allocation4 + $0x1c0] sm:$0xff]
        %v1421 = vld [vmem:[#allocation4 + $0x1c8] sm:$0xff]
        %v1422 = vld [vmem:[#allocation4 + $0x1d0] sm:$0xff]
        %v1423 = vld [vmem:[#allocation4 + $0x1d8] sm:$0xff]
        %v1424 = vld [vmem:[#allocation4 + $0x1e0] sm:$0xff]
        %v1425 = vld [vmem:[#allocation4 + $0x1e8] sm:$0xff]
        %v1426 = vld [vmem:[#allocation4 + $0x1f0] sm:$0xff]
        %v1427 = vld [vmem:[#allocation4 + $0x1f8] sm:$0xff]
        %v1428 = vadd.f32 %v869, %v1364
        %v1429 = vadd.f32 %v871, %v1365
        %v1430 = vadd.f32 %v1142, %v1366
        %v1431 = vadd.f32 %v1144, %v1367
        %v1432 = vadd.f32 %v873, %v1368
        %v1433 = vadd.f32 %v875, %v1369
        %v1434 = vadd.f32 %v1146, %v1370
        %v1435 = vadd.f32 %v1148, %v1371
        %v1436 = vadd.f32 %v879, %v1372
        %v1437 = vadd.f32 %v881, %v1373
        %v1438 = vadd.f32 %v1152, %v1374
        %v1439 = vadd.f32 %v1154, %v1375
        %v1440 = vadd.f32 %v883, %v1376
        %v1441 = vadd.f32 %v885, %v1377
        %v1442 = vadd.f32 %v1156, %v1378
        %v1443 = vadd.f32 %v1158, %v1379
        %v1444 = vadd.f32 %v889, %v1380
        %v1445 = vadd.f32 %v891, %v1381
        %v1446 = vadd.f32 %v1162, %v1382
        %v1447 = vadd.f32 %v1164, %v1383
        %v1448 = vadd.f32 %v893, %v1384
        %v1449 = vadd.f32 %v895, %v1385
        %v1450 = vadd.f32 %v1166, %v1386
        %v1451 = vadd.f32 %v1168, %v1387
        %v1452 = vadd.f32 %v899, %v1388
        %v1453 = vadd.f32 %v901, %v1389
        %v1454 = vadd.f32 %v1172, %v1390
        %v1455 = vadd.f32 %v1174, %v1391
        %v1456 = vadd.f32 %v903, %v1392
        %v1457 = vadd.f32 %v905, %v1393
        %v1458 = vadd.f32 %v1176, %v1394
        %v1459 = vadd.f32 %v1178, %v1395
        %v1460 = vadd.f32 %v909, %v1396
        %v1461 = vadd.f32 %v911, %v1397
        %v1462 = vadd.f32 %v1182, %v1398
        %v1463 = vadd.f32 %v1184, %v1399
        %v1464 = vadd.f32 %v913, %v1400
        %v1465 = vadd.f32 %v915, %v1401
        %v1466 = vadd.f32 %v1186, %v1402
        %v1467 = vadd.f32 %v1188, %v1403
        %v1468 = vadd.f32 %v919, %v1404
        %v1469 = vadd.f32 %v921, %v1405
        %v1470 = vadd.f32 %v1192, %v1406
        %v1471 = vadd.f32 %v1194, %v1407
        %v1472 = vadd.f32 %v923, %v1408
        %v1473 = vadd.f32 %v925, %v1409
        %v1474 = vadd.f32 %v1196, %v1410
        %v1475 = vadd.f32 %v1198, %v1411
        %v1476 = vadd.f32 %v929, %v1412
        %v1477 = vadd.f32 %v931, %v1413
        %v1478 = vadd.f32 %v1202, %v1414
        %v1479 = vadd.f32 %v1204, %v1415
        %v1480 = vadd.f32 %v933, %v1416
        %v1481 = vadd.f32 %v935, %v1417
        %v1482 = vadd.f32 %v1206, %v1418
        %v1483 = vadd.f32 %v1208, %v1419
        %v1484 = vadd.f32 %v939, %v1420
        %v1485 = vadd.f32 %v941, %v1421
        %v1486 = vadd.f32 %v1212, %v1422
        %v1487 = vadd.f32 %v1214, %v1423
        %v1488 = vadd.f32 %v943, %v1424
        %v1489 = vadd.f32 %v945, %v1425
        %v1490 = vadd.f32 %v1216, %v1426
        %v1491 = vadd.f32 %v1218, %v1427
        %v1492 = vpack.c.bf16 %v1432, %v1428
        %v1493 = vpack.c.bf16 %v1433, %v1429
        %v1494 = vpack.c.bf16 %v1434, %v1430
        %v1495 = vpack.c.bf16 %v1435, %v1431
        %v1496 = vpack.c.bf16 %v1440, %v1436
        %v1497 = vpack.c.bf16 %v1441, %v1437
        %v1498 = vpack.c.bf16 %v1442, %v1438
        %v1499 = vpack.c.bf16 %v1443, %v1439
        %v1500 = vpack.c.bf16 %v1448, %v1444
        %v1501 = vpack.c.bf16 %v1449, %v1445
        %v1502 = vpack.c.bf16 %v1450, %v1446
        %v1503 = vpack.c.bf16 %v1451, %v1447
        %v1504 = vpack.c.bf16 %v1456, %v1452
        %v1505 = vpack.c.bf16 %v1457, %v1453
        %v1506 = vpack.c.bf16 %v1458, %v1454
        %v1507 = vpack.c.bf16 %v1459, %v1455
        %v1508 = vpack.c.bf16 %v1464, %v1460
        %v1509 = vpack.c.bf16 %v1465, %v1461
        %v1510 = vpack.c.bf16 %v1466, %v1462
        %v1511 = vpack.c.bf16 %v1467, %v1463
        %v1512 = vpack.c.bf16 %v1472, %v1468
        %v1513 = vpack.c.bf16 %v1473, %v1469
        %v1514 = vpack.c.bf16 %v1474, %v1470
        %v1515 = vpack.c.bf16 %v1475, %v1471
        %v1516 = vpack.c.bf16 %v1480, %v1476
        %v1517 = vpack.c.bf16 %v1481, %v1477
        %v1518 = vpack.c.bf16 %v1482, %v1478
        %v1519 = vpack.c.bf16 %v1483, %v1479
        %v1520 = vpack.c.bf16 %v1488, %v1484
        %v1521 = vpack.c.bf16 %v1489, %v1485
        %v1522 = vpack.c.bf16 %v1490, %v1486
        %v1523 = vpack.c.bf16 %v1491, %v1487
        %1524 = vst [vmem:[#allocation2 + $0x100] sm:$0xff] %v1492
        %1525 = vst [vmem:[#allocation2 + $0x108] sm:$0xff] %v1493
        %1526 = vst [vmem:[#allocation2 + $0x110] sm:$0xff] %v1494
        %1527 = vst [vmem:[#allocation2 + $0x118] sm:$0xff] %v1495
        %1528 = vst [vmem:[#allocation2 + $0x120] sm:$0xff] %v1496
        %1529 = vst [vmem:[#allocation2 + $0x128] sm:$0xff] %v1497
        %1530 = vst [vmem:[#allocation2 + $0x130] sm:$0xff] %v1498
        %1531 = vst [vmem:[#allocation2 + $0x138] sm:$0xff] %v1499
        %1532 = vst [vmem:[#allocation2 + $0x140] sm:$0xff] %v1500
        %1533 = vst [vmem:[#allocation2 + $0x148] sm:$0xff] %v1501
        %1534 = vst [vmem:[#allocation2 + $0x150] sm:$0xff] %v1502
        %1535 = vst [vmem:[#allocation2 + $0x158] sm:$0xff] %v1503
        %1536 = vst [vmem:[#allocation2 + $0x160] sm:$0xff] %v1504
        %1537 = vst [vmem:[#allocation2 + $0x168] sm:$0xff] %v1505
        %1538 = vst [vmem:[#allocation2 + $0x170] sm:$0xff] %v1506
        %1539 = vst [vmem:[#allocation2 + $0x178] sm:$0xff] %v1507
        %1540 = vst [vmem:[#allocation2 + $0x180] sm:$0xff] %v1508
        %1541 = vst [vmem:[#allocation2 + $0x188] sm:$0xff] %v1509
        %1542 = vst [vmem:[#allocation2 + $0x190] sm:$0xff] %v1510
        %1543 = vst [vmem:[#allocation2 + $0x198] sm:$0xff] %v1511
        %1544 = vst [vmem:[#allocation2 + $0x1a0] sm:$0xff] %v1512
        %1545 = vst [vmem:[#allocation2 + $0x1a8] sm:$0xff] %v1513
        %1546 = vst [vmem:[#allocation2 + $0x1b0] sm:$0xff] %v1514
        %1547 = vst [vmem:[#allocation2 + $0x1b8] sm:$0xff] %v1515
        %1548 = vst [vmem:[#allocation2 + $0x1c0] sm:$0xff] %v1516
        %1549 = vst [vmem:[#allocation2 + $0x1c8] sm:$0xff] %v1517
        %1550 = vst [vmem:[#allocation2 + $0x1d0] sm:$0xff] %v1518
        %1551 = vst [vmem:[#allocation2 + $0x1d8] sm:$0xff] %v1519
        %1552 = vst [vmem:[#allocation2 + $0x1e0] sm:$0xff] %v1520
        %1553 = vst [vmem:[#allocation2 + $0x1e8] sm:$0xff] %v1521
        %1554 = vst [vmem:[#allocation2 + $0x1f0] sm:$0xff] %v1522
        %1555 = vst [vmem:[#allocation2 + $0x1f8] sm:$0xff] %v1523
        %v1556 = vpack.c.bf16 %v953, %v949
        %v1557 = vpack.c.bf16 %v955, %v951
        %v1558 = vpack.c.bf16 %v1226, %v1222
        %v1559 = vpack.c.bf16 %v1228, %v1224
        %v1560 = vpack.c.bf16 %v963, %v959
        %v1561 = vpack.c.bf16 %v965, %v961
        %v1562 = vpack.c.bf16 %v1236, %v1232
        %v1563 = vpack.c.bf16 %v1238, %v1234
        %v1564 = vpack.c.bf16 %v973, %v969
        %v1565 = vpack.c.bf16 %v975, %v971
        %v1566 = vpack.c.bf16 %v1246, %v1242
        %v1567 = vpack.c.bf16 %v1248, %v1244
        %v1568 = vpack.c.bf16 %v983, %v979
        %v1569 = vpack.c.bf16 %v985, %v981
        %v1570 = vpack.c.bf16 %v1256, %v1252
        %v1571 = vpack.c.bf16 %v1258, %v1254
        %v1572 = vpack.c.bf16 %v993, %v989
        %v1573 = vpack.c.bf16 %v995, %v991
        %v1574 = vpack.c.bf16 %v1266, %v1262
        %v1575 = vpack.c.bf16 %v1268, %v1264
        %v1576 = vpack.c.bf16 %v1003, %v999
        %v1577 = vpack.c.bf16 %v1005, %v1001
        %v1578 = vpack.c.bf16 %v1276, %v1272
        %v1579 = vpack.c.bf16 %v1278, %v1274
        %v1580 = vpack.c.bf16 %v1013, %v1009
        %v1581 = vpack.c.bf16 %v1015, %v1011
        %v1582 = vpack.c.bf16 %v1286, %v1282
        %v1583 = vpack.c.bf16 %v1288, %v1284
        %v1584 = vpack.c.bf16 %v1023, %v1019
        %v1585 = vpack.c.bf16 %v1025, %v1021
        %v1586 = vpack.c.bf16 %v1296, %v1292
        %v1587 = vpack.c.bf16 %v1298, %v1294
        %1588 = vst [vmem:[#allocation2 + $0x200] sm:$0xff] %v1556
        %1589 = vst [vmem:[#allocation2 + $0x208] sm:$0xff] %v1557
        %1590 = vst [vmem:[#allocation2 + $0x210] sm:$0xff] %v1558
        %1591 = vst [vmem:[#allocation2 + $0x218] sm:$0xff] %v1559
        %1592 = vst [vmem:[#allocation2 + $0x220] sm:$0xff] %v1560
        %1593 = vst [vmem:[#allocation2 + $0x228] sm:$0xff] %v1561
        %1594 = vst [vmem:[#allocation2 + $0x230] sm:$0xff] %v1562
        %1595 = vst [vmem:[#allocation2 + $0x238] sm:$0xff] %v1563
        %1596 = vst [vmem:[#allocation2 + $0x240] sm:$0xff] %v1564
        %1597 = vst [vmem:[#allocation2 + $0x248] sm:$0xff] %v1565
        %1598 = vst [vmem:[#allocation2 + $0x250] sm:$0xff] %v1566
        %1599 = vst [vmem:[#allocation2 + $0x258] sm:$0xff] %v1567
        %1600 = vst [vmem:[#allocation2 + $0x260] sm:$0xff] %v1568
        %1601 = vst [vmem:[#allocation2 + $0x268] sm:$0xff] %v1569
        %1602 = vst [vmem:[#allocation2 + $0x270] sm:$0xff] %v1570
        %1603 = vst [vmem:[#allocation2 + $0x278] sm:$0xff] %v1571
        %1604 = vst [vmem:[#allocation2 + $0x280] sm:$0xff] %v1572
        %1605 = vst [vmem:[#allocation2 + $0x288] sm:$0xff] %v1573
        %1606 = vst [vmem:[#allocation2 + $0x290] sm:$0xff] %v1574
        %1607 = vst [vmem:[#allocation2 + $0x298] sm:$0xff] %v1575
        %1608 = vst [vmem:[#allocation2 + $0x2a0] sm:$0xff] %v1576
        %1609 = vst [vmem:[#allocation2 + $0x2a8] sm:$0xff] %v1577
        %1610 = vst [vmem:[#allocation2 + $0x2b0] sm:$0xff] %v1578
        %1611 = vst [vmem:[#allocation2 + $0x2b8] sm:$0xff] %v1579
        %1612 = vst [vmem:[#allocation2 + $0x2c0] sm:$0xff] %v1580
        %1613 = vst [vmem:[#allocation2 + $0x2c8] sm:$0xff] %v1581
        %1614 = vst [vmem:[#allocation2 + $0x2d0] sm:$0xff] %v1582
        %1615 = vst [vmem:[#allocation2 + $0x2d8] sm:$0xff] %v1583
        %1616 = vst [vmem:[#allocation2 + $0x2e0] sm:$0xff] %v1584
        %1617 = vst [vmem:[#allocation2 + $0x2e8] sm:$0xff] %v1585
        %1618 = vst [vmem:[#allocation2 + $0x2f0] sm:$0xff] %v1586
        %1619 = vst [vmem:[#allocation2 + $0x2f8] sm:$0xff] %v1587
        %v1620 = vld [vmem:[#allocation2] sm:$0xff]
        %v1621 = vld [vmem:[#allocation2 + $0x8] sm:$0xff]
        %v1622 = vld [vmem:[#allocation2 + $0x20] sm:$0xff]
        %v1623 = vld [vmem:[#allocation2 + $0x28] sm:$0xff]
        %v1624 = vld [vmem:[#allocation2 + $0x100] sm:$0xff]
        %v1625 = vld [vmem:[#allocation2 + $0x108] sm:$0xff]
        %v1626 = vld [vmem:[#allocation2 + $0x120] sm:$0xff]
        %v1627 = vld [vmem:[#allocation2 + $0x128] sm:$0xff]
        %v1628 = vld [vmem:[#allocation2 + $0x200] sm:$0xff]
        %v1629 = vld [vmem:[#allocation2 + $0x208] sm:$0xff]
        %v1630 = vld [vmem:[#allocation2 + $0x220] sm:$0xff]
        %v1631 = vld [vmem:[#allocation2 + $0x228] sm:$0xff]
        %1632 = vxpose.xlu0.c.b16.start [1/8] %v1624, 128
        %1633 = vxpose.xlu0.c.b16.cont [2/8] %v1626, 128
        %1634 = vxpose.xlu0.c.b16.cont [3/8] 0, 128
        %1635 = vxpose.xlu0.c.b16.cont [4/8] 0, 128
        %1636 = vxpose.xlu0.c.b16.cont [5/8] 0, 128
        %1637 = vxpose.xlu0.c.b16.cont [6/8] 0, 128
        %1638 = vxpose.xlu0.c.b16.cont [7/8] 0, 128
        %1639 = vxpose.xlu0.c.b16.end [8/8] 0, 128
        %v1640 = vpop.trf.xlu0
        %v1641 = vpop.trf.xlu0
        %v1642 = vpop.trf.xlu0
        %v1643 = vpop.trf.xlu0
        %v1644 = vpop.trf.xlu0
        %v1645 = vpop.trf.xlu0
        %v1646 = vpop.trf.xlu0
        %v1647 = vpop.trf.xlu0
        %1648 = vxpose.xlu0.c.b16.start [1/8] %v1625, 128
        %1649 = vxpose.xlu0.c.b16.cont [2/8] %v1627, 128
        %1650 = vxpose.xlu0.c.b16.cont [3/8] 0, 128
        %1651 = vxpose.xlu0.c.b16.cont [4/8] 0, 128
        %1652 = vxpose.xlu0.c.b16.cont [5/8] 0, 128
        %1653 = vxpose.xlu0.c.b16.cont [6/8] 0, 128
        %1654 = vxpose.xlu0.c.b16.cont [7/8] 0, 128
        %1655 = vxpose.xlu0.c.b16.end [8/8] 0, 128
        %v1656 = vpop.trf.xlu0
        %v1657 = vpop.trf.xlu0
        %v1658 = vpop.trf.xlu0
        %v1659 = vpop.trf.xlu0
        %v1660 = vpop.trf.xlu0
        %v1661 = vpop.trf.xlu0
        %v1662 = vpop.trf.xlu0
        %v1663 = vpop.trf.xlu0
        %vm1664 = vcmask 261120
        %v1666 = vsel %vm1664, %v1640, 0
        %v1669 = vsel %vm1664, %v1641, 0
        %v1672 = vsel %vm1664, %v1642, 0
        %v1675 = vsel %vm1664, %v1643, 0
        %v1678 = vsel %vm1664, %v1644, 0
        %v1681 = vsel %vm1664, %v1645, 0
        %v1684 = vsel %vm1664, %v1646, 0
        %v1687 = vsel %vm1664, %v1647, 0
        %v1690 = vsel %vm1664, %v1656, 0
        %v1693 = vsel %vm1664, %v1657, 0
        %v1696 = vsel %vm1664, %v1658, 0
        %v1699 = vsel %vm1664, %v1659, 0
        %v1702 = vsel %vm1664, %v1660, 0
        %v1705 = vsel %vm1664, %v1661, 0
        %v1708 = vsel %vm1664, %v1662, 0
        %v1711 = vsel %vm1664, %v1663, 0
        %1713 = vmatprep.subr.bf16.mxu0 %v1621
        %1714 = vmatpush1.bf16.msra.mxu0 %v1620
        %1715 = vmatprep.subr.bf16.mxu0 %v1623
        %1716 = vmatpush1.bf16.msra.mxu0 %v1622
        %1717 = vmatprep.subr.bf16.mxu0 0
        %1718 = vmatpush1.bf16.msra.mxu0 0
        %1719 = vmatprep.subr.bf16.mxu0 0
        %1720 = vmatpush1.bf16.msra.mxu0 0
        %1721 = vmatprep.subr.bf16.mxu0 0
        %1722 = vmatpush1.bf16.msra.mxu0 0
        %1723 = vmatprep.subr.bf16.mxu0 0
        %1724 = vmatpush1.bf16.msra.mxu0 0
        %1725 = vmatprep.subr.bf16.mxu0 0
        %1726 = vmatpush1.bf16.msra.mxu0 0
        %1727 = vmatprep.subr.bf16.mxu0 0
        %1728 = vmatpush1.bf16.msra.mxu0 0
        %1729 = vmatprep.subr.bf16.mxu0 0
        %1730 = vmatpush1.bf16.msra.mxu0 0
        %1731 = vmatprep.subr.bf16.mxu0 0
        %1732 = vmatpush1.bf16.msra.mxu0 0
        %1733 = vmatprep.subr.bf16.mxu0 0
        %1734 = vmatpush1.bf16.msra.mxu0 0
        %1735 = vmatprep.subr.bf16.mxu0 0
        %1736 = vmatpush1.bf16.msra.mxu0 0
        %1737 = vmatprep.subr.bf16.mxu0 0
        %1738 = vmatpush1.bf16.msra.mxu0 0
        %1739 = vmatprep.subr.bf16.mxu0 0
        %1740 = vmatpush1.bf16.msra.mxu0 0
        %1741 = vmatprep.subr.bf16.mxu0 0
        %1742 = vmatpush1.bf16.msra.mxu0 0
        %1743 = vmatprep.subr.bf16.mxu0 0
        %1744 = vmatpush1.bf16.msra.mxu0 0
        %1745 = vmatprep.mubr.bf16.mxu0 0
        %1746 = vmatmul.mubr.bf16.gmra.mrb[0].mxu0 %v1666
        %v1747 = vpop.f32.mrb[0].mxu0
        %v1748 = vadd.f32 0.0, %v1747
        %v1749 = vpop.f32.mrb[0].mxu0
        %v1750 = vadd.f32 0.0, %v1749
        %v1751 = vpop.f32.mrb[0].mxu0
        %v1752 = vadd.f32 0.0, %v1751
        %v1753 = vpop.f32.mrb[0].mxu0
        %v1754 = vadd.f32 0.0, %v1753
        %1755 = vmatprep.mubr.bf16.mxu0 0
        %1756 = vmatmul.mubr.bf16.gmra.mrb[0].mxu0 %v1669
        %v1757 = vpop.f32.mrb[0].mxu0
        %v1758 = vadd.f32 0.0, %v1757
        %v1759 = vpop.f32.mrb[0].mxu0
        %v1760 = vadd.f32 0.0, %v1759
        %v1761 = vpop.f32.mrb[0].mxu0
        %v1762 = vadd.f32 0.0, %v1761
        %v1763 = vpop.f32.mrb[0].mxu0
        %v1764 = vadd.f32 0.0, %v1763
        %1765 = vmatprep.mubr.bf16.mxu0 0
        %1766 = vmatmul.mubr.bf16.gmra.mrb[0].mxu0 %v1672
        %v1767 = vpop.f32.mrb[0].mxu0
        %v1768 = vadd.f32 0.0, %v1767
        %v1769 = vpop.f32.mrb[0].mxu0
        %v1770 = vadd.f32 0.0, %v1769
        %v1771 = vpop.f32.mrb[0].mxu0
        %v1772 = vadd.f32 0.0, %v1771
        %v1773 = vpop.f32.mrb[0].mxu0
        %v1774 = vadd.f32 0.0, %v1773
        %1775 = vmatprep.mubr.bf16.mxu0 0
        %1776 = vmatmul.mubr.bf16.gmra.mrb[0].mxu0 %v1675
        %v1777 = vpop.f32.mrb[0].mxu0
        %v1778 = vadd.f32 0.0, %v1777
        %v1779 = vpop.f32.mrb[0].mxu0
        %v1780 = vadd.f32 0.0, %v1779
        %v1781 = vpop.f32.mrb[0].mxu0
        %v1782 = vadd.f32 0.0, %v1781
        %v1783 = vpop.f32.mrb[0].mxu0
        %v1784 = vadd.f32 0.0, %v1783
        %1785 = vmatprep.mubr.bf16.mxu0 0
        %1786 = vmatmul.mubr.bf16.gmra.mrb[0].mxu0 %v1678
        %v1787 = vpop.f32.mrb[0].mxu0
        %v1788 = vadd.f32 0.0, %v1787
        %v1789 = vpop.f32.mrb[0].mxu0
        %v1790 = vadd.f32 0.0, %v1789
        %v1791 = vpop.f32.mrb[0].mxu0
        %v1792 = vadd.f32 0.0, %v1791
        %v1793 = vpop.f32.mrb[0].mxu0
        %v1794 = vadd.f32 0.0, %v1793
        %1795 = vmatprep.mubr.bf16.mxu0 0
        %1796 = vmatmul.mubr.bf16.gmra.mrb[0].mxu0 %v1681
        %v1797 = vpop.f32.mrb[0].mxu0
        %v1798 = vadd.f32 0.0, %v1797
        %v1799 = vpop.f32.mrb[0].mxu0
        %v1800 = vadd.f32 0.0, %v1799
        %v1801 = vpop.f32.mrb[0].mxu0
        %v1802 = vadd.f32 0.0, %v1801
        %v1803 = vpop.f32.mrb[0].mxu0
        %v1804 = vadd.f32 0.0, %v1803
        %1805 = vmatprep.mubr.bf16.mxu0 0
        %1806 = vmatmul.mubr.bf16.gmra.mrb[0].mxu0 %v1684
        %v1807 = vpop.f32.mrb[0].mxu0
        %v1808 = vadd.f32 0.0, %v1807
        %v1809 = vpop.f32.mrb[0].mxu0
        %v1810 = vadd.f32 0.0, %v1809
        %v1811 = vpop.f32.mrb[0].mxu0
        %v1812 = vadd.f32 0.0, %v1811
        %v1813 = vpop.f32.mrb[0].mxu0
        %v1814 = vadd.f32 0.0, %v1813
        %1815 = vmatprep.mubr.bf16.mxu0 0
        %1816 = vmatmul.mubr.bf16.gmra.mrb[0].mxu0 %v1687
        %v1817 = vpop.f32.mrb[0].mxu0
        %v1818 = vadd.f32 0.0, %v1817
        %v1819 = vpop.f32.mrb[0].mxu0
        %v1820 = vadd.f32 0.0, %v1819
        %v1821 = vpop.f32.mrb[0].mxu0
        %v1822 = vadd.f32 0.0, %v1821
        %v1823 = vpop.f32.mrb[0].mxu0
        %v1824 = vadd.f32 0.0, %v1823
        %1825 = vmatprep.mubr.bf16.mxu0 0
        %1826 = vmatmul.mubr.bf16.gmra.mrb[0].mxu0 %v1690
        %v1827 = vpop.f32.mrb[0].mxu0
        %v1828 = vadd.f32 0.0, %v1827
        %v1829 = vpop.f32.mrb[0].mxu0
        %v1830 = vadd.f32 0.0, %v1829
        %v1831 = vpop.f32.mrb[0].mxu0
        %v1832 = vadd.f32 0.0, %v1831
        %v1833 = vpop.f32.mrb[0].mxu0
        %v1834 = vadd.f32 0.0, %v1833
        %1835 = vmatprep.mubr.bf16.mxu0 0
        %1836 = vmatmul.mubr.bf16.gmra.mrb[0].mxu0 %v1693
        %v1837 = vpop.f32.mrb[0].mxu0
        %v1838 = vadd.f32 0.0, %v1837
        %v1839 = vpop.f32.mrb[0].mxu0
        %v1840 = vadd.f32 0.0, %v1839
        %v1841 = vpop.f32.mrb[0].mxu0
        %v1842 = vadd.f32 0.0, %v1841
        %v1843 = vpop.f32.mrb[0].mxu0
        %v1844 = vadd.f32 0.0, %v1843
        %1845 = vmatprep.mubr.bf16.mxu0 0
        %1846 = vmatmul.mubr.bf16.gmra.mrb[0].mxu0 %v1696
        %v1847 = vpop.f32.mrb[0].mxu0
        %v1848 = vadd.f32 0.0, %v1847
        %v1849 = vpop.f32.mrb[0].mxu0
        %v1850 = vadd.f32 0.0, %v1849
        %v1851 = vpop.f32.mrb[0].mxu0
        %v1852 = vadd.f32 0.0, %v1851
        %v1853 = vpop.f32.mrb[0].mxu0
        %v1854 = vadd.f32 0.0, %v1853
        %1855 = vmatprep.mubr.bf16.mxu0 0
        %1856 = vmatmul.mubr.bf16.gmra.mrb[0].mxu0 %v1699
        %v1857 = vpop.f32.mrb[0].mxu0
        %v1858 = vadd.f32 0.0, %v1857
        %v1859 = vpop.f32.mrb[0].mxu0
        %v1860 = vadd.f32 0.0, %v1859
        %v1861 = vpop.f32.mrb[0].mxu0
        %v1862 = vadd.f32 0.0, %v1861
        %v1863 = vpop.f32.mrb[0].mxu0
        %v1864 = vadd.f32 0.0, %v1863
        %1865 = vmatprep.mubr.bf16.mxu0 0
        %1866 = vmatmul.mubr.bf16.gmra.mrb[0].mxu0 %v1702
        %v1867 = vpop.f32.mrb[0].mxu0
        %v1868 = vadd.f32 0.0, %v1867
        %v1869 = vpop.f32.mrb[0].mxu0
        %v1870 = vadd.f32 0.0, %v1869
        %v1871 = vpop.f32.mrb[0].mxu0
        %v1872 = vadd.f32 0.0, %v1871
        %v1873 = vpop.f32.mrb[0].mxu0
        %v1874 = vadd.f32 0.0, %v1873
        %1875 = vmatprep.mubr.bf16.mxu0 0
        %1876 = vmatmul.mubr.bf16.gmra.mrb[0].mxu0 %v1705
        %v1877 = vpop.f32.mrb[0].mxu0
        %v1878 = vadd.f32 0.0, %v1877
        %v1879 = vpop.f32.mrb[0].mxu0
        %v1880 = vadd.f32 0.0, %v1879
        %v1881 = vpop.f32.mrb[0].mxu0
        %v1882 = vadd.f32 0.0, %v1881
        %v1883 = vpop.f32.mrb[0].mxu0
        %v1884 = vadd.f32 0.0, %v1883
        %1885 = vmatprep.mubr.bf16.mxu0 0
        %1886 = vmatmul.mubr.bf16.gmra.mrb[0].mxu0 %v1708
        %v1887 = vpop.f32.mrb[0].mxu0
        %v1888 = vadd.f32 0.0, %v1887
        %v1889 = vpop.f32.mrb[0].mxu0
        %v1890 = vadd.f32 0.0, %v1889
        %v1891 = vpop.f32.mrb[0].mxu0
        %v1892 = vadd.f32 0.0, %v1891
        %v1893 = vpop.f32.mrb[0].mxu0
        %v1894 = vadd.f32 0.0, %v1893
        %1895 = vmatprep.mubr.bf16.mxu0 0
        %1896 = vmatmul.mubr.bf16.gmra.mrb[0].mxu0 %v1711
        %v1897 = vpop.f32.mrb[0].mxu0
        %v1898 = vadd.f32 0.0, %v1897
        %v1899 = vpop.f32.mrb[0].mxu0
        %v1900 = vadd.f32 0.0, %v1899
        %v1901 = vpop.f32.mrb[0].mxu0
        %v1902 = vadd.f32 0.0, %v1901
        %v1903 = vpop.f32.mrb[0].mxu0
        %v1904 = vadd.f32 0.0, %v1903
        %1905 = vdwg.mxu0
        %v1906 = vmax.f32 %v1748, %v1758
        %v1907 = vmax.f32 %v1752, %v1762
        %v1908 = vmax.f32 %v1906, %v1768
        %v1909 = vmax.f32 %v1907, %v1772
        %v1910 = vmax.f32 %v1908, %v1778
        %v1911 = vmax.f32 %v1909, %v1782
        %v1912 = vmax.f32 %v1910, %v1788
        %v1913 = vmax.f32 %v1911, %v1792
        %v1914 = vmax.f32 %v1912, %v1798
        %v1915 = vmax.f32 %v1913, %v1802
        %v1916 = vmax.f32 %v1914, %v1808
        %v1917 = vmax.f32 %v1915, %v1812
        %v1918 = vmax.f32 %v1916, %v1818
        %v1919 = vmax.f32 %v1917, %v1822
        %v1920 = vmax.f32 %v1918, %v1828
        %v1921 = vmax.f32 %v1919, %v1832
        %v1922 = vmax.f32 %v1920, %v1838
        %v1923 = vmax.f32 %v1921, %v1842
        %v1924 = vmax.f32 %v1922, %v1848
        %v1925 = vmax.f32 %v1923, %v1852
        %v1926 = vmax.f32 %v1924, %v1858
        %v1927 = vmax.f32 %v1925, %v1862
        %v1928 = vmax.f32 %v1926, %v1868
        %v1929 = vmax.f32 %v1927, %v1872
        %v1930 = vmax.f32 %v1928, %v1878
        %v1931 = vmax.f32 %v1929, %v1882
        %v1932 = vmax.f32 %v1930, %v1888
        %v1933 = vmax.f32 %v1931, %v1892
        %v1934 = vmax.f32 %v1932, %v1898
        %v1935 = vmax.f32 %v1933, %v1902
        %v1936 = vmax.f32 %v1934, %v1935
        %v1937 = vrot.slane %v1936, 4
        %v1938 = vmax.f32 %v1936, %v1937
        %v1939 = vrot.slane %v1938, 2
        %v1940 = vmax.f32 %v1938, %v1939
        %v1941 = vrot.slane %v1940, 1
        %v1942 = vmax.f32 %v1940, %v1941
        %v1943 = vmax.f32 %v1750, %v1760
        %v1944 = vmax.f32 %v1754, %v1764
        %v1945 = vmax.f32 %v1943, %v1770
        %v1946 = vmax.f32 %v1944, %v1774
        %v1947 = vmax.f32 %v1945, %v1780
        %v1948 = vmax.f32 %v1946, %v1784
        %v1949 = vmax.f32 %v1947, %v1790
        %v1950 = vmax.f32 %v1948, %v1794
        %v1951 = vmax.f32 %v1949, %v1800
        %v1952 = vmax.f32 %v1950, %v1804
        %v1953 = vmax.f32 %v1951, %v1810
        %v1954 = vmax.f32 %v1952, %v1814
        %v1955 = vmax.f32 %v1953, %v1820
        %v1956 = vmax.f32 %v1954, %v1824
        %v1957 = vmax.f32 %v1955, %v1830
        %v1958 = vmax.f32 %v1956, %v1834
        %v1959 = vmax.f32 %v1957, %v1840
        %v1960 = vmax.f32 %v1958, %v1844
        %v1961 = vmax.f32 %v1959, %v1850
        %v1962 = vmax.f32 %v1960, %v1854
        %v1963 = vmax.f32 %v1961, %v1860
        %v1964 = vmax.f32 %v1962, %v1864
        %v1965 = vmax.f32 %v1963, %v1870
        %v1966 = vmax.f32 %v1964, %v1874
        %v1967 = vmax.f32 %v1965, %v1880
        %v1968 = vmax.f32 %v1966, %v1884
        %v1969 = vmax.f32 %v1967, %v1890
        %v1970 = vmax.f32 %v1968, %v1894
        %v1971 = vmax.f32 %v1969, %v1900
        %v1972 = vmax.f32 %v1970, %v1904
        %v1973 = vmax.f32 %v1971, %v1972
        %v1974 = vrot.slane %v1973, 4
        %v1975 = vmax.f32 %v1973, %v1974
        %v1976 = vrot.slane %v1975, 2
        %v1977 = vmax.f32 %v1975, %v1976
        %v1978 = vrot.slane %v1977, 1
        %v1979 = vmax.f32 %v1977, %v1978
        %v1980 = vsub.f32 %v1748, %v1942
        %v1981 = vsub.f32 %v1750, %v1979
        %v1982 = vsub.f32 %v1752, %v1942
        %v1983 = vsub.f32 %v1754, %v1979
        %v1984 = vsub.f32 %v1758, %v1942
        %v1985 = vsub.f32 %v1760, %v1979
        %v1986 = vsub.f32 %v1762, %v1942
        %v1987 = vsub.f32 %v1764, %v1979
        %v1988 = vsub.f32 %v1768, %v1942
        %v1989 = vsub.f32 %v1770, %v1979
        %v1990 = vsub.f32 %v1772, %v1942
        %v1991 = vsub.f32 %v1774, %v1979
        %v1992 = vsub.f32 %v1778, %v1942
        %v1993 = vsub.f32 %v1780, %v1979
        %v1994 = vsub.f32 %v1782, %v1942
        %v1995 = vsub.f32 %v1784, %v1979
        %v1996 = vsub.f32 %v1788, %v1942
        %v1997 = vsub.f32 %v1790, %v1979
        %v1998 = vsub.f32 %v1792, %v1942
        %v1999 = vsub.f32 %v1794, %v1979
        %v2000 = vsub.f32 %v1798, %v1942
        %v2001 = vsub.f32 %v1800, %v1979
        %v2002 = vsub.f32 %v1802, %v1942
        %v2003 = vsub.f32 %v1804, %v1979
        %v2004 = vsub.f32 %v1808, %v1942
        %v2005 = vsub.f32 %v1810, %v1979
        %v2006 = vsub.f32 %v1812, %v1942
        %v2007 = vsub.f32 %v1814, %v1979
        %v2008 = vsub.f32 %v1818, %v1942
        %v2009 = vsub.f32 %v1820, %v1979
        %v2010 = vsub.f32 %v1822, %v1942
        %v2011 = vsub.f32 %v1824, %v1979
        %v2012 = vsub.f32 %v1828, %v1942
        %v2013 = vsub.f32 %v1830, %v1979
        %v2014 = vsub.f32 %v1832, %v1942
        %v2015 = vsub.f32 %v1834, %v1979
        %v2016 = vsub.f32 %v1838, %v1942
        %v2017 = vsub.f32 %v1840, %v1979
        %v2018 = vsub.f32 %v1842, %v1942
        %v2019 = vsub.f32 %v1844, %v1979
        %v2020 = vsub.f32 %v1848, %v1942
        %v2021 = vsub.f32 %v1850, %v1979
        %v2022 = vsub.f32 %v1852, %v1942
        %v2023 = vsub.f32 %v1854, %v1979
        %v2024 = vsub.f32 %v1858, %v1942
        %v2025 = vsub.f32 %v1860, %v1979
        %v2026 = vsub.f32 %v1862, %v1942
        %v2027 = vsub.f32 %v1864, %v1979
        %v2028 = vsub.f32 %v1868, %v1942
        %v2029 = vsub.f32 %v1870, %v1979
        %v2030 = vsub.f32 %v1872, %v1942
        %v2031 = vsub.f32 %v1874, %v1979
        %v2032 = vsub.f32 %v1878, %v1942
        %v2033 = vsub.f32 %v1880, %v1979
        %v2034 = vsub.f32 %v1882, %v1942
        %v2035 = vsub.f32 %v1884, %v1979
        %v2036 = vsub.f32 %v1888, %v1942
        %v2037 = vsub.f32 %v1890, %v1979
        %v2038 = vsub.f32 %v1892, %v1942
        %v2039 = vsub.f32 %v1894, %v1979
        %v2040 = vsub.f32 %v1898, %v1942
        %v2041 = vsub.f32 %v1900, %v1979
        %v2042 = vsub.f32 %v1902, %v1942
        %v2043 = vsub.f32 %v1904, %v1979
        %v2044 = vmul.f32 %v1980, 1.442695
        %v2045 = vpow.pop %v2044
        %v2046 = vmul.f32 %v1981, 1.442695
        %v2047 = vpow.pop %v2046
        %v2048 = vmul.f32 %v1982, 1.442695
        %v2049 = vpow.pop %v2048
        %v2050 = vmul.f32 %v1983, 1.442695
        %v2051 = vpow.pop %v2050
        %v2052 = vmul.f32 %v1984, 1.442695
        %v2053 = vpow.pop %v2052
        %v2054 = vmul.f32 %v1985, 1.442695
        %v2055 = vpow.pop %v2054
        %v2056 = vmul.f32 %v1986, 1.442695
        %v2057 = vpow.pop %v2056
        %v2058 = vmul.f32 %v1987, 1.442695
        %v2059 = vpow.pop %v2058
        %v2060 = vmul.f32 %v1988, 1.442695
        %v2061 = vpow.pop %v2060
        %v2062 = vmul.f32 %v1989, 1.442695
        %v2063 = vpow.pop %v2062
        %v2064 = vmul.f32 %v1990, 1.442695
        %v2065 = vpow.pop %v2064
        %v2066 = vmul.f32 %v1991, 1.442695
        %v2067 = vpow.pop %v2066
        %v2068 = vmul.f32 %v1992, 1.442695
        %v2069 = vpow.pop %v2068
        %v2070 = vmul.f32 %v1993, 1.442695
        %v2071 = vpow.pop %v2070
        %v2072 = vmul.f32 %v1994, 1.442695
        %v2073 = vpow.pop %v2072
        %v2074 = vmul.f32 %v1995, 1.442695
        %v2075 = vpow.pop %v2074
        %v2076 = vmul.f32 %v1996, 1.442695
        %v2077 = vpow.pop %v2076
        %v2078 = vmul.f32 %v1997, 1.442695
        %v2079 = vpow.pop %v2078
        %v2080 = vmul.f32 %v1998, 1.442695
        %v2081 = vpow.pop %v2080
        %v2082 = vmul.f32 %v1999, 1.442695
        %v2083 = vpow.pop %v2082
        %v2084 = vmul.f32 %v2000, 1.442695
        %v2085 = vpow.pop %v2084
        %v2086 = vmul.f32 %v2001, 1.442695
        %v2087 = vpow.pop %v2086
        %v2088 = vmul.f32 %v2002, 1.442695
        %v2089 = vpow.pop %v2088
        %v2090 = vmul.f32 %v2003, 1.442695
        %v2091 = vpow.pop %v2090
        %v2092 = vmul.f32 %v2004, 1.442695
        %v2093 = vpow.pop %v2092
        %v2094 = vmul.f32 %v2005, 1.442695
        %v2095 = vpow.pop %v2094
        %v2096 = vmul.f32 %v2006, 1.442695
        %v2097 = vpow.pop %v2096
        %v2098 = vmul.f32 %v2007, 1.442695
        %v2099 = vpow.pop %v2098
        %v2100 = vmul.f32 %v2008, 1.442695
        %v2101 = vpow.pop %v2100
        %v2102 = vmul.f32 %v2009, 1.442695
        %v2103 = vpow.pop %v2102
        %v2104 = vmul.f32 %v2010, 1.442695
        %v2105 = vpow.pop %v2104
        %v2106 = vmul.f32 %v2011, 1.442695
        %v2107 = vpow.pop %v2106
        %v2108 = vmul.f32 %v2012, 1.442695
        %v2109 = vpow.pop %v2108
        %v2110 = vmul.f32 %v2013, 1.442695
        %v2111 = vpow.pop %v2110
        %v2112 = vmul.f32 %v2014, 1.442695
        %v2113 = vpow.pop %v2112
        %v2114 = vmul.f32 %v2015, 1.442695
        %v2115 = vpow.pop %v2114
        %v2116 = vmul.f32 %v2016, 1.442695
        %v2117 = vpow.pop %v2116
        %v2118 = vmul.f32 %v2017, 1.442695
        %v2119 = vpow.pop %v2118
        %v2120 = vmul.f32 %v2018, 1.442695
        %v2121 = vpow.pop %v2120
        %v2122 = vmul.f32 %v2019, 1.442695
        %v2123 = vpow.pop %v2122
        %v2124 = vmul.f32 %v2020, 1.442695
        %v2125 = vpow.pop %v2124
        %v2126 = vmul.f32 %v2021, 1.442695
        %v2127 = vpow.pop %v2126
        %v2128 = vmul.f32 %v2022, 1.442695
        %v2129 = vpow.pop %v2128
        %v2130 = vmul.f32 %v2023, 1.442695
        %v2131 = vpow.pop %v2130
        %v2132 = vmul.f32 %v2024, 1.442695
        %v2133 = vpow.pop %v2132
        %v2134 = vmul.f32 %v2025, 1.442695
        %v2135 = vpow.pop %v2134
        %v2136 = vmul.f32 %v2026, 1.442695
        %v2137 = vpow.pop %v2136
        %v2138 = vmul.f32 %v2027, 1.442695
        %v2139 = vpow.pop %v2138
        %v2140 = vmul.f32 %v2028, 1.442695
        %v2141 = vpow.pop %v2140
        %v2142 = vmul.f32 %v2029, 1.442695
        %v2143 = vpow.pop %v2142
        %v2144 = vmul.f32 %v2030, 1.442695
        %v2145 = vpow.pop %v2144
        %v2146 = vmul.f32 %v2031, 1.442695
        %v2147 = vpow.pop %v2146
        %v2148 = vmul.f32 %v2032, 1.442695
        %v2149 = vpow.pop %v2148
        %v2150 = vmul.f32 %v2033, 1.442695
        %v2151 = vpow.pop %v2150
        %v2152 = vmul.f32 %v2034, 1.442695
        %v2153 = vpow.pop %v2152
        %v2154 = vmul.f32 %v2035, 1.442695
        %v2155 = vpow.pop %v2154
        %v2156 = vmul.f32 %v2036, 1.442695
        %v2157 = vpow.pop %v2156
        %v2158 = vmul.f32 %v2037, 1.442695
        %v2159 = vpow.pop %v2158
        %v2160 = vmul.f32 %v2038, 1.442695
        %v2161 = vpow.pop %v2160
        %v2162 = vmul.f32 %v2039, 1.442695
        %v2163 = vpow.pop %v2162
        %v2164 = vmul.f32 %v2040, 1.442695
        %v2165 = vpow.pop %v2164
        %v2166 = vmul.f32 %v2041, 1.442695
        %v2167 = vpow.pop %v2166
        %v2168 = vmul.f32 %v2042, 1.442695
        %v2169 = vpow.pop %v2168
        %v2170 = vmul.f32 %v2043, 1.442695
        %v2171 = vpow.pop %v2170
        %v2172 = vadd.f32 %v2045, %v2049
        %v2173 = vadd.f32 %v2172, %v2053
        %v2174 = vadd.f32 %v2173, %v2057
        %v2175 = vadd.f32 %v2174, %v2061
        %v2176 = vadd.f32 %v2175, %v2065
        %v2177 = vadd.f32 %v2176, %v2069
        %v2178 = vadd.f32 %v2177, %v2073
        %v2179 = vadd.f32 %v2178, %v2077
        %v2180 = vadd.f32 %v2179, %v2081
        %v2181 = vadd.f32 %v2180, %v2085
        %v2182 = vadd.f32 %v2181, %v2089
        %v2183 = vadd.f32 %v2182, %v2093
        %v2184 = vadd.f32 %v2183, %v2097
        %v2185 = vadd.f32 %v2184, %v2101
        %v2186 = vadd.f32 %v2185, %v2105
        %v2187 = vadd.f32 %v2186, %v2109
        %v2188 = vadd.f32 %v2187, %v2113
        %v2189 = vadd.f32 %v2188, %v2117
        %v2190 = vadd.f32 %v2189, %v2121
        %v2191 = vadd.f32 %v2190, %v2125
        %v2192 = vadd.f32 %v2191, %v2129
        %v2193 = vadd.f32 %v2192, %v2133
        %v2194 = vadd.f32 %v2193, %v2137
        %v2195 = vadd.f32 %v2194, %v2141
        %v2196 = vadd.f32 %v2195, %v2145
        %v2197 = vadd.f32 %v2196, %v2149
        %v2198 = vadd.f32 %v2197, %v2153
        %v2199 = vadd.f32 %v2198, %v2157
        %v2200 = vadd.f32 %v2199, %v2161
        %v2201 = vadd.f32 %v2200, %v2165
        %v2202 = vadd.f32 %v2201, %v2169
        %v2203 = vrot.slane %v2202, 4
        %v2204 = vadd.f32 %v2202, %v2203
        %v2205 = vrot.slane %v2204, 2
        %v2206 = vadd.f32 %v2204, %v2205
        %v2207 = vrot.slane %v2206, 1
        %v2208 = vadd.f32 %v2206, %v2207
        %v2209 = vadd.f32 %v2047, %v2051
        %v2210 = vadd.f32 %v2209, %v2055
        %v2211 = vadd.f32 %v2210, %v2059
        %v2212 = vadd.f32 %v2211, %v2063
        %v2213 = vadd.f32 %v2212, %v2067
        %v2214 = vadd.f32 %v2213, %v2071
        %v2215 = vadd.f32 %v2214, %v2075
        %v2216 = vadd.f32 %v2215, %v2079
        %v2217 = vadd.f32 %v2216, %v2083
        %v2218 = vadd.f32 %v2217, %v2087
        %v2219 = vadd.f32 %v2218, %v2091
        %v2220 = vadd.f32 %v2219, %v2095
        %v2221 = vadd.f32 %v2220, %v2099
        %v2222 = vadd.f32 %v2221, %v2103
        %v2223 = vadd.f32 %v2222, %v2107
        %v2224 = vadd.f32 %v2223, %v2111
        %v2225 = vadd.f32 %v2224, %v2115
        %v2226 = vadd.f32 %v2225, %v2119
        %v2227 = vadd.f32 %v2226, %v2123
        %v2228 = vadd.f32 %v2227, %v2127
        %v2229 = vadd.f32 %v2228, %v2131
        %v2230 = vadd.f32 %v2229, %v2135
        %v2231 = vadd.f32 %v2230, %v2139
        %v2232 = vadd.f32 %v2231, %v2143
        %v2233 = vadd.f32 %v2232, %v2147
        %v2234 = vadd.f32 %v2233, %v2151
        %v2235 = vadd.f32 %v2234, %v2155
        %v2236 = vadd.f32 %v2235, %v2159
        %v2237 = vadd.f32 %v2236, %v2163
        %v2238 = vadd.f32 %v2237, %v2167
        %v2239 = vadd.f32 %v2238, %v2171
        %v2240 = vrot.slane %v2239, 4
        %v2241 = vadd.f32 %v2239, %v2240
        %v2242 = vrot.slane %v2241, 2
        %v2243 = vadd.f32 %v2241, %v2242
        %v2244 = vrot.slane %v2243, 1
        %v2245 = vadd.f32 %v2243, %v2244
        %v2246 = vrcp.pop %v2208
        %v2247 = vrcp.pop %v2245
        %v2248 = vmul.f32 %v2045, %v2246
        %v2249 = vmul.f32 %v2047, %v2247
        %v2250 = vmul.f32 %v2049, %v2246
        %v2251 = vmul.f32 %v2051, %v2247
        %v2252 = vmul.f32 %v2053, %v2246
        %v2253 = vmul.f32 %v2055, %v2247
        %v2254 = vmul.f32 %v2057, %v2246
        %v2255 = vmul.f32 %v2059, %v2247
        %v2256 = vmul.f32 %v2061, %v2246
        %v2257 = vmul.f32 %v2063, %v2247
        %v2258 = vmul.f32 %v2065, %v2246
        %v2259 = vmul.f32 %v2067, %v2247
        %v2260 = vmul.f32 %v2069, %v2246
        %v2261 = vmul.f32 %v2071, %v2247
        %v2262 = vmul.f32 %v2073, %v2246
        %v2263 = vmul.f32 %v2075, %v2247
        %v2264 = vmul.f32 %v2077, %v2246
        %v2265 = vmul.f32 %v2079, %v2247
        %v2266 = vmul.f32 %v2081, %v2246
        %v2267 = vmul.f32 %v2083, %v2247
        %v2268 = vmul.f32 %v2085, %v2246
        %v2269 = vmul.f32 %v2087, %v2247
        %v2270 = vmul.f32 %v2089, %v2246
        %v2271 = vmul.f32 %v2091, %v2247
        %v2272 = vmul.f32 %v2093, %v2246
        %v2273 = vmul.f32 %v2095, %v2247
        %v2274 = vmul.f32 %v2097, %v2246
        %v2275 = vmul.f32 %v2099, %v2247
        %v2276 = vmul.f32 %v2101, %v2246
        %v2277 = vmul.f32 %v2103, %v2247
        %v2278 = vmul.f32 %v2105, %v2246
        %v2279 = vmul.f32 %v2107, %v2247
        %v2280 = vmul.f32 %v2109, %v2246
        %v2281 = vmul.f32 %v2111, %v2247
        %v2282 = vmul.f32 %v2113, %v2246
        %v2283 = vmul.f32 %v2115, %v2247
        %v2284 = vmul.f32 %v2117, %v2246
        %v2285 = vmul.f32 %v2119, %v2247
        %v2286 = vmul.f32 %v2121, %v2246
        %v2287 = vmul.f32 %v2123, %v2247
        %v2288 = vmul.f32 %v2125, %v2246
        %v2289 = vmul.f32 %v2127, %v2247
        %v2290 = vmul.f32 %v2129, %v2246
        %v2291 = vmul.f32 %v2131, %v2247
        %v2292 = vmul.f32 %v2133, %v2246
        %v2293 = vmul.f32 %v2135, %v2247
        %v2294 = vmul.f32 %v2137, %v2246
        %v2295 = vmul.f32 %v2139, %v2247
        %v2296 = vmul.f32 %v2141, %v2246
        %v2297 = vmul.f32 %v2143, %v2247
        %v2298 = vmul.f32 %v2145, %v2246
        %v2299 = vmul.f32 %v2147, %v2247
        %v2300 = vmul.f32 %v2149, %v2246
        %v2301 = vmul.f32 %v2151, %v2247
        %v2302 = vmul.f32 %v2153, %v2246
        %v2303 = vmul.f32 %v2155, %v2247
        %v2304 = vmul.f32 %v2157, %v2246
        %v2305 = vmul.f32 %v2159, %v2247
        %v2306 = vmul.f32 %v2161, %v2246
        %v2307 = vmul.f32 %v2163, %v2247
        %v2308 = vmul.f32 %v2165, %v2246
        %v2309 = vmul.f32 %v2167, %v2247
        %v2310 = vmul.f32 %v2169, %v2246
        %v2311 = vmul.f32 %v2171, %v2247
        %v2312 = vpack.c.bf16 %v2250, %v2248
        %v2313 = vpack.c.bf16 %v2251, %v2249
        %v2314 = vpack.c.bf16 %v2254, %v2252
        %v2315 = vpack.c.bf16 %v2255, %v2253
        %v2316 = vpack.c.bf16 %v2258, %v2256
        %v2317 = vpack.c.bf16 %v2259, %v2257
        %v2318 = vpack.c.bf16 %v2262, %v2260
        %v2319 = vpack.c.bf16 %v2263, %v2261
        %v2320 = vpack.c.bf16 %v2266, %v2264
        %v2321 = vpack.c.bf16 %v2267, %v2265
        %v2322 = vpack.c.bf16 %v2270, %v2268
        %v2323 = vpack.c.bf16 %v2271, %v2269
        %v2324 = vpack.c.bf16 %v2274, %v2272
        %v2325 = vpack.c.bf16 %v2275, %v2273
        %v2326 = vpack.c.bf16 %v2278, %v2276
        %v2327 = vpack.c.bf16 %v2279, %v2277
        %v2328 = vpack.c.bf16 %v2282, %v2280
        %v2329 = vpack.c.bf16 %v2283, %v2281
        %v2330 = vpack.c.bf16 %v2286, %v2284
        %v2331 = vpack.c.bf16 %v2287, %v2285
        %v2332 = vpack.c.bf16 %v2290, %v2288
        %v2333 = vpack.c.bf16 %v2291, %v2289
        %v2334 = vpack.c.bf16 %v2294, %v2292
        %v2335 = vpack.c.bf16 %v2295, %v2293
        %v2336 = vpack.c.bf16 %v2298, %v2296
        %v2337 = vpack.c.bf16 %v2299, %v2297
        %v2338 = vpack.c.bf16 %v2302, %v2300
        %v2339 = vpack.c.bf16 %v2303, %v2301
        %v2340 = vpack.c.bf16 %v2306, %v2304
        %v2341 = vpack.c.bf16 %v2307, %v2305
        %v2342 = vpack.c.bf16 %v2310, %v2308
        %v2343 = vpack.c.bf16 %v2311, %v2309
        %2344 = vmatprep.subr.bf16.mxu0 %v2313
        %2345 = vmatpush1.bf16.msra.mxu0 %v2312
        %2346 = vmatprep.subr.bf16.mxu0 %v2315
        %2347 = vmatpush1.bf16.msra.mxu0 %v2314
        %2348 = vmatprep.subr.bf16.mxu0 %v2317
        %2349 = vmatpush1.bf16.msra.mxu0 %v2316
        %2350 = vmatprep.subr.bf16.mxu0 %v2319
        %2351 = vmatpush1.bf16.msra.mxu0 %v2318
        %2352 = vmatprep.subr.bf16.mxu0 %v2321
        %2353 = vmatpush1.bf16.msra.mxu0 %v2320
        %2354 = vmatprep.subr.bf16.mxu0 %v2323
        %2355 = vmatpush1.bf16.msra.mxu0 %v2322
        %2356 = vmatprep.subr.bf16.mxu0 %v2325
        %2357 = vmatpush1.bf16.msra.mxu0 %v2324
        %2358 = vmatprep.subr.bf16.mxu0 %v2327
        %2359 = vmatpush1.bf16.msra.mxu0 %v2326
        %2360 = vmatprep.subr.bf16.mxu0 %v2329
        %2361 = vmatpush1.bf16.msra.mxu0 %v2328
        %2362 = vmatprep.subr.bf16.mxu0 %v2331
        %2363 = vmatpush1.bf16.msra.mxu0 %v2330
        %2364 = vmatprep.subr.bf16.mxu0 %v2333
        %2365 = vmatpush1.bf16.msra.mxu0 %v2332
        %2366 = vmatprep.subr.bf16.mxu0 %v2335
        %2367 = vmatpush1.bf16.msra.mxu0 %v2334
        %2368 = vmatprep.subr.bf16.mxu0 %v2337
        %2369 = vmatpush1.bf16.msra.mxu0 %v2336
        %2370 = vmatprep.subr.bf16.mxu0 %v2339
        %2371 = vmatpush1.bf16.msra.mxu0 %v2338
        %2372 = vmatprep.subr.bf16.mxu0 %v2341
        %2373 = vmatpush1.bf16.msra.mxu0 %v2340
        %2374 = vmatprep.subr.bf16.mxu0 %v2343
        %2375 = vmatpush1.bf16.msra.mxu0 %v2342
        %2376 = vmatprep.mubr.bf16.mxu0 %v1629
        %2377 = vmatmul.mubr.bf16.gmra.mrb[0].mxu0 %v1628
        %v2378 = vpop.f32.mrb[0].mxu0
        %v2379 = vadd.f32 0.0, %v2378
        %v2380 = vpop.f32.mrb[0].mxu0
        %v2381 = vadd.f32 0.0, %v2380
        %v2382 = vpop.f32.mrb[0].mxu0
        %v2383 = vadd.f32 0.0, %v2382
        %v2384 = vpop.f32.mrb[0].mxu0
        %v2385 = vadd.f32 0.0, %v2384
        %2386 = vmatprep.mubr.bf16.mxu0 %v1631
        %2387 = vmatmul.mubr.bf16.gmra.mrb[0].mxu0 %v1630
        %v2388 = vpop.f32.mrb[0].mxu0
        %v2389 = vadd.f32 0.0, %v2388
        %v2390 = vpop.f32.mrb[0].mxu0
        %v2391 = vadd.f32 0.0, %v2390
        %v2392 = vpop.f32.mrb[0].mxu0
        %v2393 = vadd.f32 0.0, %v2392
        %v2394 = vpop.f32.mrb[0].mxu0
        %v2395 = vadd.f32 0.0, %v2394
        %2396 = vdwg.mxu0
        %2397 = vst [vmem:[#allocation3] sm:$0xff] %v2379
        %2398 = vst [vmem:[#allocation3 + $0x8] sm:$0xff] %v2381
        %2399 = vst [vmem:[#allocation3 + $0x20] sm:$0xff] %v2383
        %2400 = vst [vmem:[#allocation3 + $0x28] sm:$0xff] %v2385
        %2401 = vst [vmem:[#allocation3 + $0x40] sm:$0xff] %v2389
        %2402 = vst [vmem:[#allocation3 + $0x48] sm:$0xff] %v2391
        %2403 = vst [vmem:[#allocation3 + $0x60] sm:$0xff] %v2393
        %2404 = vst [vmem:[#allocation3 + $0x68] sm:$0xff] %v2395
        %v2405 = vld [vmem:[#allocation2 + $0x10] sm:$0xff]
        %v2406 = vld [vmem:[#allocation2 + $0x18] sm:$0xff]
        %v2407 = vld [vmem:[#allocation2 + $0x30] sm:$0xff]
        %v2408 = vld [vmem:[#allocation2 + $0x38] sm:$0xff]
        %v2409 = vld [vmem:[#allocation2 + $0x110] sm:$0xff]
        %v2410 = vld [vmem:[#allocation2 + $0x118] sm:$0xff]
        %v2411 = vld [vmem:[#allocation2 + $0x130] sm:$0xff]
        %v2412 = vld [vmem:[#allocation2 + $0x138] sm:$0xff]
        %v2413 = vld [vmem:[#allocation2 + $0x210] sm:$0xff]
        %v2414 = vld [vmem:[#allocation2 + $0x218] sm:$0xff]
        %v2415 = vld [vmem:[#allocation2 + $0x230] sm:$0xff]
        %v2416 = vld [vmem:[#allocation2 + $0x238] sm:$0xff]
        %2417 = vxpose.xlu0.c.b16.start [1/8] %v2409, 128
        %2418 = vxpose.xlu0.c.b16.cont [2/8] %v2411, 128
        %2419 = vxpose.xlu0.c.b16.cont [3/8] 0, 128
        %2420 = vxpose.xlu0.c.b16.cont [4/8] 0, 128
        %2421 = vxpose.xlu0.c.b16.cont [5/8] 0, 128
        %2422 = vxpose.xlu0.c.b16.cont [6/8] 0, 128
        %2423 = vxpose.xlu0.c.b16.cont [7/8] 0, 128
        %2424 = vxpose.xlu0.c.b16.end [8/8] 0, 128
        %v2425 = vpop.trf.xlu0
        %v2426 = vpop.trf.xlu0
        %v2427 = vpop.trf.xlu0
        %v2428 = vpop.trf.xlu0
        %v2429 = vpop.trf.xlu0
        %v2430 = vpop.trf.xlu0
        %v2431 = vpop.trf.xlu0
        %v2432 = vpop.trf.xlu0
        %2433 = vxpose.xlu0.c.b16.start [1/8] %v2410, 128
        %2434 = vxpose.xlu0.c.b16.cont [2/8] %v2412, 128
        %2435 = vxpose.xlu0.c.b16.cont [3/8] 0, 128
        %2436 = vxpose.xlu0.c.b16.cont [4/8] 0, 128
        %2437 = vxpose.xlu0.c.b16.cont [5/8] 0, 128
        %2438 = vxpose.xlu0.c.b16.cont [6/8] 0, 128
        %2439 = vxpose.xlu0.c.b16.cont [7/8] 0, 128
        %2440 = vxpose.xlu0.c.b16.end [8/8] 0, 128
        %v2441 = vpop.trf.xlu0
        %v2442 = vpop.trf.xlu0
        %v2443 = vpop.trf.xlu0
        %v2444 = vpop.trf.xlu0
        %v2445 = vpop.trf.xlu0
        %v2446 = vpop.trf.xlu0
        %v2447 = vpop.trf.xlu0
        %v2448 = vpop.trf.xlu0
        %v2450 = vsel %vm1664, %v2425, 0
        %v2453 = vsel %vm1664, %v2426, 0
        %v2456 = vsel %vm1664, %v2427, 0
        %v2459 = vsel %vm1664, %v2428, 0
        %v2462 = vsel %vm1664, %v2429, 0
        %v2465 = vsel %vm1664, %v2430, 0
        %v2468 = vsel %vm1664, %v2431, 0
        %v2471 = vsel %vm1664, %v2432, 0
        %v2474 = vsel %vm1664, %v2441, 0
        %v2477 = vsel %vm1664, %v2442, 0
        %v2480 = vsel %vm1664, %v2443, 0
        %v2483 = vsel %vm1664, %v2444, 0
        %v2486 = vsel %vm1664, %v2445, 0
        %v2489 = vsel %vm1664, %v2446, 0
        %v2492 = vsel %vm1664, %v2447, 0
        %v2495 = vsel %vm1664, %v2448, 0
        %2497 = vmatprep.subr.bf16.mxu0 %v2406
        %2498 = vmatpush1.bf16.msra.mxu0 %v2405
        %2499 = vmatprep.subr.bf16.mxu0 %v2408
        %2500 = vmatpush1.bf16.msra.mxu0 %v2407
        %2501 = vmatprep.subr.bf16.mxu0 0
        %2502 = vmatpush1.bf16.msra.mxu0 0
        %2503 = vmatprep.subr.bf16.mxu0 0
        %2504 = vmatpush1.bf16.msra.mxu0 0
        %2505 = vmatprep.subr.bf16.mxu0 0
        %2506 = vmatpush1.bf16.msra.mxu0 0
        %2507 = vmatprep.subr.bf16.mxu0 0
        %2508 = vmatpush1.bf16.msra.mxu0 0
        %2509 = vmatprep.subr.bf16.mxu0 0
        %2510 = vmatpush1.bf16.msra.mxu0 0
        %2511 = vmatprep.subr.bf16.mxu0 0
        %2512 = vmatpush1.bf16.msra.mxu0 0
        %2513 = vmatprep.subr.bf16.mxu0 0
        %2514 = vmatpush1.bf16.msra.mxu0 0
        %2515 = vmatprep.subr.bf16.mxu0 0
        %2516 = vmatpush1.bf16.msra.mxu0 0
        %2517 = vmatprep.subr.bf16.mxu0 0
        %2518 = vmatpush1.bf16.msra.mxu0 0
        %2519 = vmatprep.subr.bf16.mxu0 0
        %2520 = vmatpush1.bf16.msra.mxu0 0
        %2521 = vmatprep.subr.bf16.mxu0 0
        %2522 = vmatpush1.bf16.msra.mxu0 0
        %2523 = vmatprep.subr.bf16.mxu0 0
        %2524 = vmatpush1.bf16.msra.mxu0 0
        %2525 = vmatprep.subr.bf16.mxu0 0
        %2526 = vmatpush1.bf16.msra.mxu0 0
        %2527 = vmatprep.subr.bf16.mxu0 0
        %2528 = vmatpush1.bf16.msra.mxu0 0
        %2529 = vmatprep.mubr.bf16.mxu0 0
        %2530 = vmatmul.mubr.bf16.gmra.mrb[0].mxu0 %v2450
        %v2531 = vpop.f32.mrb[0].mxu0
        %v2532 = vadd.f32 0.0, %v2531
        %v2533 = vpop.f32.mrb[0].mxu0
        %v2534 = vadd.f32 0.0, %v2533
        %v2535 = vpop.f32.mrb[0].mxu0
        %v2536 = vadd.f32 0.0, %v2535
        %v2537 = vpop.f32.mrb[0].mxu0
        %v2538 = vadd.f32 0.0, %v2537
        %2539 = vmatprep.mubr.bf16.mxu0 0
        %2540 = vmatmul.mubr.bf16.gmra.mrb[0].mxu0 %v2453
        %v2541 = vpop.f32.mrb[0].mxu0
        %v2542 = vadd.f32 0.0, %v2541
        %v2543 = vpop.f32.mrb[0].mxu0
        %v2544 = vadd.f32 0.0, %v2543
        %v2545 = vpop.f32.mrb[0].mxu0
        %v2546 = vadd.f32 0.0, %v2545
        %v2547 = vpop.f32.mrb[0].mxu0
        %v2548 = vadd.f32 0.0, %v2547
        %2549 = vmatprep.mubr.bf16.mxu0 0
        %2550 = vmatmul.mubr.bf16.gmra.mrb[0].mxu0 %v2456
        %v2551 = vpop.f32.mrb[0].mxu0
        %v2552 = vadd.f32 0.0, %v2551
        %v2553 = vpop.f32.mrb[0].mxu0
        %v2554 = vadd.f32 0.0, %v2553
        %v2555 = vpop.f32.mrb[0].mxu0
        %v2556 = vadd.f32 0.0, %v2555
        %v2557 = vpop.f32.mrb[0].mxu0
        %v2558 = vadd.f32 0.0, %v2557
        %2559 = vmatprep.mubr.bf16.mxu0 0
        %2560 = vmatmul.mubr.bf16.gmra.mrb[0].mxu0 %v2459
        %v2561 = vpop.f32.mrb[0].mxu0
        %v2562 = vadd.f32 0.0, %v2561
        %v2563 = vpop.f32.mrb[0].mxu0
        %v2564 = vadd.f32 0.0, %v2563
        %v2565 = vpop.f32.mrb[0].mxu0
        %v2566 = vadd.f32 0.0, %v2565
        %v2567 = vpop.f32.mrb[0].mxu0
        %v2568 = vadd.f32 0.0, %v2567
        %2569 = vmatprep.mubr.bf16.mxu0 0
        %2570 = vmatmul.mubr.bf16.gmra.mrb[0].mxu0 %v2462
        %v2571 = vpop.f32.mrb[0].mxu0
        %v2572 = vadd.f32 0.0, %v2571
        %v2573 = vpop.f32.mrb[0].mxu0
        %v2574 = vadd.f32 0.0, %v2573
        %v2575 = vpop.f32.mrb[0].mxu0
        %v2576 = vadd.f32 0.0, %v2575
        %v2577 = vpop.f32.mrb[0].mxu0
        %v2578 = vadd.f32 0.0, %v2577
        %2579 = vmatprep.mubr.bf16.mxu0 0
        %2580 = vmatmul.mubr.bf16.gmra.mrb[0].mxu0 %v2465
        %v2581 = vpop.f32.mrb[0].mxu0
        %v2582 = vadd.f32 0.0, %v2581
        %v2583 = vpop.f32.mrb[0].mxu0
        %v2584 = vadd.f32 0.0, %v2583
        %v2585 = vpop.f32.mrb[0].mxu0
        %v2586 = vadd.f32 0.0, %v2585
        %v2587 = vpop.f32.mrb[0].mxu0
        %v2588 = vadd.f32 0.0, %v2587
        %2589 = vmatprep.mubr.bf16.mxu0 0
        %2590 = vmatmul.mubr.bf16.gmra.mrb[0].mxu0 %v2468
        %v2591 = vpop.f32.mrb[0].mxu0
        %v2592 = vadd.f32 0.0, %v2591
        %v2593 = vpop.f32.mrb[0].mxu0
        %v2594 = vadd.f32 0.0, %v2593
        %v2595 = vpop.f32.mrb[0].mxu0
        %v2596 = vadd.f32 0.0, %v2595
        %v2597 = vpop.f32.mrb[0].mxu0
        %v2598 = vadd.f32 0.0, %v2597
        %2599 = vmatprep.mubr.bf16.mxu0 0
        %2600 = vmatmul.mubr.bf16.gmra.mrb[0].mxu0 %v2471
        %v2601 = vpop.f32.mrb[0].mxu0
        %v2602 = vadd.f32 0.0, %v2601
        %v2603 = vpop.f32.mrb[0].mxu0
        %v2604 = vadd.f32 0.0, %v2603
        %v2605 = vpop.f32.mrb[0].mxu0
        %v2606 = vadd.f32 0.0, %v2605
        %v2607 = vpop.f32.mrb[0].mxu0
        %v2608 = vadd.f32 0.0, %v2607
        %2609 = vmatprep.mubr.bf16.mxu0 0
        %2610 = vmatmul.mubr.bf16.gmra.mrb[0].mxu0 %v2474
        %v2611 = vpop.f32.mrb[0].mxu0
        %v2612 = vadd.f32 0.0, %v2611
        %v2613 = vpop.f32.mrb[0].mxu0
        %v2614 = vadd.f32 0.0, %v2613
        %v2615 = vpop.f32.mrb[0].mxu0
        %v2616 = vadd.f32 0.0, %v2615
        %v2617 = vpop.f32.mrb[0].mxu0
        %v2618 = vadd.f32 0.0, %v2617
        %2619 = vmatprep.mubr.bf16.mxu0 0
        %2620 = vmatmul.mubr.bf16.gmra.mrb[0].mxu0 %v2477
        %v2621 = vpop.f32.mrb[0].mxu0
        %v2622 = vadd.f32 0.0, %v2621
        %v2623 = vpop.f32.mrb[0].mxu0
        %v2624 = vadd.f32 0.0, %v2623
        %v2625 = vpop.f32.mrb[0].mxu0
        %v2626 = vadd.f32 0.0, %v2625
        %v2627 = vpop.f32.mrb[0].mxu0
        %v2628 = vadd.f32 0.0, %v2627
        %2629 = vmatprep.mubr.bf16.mxu0 0
        %2630 = vmatmul.mubr.bf16.gmra.mrb[0].mxu0 %v2480
        %v2631 = vpop.f32.mrb[0].mxu0
        %v2632 = vadd.f32 0.0, %v2631
        %v2633 = vpop.f32.mrb[0].mxu0
        %v2634 = vadd.f32 0.0, %v2633
        %v2635 = vpop.f32.mrb[0].mxu0
        %v2636 = vadd.f32 0.0, %v2635
        %v2637 = vpop.f32.mrb[0].mxu0
        %v2638 = vadd.f32 0.0, %v2637
        %2639 = vmatprep.mubr.bf16.mxu0 0
        %2640 = vmatmul.mubr.bf16.gmra.mrb[0].mxu0 %v2483
        %v2641 = vpop.f32.mrb[0].mxu0
        %v2642 = vadd.f32 0.0, %v2641
        %v2643 = vpop.f32.mrb[0].mxu0
        %v2644 = vadd.f32 0.0, %v2643
        %v2645 = vpop.f32.mrb[0].mxu0
        %v2646 = vadd.f32 0.0, %v2645
        %v2647 = vpop.f32.mrb[0].mxu0
        %v2648 = vadd.f32 0.0, %v2647
        %2649 = vmatprep.mubr.bf16.mxu0 0
        %2650 = vmatmul.mubr.bf16.gmra.mrb[0].mxu0 %v2486
        %v2651 = vpop.f32.mrb[0].mxu0
        %v2652 = vadd.f32 0.0, %v2651
        %v2653 = vpop.f32.mrb[0].mxu0
        %v2654 = vadd.f32 0.0, %v2653
        %v2655 = vpop.f32.mrb[0].mxu0
        %v2656 = vadd.f32 0.0, %v2655
        %v2657 = vpop.f32.mrb[0].mxu0
        %v2658 = vadd.f32 0.0, %v2657
        %2659 = vmatprep.mubr.bf16.mxu0 0
        %2660 = vmatmul.mubr.bf16.gmra.mrb[0].mxu0 %v2489
        %v2661 = vpop.f32.mrb[0].mxu0
        %v2662 = vadd.f32 0.0, %v2661
        %v2663 = vpop.f32.mrb[0].mxu0
        %v2664 = vadd.f32 0.0, %v2663
        %v2665 = vpop.f32.mrb[0].mxu0
        %v2666 = vadd.f32 0.0, %v2665
        %v2667 = vpop.f32.mrb[0].mxu0
        %v2668 = vadd.f32 0.0, %v2667
        %2669 = vmatprep.mubr.bf16.mxu0 0
        %2670 = vmatmul.mubr.bf16.gmra.mrb[0].mxu0 %v2492
        %v2671 = vpop.f32.mrb[0].mxu0
        %v2672 = vadd.f32 0.0, %v2671
        %v2673 = vpop.f32.mrb[0].mxu0
        %v2674 = vadd.f32 0.0, %v2673
        %v2675 = vpop.f32.mrb[0].mxu0
        %v2676 = vadd.f32 0.0, %v2675
        %v2677 = vpop.f32.mrb[0].mxu0
        %v2678 = vadd.f32 0.0, %v2677
        %2679 = vmatprep.mubr.bf16.mxu0 0
        %2680 = vmatmul.mubr.bf16.gmra.mrb[0].mxu0 %v2495
        %v2681 = vpop.f32.mrb[0].mxu0
        %v2682 = vadd.f32 0.0, %v2681
        %v2683 = vpop.f32.mrb[0].mxu0
        %v2684 = vadd.f32 0.0, %v2683
        %v2685 = vpop.f32.mrb[0].mxu0
        %v2686 = vadd.f32 0.0, %v2685
        %v2687 = vpop.f32.mrb[0].mxu0
        %v2688 = vadd.f32 0.0, %v2687
        %2689 = vdwg.mxu0
        %v2690 = vmax.f32 %v2532, %v2542
        %v2691 = vmax.f32 %v2536, %v2546
        %v2692 = vmax.f32 %v2690, %v2552
        %v2693 = vmax.f32 %v2691, %v2556
        %v2694 = vmax.f32 %v2692, %v2562
        %v2695 = vmax.f32 %v2693, %v2566
        %v2696 = vmax.f32 %v2694, %v2572
        %v2697 = vmax.f32 %v2695, %v2576
        %v2698 = vmax.f32 %v2696, %v2582
        %v2699 = vmax.f32 %v2697, %v2586
        %v2700 = vmax.f32 %v2698, %v2592
        %v2701 = vmax.f32 %v2699, %v2596
        %v2702 = vmax.f32 %v2700, %v2602
        %v2703 = vmax.f32 %v2701, %v2606
        %v2704 = vmax.f32 %v2702, %v2612
        %v2705 = vmax.f32 %v2703, %v2616
        %v2706 = vmax.f32 %v2704, %v2622
        %v2707 = vmax.f32 %v2705, %v2626
        %v2708 = vmax.f32 %v2706, %v2632
        %v2709 = vmax.f32 %v2707, %v2636
        %v2710 = vmax.f32 %v2708, %v2642
        %v2711 = vmax.f32 %v2709, %v2646
        %v2712 = vmax.f32 %v2710, %v2652
        %v2713 = vmax.f32 %v2711, %v2656
        %v2714 = vmax.f32 %v2712, %v2662
        %v2715 = vmax.f32 %v2713, %v2666
        %v2716 = vmax.f32 %v2714, %v2672
        %v2717 = vmax.f32 %v2715, %v2676
        %v2718 = vmax.f32 %v2716, %v2682
        %v2719 = vmax.f32 %v2717, %v2686
        %v2720 = vmax.f32 %v2718, %v2719
        %v2721 = vrot.slane %v2720, 4
        %v2722 = vmax.f32 %v2720, %v2721
        %v2723 = vrot.slane %v2722, 2
        %v2724 = vmax.f32 %v2722, %v2723
        %v2725 = vrot.slane %v2724, 1
        %v2726 = vmax.f32 %v2724, %v2725
        %v2727 = vmax.f32 %v2534, %v2544
        %v2728 = vmax.f32 %v2538, %v2548
        %v2729 = vmax.f32 %v2727, %v2554
        %v2730 = vmax.f32 %v2728, %v2558
        %v2731 = vmax.f32 %v2729, %v2564
        %v2732 = vmax.f32 %v2730, %v2568
        %v2733 = vmax.f32 %v2731, %v2574
        %v2734 = vmax.f32 %v2732, %v2578
        %v2735 = vmax.f32 %v2733, %v2584
        %v2736 = vmax.f32 %v2734, %v2588
        %v2737 = vmax.f32 %v2735, %v2594
        %v2738 = vmax.f32 %v2736, %v2598
        %v2739 = vmax.f32 %v2737, %v2604
        %v2740 = vmax.f32 %v2738, %v2608
        %v2741 = vmax.f32 %v2739, %v2614
        %v2742 = vmax.f32 %v2740, %v2618
        %v2743 = vmax.f32 %v2741, %v2624
        %v2744 = vmax.f32 %v2742, %v2628
        %v2745 = vmax.f32 %v2743, %v2634
        %v2746 = vmax.f32 %v2744, %v2638
        %v2747 = vmax.f32 %v2745, %v2644
        %v2748 = vmax.f32 %v2746, %v2648
        %v2749 = vmax.f32 %v2747, %v2654
        %v2750 = vmax.f32 %v2748, %v2658
        %v2751 = vmax.f32 %v2749, %v2664
        %v2752 = vmax.f32 %v2750, %v2668
        %v2753 = vmax.f32 %v2751, %v2674
        %v2754 = vmax.f32 %v2752, %v2678
        %v2755 = vmax.f32 %v2753, %v2684
        %v2756 = vmax.f32 %v2754, %v2688
        %v2757 = vmax.f32 %v2755, %v2756
        %v2758 = vrot.slane %v2757, 4
        %v2759 = vmax.f32 %v2757, %v2758
        %v2760 = vrot.slane %v2759, 2
        %v2761 = vmax.f32 %v2759, %v2760
        %v2762 = vrot.slane %v2761, 1
        %v2763 = vmax.f32 %v2761, %v2762
        %v2764 = vsub.f32 %v2532, %v2726
        %v2765 = vsub.f32 %v2534, %v2763
        %v2766 = vsub.f32 %v2536, %v2726
        %v2767 = vsub.f32 %v2538, %v2763
        %v2768 = vsub.f32 %v2542, %v2726
        %v2769 = vsub.f32 %v2544, %v2763
        %v2770 = vsub.f32 %v2546, %v2726
        %v2771 = vsub.f32 %v2548, %v2763
        %v2772 = vsub.f32 %v2552, %v2726
        %v2773 = vsub.f32 %v2554, %v2763
        %v2774 = vsub.f32 %v2556, %v2726
        %v2775 = vsub.f32 %v2558, %v2763
        %v2776 = vsub.f32 %v2562, %v2726
        %v2777 = vsub.f32 %v2564, %v2763
        %v2778 = vsub.f32 %v2566, %v2726
        %v2779 = vsub.f32 %v2568, %v2763
        %v2780 = vsub.f32 %v2572, %v2726
        %v2781 = vsub.f32 %v2574, %v2763
        %v2782 = vsub.f32 %v2576, %v2726
        %v2783 = vsub.f32 %v2578, %v2763
        %v2784 = vsub.f32 %v2582, %v2726
        %v2785 = vsub.f32 %v2584, %v2763
        %v2786 = vsub.f32 %v2586, %v2726
        %v2787 = vsub.f32 %v2588, %v2763
        %v2788 = vsub.f32 %v2592, %v2726
        %v2789 = vsub.f32 %v2594, %v2763
        %v2790 = vsub.f32 %v2596, %v2726
        %v2791 = vsub.f32 %v2598, %v2763
        %v2792 = vsub.f32 %v2602, %v2726
        %v2793 = vsub.f32 %v2604, %v2763
        %v2794 = vsub.f32 %v2606, %v2726
        %v2795 = vsub.f32 %v2608, %v2763
        %v2796 = vsub.f32 %v2612, %v2726
        %v2797 = vsub.f32 %v2614, %v2763
        %v2798 = vsub.f32 %v2616, %v2726
        %v2799 = vsub.f32 %v2618, %v2763
        %v2800 = vsub.f32 %v2622, %v2726
        %v2801 = vsub.f32 %v2624, %v2763
        %v2802 = vsub.f32 %v2626, %v2726
        %v2803 = vsub.f32 %v2628, %v2763
        %v2804 = vsub.f32 %v2632, %v2726
        %v2805 = vsub.f32 %v2634, %v2763
        %v2806 = vsub.f32 %v2636, %v2726
        %v2807 = vsub.f32 %v2638, %v2763
        %v2808 = vsub.f32 %v2642, %v2726
        %v2809 = vsub.f32 %v2644, %v2763
        %v2810 = vsub.f32 %v2646, %v2726
        %v2811 = vsub.f32 %v2648, %v2763
        %v2812 = vsub.f32 %v2652, %v2726
        %v2813 = vsub.f32 %v2654, %v2763
        %v2814 = vsub.f32 %v2656, %v2726
        %v2815 = vsub.f32 %v2658, %v2763
        %v2816 = vsub.f32 %v2662, %v2726
        %v2817 = vsub.f32 %v2664, %v2763
        %v2818 = vsub.f32 %v2666, %v2726
        %v2819 = vsub.f32 %v2668, %v2763
        %v2820 = vsub.f32 %v2672, %v2726
        %v2821 = vsub.f32 %v2674, %v2763
        %v2822 = vsub.f32 %v2676, %v2726
        %v2823 = vsub.f32 %v2678, %v2763
        %v2824 = vsub.f32 %v2682, %v2726
        %v2825 = vsub.f32 %v2684, %v2763
        %v2826 = vsub.f32 %v2686, %v2726
        %v2827 = vsub.f32 %v2688, %v2763
        %v2828 = vmul.f32 %v2764, 1.442695
        %v2829 = vpow.pop %v2828
        %v2830 = vmul.f32 %v2765, 1.442695
        %v2831 = vpow.pop %v2830
        %v2832 = vmul.f32 %v2766, 1.442695
        %v2833 = vpow.pop %v2832
        %v2834 = vmul.f32 %v2767, 1.442695
        %v2835 = vpow.pop %v2834
        %v2836 = vmul.f32 %v2768, 1.442695
        %v2837 = vpow.pop %v2836
        %v2838 = vmul.f32 %v2769, 1.442695
        %v2839 = vpow.pop %v2838
        %v2840 = vmul.f32 %v2770, 1.442695
        %v2841 = vpow.pop %v2840
        %v2842 = vmul.f32 %v2771, 1.442695
        %v2843 = vpow.pop %v2842
        %v2844 = vmul.f32 %v2772, 1.442695
        %v2845 = vpow.pop %v2844
        %v2846 = vmul.f32 %v2773, 1.442695
        %v2847 = vpow.pop %v2846
        %v2848 = vmul.f32 %v2774, 1.442695
        %v2849 = vpow.pop %v2848
        %v2850 = vmul.f32 %v2775, 1.442695
        %v2851 = vpow.pop %v2850
        %v2852 = vmul.f32 %v2776, 1.442695
        %v2853 = vpow.pop %v2852
        %v2854 = vmul.f32 %v2777, 1.442695
        %v2855 = vpow.pop %v2854
        %v2856 = vmul.f32 %v2778, 1.442695
        %v2857 = vpow.pop %v2856
        %v2858 = vmul.f32 %v2779, 1.442695
        %v2859 = vpow.pop %v2858
        %v2860 = vmul.f32 %v2780, 1.442695
        %v2861 = vpow.pop %v2860
        %v2862 = vmul.f32 %v2781, 1.442695
        %v2863 = vpow.pop %v2862
        %v2864 = vmul.f32 %v2782, 1.442695
        %v2865 = vpow.pop %v2864
        %v2866 = vmul.f32 %v2783, 1.442695
        %v2867 = vpow.pop %v2866
        %v2868 = vmul.f32 %v2784, 1.442695
        %v2869 = vpow.pop %v2868
        %v2870 = vmul.f32 %v2785, 1.442695
        %v2871 = vpow.pop %v2870
        %v2872 = vmul.f32 %v2786, 1.442695
        %v2873 = vpow.pop %v2872
        %v2874 = vmul.f32 %v2787, 1.442695
        %v2875 = vpow.pop %v2874
        %v2876 = vmul.f32 %v2788, 1.442695
        %v2877 = vpow.pop %v2876
        %v2878 = vmul.f32 %v2789, 1.442695
        %v2879 = vpow.pop %v2878
        %v2880 = vmul.f32 %v2790, 1.442695
        %v2881 = vpow.pop %v2880
        %v2882 = vmul.f32 %v2791, 1.442695
        %v2883 = vpow.pop %v2882
        %v2884 = vmul.f32 %v2792, 1.442695
        %v2885 = vpow.pop %v2884
        %v2886 = vmul.f32 %v2793, 1.442695
        %v2887 = vpow.pop %v2886
        %v2888 = vmul.f32 %v2794, 1.442695
        %v2889 = vpow.pop %v2888
        %v2890 = vmul.f32 %v2795, 1.442695
        %v2891 = vpow.pop %v2890
        %v2892 = vmul.f32 %v2796, 1.442695
        %v2893 = vpow.pop %v2892
        %v2894 = vmul.f32 %v2797, 1.442695
        %v2895 = vpow.pop %v2894
        %v2896 = vmul.f32 %v2798, 1.442695
        %v2897 = vpow.pop %v2896
        %v2898 = vmul.f32 %v2799, 1.442695
        %v2899 = vpow.pop %v2898
        %v2900 = vmul.f32 %v2800, 1.442695
        %v2901 = vpow.pop %v2900
        %v2902 = vmul.f32 %v2801, 1.442695
        %v2903 = vpow.pop %v2902
        %v2904 = vmul.f32 %v2802, 1.442695
        %v2905 = vpow.pop %v2904
        %v2906 = vmul.f32 %v2803, 1.442695
        %v2907 = vpow.pop %v2906
        %v2908 = vmul.f32 %v2804, 1.442695
        %v2909 = vpow.pop %v2908
        %v2910 = vmul.f32 %v2805, 1.442695
        %v2911 = vpow.pop %v2910
        %v2912 = vmul.f32 %v2806, 1.442695
        %v2913 = vpow.pop %v2912
        %v2914 = vmul.f32 %v2807, 1.442695
        %v2915 = vpow.pop %v2914
        %v2916 = vmul.f32 %v2808, 1.442695
        %v2917 = vpow.pop %v2916
        %v2918 = vmul.f32 %v2809, 1.442695
        %v2919 = vpow.pop %v2918
        %v2920 = vmul.f32 %v2810, 1.442695
        %v2921 = vpow.pop %v2920
        %v2922 = vmul.f32 %v2811, 1.442695
        %v2923 = vpow.pop %v2922
        %v2924 = vmul.f32 %v2812, 1.442695
        %v2925 = vpow.pop %v2924
        %v2926 = vmul.f32 %v2813, 1.442695
        %v2927 = vpow.pop %v2926
        %v2928 = vmul.f32 %v2814, 1.442695
        %v2929 = vpow.pop %v2928
        %v2930 = vmul.f32 %v2815, 1.442695
        %v2931 = vpow.pop %v2930
        %v2932 = vmul.f32 %v2816, 1.442695
        %v2933 = vpow.pop %v2932
        %v2934 = vmul.f32 %v2817, 1.442695
        %v2935 = vpow.pop %v2934
        %v2936 = vmul.f32 %v2818, 1.442695
        %v2937 = vpow.pop %v2936
        %v2938 = vmul.f32 %v2819, 1.442695
        %v2939 = vpow.pop %v2938
        %v2940 = vmul.f32 %v2820, 1.442695
        %v2941 = vpow.pop %v2940
        %v2942 = vmul.f32 %v2821, 1.442695
        %v2943 = vpow.pop %v2942
        %v2944 = vmul.f32 %v2822, 1.442695
        %v2945 = vpow.pop %v2944
        %v2946 = vmul.f32 %v2823, 1.442695
        %v2947 = vpow.pop %v2946
        %v2948 = vmul.f32 %v2824, 1.442695
        %v2949 = vpow.pop %v2948
        %v2950 = vmul.f32 %v2825, 1.442695
        %v2951 = vpow.pop %v2950
        %v2952 = vmul.f32 %v2826, 1.442695
        %v2953 = vpow.pop %v2952
        %v2954 = vmul.f32 %v2827, 1.442695
        %v2955 = vpow.pop %v2954
        %v2956 = vadd.f32 %v2829, %v2833
        %v2957 = vadd.f32 %v2956, %v2837
        %v2958 = vadd.f32 %v2957, %v2841
        %v2959 = vadd.f32 %v2958, %v2845
        %v2960 = vadd.f32 %v2959, %v2849
        %v2961 = vadd.f32 %v2960, %v2853
        %v2962 = vadd.f32 %v2961, %v2857
        %v2963 = vadd.f32 %v2962, %v2861
        %v2964 = vadd.f32 %v2963, %v2865
        %v2965 = vadd.f32 %v2964, %v2869
        %v2966 = vadd.f32 %v2965, %v2873
        %v2967 = vadd.f32 %v2966, %v2877
        %v2968 = vadd.f32 %v2967, %v2881
        %v2969 = vadd.f32 %v2968, %v2885
        %v2970 = vadd.f32 %v2969, %v2889
        %v2971 = vadd.f32 %v2970, %v2893
        %v2972 = vadd.f32 %v2971, %v2897
        %v2973 = vadd.f32 %v2972, %v2901
        %v2974 = vadd.f32 %v2973, %v2905
        %v2975 = vadd.f32 %v2974, %v2909
        %v2976 = vadd.f32 %v2975, %v2913
        %v2977 = vadd.f32 %v2976, %v2917
        %v2978 = vadd.f32 %v2977, %v2921
        %v2979 = vadd.f32 %v2978, %v2925
        %v2980 = vadd.f32 %v2979, %v2929
        %v2981 = vadd.f32 %v2980, %v2933
        %v2982 = vadd.f32 %v2981, %v2937
        %v2983 = vadd.f32 %v2982, %v2941
        %v2984 = vadd.f32 %v2983, %v2945
        %v2985 = vadd.f32 %v2984, %v2949
        %v2986 = vadd.f32 %v2985, %v2953
        %v2987 = vrot.slane %v2986, 4
        %v2988 = vadd.f32 %v2986, %v2987
        %v2989 = vrot.slane %v2988, 2
        %v2990 = vadd.f32 %v2988, %v2989
        %v2991 = vrot.slane %v2990, 1
        %v2992 = vadd.f32 %v2990, %v2991
        %v2993 = vadd.f32 %v2831, %v2835
        %v2994 = vadd.f32 %v2993, %v2839
        %v2995 = vadd.f32 %v2994, %v2843
        %v2996 = vadd.f32 %v2995, %v2847
        %v2997 = vadd.f32 %v2996, %v2851
        %v2998 = vadd.f32 %v2997, %v2855
        %v2999 = vadd.f32 %v2998, %v2859
        %v3000 = vadd.f32 %v2999, %v2863
        %v3001 = vadd.f32 %v3000, %v2867
        %v3002 = vadd.f32 %v3001, %v2871
        %v3003 = vadd.f32 %v3002, %v2875
        %v3004 = vadd.f32 %v3003, %v2879
        %v3005 = vadd.f32 %v3004, %v2883
        %v3006 = vadd.f32 %v3005, %v2887
        %v3007 = vadd.f32 %v3006, %v2891
        %v3008 = vadd.f32 %v3007, %v2895
        %v3009 = vadd.f32 %v3008, %v2899
        %v3010 = vadd.f32 %v3009, %v2903
        %v3011 = vadd.f32 %v3010, %v2907
        %v3012 = vadd.f32 %v3011, %v2911
        %v3013 = vadd.f32 %v3012, %v2915
        %v3014 = vadd.f32 %v3013, %v2919
        %v3015 = vadd.f32 %v3014, %v2923
        %v3016 = vadd.f32 %v3015, %v2927
        %v3017 = vadd.f32 %v3016, %v2931
        %v3018 = vadd.f32 %v3017, %v2935
        %v3019 = vadd.f32 %v3018, %v2939
        %v3020 = vadd.f32 %v3019, %v2943
        %v3021 = vadd.f32 %v3020, %v2947
        %v3022 = vadd.f32 %v3021, %v2951
        %v3023 = vadd.f32 %v3022, %v2955
        %v3024 = vrot.slane %v3023, 4
        %v3025 = vadd.f32 %v3023, %v3024
        %v3026 = vrot.slane %v3025, 2
        %v3027 = vadd.f32 %v3025, %v3026
        %v3028 = vrot.slane %v3027, 1
        %v3029 = vadd.f32 %v3027, %v3028
        %v3030 = vrcp.pop %v2992
        %v3031 = vrcp.pop %v3029
        %v3032 = vmul.f32 %v2829, %v3030
        %v3033 = vmul.f32 %v2831, %v3031
        %v3034 = vmul.f32 %v2833, %v3030
        %v3035 = vmul.f32 %v2835, %v3031
        %v3036 = vmul.f32 %v2837, %v3030
        %v3037 = vmul.f32 %v2839, %v3031
        %v3038 = vmul.f32 %v2841, %v3030
        %v3039 = vmul.f32 %v2843, %v3031
        %v3040 = vmul.f32 %v2845, %v3030
        %v3041 = vmul.f32 %v2847, %v3031
        %v3042 = vmul.f32 %v2849, %v3030
        %v3043 = vmul.f32 %v2851, %v3031
        %v3044 = vmul.f32 %v2853, %v3030
        %v3045 = vmul.f32 %v2855, %v3031
        %v3046 = vmul.f32 %v2857, %v3030
        %v3047 = vmul.f32 %v2859, %v3031
        %v3048 = vmul.f32 %v2861, %v3030
        %v3049 = vmul.f32 %v2863, %v3031
        %v3050 = vmul.f32 %v2865, %v3030
        %v3051 = vmul.f32 %v2867, %v3031
        %v3052 = vmul.f32 %v2869, %v3030
        %v3053 = vmul.f32 %v2871, %v3031
        %v3054 = vmul.f32 %v2873, %v3030
        %v3055 = vmul.f32 %v2875, %v3031
        %v3056 = vmul.f32 %v2877, %v3030
        %v3057 = vmul.f32 %v2879, %v3031
        %v3058 = vmul.f32 %v2881, %v3030
        %v3059 = vmul.f32 %v2883, %v3031
        %v3060 = vmul.f32 %v2885, %v3030
        %v3061 = vmul.f32 %v2887, %v3031
        %v3062 = vmul.f32 %v2889, %v3030
        %v3063 = vmul.f32 %v2891, %v3031
        %v3064 = vmul.f32 %v2893, %v3030
        %v3065 = vmul.f32 %v2895, %v3031
        %v3066 = vmul.f32 %v2897, %v3030
        %v3067 = vmul.f32 %v2899, %v3031
        %v3068 = vmul.f32 %v2901, %v3030
        %v3069 = vmul.f32 %v2903, %v3031
        %v3070 = vmul.f32 %v2905, %v3030
        %v3071 = vmul.f32 %v2907, %v3031
        %v3072 = vmul.f32 %v2909, %v3030
        %v3073 = vmul.f32 %v2911, %v3031
        %v3074 = vmul.f32 %v2913, %v3030
        %v3075 = vmul.f32 %v2915, %v3031
        %v3076 = vmul.f32 %v2917, %v3030
        %v3077 = vmul.f32 %v2919, %v3031
        %v3078 = vmul.f32 %v2921, %v3030
        %v3079 = vmul.f32 %v2923, %v3031
        %v3080 = vmul.f32 %v2925, %v3030
        %v3081 = vmul.f32 %v2927, %v3031
        %v3082 = vmul.f32 %v2929, %v3030
        %v3083 = vmul.f32 %v2931, %v3031
        %v3084 = vmul.f32 %v2933, %v3030
        %v3085 = vmul.f32 %v2935, %v3031
        %v3086 = vmul.f32 %v2937, %v3030
        %v3087 = vmul.f32 %v2939, %v3031
        %v3088 = vmul.f32 %v2941, %v3030
        %v3089 = vmul.f32 %v2943, %v3031
        %v3090 = vmul.f32 %v2945, %v3030
        %v3091 = vmul.f32 %v2947, %v3031
        %v3092 = vmul.f32 %v2949, %v3030
        %v3093 = vmul.f32 %v2951, %v3031
        %v3094 = vmul.f32 %v2953, %v3030
        %v3095 = vmul.f32 %v2955, %v3031
        %v3096 = vpack.c.bf16 %v3034, %v3032
        %v3097 = vpack.c.bf16 %v3035, %v3033
        %v3098 = vpack.c.bf16 %v3038, %v3036
        %v3099 = vpack.c.bf16 %v3039, %v3037
        %v3100 = vpack.c.bf16 %v3042, %v3040
        %v3101 = vpack.c.bf16 %v3043, %v3041
        %v3102 = vpack.c.bf16 %v3046, %v3044
        %v3103 = vpack.c.bf16 %v3047, %v3045
        %v3104 = vpack.c.bf16 %v3050, %v3048
        %v3105 = vpack.c.bf16 %v3051, %v3049
        %v3106 = vpack.c.bf16 %v3054, %v3052
        %v3107 = vpack.c.bf16 %v3055, %v3053
        %v3108 = vpack.c.bf16 %v3058, %v3056
        %v3109 = vpack.c.bf16 %v3059, %v3057
        %v3110 = vpack.c.bf16 %v3062, %v3060
        %v3111 = vpack.c.bf16 %v3063, %v3061
        %v3112 = vpack.c.bf16 %v3066, %v3064
        %v3113 = vpack.c.bf16 %v3067, %v3065
        %v3114 = vpack.c.bf16 %v3070, %v3068
        %v3115 = vpack.c.bf16 %v3071, %v3069
        %v3116 = vpack.c.bf16 %v3074, %v3072
        %v3117 = vpack.c.bf16 %v3075, %v3073
        %v3118 = vpack.c.bf16 %v3078, %v3076
        %v3119 = vpack.c.bf16 %v3079, %v3077
        %v3120 = vpack.c.bf16 %v3082, %v3080
        %v3121 = vpack.c.bf16 %v3083, %v3081
        %v3122 = vpack.c.bf16 %v3086, %v3084
        %v3123 = vpack.c.bf16 %v3087, %v3085
        %v3124 = vpack.c.bf16 %v3090, %v3088
        %v3125 = vpack.c.bf16 %v3091, %v3089
        %v3126 = vpack.c.bf16 %v3094, %v3092
        %v3127 = vpack.c.bf16 %v3095, %v3093
        %3128 = vmatprep.subr.bf16.mxu0 %v3097
        %3129 = vmatpush1.bf16.msra.mxu0 %v3096
        %3130 = vmatprep.subr.bf16.mxu0 %v3099
        %3131 = vmatpush1.bf16.msra.mxu0 %v3098
        %3132 = vmatprep.subr.bf16.mxu0 %v3101
        %3133 = vmatpush1.bf16.msra.mxu0 %v3100
        %3134 = vmatprep.subr.bf16.mxu0 %v3103
        %3135 = vmatpush1.bf16.msra.mxu0 %v3102
        %3136 = vmatprep.subr.bf16.mxu0 %v3105
        %3137 = vmatpush1.bf16.msra.mxu0 %v3104
        %3138 = vmatprep.subr.bf16.mxu0 %v3107
        %3139 = vmatpush1.bf16.msra.mxu0 %v3106
        %3140 = vmatprep.subr.bf16.mxu0 %v3109
        %3141 = vmatpush1.bf16.msra.mxu0 %v3108
        %3142 = vmatprep.subr.bf16.mxu0 %v3111
        %3143 = vmatpush1.bf16.msra.mxu0 %v3110
        %3144 = vmatprep.subr.bf16.mxu0 %v3113
        %3145 = vmatpush1.bf16.msra.mxu0 %v3112
        %3146 = vmatprep.subr.bf16.mxu0 %v3115
        %3147 = vmatpush1.bf16.msra.mxu0 %v3114
        %3148 = vmatprep.subr.bf16.mxu0 %v3117
        %3149 = vmatpush1.bf16.msra.mxu0 %v3116
        %3150 = vmatprep.subr.bf16.mxu0 %v3119
        %3151 = vmatpush1.bf16.msra.mxu0 %v3118
        %3152 = vmatprep.subr.bf16.mxu0 %v3121
        %3153 = vmatpush1.bf16.msra.mxu0 %v3120
        %3154 = vmatprep.subr.bf16.mxu0 %v3123
        %3155 = vmatpush1.bf16.msra.mxu0 %v3122
        %3156 = vmatprep.subr.bf16.mxu0 %v3125
        %3157 = vmatpush1.bf16.msra.mxu0 %v3124
        %3158 = vmatprep.subr.bf16.mxu0 %v3127
        %3159 = vmatpush1.bf16.msra.mxu0 %v3126
        %3160 = vmatprep.mubr.bf16.mxu0 %v2414
        %3161 = vmatmul.mubr.bf16.gmra.mrb[0].mxu0 %v2413
        %v3162 = vpop.f32.mrb[0].mxu0
        %v3163 = vadd.f32 0.0, %v3162
        %v3164 = vpop.f32.mrb[0].mxu0
        %v3165 = vadd.f32 0.0, %v3164
        %v3166 = vpop.f32.mrb[0].mxu0
        %v3167 = vadd.f32 0.0, %v3166
        %v3168 = vpop.f32.mrb[0].mxu0
        %v3169 = vadd.f32 0.0, %v3168
        %3170 = vmatprep.mubr.bf16.mxu0 %v2416
        %3171 = vmatmul.mubr.bf16.gmra.mrb[0].mxu0 %v2415
        %v3172 = vpop.f32.mrb[0].mxu0
        %v3173 = vadd.f32 0.0, %v3172
        %v3174 = vpop.f32.mrb[0].mxu0
        %v3175 = vadd.f32 0.0, %v3174
        %v3176 = vpop.f32.mrb[0].mxu0
        %v3177 = vadd.f32 0.0, %v3176
        %v3178 = vpop.f32.mrb[0].mxu0
        %v3179 = vadd.f32 0.0, %v3178
        %3180 = vdwg.mxu0
        %3181 = vst [vmem:[#allocation3 + $0x10] sm:$0xff] %v3163
        %3182 = vst [vmem:[#allocation3 + $0x18] sm:$0xff] %v3165
        %3183 = vst [vmem:[#allocation3 + $0x30] sm:$0xff] %v3167
        %3184 = vst [vmem:[#allocation3 + $0x38] sm:$0xff] %v3169
        %3185 = vst [vmem:[#allocation3 + $0x50] sm:$0xff] %v3173
        %3186 = vst [vmem:[#allocation3 + $0x58] sm:$0xff] %v3175
        %3187 = vst [vmem:[#allocation3 + $0x70] sm:$0xff] %v3177
        %3188 = vst [vmem:[#allocation3 + $0x78] sm:$0xff] %v3179
        %v3189 = vld [vmem:[#allocation2 + $0x40] sm:$0xff]
        %v3190 = vld [vmem:[#allocation2 + $0x48] sm:$0xff]
        %v3191 = vld [vmem:[#allocation2 + $0x60] sm:$0xff]
        %v3192 = vld [vmem:[#allocation2 + $0x68] sm:$0xff]
        %v3193 = vld [vmem:[#allocation2 + $0x140] sm:$0xff]
        %v3194 = vld [vmem:[#allocation2 + $0x148] sm:$0xff]
        %v3195 = vld [vmem:[#allocation2 + $0x160] sm:$0xff]
        %v3196 = vld [vmem:[#allocation2 + $0x168] sm:$0xff]
        %v3197 = vld [vmem:[#allocation2 + $0x240] sm:$0xff]
        %v3198 = vld [vmem:[#allocation2 + $0x248] sm:$0xff]
        %v3199 = vld [vmem:[#allocation2 + $0x260] sm:$0xff]
        %v3200 = vld [vmem:[#allocation2 + $0x268] sm:$0xff]
        %3201 = vxpose.xlu0.c.b16.start [1/8] %v3193, 128
        %3202 = vxpose.xlu0.c.b16.cont [2/8] %v3195, 128
        %3203 = vxpose.xlu0.c.b16.cont [3/8] 0, 128
        %3204 = vxpose.xlu0.c.b16.cont [4/8] 0, 128
        %3205 = vxpose.xlu0.c.b16.cont [5/8] 0, 128
        %3206 = vxpose.xlu0.c.b16.cont [6/8] 0, 128
        %3207 = vxpose.xlu0.c.b16.cont [7/8] 0, 128
        %3208 = vxpose.xlu0.c.b16.end [8/8] 0, 128
        %v3209 = vpop.trf.xlu0
        %v3210 = vpop.trf.xlu0
        %v3211 = vpop.trf.xlu0
        %v3212 = vpop.trf.xlu0
        %v3213 = vpop.trf.xlu0
        %v3214 = vpop.trf.xlu0
        %v3215 = vpop.trf.xlu0
        %v3216 = vpop.trf.xlu0
        %3217 = vxpose.xlu0.c.b16.start [1/8] %v3194, 128
        %3218 = vxpose.xlu0.c.b16.cont [2/8] %v3196, 128
        %3219 = vxpose.xlu0.c.b16.cont [3/8] 0, 128
        %3220 = vxpose.xlu0.c.b16.cont [4/8] 0, 128
        %3221 = vxpose.xlu0.c.b16.cont [5/8] 0, 128
        %3222 = vxpose.xlu0.c.b16.cont [6/8] 0, 128
        %3223 = vxpose.xlu0.c.b16.cont [7/8] 0, 128
        %3224 = vxpose.xlu0.c.b16.end [8/8] 0, 128
        %v3225 = vpop.trf.xlu0
        %v3226 = vpop.trf.xlu0
        %v3227 = vpop.trf.xlu0
        %v3228 = vpop.trf.xlu0
        %v3229 = vpop.trf.xlu0
        %v3230 = vpop.trf.xlu0
        %v3231 = vpop.trf.xlu0
        %v3232 = vpop.trf.xlu0
        %v3234 = vsel %vm1664, %v3209, 0
        %v3237 = vsel %vm1664, %v3210, 0
        %v3240 = vsel %vm1664, %v3211, 0
        %v3243 = vsel %vm1664, %v3212, 0
        %v3246 = vsel %vm1664, %v3213, 0
        %v3249 = vsel %vm1664, %v3214, 0
        %v3252 = vsel %vm1664, %v3215, 0
        %v3255 = vsel %vm1664, %v3216, 0
        %v3258 = vsel %vm1664, %v3225, 0
        %v3261 = vsel %vm1664, %v3226, 0
        %v3264 = vsel %vm1664, %v3227, 0
        %v3267 = vsel %vm1664, %v3228, 0
        %v3270 = vsel %vm1664, %v3229, 0
        %v3273 = vsel %vm1664, %v3230, 0
        %v3276 = vsel %vm1664, %v3231, 0
        %v3279 = vsel %vm1664, %v3232, 0
        %3281 = vmatprep.subr.bf16.mxu0 %v3190
        %3282 = vmatpush1.bf16.msra.mxu0 %v3189
        %3283 = vmatprep.subr.bf16.mxu0 %v3192
        %3284 = vmatpush1.bf16.msra.mxu0 %v3191
        %3285 = vmatprep.subr.bf16.mxu0 0
        %3286 = vmatpush1.bf16.msra.mxu0 0
        %3287 = vmatprep.subr.bf16.mxu0 0
        %3288 = vmatpush1.bf16.msra.mxu0 0
        %3289 = vmatprep.subr.bf16.mxu0 0
        %3290 = vmatpush1.bf16.msra.mxu0 0
        %3291 = vmatprep.subr.bf16.mxu0 0
        %3292 = vmatpush1.bf16.msra.mxu0 0
        %3293 = vmatprep.subr.bf16.mxu0 0
        %3294 = vmatpush1.bf16.msra.mxu0 0
        %3295 = vmatprep.subr.bf16.mxu0 0
        %3296 = vmatpush1.bf16.msra.mxu0 0
        %3297 = vmatprep.subr.bf16.mxu0 0
        %3298 = vmatpush1.bf16.msra.mxu0 0
        %3299 = vmatprep.subr.bf16.mxu0 0
        %3300 = vmatpush1.bf16.msra.mxu0 0
        %3301 = vmatprep.subr.bf16.mxu0 0
        %3302 = vmatpush1.bf16.msra.mxu0 0
        %3303 = vmatprep.subr.bf16.mxu0 0
        %3304 = vmatpush1.bf16.msra.mxu0 0
        %3305 = vmatprep.subr.bf16.mxu0 0
        %3306 = vmatpush1.bf16.msra.mxu0 0
        %3307 = vmatprep.subr.bf16.mxu0 0
        %3308 = vmatpush1.bf16.msra.mxu0 0
        %3309 = vmatprep.subr.bf16.mxu0 0
        %3310 = vmatpush1.bf16.msra.mxu0 0
        %3311 = vmatprep.subr.bf16.mxu0 0
        %3312 = vmatpush1.bf16.msra.mxu0 0
        %3313 = vmatprep.mubr.bf16.mxu0 0
        %3314 = vmatmul.mubr.bf16.gmra.mrb[0].mxu0 %v3234
        %v3315 = vpop.f32.mrb[0].mxu0
        %v3316 = vadd.f32 0.0, %v3315
        %v3317 = vpop.f32.mrb[0].mxu0
        %v3318 = vadd.f32 0.0, %v3317
        %v3319 = vpop.f32.mrb[0].mxu0
        %v3320 = vadd.f32 0.0, %v3319
        %v3321 = vpop.f32.mrb[0].mxu0
        %v3322 = vadd.f32 0.0, %v3321
        %3323 = vmatprep.mubr.bf16.mxu0 0
        %3324 = vmatmul.mubr.bf16.gmra.mrb[0].mxu0 %v3237
        %v3325 = vpop.f32.mrb[0].mxu0
        %v3326 = vadd.f32 0.0, %v3325
        %v3327 = vpop.f32.mrb[0].mxu0
        %v3328 = vadd.f32 0.0, %v3327
        %v3329 = vpop.f32.mrb[0].mxu0
        %v3330 = vadd.f32 0.0, %v3329
        %v3331 = vpop.f32.mrb[0].mxu0
        %v3332 = vadd.f32 0.0, %v3331
        %3333 = vmatprep.mubr.bf16.mxu0 0
        %3334 = vmatmul.mubr.bf16.gmra.mrb[0].mxu0 %v3240
        %v3335 = vpop.f32.mrb[0].mxu0
        %v3336 = vadd.f32 0.0, %v3335
        %v3337 = vpop.f32.mrb[0].mxu0
        %v3338 = vadd.f32 0.0, %v3337
        %v3339 = vpop.f32.mrb[0].mxu0
        %v3340 = vadd.f32 0.0, %v3339
        %v3341 = vpop.f32.mrb[0].mxu0
        %v3342 = vadd.f32 0.0, %v3341
        %3343 = vmatprep.mubr.bf16.mxu0 0
        %3344 = vmatmul.mubr.bf16.gmra.mrb[0].mxu0 %v3243
        %v3345 = vpop.f32.mrb[0].mxu0
        %v3346 = vadd.f32 0.0, %v3345
        %v3347 = vpop.f32.mrb[0].mxu0
        %v3348 = vadd.f32 0.0, %v3347
        %v3349 = vpop.f32.mrb[0].mxu0
        %v3350 = vadd.f32 0.0, %v3349
        %v3351 = vpop.f32.mrb[0].mxu0
        %v3352 = vadd.f32 0.0, %v3351
        %3353 = vmatprep.mubr.bf16.mxu0 0
        %3354 = vmatmul.mubr.bf16.gmra.mrb[0].mxu0 %v3246
        %v3355 = vpop.f32.mrb[0].mxu0
        %v3356 = vadd.f32 0.0, %v3355
        %v3357 = vpop.f32.mrb[0].mxu0
        %v3358 = vadd.f32 0.0, %v3357
        %v3359 = vpop.f32.mrb[0].mxu0
        %v3360 = vadd.f32 0.0, %v3359
        %v3361 = vpop.f32.mrb[0].mxu0
        %v3362 = vadd.f32 0.0, %v3361
        %3363 = vmatprep.mubr.bf16.mxu0 0
        %3364 = vmatmul.mubr.bf16.gmra.mrb[0].mxu0 %v3249
        %v3365 = vpop.f32.mrb[0].mxu0
        %v3366 = vadd.f32 0.0, %v3365
        %v3367 = vpop.f32.mrb[0].mxu0
        %v3368 = vadd.f32 0.0, %v3367
        %v3369 = vpop.f32.mrb[0].mxu0
        %v3370 = vadd.f32 0.0, %v3369
        %v3371 = vpop.f32.mrb[0].mxu0
        %v3372 = vadd.f32 0.0, %v3371
        %3373 = vmatprep.mubr.bf16.mxu0 0
        %3374 = vmatmul.mubr.bf16.gmra.mrb[0].mxu0 %v3252
        %v3375 = vpop.f32.mrb[0].mxu0
        %v3376 = vadd.f32 0.0, %v3375
        %v3377 = vpop.f32.mrb[0].mxu0
        %v3378 = vadd.f32 0.0, %v3377
        %v3379 = vpop.f32.mrb[0].mxu0
        %v3380 = vadd.f32 0.0, %v3379
        %v3381 = vpop.f32.mrb[0].mxu0
        %v3382 = vadd.f32 0.0, %v3381
        %3383 = vmatprep.mubr.bf16.mxu0 0
        %3384 = vmatmul.mubr.bf16.gmra.mrb[0].mxu0 %v3255
        %v3385 = vpop.f32.mrb[0].mxu0
        %v3386 = vadd.f32 0.0, %v3385
        %v3387 = vpop.f32.mrb[0].mxu0
        %v3388 = vadd.f32 0.0, %v3387
        %v3389 = vpop.f32.mrb[0].mxu0
        %v3390 = vadd.f32 0.0, %v3389
        %v3391 = vpop.f32.mrb[0].mxu0
        %v3392 = vadd.f32 0.0, %v3391
        %3393 = vmatprep.mubr.bf16.mxu0 0
        %3394 = vmatmul.mubr.bf16.gmra.mrb[0].mxu0 %v3258
        %v3395 = vpop.f32.mrb[0].mxu0
        %v3396 = vadd.f32 0.0, %v3395
        %v3397 = vpop.f32.mrb[0].mxu0
        %v3398 = vadd.f32 0.0, %v3397
        %v3399 = vpop.f32.mrb[0].mxu0
        %v3400 = vadd.f32 0.0, %v3399
        %v3401 = vpop.f32.mrb[0].mxu0
        %v3402 = vadd.f32 0.0, %v3401
        %3403 = vmatprep.mubr.bf16.mxu0 0
        %3404 = vmatmul.mubr.bf16.gmra.mrb[0].mxu0 %v3261
        %v3405 = vpop.f32.mrb[0].mxu0
        %v3406 = vadd.f32 0.0, %v3405
        %v3407 = vpop.f32.mrb[0].mxu0
        %v3408 = vadd.f32 0.0, %v3407
        %v3409 = vpop.f32.mrb[0].mxu0
        %v3410 = vadd.f32 0.0, %v3409
        %v3411 = vpop.f32.mrb[0].mxu0
        %v3412 = vadd.f32 0.0, %v3411
        %3413 = vmatprep.mubr.bf16.mxu0 0
        %3414 = vmatmul.mubr.bf16.gmra.mrb[0].mxu0 %v3264
        %v3415 = vpop.f32.mrb[0].mxu0
        %v3416 = vadd.f32 0.0, %v3415
        %v3417 = vpop.f32.mrb[0].mxu0
        %v3418 = vadd.f32 0.0, %v3417
        %v3419 = vpop.f32.mrb[0].mxu0
        %v3420 = vadd.f32 0.0, %v3419
        %v3421 = vpop.f32.mrb[0].mxu0
        %v3422 = vadd.f32 0.0, %v3421
        %3423 = vmatprep.mubr.bf16.mxu0 0
        %3424 = vmatmul.mubr.bf16.gmra.mrb[0].mxu0 %v3267
        %v3425 = vpop.f32.mrb[0].mxu0
        %v3426 = vadd.f32 0.0, %v3425
        %v3427 = vpop.f32.mrb[0].mxu0
        %v3428 = vadd.f32 0.0, %v3427
        %v3429 = vpop.f32.mrb[0].mxu0
        %v3430 = vadd.f32 0.0, %v3429
        %v3431 = vpop.f32.mrb[0].mxu0
        %v3432 = vadd.f32 0.0, %v3431
        %3433 = vmatprep.mubr.bf16.mxu0 0
        %3434 = vmatmul.mubr.bf16.gmra.mrb[0].mxu0 %v3270
        %v3435 = vpop.f32.mrb[0].mxu0
        %v3436 = vadd.f32 0.0, %v3435
        %v3437 = vpop.f32.mrb[0].mxu0
        %v3438 = vadd.f32 0.0, %v3437
        %v3439 = vpop.f32.mrb[0].mxu0
        %v3440 = vadd.f32 0.0, %v3439
        %v3441 = vpop.f32.mrb[0].mxu0
        %v3442 = vadd.f32 0.0, %v3441
        %3443 = vmatprep.mubr.bf16.mxu0 0
        %3444 = vmatmul.mubr.bf16.gmra.mrb[0].mxu0 %v3273
        %v3445 = vpop.f32.mrb[0].mxu0
        %v3446 = vadd.f32 0.0, %v3445
        %v3447 = vpop.f32.mrb[0].mxu0
        %v3448 = vadd.f32 0.0, %v3447
        %v3449 = vpop.f32.mrb[0].mxu0
        %v3450 = vadd.f32 0.0, %v3449
        %v3451 = vpop.f32.mrb[0].mxu0
        %v3452 = vadd.f32 0.0, %v3451
        %3453 = vmatprep.mubr.bf16.mxu0 0
        %3454 = vmatmul.mubr.bf16.gmra.mrb[0].mxu0 %v3276
        %v3455 = vpop.f32.mrb[0].mxu0
        %v3456 = vadd.f32 0.0, %v3455
        %v3457 = vpop.f32.mrb[0].mxu0
        %v3458 = vadd.f32 0.0, %v3457
        %v3459 = vpop.f32.mrb[0].mxu0
        %v3460 = vadd.f32 0.0, %v3459
        %v3461 = vpop.f32.mrb[0].mxu0
        %v3462 = vadd.f32 0.0, %v3461
        %3463 = vmatprep.mubr.bf16.mxu0 0
        %3464 = vmatmul.mubr.bf16.gmra.mrb[0].mxu0 %v3279
        %v3465 = vpop.f32.mrb[0].mxu0
        %v3466 = vadd.f32 0.0, %v3465
        %v3467 = vpop.f32.mrb[0].mxu0
        %v3468 = vadd.f32 0.0, %v3467
        %v3469 = vpop.f32.mrb[0].mxu0
        %v3470 = vadd.f32 0.0, %v3469
        %v3471 = vpop.f32.mrb[0].mxu0
        %v3472 = vadd.f32 0.0, %v3471
        %3473 = vdwg.mxu0
        %v3474 = vmax.f32 %v3316, %v3326
        %v3475 = vmax.f32 %v3320, %v3330
        %v3476 = vmax.f32 %v3474, %v3336
        %v3477 = vmax.f32 %v3475, %v3340
        %v3478 = vmax.f32 %v3476, %v3346
        %v3479 = vmax.f32 %v3477, %v3350
        %v3480 = vmax.f32 %v3478, %v3356
        %v3481 = vmax.f32 %v3479, %v3360
        %v3482 = vmax.f32 %v3480, %v3366
        %v3483 = vmax.f32 %v3481, %v3370
        %v3484 = vmax.f32 %v3482, %v3376
        %v3485 = vmax.f32 %v3483, %v3380
        %v3486 = vmax.f32 %v3484, %v3386
        %v3487 = vmax.f32 %v3485, %v3390
        %v3488 = vmax.f32 %v3486, %v3396
        %v3489 = vmax.f32 %v3487, %v3400
        %v3490 = vmax.f32 %v3488, %v3406
        %v3491 = vmax.f32 %v3489, %v3410
        %v3492 = vmax.f32 %v3490, %v3416
        %v3493 = vmax.f32 %v3491, %v3420
        %v3494 = vmax.f32 %v3492, %v3426
        %v3495 = vmax.f32 %v3493, %v3430
        %v3496 = vmax.f32 %v3494, %v3436
        %v3497 = vmax.f32 %v3495, %v3440
        %v3498 = vmax.f32 %v3496, %v3446
        %v3499 = vmax.f32 %v3497, %v3450
        %v3500 = vmax.f32 %v3498, %v3456
        %v3501 = vmax.f32 %v3499, %v3460
        %v3502 = vmax.f32 %v3500, %v3466
        %v3503 = vmax.f32 %v3501, %v3470
        %v3504 = vmax.f32 %v3502, %v3503
        %v3505 = vrot.slane %v3504, 4
        %v3506 = vmax.f32 %v3504, %v3505
        %v3507 = vrot.slane %v3506, 2
        %v3508 = vmax.f32 %v3506, %v3507
        %v3509 = vrot.slane %v3508, 1
        %v3510 = vmax.f32 %v3508, %v3509
        %v3511 = vmax.f32 %v3318, %v3328
        %v3512 = vmax.f32 %v3322, %v3332
        %v3513 = vmax.f32 %v3511, %v3338
        %v3514 = vmax.f32 %v3512, %v3342
        %v3515 = vmax.f32 %v3513, %v3348
        %v3516 = vmax.f32 %v3514, %v3352
        %v3517 = vmax.f32 %v3515, %v3358
        %v3518 = vmax.f32 %v3516, %v3362
        %v3519 = vmax.f32 %v3517, %v3368
        %v3520 = vmax.f32 %v3518, %v3372
        %v3521 = vmax.f32 %v3519, %v3378
        %v3522 = vmax.f32 %v3520, %v3382
        %v3523 = vmax.f32 %v3521, %v3388
        %v3524 = vmax.f32 %v3522, %v3392
        %v3525 = vmax.f32 %v3523, %v3398
        %v3526 = vmax.f32 %v3524, %v3402
        %v3527 = vmax.f32 %v3525, %v3408
        %v3528 = vmax.f32 %v3526, %v3412
        %v3529 = vmax.f32 %v3527, %v3418
        %v3530 = vmax.f32 %v3528, %v3422
        %v3531 = vmax.f32 %v3529, %v3428
        %v3532 = vmax.f32 %v3530, %v3432
        %v3533 = vmax.f32 %v3531, %v3438
        %v3534 = vmax.f32 %v3532, %v3442
        %v3535 = vmax.f32 %v3533, %v3448
        %v3536 = vmax.f32 %v3534, %v3452
        %v3537 = vmax.f32 %v3535, %v3458
        %v3538 = vmax.f32 %v3536, %v3462
        %v3539 = vmax.f32 %v3537, %v3468
        %v3540 = vmax.f32 %v3538, %v3472
        %v3541 = vmax.f32 %v3539, %v3540
        %v3542 = vrot.slane %v3541, 4
        %v3543 = vmax.f32 %v3541, %v3542
        %v3544 = vrot.slane %v3543, 2
        %v3545 = vmax.f32 %v3543, %v3544
        %v3546 = vrot.slane %v3545, 1
        %v3547 = vmax.f32 %v3545, %v3546
        %v3548 = vsub.f32 %v3316, %v3510
        %v3549 = vsub.f32 %v3318, %v3547
        %v3550 = vsub.f32 %v3320, %v3510
        %v3551 = vsub.f32 %v3322, %v3547
        %v3552 = vsub.f32 %v3326, %v3510
        %v3553 = vsub.f32 %v3328, %v3547
        %v3554 = vsub.f32 %v3330, %v3510
        %v3555 = vsub.f32 %v3332, %v3547
        %v3556 = vsub.f32 %v3336, %v3510
        %v3557 = vsub.f32 %v3338, %v3547
        %v3558 = vsub.f32 %v3340, %v3510
        %v3559 = vsub.f32 %v3342, %v3547
        %v3560 = vsub.f32 %v3346, %v3510
        %v3561 = vsub.f32 %v3348, %v3547
        %v3562 = vsub.f32 %v3350, %v3510
        %v3563 = vsub.f32 %v3352, %v3547
        %v3564 = vsub.f32 %v3356, %v3510
        %v3565 = vsub.f32 %v3358, %v3547
        %v3566 = vsub.f32 %v3360, %v3510
        %v3567 = vsub.f32 %v3362, %v3547
        %v3568 = vsub.f32 %v3366, %v3510
        %v3569 = vsub.f32 %v3368, %v3547
        %v3570 = vsub.f32 %v3370, %v3510
        %v3571 = vsub.f32 %v3372, %v3547
        %v3572 = vsub.f32 %v3376, %v3510
        %v3573 = vsub.f32 %v3378, %v3547
        %v3574 = vsub.f32 %v3380, %v3510
        %v3575 = vsub.f32 %v3382, %v3547
        %v3576 = vsub.f32 %v3386, %v3510
        %v3577 = vsub.f32 %v3388, %v3547
        %v3578 = vsub.f32 %v3390, %v3510
        %v3579 = vsub.f32 %v3392, %v3547
        %v3580 = vsub.f32 %v3396, %v3510
        %v3581 = vsub.f32 %v3398, %v3547
        %v3582 = vsub.f32 %v3400, %v3510
        %v3583 = vsub.f32 %v3402, %v3547
        %v3584 = vsub.f32 %v3406, %v3510
        %v3585 = vsub.f32 %v3408, %v3547
        %v3586 = vsub.f32 %v3410, %v3510
        %v3587 = vsub.f32 %v3412, %v3547
        %v3588 = vsub.f32 %v3416, %v3510
        %v3589 = vsub.f32 %v3418, %v3547
        %v3590 = vsub.f32 %v3420, %v3510
        %v3591 = vsub.f32 %v3422, %v3547
        %v3592 = vsub.f32 %v3426, %v3510
        %v3593 = vsub.f32 %v3428, %v3547
        %v3594 = vsub.f32 %v3430, %v3510
        %v3595 = vsub.f32 %v3432, %v3547
        %v3596 = vsub.f32 %v3436, %v3510
        %v3597 = vsub.f32 %v3438, %v3547
        %v3598 = vsub.f32 %v3440, %v3510
        %v3599 = vsub.f32 %v3442, %v3547
        %v3600 = vsub.f32 %v3446, %v3510
        %v3601 = vsub.f32 %v3448, %v3547
        %v3602 = vsub.f32 %v3450, %v3510
        %v3603 = vsub.f32 %v3452, %v3547
        %v3604 = vsub.f32 %v3456, %v3510
        %v3605 = vsub.f32 %v3458, %v3547
        %v3606 = vsub.f32 %v3460, %v3510
        %v3607 = vsub.f32 %v3462, %v3547
        %v3608 = vsub.f32 %v3466, %v3510
        %v3609 = vsub.f32 %v3468, %v3547
        %v3610 = vsub.f32 %v3470, %v3510
        %v3611 = vsub.f32 %v3472, %v3547
        %v3612 = vmul.f32 %v3548, 1.442695
        %v3613 = vpow.pop %v3612
        %v3614 = vmul.f32 %v3549, 1.442695
        %v3615 = vpow.pop %v3614
        %v3616 = vmul.f32 %v3550, 1.442695
        %v3617 = vpow.pop %v3616
        %v3618 = vmul.f32 %v3551, 1.442695
        %v3619 = vpow.pop %v3618
        %v3620 = vmul.f32 %v3552, 1.442695
        %v3621 = vpow.pop %v3620
        %v3622 = vmul.f32 %v3553, 1.442695
        %v3623 = vpow.pop %v3622
        %v3624 = vmul.f32 %v3554, 1.442695
        %v3625 = vpow.pop %v3624
        %v3626 = vmul.f32 %v3555, 1.442695
        %v3627 = vpow.pop %v3626
        %v3628 = vmul.f32 %v3556, 1.442695
        %v3629 = vpow.pop %v3628
        %v3630 = vmul.f32 %v3557, 1.442695
        %v3631 = vpow.pop %v3630
        %v3632 = vmul.f32 %v3558, 1.442695
        %v3633 = vpow.pop %v3632
        %v3634 = vmul.f32 %v3559, 1.442695
        %v3635 = vpow.pop %v3634
        %v3636 = vmul.f32 %v3560, 1.442695
        %v3637 = vpow.pop %v3636
        %v3638 = vmul.f32 %v3561, 1.442695
        %v3639 = vpow.pop %v3638
        %v3640 = vmul.f32 %v3562, 1.442695
        %v3641 = vpow.pop %v3640
        %v3642 = vmul.f32 %v3563, 1.442695
        %v3643 = vpow.pop %v3642
        %v3644 = vmul.f32 %v3564, 1.442695
        %v3645 = vpow.pop %v3644
        %v3646 = vmul.f32 %v3565, 1.442695
        %v3647 = vpow.pop %v3646
        %v3648 = vmul.f32 %v3566, 1.442695
        %v3649 = vpow.pop %v3648
        %v3650 = vmul.f32 %v3567, 1.442695
        %v3651 = vpow.pop %v3650
        %v3652 = vmul.f32 %v3568, 1.442695
        %v3653 = vpow.pop %v3652
        %v3654 = vmul.f32 %v3569, 1.442695
        %v3655 = vpow.pop %v3654
        %v3656 = vmul.f32 %v3570, 1.442695
        %v3657 = vpow.pop %v3656
        %v3658 = vmul.f32 %v3571, 1.442695
        %v3659 = vpow.pop %v3658
        %v3660 = vmul.f32 %v3572, 1.442695
        %v3661 = vpow.pop %v3660
        %v3662 = vmul.f32 %v3573, 1.442695
        %v3663 = vpow.pop %v3662
        %v3664 = vmul.f32 %v3574, 1.442695
        %v3665 = vpow.pop %v3664
        %v3666 = vmul.f32 %v3575, 1.442695
        %v3667 = vpow.pop %v3666
        %v3668 = vmul.f32 %v3576, 1.442695
        %v3669 = vpow.pop %v3668
        %v3670 = vmul.f32 %v3577, 1.442695
        %v3671 = vpow.pop %v3670
        %v3672 = vmul.f32 %v3578, 1.442695
        %v3673 = vpow.pop %v3672
        %v3674 = vmul.f32 %v3579, 1.442695
        %v3675 = vpow.pop %v3674
        %v3676 = vmul.f32 %v3580, 1.442695
        %v3677 = vpow.pop %v3676
        %v3678 = vmul.f32 %v3581, 1.442695
        %v3679 = vpow.pop %v3678
        %v3680 = vmul.f32 %v3582, 1.442695
        %v3681 = vpow.pop %v3680
        %v3682 = vmul.f32 %v3583, 1.442695
        %v3683 = vpow.pop %v3682
        %v3684 = vmul.f32 %v3584, 1.442695
        %v3685 = vpow.pop %v3684
        %v3686 = vmul.f32 %v3585, 1.442695
        %v3687 = vpow.pop %v3686
        %v3688 = vmul.f32 %v3586, 1.442695
        %v3689 = vpow.pop %v3688
        %v3690 = vmul.f32 %v3587, 1.442695
        %v3691 = vpow.pop %v3690
        %v3692 = vmul.f32 %v3588, 1.442695
        %v3693 = vpow.pop %v3692
        %v3694 = vmul.f32 %v3589, 1.442695
        %v3695 = vpow.pop %v3694
        %v3696 = vmul.f32 %v3590, 1.442695
        %v3697 = vpow.pop %v3696
        %v3698 = vmul.f32 %v3591, 1.442695
        %v3699 = vpow.pop %v3698
        %v3700 = vmul.f32 %v3592, 1.442695
        %v3701 = vpow.pop %v3700
        %v3702 = vmul.f32 %v3593, 1.442695
        %v3703 = vpow.pop %v3702
        %v3704 = vmul.f32 %v3594, 1.442695
        %v3705 = vpow.pop %v3704
        %v3706 = vmul.f32 %v3595, 1.442695
        %v3707 = vpow.pop %v3706
        %v3708 = vmul.f32 %v3596, 1.442695
        %v3709 = vpow.pop %v3708
        %v3710 = vmul.f32 %v3597, 1.442695
        %v3711 = vpow.pop %v3710
        %v3712 = vmul.f32 %v3598, 1.442695
        %v3713 = vpow.pop %v3712
        %v3714 = vmul.f32 %v3599, 1.442695
        %v3715 = vpow.pop %v3714
        %v3716 = vmul.f32 %v3600, 1.442695
        %v3717 = vpow.pop %v3716
        %v3718 = vmul.f32 %v3601, 1.442695
        %v3719 = vpow.pop %v3718
        %v3720 = vmul.f32 %v3602, 1.442695
        %v3721 = vpow.pop %v3720
        %v3722 = vmul.f32 %v3603, 1.442695
        %v3723 = vpow.pop %v3722
        %v3724 = vmul.f32 %v3604, 1.442695
        %v3725 = vpow.pop %v3724
        %v3726 = vmul.f32 %v3605, 1.442695
        %v3727 = vpow.pop %v3726
        %v3728 = vmul.f32 %v3606, 1.442695
        %v3729 = vpow.pop %v3728
        %v3730 = vmul.f32 %v3607, 1.442695
        %v3731 = vpow.pop %v3730
        %v3732 = vmul.f32 %v3608, 1.442695
        %v3733 = vpow.pop %v3732
        %v3734 = vmul.f32 %v3609, 1.442695
        %v3735 = vpow.pop %v3734
        %v3736 = vmul.f32 %v3610, 1.442695
        %v3737 = vpow.pop %v3736
        %v3738 = vmul.f32 %v3611, 1.442695
        %v3739 = vpow.pop %v3738
        %v3740 = vadd.f32 %v3613, %v3617
        %v3741 = vadd.f32 %v3740, %v3621
        %v3742 = vadd.f32 %v3741, %v3625
        %v3743 = vadd.f32 %v3742, %v3629
        %v3744 = vadd.f32 %v3743, %v3633
        %v3745 = vadd.f32 %v3744, %v3637
        %v3746 = vadd.f32 %v3745, %v3641
        %v3747 = vadd.f32 %v3746, %v3645
        %v3748 = vadd.f32 %v3747, %v3649
        %v3749 = vadd.f32 %v3748, %v3653
        %v3750 = vadd.f32 %v3749, %v3657
        %v3751 = vadd.f32 %v3750, %v3661
        %v3752 = vadd.f32 %v3751, %v3665
        %v3753 = vadd.f32 %v3752, %v3669
        %v3754 = vadd.f32 %v3753, %v3673
        %v3755 = vadd.f32 %v3754, %v3677
        %v3756 = vadd.f32 %v3755, %v3681
        %v3757 = vadd.f32 %v3756, %v3685
        %v3758 = vadd.f32 %v3757, %v3689
        %v3759 = vadd.f32 %v3758, %v3693
        %v3760 = vadd.f32 %v3759, %v3697
        %v3761 = vadd.f32 %v3760, %v3701
        %v3762 = vadd.f32 %v3761, %v3705
        %v3763 = vadd.f32 %v3762, %v3709
        %v3764 = vadd.f32 %v3763, %v3713
        %v3765 = vadd.f32 %v3764, %v3717
        %v3766 = vadd.f32 %v3765, %v3721
        %v3767 = vadd.f32 %v3766, %v3725
        %v3768 = vadd.f32 %v3767, %v3729
        %v3769 = vadd.f32 %v3768, %v3733
        %v3770 = vadd.f32 %v3769, %v3737
        %v3771 = vrot.slane %v3770, 4
        %v3772 = vadd.f32 %v3770, %v3771
        %v3773 = vrot.slane %v3772, 2
        %v3774 = vadd.f32 %v3772, %v3773
        %v3775 = vrot.slane %v3774, 1
        %v3776 = vadd.f32 %v3774, %v3775
        %v3777 = vadd.f32 %v3615, %v3619
        %v3778 = vadd.f32 %v3777, %v3623
        %v3779 = vadd.f32 %v3778, %v3627
        %v3780 = vadd.f32 %v3779, %v3631
        %v3781 = vadd.f32 %v3780, %v3635
        %v3782 = vadd.f32 %v3781, %v3639
        %v3783 = vadd.f32 %v3782, %v3643
        %v3784 = vadd.f32 %v3783, %v3647
        %v3785 = vadd.f32 %v3784, %v3651
        %v3786 = vadd.f32 %v3785, %v3655
        %v3787 = vadd.f32 %v3786, %v3659
        %v3788 = vadd.f32 %v3787, %v3663
        %v3789 = vadd.f32 %v3788, %v3667
        %v3790 = vadd.f32 %v3789, %v3671
        %v3791 = vadd.f32 %v3790, %v3675
        %v3792 = vadd.f32 %v3791, %v3679
        %v3793 = vadd.f32 %v3792, %v3683
        %v3794 = vadd.f32 %v3793, %v3687
        %v3795 = vadd.f32 %v3794, %v3691
        %v3796 = vadd.f32 %v3795, %v3695
        %v3797 = vadd.f32 %v3796, %v3699
        %v3798 = vadd.f32 %v3797, %v3703
        %v3799 = vadd.f32 %v3798, %v3707
        %v3800 = vadd.f32 %v3799, %v3711
        %v3801 = vadd.f32 %v3800, %v3715
        %v3802 = vadd.f32 %v3801, %v3719
        %v3803 = vadd.f32 %v3802, %v3723
        %v3804 = vadd.f32 %v3803, %v3727
        %v3805 = vadd.f32 %v3804, %v3731
        %v3806 = vadd.f32 %v3805, %v3735
        %v3807 = vadd.f32 %v3806, %v3739
        %v3808 = vrot.slane %v3807, 4
        %v3809 = vadd.f32 %v3807, %v3808
        %v3810 = vrot.slane %v3809, 2
        %v3811 = vadd.f32 %v3809, %v3810
        %v3812 = vrot.slane %v3811, 1
        %v3813 = vadd.f32 %v3811, %v3812
        %v3814 = vrcp.pop %v3776
        %v3815 = vrcp.pop %v3813
        %v3816 = vmul.f32 %v3613, %v3814
        %v3817 = vmul.f32 %v3615, %v3815
        %v3818 = vmul.f32 %v3617, %v3814
        %v3819 = vmul.f32 %v3619, %v3815
        %v3820 = vmul.f32 %v3621, %v3814
        %v3821 = vmul.f32 %v3623, %v3815
        %v3822 = vmul.f32 %v3625, %v3814
        %v3823 = vmul.f32 %v3627, %v3815
        %v3824 = vmul.f32 %v3629, %v3814
        %v3825 = vmul.f32 %v3631, %v3815
        %v3826 = vmul.f32 %v3633, %v3814
        %v3827 = vmul.f32 %v3635, %v3815
        %v3828 = vmul.f32 %v3637, %v3814
        %v3829 = vmul.f32 %v3639, %v3815
        %v3830 = vmul.f32 %v3641, %v3814
        %v3831 = vmul.f32 %v3643, %v3815
        %v3832 = vmul.f32 %v3645, %v3814
        %v3833 = vmul.f32 %v3647, %v3815
        %v3834 = vmul.f32 %v3649, %v3814
        %v3835 = vmul.f32 %v3651, %v3815
        %v3836 = vmul.f32 %v3653, %v3814
        %v3837 = vmul.f32 %v3655, %v3815
        %v3838 = vmul.f32 %v3657, %v3814
        %v3839 = vmul.f32 %v3659, %v3815
        %v3840 = vmul.f32 %v3661, %v3814
        %v3841 = vmul.f32 %v3663, %v3815
        %v3842 = vmul.f32 %v3665, %v3814
        %v3843 = vmul.f32 %v3667, %v3815
        %v3844 = vmul.f32 %v3669, %v3814
        %v3845 = vmul.f32 %v3671, %v3815
        %v3846 = vmul.f32 %v3673, %v3814
        %v3847 = vmul.f32 %v3675, %v3815
        %v3848 = vmul.f32 %v3677, %v3814
        %v3849 = vmul.f32 %v3679, %v3815
        %v3850 = vmul.f32 %v3681, %v3814
        %v3851 = vmul.f32 %v3683, %v3815
        %v3852 = vmul.f32 %v3685, %v3814
        %v3853 = vmul.f32 %v3687, %v3815
        %v3854 = vmul.f32 %v3689, %v3814
        %v3855 = vmul.f32 %v3691, %v3815
        %v3856 = vmul.f32 %v3693, %v3814
        %v3857 = vmul.f32 %v3695, %v3815
        %v3858 = vmul.f32 %v3697, %v3814
        %v3859 = vmul.f32 %v3699, %v3815
        %v3860 = vmul.f32 %v3701, %v3814
        %v3861 = vmul.f32 %v3703, %v3815
        %v3862 = vmul.f32 %v3705, %v3814
        %v3863 = vmul.f32 %v3707, %v3815
        %v3864 = vmul.f32 %v3709, %v3814
        %v3865 = vmul.f32 %v3711, %v3815
        %v3866 = vmul.f32 %v3713, %v3814
        %v3867 = vmul.f32 %v3715, %v3815
        %v3868 = vmul.f32 %v3717, %v3814
        %v3869 = vmul.f32 %v3719, %v3815
        %v3870 = vmul.f32 %v3721, %v3814
        %v3871 = vmul.f32 %v3723, %v3815
        %v3872 = vmul.f32 %v3725, %v3814
        %v3873 = vmul.f32 %v3727, %v3815
        %v3874 = vmul.f32 %v3729, %v3814
        %v3875 = vmul.f32 %v3731, %v3815
        %v3876 = vmul.f32 %v3733, %v3814
        %v3877 = vmul.f32 %v3735, %v3815
        %v3878 = vmul.f32 %v3737, %v3814
        %v3879 = vmul.f32 %v3739, %v3815
        %v3880 = vpack.c.bf16 %v3818, %v3816
        %v3881 = vpack.c.bf16 %v3819, %v3817
        %v3882 = vpack.c.bf16 %v3822, %v3820
        %v3883 = vpack.c.bf16 %v3823, %v3821
        %v3884 = vpack.c.bf16 %v3826, %v3824
        %v3885 = vpack.c.bf16 %v3827, %v3825
        %v3886 = vpack.c.bf16 %v3830, %v3828
        %v3887 = vpack.c.bf16 %v3831, %v3829
        %v3888 = vpack.c.bf16 %v3834, %v3832
        %v3889 = vpack.c.bf16 %v3835, %v3833
        %v3890 = vpack.c.bf16 %v3838, %v3836
        %v3891 = vpack.c.bf16 %v3839, %v3837
        %v3892 = vpack.c.bf16 %v3842, %v3840
        %v3893 = vpack.c.bf16 %v3843, %v3841
        %v3894 = vpack.c.bf16 %v3846, %v3844
        %v3895 = vpack.c.bf16 %v3847, %v3845
        %v3896 = vpack.c.bf16 %v3850, %v3848
        %v3897 = vpack.c.bf16 %v3851, %v3849
        %v3898 = vpack.c.bf16 %v3854, %v3852
        %v3899 = vpack.c.bf16 %v3855, %v3853
        %v3900 = vpack.c.bf16 %v3858, %v3856
        %v3901 = vpack.c.bf16 %v3859, %v3857
        %v3902 = vpack.c.bf16 %v3862, %v3860
        %v3903 = vpack.c.bf16 %v3863, %v3861
        %v3904 = vpack.c.bf16 %v3866, %v3864
        %v3905 = vpack.c.bf16 %v3867, %v3865
        %v3906 = vpack.c.bf16 %v3870, %v3868
        %v3907 = vpack.c.bf16 %v3871, %v3869
        %v3908 = vpack.c.bf16 %v3874, %v3872
        %v3909 = vpack.c.bf16 %v3875, %v3873
        %v3910 = vpack.c.bf16 %v3878, %v3876
        %v3911 = vpack.c.bf16 %v3879, %v3877
        %3912 = vmatprep.subr.bf16.mxu0 %v3881
        %3913 = vmatpush1.bf16.msra.mxu0 %v3880
        %3914 = vmatprep.subr.bf16.mxu0 %v3883
        %3915 = vmatpush1.bf16.msra.mxu0 %v3882
        %3916 = vmatprep.subr.bf16.mxu0 %v3885
        %3917 = vmatpush1.bf16.msra.mxu0 %v3884
        %3918 = vmatprep.subr.bf16.mxu0 %v3887
        %3919 = vmatpush1.bf16.msra.mxu0 %v3886
        %3920 = vmatprep.subr.bf16.mxu0 %v3889
        %3921 = vmatpush1.bf16.msra.mxu0 %v3888
        %3922 = vmatprep.subr.bf16.mxu0 %v3891
        %3923 = vmatpush1.bf16.msra.mxu0 %v3890
        %3924 = vmatprep.subr.bf16.mxu0 %v3893
        %3925 = vmatpush1.bf16.msra.mxu0 %v3892
        %3926 = vmatprep.subr.bf16.mxu0 %v3895
        %3927 = vmatpush1.bf16.msra.mxu0 %v3894
        %3928 = vmatprep.subr.bf16.mxu0 %v3897
        %3929 = vmatpush1.bf16.msra.mxu0 %v3896
        %3930 = vmatprep.subr.bf16.mxu0 %v3899
        %3931 = vmatpush1.bf16.msra.mxu0 %v3898
        %3932 = vmatprep.subr.bf16.mxu0 %v3901
        %3933 = vmatpush1.bf16.msra.mxu0 %v3900
        %3934 = vmatprep.subr.bf16.mxu0 %v3903
        %3935 = vmatpush1.bf16.msra.mxu0 %v3902
        %3936 = vmatprep.subr.bf16.mxu0 %v3905
        %3937 = vmatpush1.bf16.msra.mxu0 %v3904
        %3938 = vmatprep.subr.bf16.mxu0 %v3907
        %3939 = vmatpush1.bf16.msra.mxu0 %v3906
        %3940 = vmatprep.subr.bf16.mxu0 %v3909
        %3941 = vmatpush1.bf16.msra.mxu0 %v3908
        %3942 = vmatprep.subr.bf16.mxu0 %v3911
        %3943 = vmatpush1.bf16.msra.mxu0 %v3910
        %3944 = vmatprep.mubr.bf16.mxu0 %v3198
        %3945 = vmatmul.mubr.bf16.gmra.mrb[0].mxu0 %v3197
        %v3946 = vpop.f32.mrb[0].mxu0
        %v3947 = vadd.f32 0.0, %v3946
        %v3948 = vpop.f32.mrb[0].mxu0
        %v3949 = vadd.f32 0.0, %v3948
        %v3950 = vpop.f32.mrb[0].mxu0
        %v3951 = vadd.f32 0.0, %v3950
        %v3952 = vpop.f32.mrb[0].mxu0
        %v3953 = vadd.f32 0.0, %v3952
        %3954 = vmatprep.mubr.bf16.mxu0 %v3200
        %3955 = vmatmul.mubr.bf16.gmra.mrb[0].mxu0 %v3199
        %v3956 = vpop.f32.mrb[0].mxu0
        %v3957 = vadd.f32 0.0, %v3956
        %v3958 = vpop.f32.mrb[0].mxu0
        %v3959 = vadd.f32 0.0, %v3958
        %v3960 = vpop.f32.mrb[0].mxu0
        %v3961 = vadd.f32 0.0, %v3960
        %v3962 = vpop.f32.mrb[0].mxu0
        %v3963 = vadd.f32 0.0, %v3962
        %3964 = vdwg.mxu0
        %3965 = vst [vmem:[#allocation3 + $0x80] sm:$0xff] %v3947
        %3966 = vst [vmem:[#allocation3 + $0x88] sm:$0xff] %v3949
        %3967 = vst [vmem:[#allocation3 + $0xa0] sm:$0xff] %v3951
        %3968 = vst [vmem:[#allocation3 + $0xa8] sm:$0xff] %v3953
        %3969 = vst [vmem:[#allocation3 + $0xc0] sm:$0xff] %v3957
        %3970 = vst [vmem:[#allocation3 + $0xc8] sm:$0xff] %v3959
        %3971 = vst [vmem:[#allocation3 + $0xe0] sm:$0xff] %v3961
        %3972 = vst [vmem:[#allocation3 + $0xe8] sm:$0xff] %v3963
        %v3973 = vld [vmem:[#allocation2 + $0x50] sm:$0xff]
        %v3974 = vld [vmem:[#allocation2 + $0x58] sm:$0xff]
        %v3975 = vld [vmem:[#allocation2 + $0x70] sm:$0xff]
        %v3976 = vld [vmem:[#allocation2 + $0x78] sm:$0xff]
        %v3977 = vld [vmem:[#allocation2 + $0x150] sm:$0xff]
        %v3978 = vld [vmem:[#allocation2 + $0x158] sm:$0xff]
        %v3979 = vld [vmem:[#allocation2 + $0x170] sm:$0xff]
        %v3980 = vld [vmem:[#allocation2 + $0x178] sm:$0xff]
        %v3981 = vld [vmem:[#allocation2 + $0x250] sm:$0xff]
        %v3982 = vld [vmem:[#allocation2 + $0x258] sm:$0xff]
        %v3983 = vld [vmem:[#allocation2 + $0x270] sm:$0xff]
        %v3984 = vld [vmem:[#allocation2 + $0x278] sm:$0xff]
        %3985 = vxpose.xlu0.c.b16.start [1/8] %v3977, 128
        %3986 = vxpose.xlu0.c.b16.cont [2/8] %v3979, 128
        %3987 = vxpose.xlu0.c.b16.cont [3/8] 0, 128
        %3988 = vxpose.xlu0.c.b16.cont [4/8] 0, 128
        %3989 = vxpose.xlu0.c.b16.cont [5/8] 0, 128
        %3990 = vxpose.xlu0.c.b16.cont [6/8] 0, 128
        %3991 = vxpose.xlu0.c.b16.cont [7/8] 0, 128
        %3992 = vxpose.xlu0.c.b16.end [8/8] 0, 128
        %v3993 = vpop.trf.xlu0
        %v3994 = vpop.trf.xlu0
        %v3995 = vpop.trf.xlu0
        %v3996 = vpop.trf.xlu0
        %v3997 = vpop.trf.xlu0
        %v3998 = vpop.trf.xlu0
        %v3999 = vpop.trf.xlu0
        %v4000 = vpop.trf.xlu0
        %4001 = vxpose.xlu0.c.b16.start [1/8] %v3978, 128
        %4002 = vxpose.xlu0.c.b16.cont [2/8] %v3980, 128
        %4003 = vxpose.xlu0.c.b16.cont [3/8] 0, 128
        %4004 = vxpose.xlu0.c.b16.cont [4/8] 0, 128
        %4005 = vxpose.xlu0.c.b16.cont [5/8] 0, 128
        %4006 = vxpose.xlu0.c.b16.cont [6/8] 0, 128
        %4007 = vxpose.xlu0.c.b16.cont [7/8] 0, 128
        %4008 = vxpose.xlu0.c.b16.end [8/8] 0, 128
        %v4009 = vpop.trf.xlu0
        %v4010 = vpop.trf.xlu0
        %v4011 = vpop.trf.xlu0
        %v4012 = vpop.trf.xlu0
        %v4013 = vpop.trf.xlu0
        %v4014 = vpop.trf.xlu0
        %v4015 = vpop.trf.xlu0
        %v4016 = vpop.trf.xlu0
        %v4018 = vsel %vm1664, %v3993, 0
        %v4021 = vsel %vm1664, %v3994, 0
        %v4024 = vsel %vm1664, %v3995, 0
        %v4027 = vsel %vm1664, %v3996, 0
        %v4030 = vsel %vm1664, %v3997, 0
        %v4033 = vsel %vm1664, %v3998, 0
        %v4036 = vsel %vm1664, %v3999, 0
        %v4039 = vsel %vm1664, %v4000, 0
        %v4042 = vsel %vm1664, %v4009, 0
        %v4045 = vsel %vm1664, %v4010, 0
        %v4048 = vsel %vm1664, %v4011, 0
        %v4051 = vsel %vm1664, %v4012, 0
        %v4054 = vsel %vm1664, %v4013, 0
        %v4057 = vsel %vm1664, %v4014, 0
        %v4060 = vsel %vm1664, %v4015, 0
        %v4063 = vsel %vm1664, %v4016, 0
        %4065 = vmatprep.subr.bf16.mxu0 %v3974
        %4066 = vmatpush1.bf16.msra.mxu0 %v3973
        %4067 = vmatprep.subr.bf16.mxu0 %v3976
        %4068 = vmatpush1.bf16.msra.mxu0 %v3975
        %4069 = vmatprep.subr.bf16.mxu0 0
        %4070 = vmatpush1.bf16.msra.mxu0 0
        %4071 = vmatprep.subr.bf16.mxu0 0
        %4072 = vmatpush1.bf16.msra.mxu0 0
        %4073 = vmatprep.subr.bf16.mxu0 0
        %4074 = vmatpush1.bf16.msra.mxu0 0
        %4075 = vmatprep.subr.bf16.mxu0 0
        %4076 = vmatpush1.bf16.msra.mxu0 0
        %4077 = vmatprep.subr.bf16.mxu0 0
        %4078 = vmatpush1.bf16.msra.mxu0 0
        %4079 = vmatprep.subr.bf16.mxu0 0
        %4080 = vmatpush1.bf16.msra.mxu0 0
        %4081 = vmatprep.subr.bf16.mxu0 0
        %4082 = vmatpush1.bf16.msra.mxu0 0
        %4083 = vmatprep.subr.bf16.mxu0 0
        %4084 = vmatpush1.bf16.msra.mxu0 0
        %4085 = vmatprep.subr.bf16.mxu0 0
        %4086 = vmatpush1.bf16.msra.mxu0 0
        %4087 = vmatprep.subr.bf16.mxu0 0
        %4088 = vmatpush1.bf16.msra.mxu0 0
        %4089 = vmatprep.subr.bf16.mxu0 0
        %4090 = vmatpush1.bf16.msra.mxu0 0
        %4091 = vmatprep.subr.bf16.mxu0 0
        %4092 = vmatpush1.bf16.msra.mxu0 0
        %4093 = vmatprep.subr.bf16.mxu0 0
        %4094 = vmatpush1.bf16.msra.mxu0 0
        %4095 = vmatprep.subr.bf16.mxu0 0
        %4096 = vmatpush1.bf16.msra.mxu0 0
        %4097 = vmatprep.mubr.bf16.mxu0 0
        %4098 = vmatmul.mubr.bf16.gmra.mrb[0].mxu0 %v4018
        %v4099 = vpop.f32.mrb[0].mxu0
        %v4100 = vadd.f32 0.0, %v4099
        %v4101 = vpop.f32.mrb[0].mxu0
        %v4102 = vadd.f32 0.0, %v4101
        %v4103 = vpop.f32.mrb[0].mxu0
        %v4104 = vadd.f32 0.0, %v4103
        %v4105 = vpop.f32.mrb[0].mxu0
        %v4106 = vadd.f32 0.0, %v4105
        %4107 = vmatprep.mubr.bf16.mxu0 0
        %4108 = vmatmul.mubr.bf16.gmra.mrb[0].mxu0 %v4021
        %v4109 = vpop.f32.mrb[0].mxu0
        %v4110 = vadd.f32 0.0, %v4109
        %v4111 = vpop.f32.mrb[0].mxu0
        %v4112 = vadd.f32 0.0, %v4111
        %v4113 = vpop.f32.mrb[0].mxu0
        %v4114 = vadd.f32 0.0, %v4113
        %v4115 = vpop.f32.mrb[0].mxu0
        %v4116 = vadd.f32 0.0, %v4115
        %4117 = vmatprep.mubr.bf16.mxu0 0
        %4118 = vmatmul.mubr.bf16.gmra.mrb[0].mxu0 %v4024
        %v4119 = vpop.f32.mrb[0].mxu0
        %v4120 = vadd.f32 0.0, %v4119
        %v4121 = vpop.f32.mrb[0].mxu0
        %v4122 = vadd.f32 0.0, %v4121
        %v4123 = vpop.f32.mrb[0].mxu0
        %v4124 = vadd.f32 0.0, %v4123
        %v4125 = vpop.f32.mrb[0].mxu0
        %v4126 = vadd.f32 0.0, %v4125
        %4127 = vmatprep.mubr.bf16.mxu0 0
        %4128 = vmatmul.mubr.bf16.gmra.mrb[0].mxu0 %v4027
        %v4129 = vpop.f32.mrb[0].mxu0
        %v4130 = vadd.f32 0.0, %v4129
        %v4131 = vpop.f32.mrb[0].mxu0
        %v4132 = vadd.f32 0.0, %v4131
        %v4133 = vpop.f32.mrb[0].mxu0
        %v4134 = vadd.f32 0.0, %v4133
        %v4135 = vpop.f32.mrb[0].mxu0
        %v4136 = vadd.f32 0.0, %v4135
        %4137 = vmatprep.mubr.bf16.mxu0 0
        %4138 = vmatmul.mubr.bf16.gmra.mrb[0].mxu0 %v4030
        %v4139 = vpop.f32.mrb[0].mxu0
        %v4140 = vadd.f32 0.0, %v4139
        %v4141 = vpop.f32.mrb[0].mxu0
        %v4142 = vadd.f32 0.0, %v4141
        %v4143 = vpop.f32.mrb[0].mxu0
        %v4144 = vadd.f32 0.0, %v4143
        %v4145 = vpop.f32.mrb[0].mxu0
        %v4146 = vadd.f32 0.0, %v4145
        %4147 = vmatprep.mubr.bf16.mxu0 0
        %4148 = vmatmul.mubr.bf16.gmra.mrb[0].mxu0 %v4033
        %v4149 = vpop.f32.mrb[0].mxu0
        %v4150 = vadd.f32 0.0, %v4149
        %v4151 = vpop.f32.mrb[0].mxu0
        %v4152 = vadd.f32 0.0, %v4151
        %v4153 = vpop.f32.mrb[0].mxu0
        %v4154 = vadd.f32 0.0, %v4153
        %v4155 = vpop.f32.mrb[0].mxu0
        %v4156 = vadd.f32 0.0, %v4155
        %4157 = vmatprep.mubr.bf16.mxu0 0
        %4158 = vmatmul.mubr.bf16.gmra.mrb[0].mxu0 %v4036
        %v4159 = vpop.f32.mrb[0].mxu0
        %v4160 = vadd.f32 0.0, %v4159
        %v4161 = vpop.f32.mrb[0].mxu0
        %v4162 = vadd.f32 0.0, %v4161
        %v4163 = vpop.f32.mrb[0].mxu0
        %v4164 = vadd.f32 0.0, %v4163
        %v4165 = vpop.f32.mrb[0].mxu0
        %v4166 = vadd.f32 0.0, %v4165
        %4167 = vmatprep.mubr.bf16.mxu0 0
        %4168 = vmatmul.mubr.bf16.gmra.mrb[0].mxu0 %v4039
        %v4169 = vpop.f32.mrb[0].mxu0
        %v4170 = vadd.f32 0.0, %v4169
        %v4171 = vpop.f32.mrb[0].mxu0
        %v4172 = vadd.f32 0.0, %v4171
        %v4173 = vpop.f32.mrb[0].mxu0
        %v4174 = vadd.f32 0.0, %v4173
        %v4175 = vpop.f32.mrb[0].mxu0
        %v4176 = vadd.f32 0.0, %v4175
        %4177 = vmatprep.mubr.bf16.mxu0 0
        %4178 = vmatmul.mubr.bf16.gmra.mrb[0].mxu0 %v4042
        %v4179 = vpop.f32.mrb[0].mxu0
        %v4180 = vadd.f32 0.0, %v4179
        %v4181 = vpop.f32.mrb[0].mxu0
        %v4182 = vadd.f32 0.0, %v4181
        %v4183 = vpop.f32.mrb[0].mxu0
        %v4184 = vadd.f32 0.0, %v4183
        %v4185 = vpop.f32.mrb[0].mxu0
        %v4186 = vadd.f32 0.0, %v4185
        %4187 = vmatprep.mubr.bf16.mxu0 0
        %4188 = vmatmul.mubr.bf16.gmra.mrb[0].mxu0 %v4045
        %v4189 = vpop.f32.mrb[0].mxu0
        %v4190 = vadd.f32 0.0, %v4189
        %v4191 = vpop.f32.mrb[0].mxu0
        %v4192 = vadd.f32 0.0, %v4191
        %v4193 = vpop.f32.mrb[0].mxu0
        %v4194 = vadd.f32 0.0, %v4193
        %v4195 = vpop.f32.mrb[0].mxu0
        %v4196 = vadd.f32 0.0, %v4195
        %4197 = vmatprep.mubr.bf16.mxu0 0
        %4198 = vmatmul.mubr.bf16.gmra.mrb[0].mxu0 %v4048
        %v4199 = vpop.f32.mrb[0].mxu0
        %v4200 = vadd.f32 0.0, %v4199
        %v4201 = vpop.f32.mrb[0].mxu0
        %v4202 = vadd.f32 0.0, %v4201
        %v4203 = vpop.f32.mrb[0].mxu0
        %v4204 = vadd.f32 0.0, %v4203
        %v4205 = vpop.f32.mrb[0].mxu0
        %v4206 = vadd.f32 0.0, %v4205
        %4207 = vmatprep.mubr.bf16.mxu0 0
        %4208 = vmatmul.mubr.bf16.gmra.mrb[0].mxu0 %v4051
        %v4209 = vpop.f32.mrb[0].mxu0
        %v4210 = vadd.f32 0.0, %v4209
        %v4211 = vpop.f32.mrb[0].mxu0
        %v4212 = vadd.f32 0.0, %v4211
        %v4213 = vpop.f32.mrb[0].mxu0
        %v4214 = vadd.f32 0.0, %v4213
        %v4215 = vpop.f32.mrb[0].mxu0
        %v4216 = vadd.f32 0.0, %v4215
        %4217 = vmatprep.mubr.bf16.mxu0 0
        %4218 = vmatmul.mubr.bf16.gmra.mrb[0].mxu0 %v4054
        %v4219 = vpop.f32.mrb[0].mxu0
        %v4220 = vadd.f32 0.0, %v4219
        %v4221 = vpop.f32.mrb[0].mxu0
        %v4222 = vadd.f32 0.0, %v4221
        %v4223 = vpop.f32.mrb[0].mxu0
        %v4224 = vadd.f32 0.0, %v4223
        %v4225 = vpop.f32.mrb[0].mxu0
        %v4226 = vadd.f32 0.0, %v4225
        %4227 = vmatprep.mubr.bf16.mxu0 0
        %4228 = vmatmul.mubr.bf16.gmra.mrb[0].mxu0 %v4057
        %v4229 = vpop.f32.mrb[0].mxu0
        %v4230 = vadd.f32 0.0, %v4229
        %v4231 = vpop.f32.mrb[0].mxu0
        %v4232 = vadd.f32 0.0, %v4231
        %v4233 = vpop.f32.mrb[0].mxu0
        %v4234 = vadd.f32 0.0, %v4233
        %v4235 = vpop.f32.mrb[0].mxu0
        %v4236 = vadd.f32 0.0, %v4235
        %4237 = vmatprep.mubr.bf16.mxu0 0
        %4238 = vmatmul.mubr.bf16.gmra.mrb[0].mxu0 %v4060
        %v4239 = vpop.f32.mrb[0].mxu0
        %v4240 = vadd.f32 0.0, %v4239
        %v4241 = vpop.f32.mrb[0].mxu0
        %v4242 = vadd.f32 0.0, %v4241
        %v4243 = vpop.f32.mrb[0].mxu0
        %v4244 = vadd.f32 0.0, %v4243
        %v4245 = vpop.f32.mrb[0].mxu0
        %v4246 = vadd.f32 0.0, %v4245
        %4247 = vmatprep.mubr.bf16.mxu0 0
        %4248 = vmatmul.mubr.bf16.gmra.mrb[0].mxu0 %v4063
        %v4249 = vpop.f32.mrb[0].mxu0
        %v4250 = vadd.f32 0.0, %v4249
        %v4251 = vpop.f32.mrb[0].mxu0
        %v4252 = vadd.f32 0.0, %v4251
        %v4253 = vpop.f32.mrb[0].mxu0
        %v4254 = vadd.f32 0.0, %v4253
        %v4255 = vpop.f32.mrb[0].mxu0
        %v4256 = vadd.f32 0.0, %v4255
        %4257 = vdwg.mxu0
        %v4258 = vmax.f32 %v4100, %v4110
        %v4259 = vmax.f32 %v4104, %v4114
        %v4260 = vmax.f32 %v4258, %v4120
        %v4261 = vmax.f32 %v4259, %v4124
        %v4262 = vmax.f32 %v4260, %v4130
        %v4263 = vmax.f32 %v4261, %v4134
        %v4264 = vmax.f32 %v4262, %v4140
        %v4265 = vmax.f32 %v4263, %v4144
        %v4266 = vmax.f32 %v4264, %v4150
        %v4267 = vmax.f32 %v4265, %v4154
        %v4268 = vmax.f32 %v4266, %v4160
        %v4269 = vmax.f32 %v4267, %v4164
        %v4270 = vmax.f32 %v4268, %v4170
        %v4271 = vmax.f32 %v4269, %v4174
        %v4272 = vmax.f32 %v4270, %v4180
        %v4273 = vmax.f32 %v4271, %v4184
        %v4274 = vmax.f32 %v4272, %v4190
        %v4275 = vmax.f32 %v4273, %v4194
        %v4276 = vmax.f32 %v4274, %v4200
        %v4277 = vmax.f32 %v4275, %v4204
        %v4278 = vmax.f32 %v4276, %v4210
        %v4279 = vmax.f32 %v4277, %v4214
        %v4280 = vmax.f32 %v4278, %v4220
        %v4281 = vmax.f32 %v4279, %v4224
        %v4282 = vmax.f32 %v4280, %v4230
        %v4283 = vmax.f32 %v4281, %v4234
        %v4284 = vmax.f32 %v4282, %v4240
        %v4285 = vmax.f32 %v4283, %v4244
        %v4286 = vmax.f32 %v4284, %v4250
        %v4287 = vmax.f32 %v4285, %v4254
        %v4288 = vmax.f32 %v4286, %v4287
        %v4289 = vrot.slane %v4288, 4
        %v4290 = vmax.f32 %v4288, %v4289
        %v4291 = vrot.slane %v4290, 2
        %v4292 = vmax.f32 %v4290, %v4291
        %v4293 = vrot.slane %v4292, 1
        %v4294 = vmax.f32 %v4292, %v4293
        %v4295 = vmax.f32 %v4102, %v4112
        %v4296 = vmax.f32 %v4106, %v4116
        %v4297 = vmax.f32 %v4295, %v4122
        %v4298 = vmax.f32 %v4296, %v4126
        %v4299 = vmax.f32 %v4297, %v4132
        %v4300 = vmax.f32 %v4298, %v4136
        %v4301 = vmax.f32 %v4299, %v4142
        %v4302 = vmax.f32 %v4300, %v4146
        %v4303 = vmax.f32 %v4301, %v4152
        %v4304 = vmax.f32 %v4302, %v4156
        %v4305 = vmax.f32 %v4303, %v4162
        %v4306 = vmax.f32 %v4304, %v4166
        %v4307 = vmax.f32 %v4305, %v4172
        %v4308 = vmax.f32 %v4306, %v4176
        %v4309 = vmax.f32 %v4307, %v4182
        %v4310 = vmax.f32 %v4308, %v4186
        %v4311 = vmax.f32 %v4309, %v4192
        %v4312 = vmax.f32 %v4310, %v4196
        %v4313 = vmax.f32 %v4311, %v4202
        %v4314 = vmax.f32 %v4312, %v4206
        %v4315 = vmax.f32 %v4313, %v4212
        %v4316 = vmax.f32 %v4314, %v4216
        %v4317 = vmax.f32 %v4315, %v4222
        %v4318 = vmax.f32 %v4316, %v4226
        %v4319 = vmax.f32 %v4317, %v4232
        %v4320 = vmax.f32 %v4318, %v4236
        %v4321 = vmax.f32 %v4319, %v4242
        %v4322 = vmax.f32 %v4320, %v4246
        %v4323 = vmax.f32 %v4321, %v4252
        %v4324 = vmax.f32 %v4322, %v4256
        %v4325 = vmax.f32 %v4323, %v4324
        %v4326 = vrot.slane %v4325, 4
        %v4327 = vmax.f32 %v4325, %v4326
        %v4328 = vrot.slane %v4327, 2
        %v4329 = vmax.f32 %v4327, %v4328
        %v4330 = vrot.slane %v4329, 1
        %v4331 = vmax.f32 %v4329, %v4330
        %v4332 = vsub.f32 %v4100, %v4294
        %v4333 = vsub.f32 %v4102, %v4331
        %v4334 = vsub.f32 %v4104, %v4294
        %v4335 = vsub.f32 %v4106, %v4331
        %v4336 = vsub.f32 %v4110, %v4294
        %v4337 = vsub.f32 %v4112, %v4331
        %v4338 = vsub.f32 %v4114, %v4294
        %v4339 = vsub.f32 %v4116, %v4331
        %v4340 = vsub.f32 %v4120, %v4294
        %v4341 = vsub.f32 %v4122, %v4331
        %v4342 = vsub.f32 %v4124, %v4294
        %v4343 = vsub.f32 %v4126, %v4331
        %v4344 = vsub.f32 %v4130, %v4294
        %v4345 = vsub.f32 %v4132, %v4331
        %v4346 = vsub.f32 %v4134, %v4294
        %v4347 = vsub.f32 %v4136, %v4331
        %v4348 = vsub.f32 %v4140, %v4294
        %v4349 = vsub.f32 %v4142, %v4331
        %v4350 = vsub.f32 %v4144, %v4294
        %v4351 = vsub.f32 %v4146, %v4331
        %v4352 = vsub.f32 %v4150, %v4294
        %v4353 = vsub.f32 %v4152, %v4331
        %v4354 = vsub.f32 %v4154, %v4294
        %v4355 = vsub.f32 %v4156, %v4331
        %v4356 = vsub.f32 %v4160, %v4294
        %v4357 = vsub.f32 %v4162, %v4331
        %v4358 = vsub.f32 %v4164, %v4294
        %v4359 = vsub.f32 %v4166, %v4331
        %v4360 = vsub.f32 %v4170, %v4294
        %v4361 = vsub.f32 %v4172, %v4331
        %v4362 = vsub.f32 %v4174, %v4294
        %v4363 = vsub.f32 %v4176, %v4331
        %v4364 = vsub.f32 %v4180, %v4294
        %v4365 = vsub.f32 %v4182, %v4331
        %v4366 = vsub.f32 %v4184, %v4294
        %v4367 = vsub.f32 %v4186, %v4331
        %v4368 = vsub.f32 %v4190, %v4294
        %v4369 = vsub.f32 %v4192, %v4331
        %v4370 = vsub.f32 %v4194, %v4294
        %v4371 = vsub.f32 %v4196, %v4331
        %v4372 = vsub.f32 %v4200, %v4294
        %v4373 = vsub.f32 %v4202, %v4331
        %v4374 = vsub.f32 %v4204, %v4294
        %v4375 = vsub.f32 %v4206, %v4331
        %v4376 = vsub.f32 %v4210, %v4294
        %v4377 = vsub.f32 %v4212, %v4331
        %v4378 = vsub.f32 %v4214, %v4294
        %v4379 = vsub.f32 %v4216, %v4331
        %v4380 = vsub.f32 %v4220, %v4294
        %v4381 = vsub.f32 %v4222, %v4331
        %v4382 = vsub.f32 %v4224, %v4294
        %v4383 = vsub.f32 %v4226, %v4331
        %v4384 = vsub.f32 %v4230, %v4294
        %v4385 = vsub.f32 %v4232, %v4331
        %v4386 = vsub.f32 %v4234, %v4294
        %v4387 = vsub.f32 %v4236, %v4331
        %v4388 = vsub.f32 %v4240, %v4294
        %v4389 = vsub.f32 %v4242, %v4331
        %v4390 = vsub.f32 %v4244, %v4294
        %v4391 = vsub.f32 %v4246, %v4331
        %v4392 = vsub.f32 %v4250, %v4294
        %v4393 = vsub.f32 %v4252, %v4331
        %v4394 = vsub.f32 %v4254, %v4294
        %v4395 = vsub.f32 %v4256, %v4331
        %v4396 = vmul.f32 %v4332, 1.442695
        %v4397 = vpow.pop %v4396
        %v4398 = vmul.f32 %v4333, 1.442695
        %v4399 = vpow.pop %v4398
        %v4400 = vmul.f32 %v4334, 1.442695
        %v4401 = vpow.pop %v4400
        %v4402 = vmul.f32 %v4335, 1.442695
        %v4403 = vpow.pop %v4402
        %v4404 = vmul.f32 %v4336, 1.442695
        %v4405 = vpow.pop %v4404
        %v4406 = vmul.f32 %v4337, 1.442695
        %v4407 = vpow.pop %v4406
        %v4408 = vmul.f32 %v4338, 1.442695
        %v4409 = vpow.pop %v4408
        %v4410 = vmul.f32 %v4339, 1.442695
        %v4411 = vpow.pop %v4410
        %v4412 = vmul.f32 %v4340, 1.442695
        %v4413 = vpow.pop %v4412
        %v4414 = vmul.f32 %v4341, 1.442695
        %v4415 = vpow.pop %v4414
        %v4416 = vmul.f32 %v4342, 1.442695
        %v4417 = vpow.pop %v4416
        %v4418 = vmul.f32 %v4343, 1.442695
        %v4419 = vpow.pop %v4418
        %v4420 = vmul.f32 %v4344, 1.442695
        %v4421 = vpow.pop %v4420
        %v4422 = vmul.f32 %v4345, 1.442695
        %v4423 = vpow.pop %v4422
        %v4424 = vmul.f32 %v4346, 1.442695
        %v4425 = vpow.pop %v4424
        %v4426 = vmul.f32 %v4347, 1.442695
        %v4427 = vpow.pop %v4426
        %v4428 = vmul.f32 %v4348, 1.442695
        %v4429 = vpow.pop %v4428
        %v4430 = vmul.f32 %v4349, 1.442695
        %v4431 = vpow.pop %v4430
        %v4432 = vmul.f32 %v4350, 1.442695
        %v4433 = vpow.pop %v4432
        %v4434 = vmul.f32 %v4351, 1.442695
        %v4435 = vpow.pop %v4434
        %v4436 = vmul.f32 %v4352, 1.442695
        %v4437 = vpow.pop %v4436
        %v4438 = vmul.f32 %v4353, 1.442695
        %v4439 = vpow.pop %v4438
        %v4440 = vmul.f32 %v4354, 1.442695
        %v4441 = vpow.pop %v4440
        %v4442 = vmul.f32 %v4355, 1.442695
        %v4443 = vpow.pop %v4442
        %v4444 = vmul.f32 %v4356, 1.442695
        %v4445 = vpow.pop %v4444
        %v4446 = vmul.f32 %v4357, 1.442695
        %v4447 = vpow.pop %v4446
        %v4448 = vmul.f32 %v4358, 1.442695
        %v4449 = vpow.pop %v4448
        %v4450 = vmul.f32 %v4359, 1.442695
        %v4451 = vpow.pop %v4450
        %v4452 = vmul.f32 %v4360, 1.442695
        %v4453 = vpow.pop %v4452
        %v4454 = vmul.f32 %v4361, 1.442695
        %v4455 = vpow.pop %v4454
        %v4456 = vmul.f32 %v4362, 1.442695
        %v4457 = vpow.pop %v4456
        %v4458 = vmul.f32 %v4363, 1.442695
        %v4459 = vpow.pop %v4458
        %v4460 = vmul.f32 %v4364, 1.442695
        %v4461 = vpow.pop %v4460
        %v4462 = vmul.f32 %v4365, 1.442695
        %v4463 = vpow.pop %v4462
        %v4464 = vmul.f32 %v4366, 1.442695
        %v4465 = vpow.pop %v4464
        %v4466 = vmul.f32 %v4367, 1.442695
        %v4467 = vpow.pop %v4466
        %v4468 = vmul.f32 %v4368, 1.442695
        %v4469 = vpow.pop %v4468
        %v4470 = vmul.f32 %v4369, 1.442695
        %v4471 = vpow.pop %v4470
        %v4472 = vmul.f32 %v4370, 1.442695
        %v4473 = vpow.pop %v4472
        %v4474 = vmul.f32 %v4371, 1.442695
        %v4475 = vpow.pop %v4474
        %v4476 = vmul.f32 %v4372, 1.442695
        %v4477 = vpow.pop %v4476
        %v4478 = vmul.f32 %v4373, 1.442695
        %v4479 = vpow.pop %v4478
        %v4480 = vmul.f32 %v4374, 1.442695
        %v4481 = vpow.pop %v4480
        %v4482 = vmul.f32 %v4375, 1.442695
        %v4483 = vpow.pop %v4482
        %v4484 = vmul.f32 %v4376, 1.442695
        %v4485 = vpow.pop %v4484
        %v4486 = vmul.f32 %v4377, 1.442695
        %v4487 = vpow.pop %v4486
        %v4488 = vmul.f32 %v4378, 1.442695
        %v4489 = vpow.pop %v4488
        %v4490 = vmul.f32 %v4379, 1.442695
        %v4491 = vpow.pop %v4490
        %v4492 = vmul.f32 %v4380, 1.442695
        %v4493 = vpow.pop %v4492
        %v4494 = vmul.f32 %v4381, 1.442695
        %v4495 = vpow.pop %v4494
        %v4496 = vmul.f32 %v4382, 1.442695
        %v4497 = vpow.pop %v4496
        %v4498 = vmul.f32 %v4383, 1.442695
        %v4499 = vpow.pop %v4498
        %v4500 = vmul.f32 %v4384, 1.442695
        %v4501 = vpow.pop %v4500
        %v4502 = vmul.f32 %v4385, 1.442695
        %v4503 = vpow.pop %v4502
        %v4504 = vmul.f32 %v4386, 1.442695
        %v4505 = vpow.pop %v4504
        %v4506 = vmul.f32 %v4387, 1.442695
        %v4507 = vpow.pop %v4506
        %v4508 = vmul.f32 %v4388, 1.442695
        %v4509 = vpow.pop %v4508
        %v4510 = vmul.f32 %v4389, 1.442695
        %v4511 = vpow.pop %v4510
        %v4512 = vmul.f32 %v4390, 1.442695
        %v4513 = vpow.pop %v4512
        %v4514 = vmul.f32 %v4391, 1.442695
        %v4515 = vpow.pop %v4514
        %v4516 = vmul.f32 %v4392, 1.442695
        %v4517 = vpow.pop %v4516
        %v4518 = vmul.f32 %v4393, 1.442695
        %v4519 = vpow.pop %v4518
        %v4520 = vmul.f32 %v4394, 1.442695
        %v4521 = vpow.pop %v4520
        %v4522 = vmul.f32 %v4395, 1.442695
        %v4523 = vpow.pop %v4522
        %v4524 = vadd.f32 %v4397, %v4401
        %v4525 = vadd.f32 %v4524, %v4405
        %v4526 = vadd.f32 %v4525, %v4409
        %v4527 = vadd.f32 %v4526, %v4413
        %v4528 = vadd.f32 %v4527, %v4417
        %v4529 = vadd.f32 %v4528, %v4421
        %v4530 = vadd.f32 %v4529, %v4425
        %v4531 = vadd.f32 %v4530, %v4429
        %v4532 = vadd.f32 %v4531, %v4433
        %v4533 = vadd.f32 %v4532, %v4437
        %v4534 = vadd.f32 %v4533, %v4441
        %v4535 = vadd.f32 %v4534, %v4445
        %v4536 = vadd.f32 %v4535, %v4449
        %v4537 = vadd.f32 %v4536, %v4453
        %v4538 = vadd.f32 %v4537, %v4457
        %v4539 = vadd.f32 %v4538, %v4461
        %v4540 = vadd.f32 %v4539, %v4465
        %v4541 = vadd.f32 %v4540, %v4469
        %v4542 = vadd.f32 %v4541, %v4473
        %v4543 = vadd.f32 %v4542, %v4477
        %v4544 = vadd.f32 %v4543, %v4481
        %v4545 = vadd.f32 %v4544, %v4485
        %v4546 = vadd.f32 %v4545, %v4489
        %v4547 = vadd.f32 %v4546, %v4493
        %v4548 = vadd.f32 %v4547, %v4497
        %v4549 = vadd.f32 %v4548, %v4501
        %v4550 = vadd.f32 %v4549, %v4505
        %v4551 = vadd.f32 %v4550, %v4509
        %v4552 = vadd.f32 %v4551, %v4513
        %v4553 = vadd.f32 %v4552, %v4517
        %v4554 = vadd.f32 %v4553, %v4521
        %v4555 = vrot.slane %v4554, 4
        %v4556 = vadd.f32 %v4554, %v4555
        %v4557 = vrot.slane %v4556, 2
        %v4558 = vadd.f32 %v4556, %v4557
        %v4559 = vrot.slane %v4558, 1
        %v4560 = vadd.f32 %v4558, %v4559
        %v4561 = vadd.f32 %v4399, %v4403
        %v4562 = vadd.f32 %v4561, %v4407
        %v4563 = vadd.f32 %v4562, %v4411
        %v4564 = vadd.f32 %v4563, %v4415
        %v4565 = vadd.f32 %v4564, %v4419
        %v4566 = vadd.f32 %v4565, %v4423
        %v4567 = vadd.f32 %v4566, %v4427
        %v4568 = vadd.f32 %v4567, %v4431
        %v4569 = vadd.f32 %v4568, %v4435
        %v4570 = vadd.f32 %v4569, %v4439
        %v4571 = vadd.f32 %v4570, %v4443
        %v4572 = vadd.f32 %v4571, %v4447
        %v4573 = vadd.f32 %v4572, %v4451
        %v4574 = vadd.f32 %v4573, %v4455
        %v4575 = vadd.f32 %v4574, %v4459
        %v4576 = vadd.f32 %v4575, %v4463
        %v4577 = vadd.f32 %v4576, %v4467
        %v4578 = vadd.f32 %v4577, %v4471
        %v4579 = vadd.f32 %v4578, %v4475
        %v4580 = vadd.f32 %v4579, %v4479
        %v4581 = vadd.f32 %v4580, %v4483
        %v4582 = vadd.f32 %v4581, %v4487
        %v4583 = vadd.f32 %v4582, %v4491
        %v4584 = vadd.f32 %v4583, %v4495
        %v4585 = vadd.f32 %v4584, %v4499
        %v4586 = vadd.f32 %v4585, %v4503
        %v4587 = vadd.f32 %v4586, %v4507
        %v4588 = vadd.f32 %v4587, %v4511
        %v4589 = vadd.f32 %v4588, %v4515
        %v4590 = vadd.f32 %v4589, %v4519
        %v4591 = vadd.f32 %v4590, %v4523
        %v4592 = vrot.slane %v4591, 4
        %v4593 = vadd.f32 %v4591, %v4592
        %v4594 = vrot.slane %v4593, 2
        %v4595 = vadd.f32 %v4593, %v4594
        %v4596 = vrot.slane %v4595, 1
        %v4597 = vadd.f32 %v4595, %v4596
        %v4598 = vrcp.pop %v4560
        %v4599 = vrcp.pop %v4597
        %v4600 = vmul.f32 %v4397, %v4598
        %v4601 = vmul.f32 %v4399, %v4599
        %v4602 = vmul.f32 %v4401, %v4598
        %v4603 = vmul.f32 %v4403, %v4599
        %v4604 = vmul.f32 %v4405, %v4598
        %v4605 = vmul.f32 %v4407, %v4599
        %v4606 = vmul.f32 %v4409, %v4598
        %v4607 = vmul.f32 %v4411, %v4599
        %v4608 = vmul.f32 %v4413, %v4598
        %v4609 = vmul.f32 %v4415, %v4599
        %v4610 = vmul.f32 %v4417, %v4598
        %v4611 = vmul.f32 %v4419, %v4599
        %v4612 = vmul.f32 %v4421, %v4598
        %v4613 = vmul.f32 %v4423, %v4599
        %v4614 = vmul.f32 %v4425, %v4598
        %v4615 = vmul.f32 %v4427, %v4599
        %v4616 = vmul.f32 %v4429, %v4598
        %v4617 = vmul.f32 %v4431, %v4599
        %v4618 = vmul.f32 %v4433, %v4598
        %v4619 = vmul.f32 %v4435, %v4599
        %v4620 = vmul.f32 %v4437, %v4598
        %v4621 = vmul.f32 %v4439, %v4599
        %v4622 = vmul.f32 %v4441, %v4598
        %v4623 = vmul.f32 %v4443, %v4599
        %v4624 = vmul.f32 %v4445, %v4598
        %v4625 = vmul.f32 %v4447, %v4599
        %v4626 = vmul.f32 %v4449, %v4598
        %v4627 = vmul.f32 %v4451, %v4599
        %v4628 = vmul.f32 %v4453, %v4598
        %v4629 = vmul.f32 %v4455, %v4599
        %v4630 = vmul.f32 %v4457, %v4598
        %v4631 = vmul.f32 %v4459, %v4599
        %v4632 = vmul.f32 %v4461, %v4598
        %v4633 = vmul.f32 %v4463, %v4599
        %v4634 = vmul.f32 %v4465, %v4598
        %v4635 = vmul.f32 %v4467, %v4599
        %v4636 = vmul.f32 %v4469, %v4598
        %v4637 = vmul.f32 %v4471, %v4599
        %v4638 = vmul.f32 %v4473, %v4598
        %v4639 = vmul.f32 %v4475, %v4599
        %v4640 = vmul.f32 %v4477, %v4598
        %v4641 = vmul.f32 %v4479, %v4599
        %v4642 = vmul.f32 %v4481, %v4598
        %v4643 = vmul.f32 %v4483, %v4599
        %v4644 = vmul.f32 %v4485, %v4598
        %v4645 = vmul.f32 %v4487, %v4599
        %v4646 = vmul.f32 %v4489, %v4598
        %v4647 = vmul.f32 %v4491, %v4599
        %v4648 = vmul.f32 %v4493, %v4598
        %v4649 = vmul.f32 %v4495, %v4599
        %v4650 = vmul.f32 %v4497, %v4598
        %v4651 = vmul.f32 %v4499, %v4599
        %v4652 = vmul.f32 %v4501, %v4598
        %v4653 = vmul.f32 %v4503, %v4599
        %v4654 = vmul.f32 %v4505, %v4598
        %v4655 = vmul.f32 %v4507, %v4599
        %v4656 = vmul.f32 %v4509, %v4598
        %v4657 = vmul.f32 %v4511, %v4599
        %v4658 = vmul.f32 %v4513, %v4598
        %v4659 = vmul.f32 %v4515, %v4599
        %v4660 = vmul.f32 %v4517, %v4598
        %v4661 = vmul.f32 %v4519, %v4599
        %v4662 = vmul.f32 %v4521, %v4598
        %v4663 = vmul.f32 %v4523, %v4599
        %v4664 = vpack.c.bf16 %v4602, %v4600
        %v4665 = vpack.c.bf16 %v4603, %v4601
        %v4666 = vpack.c.bf16 %v4606, %v4604
        %v4667 = vpack.c.bf16 %v4607, %v4605
        %v4668 = vpack.c.bf16 %v4610, %v4608
        %v4669 = vpack.c.bf16 %v4611, %v4609
        %v4670 = vpack.c.bf16 %v4614, %v4612
        %v4671 = vpack.c.bf16 %v4615, %v4613
        %v4672 = vpack.c.bf16 %v4618, %v4616
        %v4673 = vpack.c.bf16 %v4619, %v4617
        %v4674 = vpack.c.bf16 %v4622, %v4620
        %v4675 = vpack.c.bf16 %v4623, %v4621
        %v4676 = vpack.c.bf16 %v4626, %v4624
        %v4677 = vpack.c.bf16 %v4627, %v4625
        %v4678 = vpack.c.bf16 %v4630, %v4628
        %v4679 = vpack.c.bf16 %v4631, %v4629
        %v4680 = vpack.c.bf16 %v4634, %v4632
        %v4681 = vpack.c.bf16 %v4635, %v4633
        %v4682 = vpack.c.bf16 %v4638, %v4636
        %v4683 = vpack.c.bf16 %v4639, %v4637
        %v4684 = vpack.c.bf16 %v4642, %v4640
        %v4685 = vpack.c.bf16 %v4643, %v4641
        %v4686 = vpack.c.bf16 %v4646, %v4644
        %v4687 = vpack.c.bf16 %v4647, %v4645
        %v4688 = vpack.c.bf16 %v4650, %v4648
        %v4689 = vpack.c.bf16 %v4651, %v4649
        %v4690 = vpack.c.bf16 %v4654, %v4652
        %v4691 = vpack.c.bf16 %v4655, %v4653
        %v4692 = vpack.c.bf16 %v4658, %v4656
        %v4693 = vpack.c.bf16 %v4659, %v4657
        %v4694 = vpack.c.bf16 %v4662, %v4660
        %v4695 = vpack.c.bf16 %v4663, %v4661
        %4696 = vmatprep.subr.bf16.mxu0 %v4665
        %4697 = vmatpush1.bf16.msra.mxu0 %v4664
        %4698 = vmatprep.subr.bf16.mxu0 %v4667
        %4699 = vmatpush1.bf16.msra.mxu0 %v4666
        %4700 = vmatprep.subr.bf16.mxu0 %v4669
        %4701 = vmatpush1.bf16.msra.mxu0 %v4668
        %4702 = vmatprep.subr.bf16.mxu0 %v4671
        %4703 = vmatpush1.bf16.msra.mxu0 %v4670
        %4704 = vmatprep.subr.bf16.mxu0 %v4673
        %4705 = vmatpush1.bf16.msra.mxu0 %v4672
        %4706 = vmatprep.subr.bf16.mxu0 %v4675
        %4707 = vmatpush1.bf16.msra.mxu0 %v4674
        %4708 = vmatprep.subr.bf16.mxu0 %v4677
        %4709 = vmatpush1.bf16.msra.mxu0 %v4676
        %4710 = vmatprep.subr.bf16.mxu0 %v4679
        %4711 = vmatpush1.bf16.msra.mxu0 %v4678
        %4712 = vmatprep.subr.bf16.mxu0 %v4681
        %4713 = vmatpush1.bf16.msra.mxu0 %v4680
        %4714 = vmatprep.subr.bf16.mxu0 %v4683
        %4715 = vmatpush1.bf16.msra.mxu0 %v4682
        %4716 = vmatprep.subr.bf16.mxu0 %v4685
        %4717 = vmatpush1.bf16.msra.mxu0 %v4684
        %4718 = vmatprep.subr.bf16.mxu0 %v4687
        %4719 = vmatpush1.bf16.msra.mxu0 %v4686
        %4720 = vmatprep.subr.bf16.mxu0 %v4689
        %4721 = vmatpush1.bf16.msra.mxu0 %v4688
        %4722 = vmatprep.subr.bf16.mxu0 %v4691
        %4723 = vmatpush1.bf16.msra.mxu0 %v4690
        %4724 = vmatprep.subr.bf16.mxu0 %v4693
        %4725 = vmatpush1.bf16.msra.mxu0 %v4692
        %4726 = vmatprep.subr.bf16.mxu0 %v4695
        %4727 = vmatpush1.bf16.msra.mxu0 %v4694
        %4728 = vmatprep.mubr.bf16.mxu0 %v3982
        %4729 = vmatmul.mubr.bf16.gmra.mrb[0].mxu0 %v3981
        %v4730 = vpop.f32.mrb[0].mxu0
        %v4731 = vadd.f32 0.0, %v4730
        %v4732 = vpop.f32.mrb[0].mxu0
        %v4733 = vadd.f32 0.0, %v4732
        %v4734 = vpop.f32.mrb[0].mxu0
        %v4735 = vadd.f32 0.0, %v4734
        %v4736 = vpop.f32.mrb[0].mxu0
        %v4737 = vadd.f32 0.0, %v4736
        %4738 = vmatprep.mubr.bf16.mxu0 %v3984
        %4739 = vmatmul.mubr.bf16.gmra.mrb[0].mxu0 %v3983
        %v4740 = vpop.f32.mrb[0].mxu0
        %v4741 = vadd.f32 0.0, %v4740
        %v4742 = vpop.f32.mrb[0].mxu0
        %v4743 = vadd.f32 0.0, %v4742
        %v4744 = vpop.f32.mrb[0].mxu0
        %v4745 = vadd.f32 0.0, %v4744
        %v4746 = vpop.f32.mrb[0].mxu0
        %v4747 = vadd.f32 0.0, %v4746
        %4748 = vdwg.mxu0
        %4749 = vst [vmem:[#allocation3 + $0x90] sm:$0xff] %v4731
        %4750 = vst [vmem:[#allocation3 + $0x98] sm:$0xff] %v4733
        %4751 = vst [vmem:[#allocation3 + $0xb0] sm:$0xff] %v4735
        %4752 = vst [vmem:[#allocation3 + $0xb8] sm:$0xff] %v4737
        %4753 = vst [vmem:[#allocation3 + $0xd0] sm:$0xff] %v4741
        %4754 = vst [vmem:[#allocation3 + $0xd8] sm:$0xff] %v4743
        %4755 = vst [vmem:[#allocation3 + $0xf0] sm:$0xff] %v4745
        %4756 = vst [vmem:[#allocation3 + $0xf8] sm:$0xff] %v4747
        %v4757 = vld [vmem:[#allocation2 + $0x80] sm:$0xff]
        %v4758 = vld [vmem:[#allocation2 + $0x88] sm:$0xff]
        %v4759 = vld [vmem:[#allocation2 + $0xa0] sm:$0xff]
        %v4760 = vld [vmem:[#allocation2 + $0xa8] sm:$0xff]
        %v4761 = vld [vmem:[#allocation2 + $0x180] sm:$0xff]
        %v4762 = vld [vmem:[#allocation2 + $0x188] sm:$0xff]
        %v4763 = vld [vmem:[#allocation2 + $0x1a0] sm:$0xff]
        %v4764 = vld [vmem:[#allocation2 + $0x1a8] sm:$0xff]
        %v4765 = vld [vmem:[#allocation2 + $0x280] sm:$0xff]
        %v4766 = vld [vmem:[#allocation2 + $0x288] sm:$0xff]
        %v4767 = vld [vmem:[#allocation2 + $0x2a0] sm:$0xff]
        %v4768 = vld [vmem:[#allocation2 + $0x2a8] sm:$0xff]
        %4769 = vxpose.xlu0.c.b16.start [1/8] %v4761, 128
        %4770 = vxpose.xlu0.c.b16.cont [2/8] %v4763, 128
        %4771 = vxpose.xlu0.c.b16.cont [3/8] 0, 128
        %4772 = vxpose.xlu0.c.b16.cont [4/8] 0, 128
        %4773 = vxpose.xlu0.c.b16.cont [5/8] 0, 128
        %4774 = vxpose.xlu0.c.b16.cont [6/8] 0, 128
        %4775 = vxpose.xlu0.c.b16.cont [7/8] 0, 128
        %4776 = vxpose.xlu0.c.b16.end [8/8] 0, 128
        %v4777 = vpop.trf.xlu0
        %v4778 = vpop.trf.xlu0
        %v4779 = vpop.trf.xlu0
        %v4780 = vpop.trf.xlu0
        %v4781 = vpop.trf.xlu0
        %v4782 = vpop.trf.xlu0
        %v4783 = vpop.trf.xlu0
        %v4784 = vpop.trf.xlu0
        %4785 = vxpose.xlu0.c.b16.start [1/8] %v4762, 128
        %4786 = vxpose.xlu0.c.b16.cont [2/8] %v4764, 128
        %4787 = vxpose.xlu0.c.b16.cont [3/8] 0, 128
        %4788 = vxpose.xlu0.c.b16.cont [4/8] 0, 128
        %4789 = vxpose.xlu0.c.b16.cont [5/8] 0, 128
        %4790 = vxpose.xlu0.c.b16.cont [6/8] 0, 128
        %4791 = vxpose.xlu0.c.b16.cont [7/8] 0, 128
        %4792 = vxpose.xlu0.c.b16.end [8/8] 0, 128
        %v4793 = vpop.trf.xlu0
        %v4794 = vpop.trf.xlu0
        %v4795 = vpop.trf.xlu0
        %v4796 = vpop.trf.xlu0
        %v4797 = vpop.trf.xlu0
        %v4798 = vpop.trf.xlu0
        %v4799 = vpop.trf.xlu0
        %v4800 = vpop.trf.xlu0
        %v4802 = vsel %vm1664, %v4777, 0
        %v4805 = vsel %vm1664, %v4778, 0
        %v4808 = vsel %vm1664, %v4779, 0
        %v4811 = vsel %vm1664, %v4780, 0
        %v4814 = vsel %vm1664, %v4781, 0
        %v4817 = vsel %vm1664, %v4782, 0
        %v4820 = vsel %vm1664, %v4783, 0
        %v4823 = vsel %vm1664, %v4784, 0
        %v4826 = vsel %vm1664, %v4793, 0
        %v4829 = vsel %vm1664, %v4794, 0
        %v4832 = vsel %vm1664, %v4795, 0
        %v4835 = vsel %vm1664, %v4796, 0
        %v4838 = vsel %vm1664, %v4797, 0
        %v4841 = vsel %vm1664, %v4798, 0
        %v4844 = vsel %vm1664, %v4799, 0
        %v4847 = vsel %vm1664, %v4800, 0
        %4849 = vmatprep.subr.bf16.mxu0 %v4758
        %4850 = vmatpush1.bf16.msra.mxu0 %v4757
        %4851 = vmatprep.subr.bf16.mxu0 %v4760
        %4852 = vmatpush1.bf16.msra.mxu0 %v4759
        %4853 = vmatprep.subr.bf16.mxu0 0
        %4854 = vmatpush1.bf16.msra.mxu0 0
        %4855 = vmatprep.subr.bf16.mxu0 0
        %4856 = vmatpush1.bf16.msra.mxu0 0
        %4857 = vmatprep.subr.bf16.mxu0 0
        %4858 = vmatpush1.bf16.msra.mxu0 0
        %4859 = vmatprep.subr.bf16.mxu0 0
        %4860 = vmatpush1.bf16.msra.mxu0 0
        %4861 = vmatprep.subr.bf16.mxu0 0
        %4862 = vmatpush1.bf16.msra.mxu0 0
        %4863 = vmatprep.subr.bf16.mxu0 0
        %4864 = vmatpush1.bf16.msra.mxu0 0
        %4865 = vmatprep.subr.bf16.mxu0 0
        %4866 = vmatpush1.bf16.msra.mxu0 0
        %4867 = vmatprep.subr.bf16.mxu0 0
        %4868 = vmatpush1.bf16.msra.mxu0 0
        %4869 = vmatprep.subr.bf16.mxu0 0
        %4870 = vmatpush1.bf16.msra.mxu0 0
        %4871 = vmatprep.subr.bf16.mxu0 0
        %4872 = vmatpush1.bf16.msra.mxu0 0
        %4873 = vmatprep.subr.bf16.mxu0 0
        %4874 = vmatpush1.bf16.msra.mxu0 0
        %4875 = vmatprep.subr.bf16.mxu0 0
        %4876 = vmatpush1.bf16.msra.mxu0 0
        %4877 = vmatprep.subr.bf16.mxu0 0
        %4878 = vmatpush1.bf16.msra.mxu0 0
        %4879 = vmatprep.subr.bf16.mxu0 0
        %4880 = vmatpush1.bf16.msra.mxu0 0
        %4881 = vmatprep.mubr.bf16.mxu0 0
        %4882 = vmatmul.mubr.bf16.gmra.mrb[0].mxu0 %v4802
        %v4883 = vpop.f32.mrb[0].mxu0
        %v4884 = vadd.f32 0.0, %v4883
        %v4885 = vpop.f32.mrb[0].mxu0
        %v4886 = vadd.f32 0.0, %v4885
        %v4887 = vpop.f32.mrb[0].mxu0
        %v4888 = vadd.f32 0.0, %v4887
        %v4889 = vpop.f32.mrb[0].mxu0
        %v4890 = vadd.f32 0.0, %v4889
        %4891 = vmatprep.mubr.bf16.mxu0 0
        %4892 = vmatmul.mubr.bf16.gmra.mrb[0].mxu0 %v4805
        %v4893 = vpop.f32.mrb[0].mxu0
        %v4894 = vadd.f32 0.0, %v4893
        %v4895 = vpop.f32.mrb[0].mxu0
        %v4896 = vadd.f32 0.0, %v4895
        %v4897 = vpop.f32.mrb[0].mxu0
        %v4898 = vadd.f32 0.0, %v4897
        %v4899 = vpop.f32.mrb[0].mxu0
        %v4900 = vadd.f32 0.0, %v4899
        %4901 = vmatprep.mubr.bf16.mxu0 0
        %4902 = vmatmul.mubr.bf16.gmra.mrb[0].mxu0 %v4808
        %v4903 = vpop.f32.mrb[0].mxu0
        %v4904 = vadd.f32 0.0, %v4903
        %v4905 = vpop.f32.mrb[0].mxu0
        %v4906 = vadd.f32 0.0, %v4905
        %v4907 = vpop.f32.mrb[0].mxu0
        %v4908 = vadd.f32 0.0, %v4907
        %v4909 = vpop.f32.mrb[0].mxu0
        %v4910 = vadd.f32 0.0, %v4909
        %4911 = vmatprep.mubr.bf16.mxu0 0
        %4912 = vmatmul.mubr.bf16.gmra.mrb[0].mxu0 %v4811
        %v4913 = vpop.f32.mrb[0].mxu0
        %v4914 = vadd.f32 0.0, %v4913
        %v4915 = vpop.f32.mrb[0].mxu0
        %v4916 = vadd.f32 0.0, %v4915
        %v4917 = vpop.f32.mrb[0].mxu0
        %v4918 = vadd.f32 0.0, %v4917
        %v4919 = vpop.f32.mrb[0].mxu0
        %v4920 = vadd.f32 0.0, %v4919
        %4921 = vmatprep.mubr.bf16.mxu0 0
        %4922 = vmatmul.mubr.bf16.gmra.mrb[0].mxu0 %v4814
        %v4923 = vpop.f32.mrb[0].mxu0
        %v4924 = vadd.f32 0.0, %v4923
        %v4925 = vpop.f32.mrb[0].mxu0
        %v4926 = vadd.f32 0.0, %v4925
        %v4927 = vpop.f32.mrb[0].mxu0
        %v4928 = vadd.f32 0.0, %v4927
        %v4929 = vpop.f32.mrb[0].mxu0
        %v4930 = vadd.f32 0.0, %v4929
        %4931 = vmatprep.mubr.bf16.mxu0 0
        %4932 = vmatmul.mubr.bf16.gmra.mrb[0].mxu0 %v4817
        %v4933 = vpop.f32.mrb[0].mxu0
        %v4934 = vadd.f32 0.0, %v4933
        %v4935 = vpop.f32.mrb[0].mxu0
        %v4936 = vadd.f32 0.0, %v4935
        %v4937 = vpop.f32.mrb[0].mxu0
        %v4938 = vadd.f32 0.0, %v4937
        %v4939 = vpop.f32.mrb[0].mxu0
        %v4940 = vadd.f32 0.0, %v4939
        %4941 = vmatprep.mubr.bf16.mxu0 0
        %4942 = vmatmul.mubr.bf16.gmra.mrb[0].mxu0 %v4820
        %v4943 = vpop.f32.mrb[0].mxu0
        %v4944 = vadd.f32 0.0, %v4943
        %v4945 = vpop.f32.mrb[0].mxu0
        %v4946 = vadd.f32 0.0, %v4945
        %v4947 = vpop.f32.mrb[0].mxu0
        %v4948 = vadd.f32 0.0, %v4947
        %v4949 = vpop.f32.mrb[0].mxu0
        %v4950 = vadd.f32 0.0, %v4949
        %4951 = vmatprep.mubr.bf16.mxu0 0
        %4952 = vmatmul.mubr.bf16.gmra.mrb[0].mxu0 %v4823
        %v4953 = vpop.f32.mrb[0].mxu0
        %v4954 = vadd.f32 0.0, %v4953
        %v4955 = vpop.f32.mrb[0].mxu0
        %v4956 = vadd.f32 0.0, %v4955
        %v4957 = vpop.f32.mrb[0].mxu0
        %v4958 = vadd.f32 0.0, %v4957
        %v4959 = vpop.f32.mrb[0].mxu0
        %v4960 = vadd.f32 0.0, %v4959
        %4961 = vmatprep.mubr.bf16.mxu0 0
        %4962 = vmatmul.mubr.bf16.gmra.mrb[0].mxu0 %v4826
        %v4963 = vpop.f32.mrb[0].mxu0
        %v4964 = vadd.f32 0.0, %v4963
        %v4965 = vpop.f32.mrb[0].mxu0
        %v4966 = vadd.f32 0.0, %v4965
        %v4967 = vpop.f32.mrb[0].mxu0
        %v4968 = vadd.f32 0.0, %v4967
        %v4969 = vpop.f32.mrb[0].mxu0
        %v4970 = vadd.f32 0.0, %v4969
        %4971 = vmatprep.mubr.bf16.mxu0 0
        %4972 = vmatmul.mubr.bf16.gmra.mrb[0].mxu0 %v4829
        %v4973 = vpop.f32.mrb[0].mxu0
        %v4974 = vadd.f32 0.0, %v4973
        %v4975 = vpop.f32.mrb[0].mxu0
        %v4976 = vadd.f32 0.0, %v4975
        %v4977 = vpop.f32.mrb[0].mxu0
        %v4978 = vadd.f32 0.0, %v4977
        %v4979 = vpop.f32.mrb[0].mxu0
        %v4980 = vadd.f32 0.0, %v4979
        %4981 = vmatprep.mubr.bf16.mxu0 0
        %4982 = vmatmul.mubr.bf16.gmra.mrb[0].mxu0 %v4832
        %v4983 = vpop.f32.mrb[0].mxu0
        %v4984 = vadd.f32 0.0, %v4983
        %v4985 = vpop.f32.mrb[0].mxu0
        %v4986 = vadd.f32 0.0, %v4985
        %v4987 = vpop.f32.mrb[0].mxu0
        %v4988 = vadd.f32 0.0, %v4987
        %v4989 = vpop.f32.mrb[0].mxu0
        %v4990 = vadd.f32 0.0, %v4989
        %4991 = vmatprep.mubr.bf16.mxu0 0
        %4992 = vmatmul.mubr.bf16.gmra.mrb[0].mxu0 %v4835
        %v4993 = vpop.f32.mrb[0].mxu0
        %v4994 = vadd.f32 0.0, %v4993
        %v4995 = vpop.f32.mrb[0].mxu0
        %v4996 = vadd.f32 0.0, %v4995
        %v4997 = vpop.f32.mrb[0].mxu0
        %v4998 = vadd.f32 0.0, %v4997
        %v4999 = vpop.f32.mrb[0].mxu0
        %v5000 = vadd.f32 0.0, %v4999
        %5001 = vmatprep.mubr.bf16.mxu0 0
        %5002 = vmatmul.mubr.bf16.gmra.mrb[0].mxu0 %v4838
        %v5003 = vpop.f32.mrb[0].mxu0
        %v5004 = vadd.f32 0.0, %v5003
        %v5005 = vpop.f32.mrb[0].mxu0
        %v5006 = vadd.f32 0.0, %v5005
        %v5007 = vpop.f32.mrb[0].mxu0
        %v5008 = vadd.f32 0.0, %v5007
        %v5009 = vpop.f32.mrb[0].mxu0
        %v5010 = vadd.f32 0.0, %v5009
        %5011 = vmatprep.mubr.bf16.mxu0 0
        %5012 = vmatmul.mubr.bf16.gmra.mrb[0].mxu0 %v4841
        %v5013 = vpop.f32.mrb[0].mxu0
        %v5014 = vadd.f32 0.0, %v5013
        %v5015 = vpop.f32.mrb[0].mxu0
        %v5016 = vadd.f32 0.0, %v5015
        %v5017 = vpop.f32.mrb[0].mxu0
        %v5018 = vadd.f32 0.0, %v5017
        %v5019 = vpop.f32.mrb[0].mxu0
        %v5020 = vadd.f32 0.0, %v5019
        %5021 = vmatprep.mubr.bf16.mxu0 0
        %5022 = vmatmul.mubr.bf16.gmra.mrb[0].mxu0 %v4844
        %v5023 = vpop.f32.mrb[0].mxu0
        %v5024 = vadd.f32 0.0, %v5023
        %v5025 = vpop.f32.mrb[0].mxu0
        %v5026 = vadd.f32 0.0, %v5025
        %v5027 = vpop.f32.mrb[0].mxu0
        %v5028 = vadd.f32 0.0, %v5027
        %v5029 = vpop.f32.mrb[0].mxu0
        %v5030 = vadd.f32 0.0, %v5029
        %5031 = vmatprep.mubr.bf16.mxu0 0
        %5032 = vmatmul.mubr.bf16.gmra.mrb[0].mxu0 %v4847
        %v5033 = vpop.f32.mrb[0].mxu0
        %v5034 = vadd.f32 0.0, %v5033
        %v5035 = vpop.f32.mrb[0].mxu0
        %v5036 = vadd.f32 0.0, %v5035
        %v5037 = vpop.f32.mrb[0].mxu0
        %v5038 = vadd.f32 0.0, %v5037
        %v5039 = vpop.f32.mrb[0].mxu0
        %v5040 = vadd.f32 0.0, %v5039
        %5041 = vdwg.mxu0
        %v5042 = vmax.f32 %v4884, %v4894
        %v5043 = vmax.f32 %v4888, %v4898
        %v5044 = vmax.f32 %v5042, %v4904
        %v5045 = vmax.f32 %v5043, %v4908
        %v5046 = vmax.f32 %v5044, %v4914
        %v5047 = vmax.f32 %v5045, %v4918
        %v5048 = vmax.f32 %v5046, %v4924
        %v5049 = vmax.f32 %v5047, %v4928
        %v5050 = vmax.f32 %v5048, %v4934
        %v5051 = vmax.f32 %v5049, %v4938
        %v5052 = vmax.f32 %v5050, %v4944
        %v5053 = vmax.f32 %v5051, %v4948
        %v5054 = vmax.f32 %v5052, %v4954
        %v5055 = vmax.f32 %v5053, %v4958
        %v5056 = vmax.f32 %v5054, %v4964
        %v5057 = vmax.f32 %v5055, %v4968
        %v5058 = vmax.f32 %v5056, %v4974
        %v5059 = vmax.f32 %v5057, %v4978
        %v5060 = vmax.f32 %v5058, %v4984
        %v5061 = vmax.f32 %v5059, %v4988
        %v5062 = vmax.f32 %v5060, %v4994
        %v5063 = vmax.f32 %v5061, %v4998
        %v5064 = vmax.f32 %v5062, %v5004
        %v5065 = vmax.f32 %v5063, %v5008
        %v5066 = vmax.f32 %v5064, %v5014
        %v5067 = vmax.f32 %v5065, %v5018
        %v5068 = vmax.f32 %v5066, %v5024
        %v5069 = vmax.f32 %v5067, %v5028
        %v5070 = vmax.f32 %v5068, %v5034
        %v5071 = vmax.f32 %v5069, %v5038
        %v5072 = vmax.f32 %v5070, %v5071
        %v5073 = vrot.slane %v5072, 4
        %v5074 = vmax.f32 %v5072, %v5073
        %v5075 = vrot.slane %v5074, 2
        %v5076 = vmax.f32 %v5074, %v5075
        %v5077 = vrot.slane %v5076, 1
        %v5078 = vmax.f32 %v5076, %v5077
        %v5079 = vmax.f32 %v4886, %v4896
        %v5080 = vmax.f32 %v4890, %v4900
        %v5081 = vmax.f32 %v5079, %v4906
        %v5082 = vmax.f32 %v5080, %v4910
        %v5083 = vmax.f32 %v5081, %v4916
        %v5084 = vmax.f32 %v5082, %v4920
        %v5085 = vmax.f32 %v5083, %v4926
        %v5086 = vmax.f32 %v5084, %v4930
        %v5087 = vmax.f32 %v5085, %v4936
        %v5088 = vmax.f32 %v5086, %v4940
        %v5089 = vmax.f32 %v5087, %v4946
        %v5090 = vmax.f32 %v5088, %v4950
        %v5091 = vmax.f32 %v5089, %v4956
        %v5092 = vmax.f32 %v5090, %v4960
        %v5093 = vmax.f32 %v5091, %v4966
        %v5094 = vmax.f32 %v5092, %v4970
        %v5095 = vmax.f32 %v5093, %v4976
        %v5096 = vmax.f32 %v5094, %v4980
        %v5097 = vmax.f32 %v5095, %v4986
        %v5098 = vmax.f32 %v5096, %v4990
        %v5099 = vmax.f32 %v5097, %v4996
        %v5100 = vmax.f32 %v5098, %v5000
        %v5101 = vmax.f32 %v5099, %v5006
        %v5102 = vmax.f32 %v5100, %v5010
        %v5103 = vmax.f32 %v5101, %v5016
        %v5104 = vmax.f32 %v5102, %v5020
        %v5105 = vmax.f32 %v5103, %v5026
        %v5106 = vmax.f32 %v5104, %v5030
        %v5107 = vmax.f32 %v5105, %v5036
        %v5108 = vmax.f32 %v5106, %v5040
        %v5109 = vmax.f32 %v5107, %v5108
        %v5110 = vrot.slane %v5109, 4
        %v5111 = vmax.f32 %v5109, %v5110
        %v5112 = vrot.slane %v5111, 2
        %v5113 = vmax.f32 %v5111, %v5112
        %v5114 = vrot.slane %v5113, 1
        %v5115 = vmax.f32 %v5113, %v5114
        %v5116 = vsub.f32 %v4884, %v5078
        %v5117 = vsub.f32 %v4886, %v5115
        %v5118 = vsub.f32 %v4888, %v5078
        %v5119 = vsub.f32 %v4890, %v5115
        %v5120 = vsub.f32 %v4894, %v5078
        %v5121 = vsub.f32 %v4896, %v5115
        %v5122 = vsub.f32 %v4898, %v5078
        %v5123 = vsub.f32 %v4900, %v5115
        %v5124 = vsub.f32 %v4904, %v5078
        %v5125 = vsub.f32 %v4906, %v5115
        %v5126 = vsub.f32 %v4908, %v5078
        %v5127 = vsub.f32 %v4910, %v5115
        %v5128 = vsub.f32 %v4914, %v5078
        %v5129 = vsub.f32 %v4916, %v5115
        %v5130 = vsub.f32 %v4918, %v5078
        %v5131 = vsub.f32 %v4920, %v5115
        %v5132 = vsub.f32 %v4924, %v5078
        %v5133 = vsub.f32 %v4926, %v5115
        %v5134 = vsub.f32 %v4928, %v5078
        %v5135 = vsub.f32 %v4930, %v5115
        %v5136 = vsub.f32 %v4934, %v5078
        %v5137 = vsub.f32 %v4936, %v5115
        %v5138 = vsub.f32 %v4938, %v5078
        %v5139 = vsub.f32 %v4940, %v5115
        %v5140 = vsub.f32 %v4944, %v5078
        %v5141 = vsub.f32 %v4946, %v5115
        %v5142 = vsub.f32 %v4948, %v5078
        %v5143 = vsub.f32 %v4950, %v5115
        %v5144 = vsub.f32 %v4954, %v5078
        %v5145 = vsub.f32 %v4956, %v5115
        %v5146 = vsub.f32 %v4958, %v5078
        %v5147 = vsub.f32 %v4960, %v5115
        %v5148 = vsub.f32 %v4964, %v5078
        %v5149 = vsub.f32 %v4966, %v5115
        %v5150 = vsub.f32 %v4968, %v5078
        %v5151 = vsub.f32 %v4970, %v5115
        %v5152 = vsub.f32 %v4974, %v5078
        %v5153 = vsub.f32 %v4976, %v5115
        %v5154 = vsub.f32 %v4978, %v5078
        %v5155 = vsub.f32 %v4980, %v5115
        %v5156 = vsub.f32 %v4984, %v5078
        %v5157 = vsub.f32 %v4986, %v5115
        %v5158 = vsub.f32 %v4988, %v5078
        %v5159 = vsub.f32 %v4990, %v5115
        %v5160 = vsub.f32 %v4994, %v5078
        %v5161 = vsub.f32 %v4996, %v5115
        %v5162 = vsub.f32 %v4998, %v5078
        %v5163 = vsub.f32 %v5000, %v5115
        %v5164 = vsub.f32 %v5004, %v5078
        %v5165 = vsub.f32 %v5006, %v5115
        %v5166 = vsub.f32 %v5008, %v5078
        %v5167 = vsub.f32 %v5010, %v5115
        %v5168 = vsub.f32 %v5014, %v5078
        %v5169 = vsub.f32 %v5016, %v5115
        %v5170 = vsub.f32 %v5018, %v5078
        %v5171 = vsub.f32 %v5020, %v5115
        %v5172 = vsub.f32 %v5024, %v5078
        %v5173 = vsub.f32 %v5026, %v5115
        %v5174 = vsub.f32 %v5028, %v5078
        %v5175 = vsub.f32 %v5030, %v5115
        %v5176 = vsub.f32 %v5034, %v5078
        %v5177 = vsub.f32 %v5036, %v5115
        %v5178 = vsub.f32 %v5038, %v5078
        %v5179 = vsub.f32 %v5040, %v5115
        %v5180 = vmul.f32 %v5116, 1.442695
        %v5181 = vpow.pop %v5180
        %v5182 = vmul.f32 %v5117, 1.442695
        %v5183 = vpow.pop %v5182
        %v5184 = vmul.f32 %v5118, 1.442695
        %v5185 = vpow.pop %v5184
        %v5186 = vmul.f32 %v5119, 1.442695
        %v5187 = vpow.pop %v5186
        %v5188 = vmul.f32 %v5120, 1.442695
        %v5189 = vpow.pop %v5188
        %v5190 = vmul.f32 %v5121, 1.442695
        %v5191 = vpow.pop %v5190
        %v5192 = vmul.f32 %v5122, 1.442695
        %v5193 = vpow.pop %v5192
        %v5194 = vmul.f32 %v5123, 1.442695
        %v5195 = vpow.pop %v5194
        %v5196 = vmul.f32 %v5124, 1.442695
        %v5197 = vpow.pop %v5196
        %v5198 = vmul.f32 %v5125, 1.442695
        %v5199 = vpow.pop %v5198
        %v5200 = vmul.f32 %v5126, 1.442695
        %v5201 = vpow.pop %v5200
        %v5202 = vmul.f32 %v5127, 1.442695
        %v5203 = vpow.pop %v5202
        %v5204 = vmul.f32 %v5128, 1.442695
        %v5205 = vpow.pop %v5204
        %v5206 = vmul.f32 %v5129, 1.442695
        %v5207 = vpow.pop %v5206
        %v5208 = vmul.f32 %v5130, 1.442695
        %v5209 = vpow.pop %v5208
        %v5210 = vmul.f32 %v5131, 1.442695
        %v5211 = vpow.pop %v5210
        %v5212 = vmul.f32 %v5132, 1.442695
        %v5213 = vpow.pop %v5212
        %v5214 = vmul.f32 %v5133, 1.442695
        %v5215 = vpow.pop %v5214
        %v5216 = vmul.f32 %v5134, 1.442695
        %v5217 = vpow.pop %v5216
        %v5218 = vmul.f32 %v5135, 1.442695
        %v5219 = vpow.pop %v5218
        %v5220 = vmul.f32 %v5136, 1.442695
        %v5221 = vpow.pop %v5220
        %v5222 = vmul.f32 %v5137, 1.442695
        %v5223 = vpow.pop %v5222
        %v5224 = vmul.f32 %v5138, 1.442695
        %v5225 = vpow.pop %v5224
        %v5226 = vmul.f32 %v5139, 1.442695
        %v5227 = vpow.pop %v5226
        %v5228 = vmul.f32 %v5140, 1.442695
        %v5229 = vpow.pop %v5228
        %v5230 = vmul.f32 %v5141, 1.442695
        %v5231 = vpow.pop %v5230
        %v5232 = vmul.f32 %v5142, 1.442695
        %v5233 = vpow.pop %v5232
        %v5234 = vmul.f32 %v5143, 1.442695
        %v5235 = vpow.pop %v5234
        %v5236 = vmul.f32 %v5144, 1.442695
        %v5237 = vpow.pop %v5236
        %v5238 = vmul.f32 %v5145, 1.442695
        %v5239 = vpow.pop %v5238
        %v5240 = vmul.f32 %v5146, 1.442695
        %v5241 = vpow.pop %v5240
        %v5242 = vmul.f32 %v5147, 1.442695
        %v5243 = vpow.pop %v5242
        %v5244 = vmul.f32 %v5148, 1.442695
        %v5245 = vpow.pop %v5244
        %v5246 = vmul.f32 %v5149, 1.442695
        %v5247 = vpow.pop %v5246
        %v5248 = vmul.f32 %v5150, 1.442695
        %v5249 = vpow.pop %v5248
        %v5250 = vmul.f32 %v5151, 1.442695
        %v5251 = vpow.pop %v5250
        %v5252 = vmul.f32 %v5152, 1.442695
        %v5253 = vpow.pop %v5252
        %v5254 = vmul.f32 %v5153, 1.442695
        %v5255 = vpow.pop %v5254
        %v5256 = vmul.f32 %v5154, 1.442695
        %v5257 = vpow.pop %v5256
        %v5258 = vmul.f32 %v5155, 1.442695
        %v5259 = vpow.pop %v5258
        %v5260 = vmul.f32 %v5156, 1.442695
        %v5261 = vpow.pop %v5260
        %v5262 = vmul.f32 %v5157, 1.442695
        %v5263 = vpow.pop %v5262
        %v5264 = vmul.f32 %v5158, 1.442695
        %v5265 = vpow.pop %v5264
        %v5266 = vmul.f32 %v5159, 1.442695
        %v5267 = vpow.pop %v5266
        %v5268 = vmul.f32 %v5160, 1.442695
        %v5269 = vpow.pop %v5268
        %v5270 = vmul.f32 %v5161, 1.442695
        %v5271 = vpow.pop %v5270
        %v5272 = vmul.f32 %v5162, 1.442695
        %v5273 = vpow.pop %v5272
        %v5274 = vmul.f32 %v5163, 1.442695
        %v5275 = vpow.pop %v5274
        %v5276 = vmul.f32 %v5164, 1.442695
        %v5277 = vpow.pop %v5276
        %v5278 = vmul.f32 %v5165, 1.442695
        %v5279 = vpow.pop %v5278
        %v5280 = vmul.f32 %v5166, 1.442695
        %v5281 = vpow.pop %v5280
        %v5282 = vmul.f32 %v5167, 1.442695
        %v5283 = vpow.pop %v5282
        %v5284 = vmul.f32 %v5168, 1.442695
        %v5285 = vpow.pop %v5284
        %v5286 = vmul.f32 %v5169, 1.442695
        %v5287 = vpow.pop %v5286
        %v5288 = vmul.f32 %v5170, 1.442695
        %v5289 = vpow.pop %v5288
        %v5290 = vmul.f32 %v5171, 1.442695
        %v5291 = vpow.pop %v5290
        %v5292 = vmul.f32 %v5172, 1.442695
        %v5293 = vpow.pop %v5292
        %v5294 = vmul.f32 %v5173, 1.442695
        %v5295 = vpow.pop %v5294
        %v5296 = vmul.f32 %v5174, 1.442695
        %v5297 = vpow.pop %v5296
        %v5298 = vmul.f32 %v5175, 1.442695
        %v5299 = vpow.pop %v5298
        %v5300 = vmul.f32 %v5176, 1.442695
        %v5301 = vpow.pop %v5300
        %v5302 = vmul.f32 %v5177, 1.442695
        %v5303 = vpow.pop %v5302
        %v5304 = vmul.f32 %v5178, 1.442695
        %v5305 = vpow.pop %v5304
        %v5306 = vmul.f32 %v5179, 1.442695
        %v5307 = vpow.pop %v5306
        %v5308 = vadd.f32 %v5181, %v5185
        %v5309 = vadd.f32 %v5308, %v5189
        %v5310 = vadd.f32 %v5309, %v5193
        %v5311 = vadd.f32 %v5310, %v5197
        %v5312 = vadd.f32 %v5311, %v5201
        %v5313 = vadd.f32 %v5312, %v5205
        %v5314 = vadd.f32 %v5313, %v5209
        %v5315 = vadd.f32 %v5314, %v5213
        %v5316 = vadd.f32 %v5315, %v5217
        %v5317 = vadd.f32 %v5316, %v5221
        %v5318 = vadd.f32 %v5317, %v5225
        %v5319 = vadd.f32 %v5318, %v5229
        %v5320 = vadd.f32 %v5319, %v5233
        %v5321 = vadd.f32 %v5320, %v5237
        %v5322 = vadd.f32 %v5321, %v5241
        %v5323 = vadd.f32 %v5322, %v5245
        %v5324 = vadd.f32 %v5323, %v5249
        %v5325 = vadd.f32 %v5324, %v5253
        %v5326 = vadd.f32 %v5325, %v5257
        %v5327 = vadd.f32 %v5326, %v5261
        %v5328 = vadd.f32 %v5327, %v5265
        %v5329 = vadd.f32 %v5328, %v5269
        %v5330 = vadd.f32 %v5329, %v5273
        %v5331 = vadd.f32 %v5330, %v5277
        %v5332 = vadd.f32 %v5331, %v5281
        %v5333 = vadd.f32 %v5332, %v5285
        %v5334 = vadd.f32 %v5333, %v5289
        %v5335 = vadd.f32 %v5334, %v5293
        %v5336 = vadd.f32 %v5335, %v5297
        %v5337 = vadd.f32 %v5336, %v5301
        %v5338 = vadd.f32 %v5337, %v5305
        %v5339 = vrot.slane %v5338, 4
        %v5340 = vadd.f32 %v5338, %v5339
        %v5341 = vrot.slane %v5340, 2
        %v5342 = vadd.f32 %v5340, %v5341
        %v5343 = vrot.slane %v5342, 1
        %v5344 = vadd.f32 %v5342, %v5343
        %v5345 = vadd.f32 %v5183, %v5187
        %v5346 = vadd.f32 %v5345, %v5191
        %v5347 = vadd.f32 %v5346, %v5195
        %v5348 = vadd.f32 %v5347, %v5199
        %v5349 = vadd.f32 %v5348, %v5203
        %v5350 = vadd.f32 %v5349, %v5207
        %v5351 = vadd.f32 %v5350, %v5211
        %v5352 = vadd.f32 %v5351, %v5215
        %v5353 = vadd.f32 %v5352, %v5219
        %v5354 = vadd.f32 %v5353, %v5223
        %v5355 = vadd.f32 %v5354, %v5227
        %v5356 = vadd.f32 %v5355, %v5231
        %v5357 = vadd.f32 %v5356, %v5235
        %v5358 = vadd.f32 %v5357, %v5239
        %v5359 = vadd.f32 %v5358, %v5243
        %v5360 = vadd.f32 %v5359, %v5247
        %v5361 = vadd.f32 %v5360, %v5251
        %v5362 = vadd.f32 %v5361, %v5255
        %v5363 = vadd.f32 %v5362, %v5259
        %v5364 = vadd.f32 %v5363, %v5263
        %v5365 = vadd.f32 %v5364, %v5267
        %v5366 = vadd.f32 %v5365, %v5271
        %v5367 = vadd.f32 %v5366, %v5275
        %v5368 = vadd.f32 %v5367, %v5279
        %v5369 = vadd.f32 %v5368, %v5283
        %v5370 = vadd.f32 %v5369, %v5287
        %v5371 = vadd.f32 %v5370, %v5291
        %v5372 = vadd.f32 %v5371, %v5295
        %v5373 = vadd.f32 %v5372, %v5299
        %v5374 = vadd.f32 %v5373, %v5303
        %v5375 = vadd.f32 %v5374, %v5307
        %v5376 = vrot.slane %v5375, 4
        %v5377 = vadd.f32 %v5375, %v5376
        %v5378 = vrot.slane %v5377, 2
        %v5379 = vadd.f32 %v5377, %v5378
        %v5380 = vrot.slane %v5379, 1
        %v5381 = vadd.f32 %v5379, %v5380
        %v5382 = vrcp.pop %v5344
        %v5383 = vrcp.pop %v5381
        %v5384 = vmul.f32 %v5181, %v5382
        %v5385 = vmul.f32 %v5183, %v5383
        %v5386 = vmul.f32 %v5185, %v5382
        %v5387 = vmul.f32 %v5187, %v5383
        %v5388 = vmul.f32 %v5189, %v5382
        %v5389 = vmul.f32 %v5191, %v5383
        %v5390 = vmul.f32 %v5193, %v5382
        %v5391 = vmul.f32 %v5195, %v5383
        %v5392 = vmul.f32 %v5197, %v5382
        %v5393 = vmul.f32 %v5199, %v5383
        %v5394 = vmul.f32 %v5201, %v5382
        %v5395 = vmul.f32 %v5203, %v5383
        %v5396 = vmul.f32 %v5205, %v5382
        %v5397 = vmul.f32 %v5207, %v5383
        %v5398 = vmul.f32 %v5209, %v5382
        %v5399 = vmul.f32 %v5211, %v5383
        %v5400 = vmul.f32 %v5213, %v5382
        %v5401 = vmul.f32 %v5215, %v5383
        %v5402 = vmul.f32 %v5217, %v5382
        %v5403 = vmul.f32 %v5219, %v5383
        %v5404 = vmul.f32 %v5221, %v5382
        %v5405 = vmul.f32 %v5223, %v5383
        %v5406 = vmul.f32 %v5225, %v5382
        %v5407 = vmul.f32 %v5227, %v5383
        %v5408 = vmul.f32 %v5229, %v5382
        %v5409 = vmul.f32 %v5231, %v5383
        %v5410 = vmul.f32 %v5233, %v5382
        %v5411 = vmul.f32 %v5235, %v5383
        %v5412 = vmul.f32 %v5237, %v5382
        %v5413 = vmul.f32 %v5239, %v5383
        %v5414 = vmul.f32 %v5241, %v5382
        %v5415 = vmul.f32 %v5243, %v5383
        %v5416 = vmul.f32 %v5245, %v5382
        %v5417 = vmul.f32 %v5247, %v5383
        %v5418 = vmul.f32 %v5249, %v5382
        %v5419 = vmul.f32 %v5251, %v5383
        %v5420 = vmul.f32 %v5253, %v5382
        %v5421 = vmul.f32 %v5255, %v5383
        %v5422 = vmul.f32 %v5257, %v5382
        %v5423 = vmul.f32 %v5259, %v5383
        %v5424 = vmul.f32 %v5261, %v5382
        %v5425 = vmul.f32 %v5263, %v5383
        %v5426 = vmul.f32 %v5265, %v5382
        %v5427 = vmul.f32 %v5267, %v5383
        %v5428 = vmul.f32 %v5269, %v5382
        %v5429 = vmul.f32 %v5271, %v5383
        %v5430 = vmul.f32 %v5273, %v5382
        %v5431 = vmul.f32 %v5275, %v5383
        %v5432 = vmul.f32 %v5277, %v5382
        %v5433 = vmul.f32 %v5279, %v5383
        %v5434 = vmul.f32 %v5281, %v5382
        %v5435 = vmul.f32 %v5283, %v5383
        %v5436 = vmul.f32 %v5285, %v5382
        %v5437 = vmul.f32 %v5287, %v5383
        %v5438 = vmul.f32 %v5289, %v5382
        %v5439 = vmul.f32 %v5291, %v5383
        %v5440 = vmul.f32 %v5293, %v5382
        %v5441 = vmul.f32 %v5295, %v5383
        %v5442 = vmul.f32 %v5297, %v5382
        %v5443 = vmul.f32 %v5299, %v5383
        %v5444 = vmul.f32 %v5301, %v5382
        %v5445 = vmul.f32 %v5303, %v5383
        %v5446 = vmul.f32 %v5305, %v5382
        %v5447 = vmul.f32 %v5307, %v5383
        %v5448 = vpack.c.bf16 %v5386, %v5384
        %v5449 = vpack.c.bf16 %v5387, %v5385
        %v5450 = vpack.c.bf16 %v5390, %v5388
        %v5451 = vpack.c.bf16 %v5391, %v5389
        %v5452 = vpack.c.bf16 %v5394, %v5392
        %v5453 = vpack.c.bf16 %v5395, %v5393
        %v5454 = vpack.c.bf16 %v5398, %v5396
        %v5455 = vpack.c.bf16 %v5399, %v5397
        %v5456 = vpack.c.bf16 %v5402, %v5400
        %v5457 = vpack.c.bf16 %v5403, %v5401
        %v5458 = vpack.c.bf16 %v5406, %v5404
        %v5459 = vpack.c.bf16 %v5407, %v5405
        %v5460 = vpack.c.bf16 %v5410, %v5408
        %v5461 = vpack.c.bf16 %v5411, %v5409
        %v5462 = vpack.c.bf16 %v5414, %v5412
        %v5463 = vpack.c.bf16 %v5415, %v5413
        %v5464 = vpack.c.bf16 %v5418, %v5416
        %v5465 = vpack.c.bf16 %v5419, %v5417
        %v5466 = vpack.c.bf16 %v5422, %v5420
        %v5467 = vpack.c.bf16 %v5423, %v5421
        %v5468 = vpack.c.bf16 %v5426, %v5424
        %v5469 = vpack.c.bf16 %v5427, %v5425
        %v5470 = vpack.c.bf16 %v5430, %v5428
        %v5471 = vpack.c.bf16 %v5431, %v5429
        %v5472 = vpack.c.bf16 %v5434, %v5432
        %v5473 = vpack.c.bf16 %v5435, %v5433
        %v5474 = vpack.c.bf16 %v5438, %v5436
        %v5475 = vpack.c.bf16 %v5439, %v5437
        %v5476 = vpack.c.bf16 %v5442, %v5440
        %v5477 = vpack.c.bf16 %v5443, %v5441
        %v5478 = vpack.c.bf16 %v5446, %v5444
        %v5479 = vpack.c.bf16 %v5447, %v5445
        %5480 = vmatprep.subr.bf16.mxu0 %v5449
        %5481 = vmatpush1.bf16.msra.mxu0 %v5448
        %5482 = vmatprep.subr.bf16.mxu0 %v5451
        %5483 = vmatpush1.bf16.msra.mxu0 %v5450
        %5484 = vmatprep.subr.bf16.mxu0 %v5453
        %5485 = vmatpush1.bf16.msra.mxu0 %v5452
        %5486 = vmatprep.subr.bf16.mxu0 %v5455
        %5487 = vmatpush1.bf16.msra.mxu0 %v5454
        %5488 = vmatprep.subr.bf16.mxu0 %v5457
        %5489 = vmatpush1.bf16.msra.mxu0 %v5456
        %5490 = vmatprep.subr.bf16.mxu0 %v5459
        %5491 = vmatpush1.bf16.msra.mxu0 %v5458
        %5492 = vmatprep.subr.bf16.mxu0 %v5461
        %5493 = vmatpush1.bf16.msra.mxu0 %v5460
        %5494 = vmatprep.subr.bf16.mxu0 %v5463
        %5495 = vmatpush1.bf16.msra.mxu0 %v5462
        %5496 = vmatprep.subr.bf16.mxu0 %v5465
        %5497 = vmatpush1.bf16.msra.mxu0 %v5464
        %5498 = vmatprep.subr.bf16.mxu0 %v5467
        %5499 = vmatpush1.bf16.msra.mxu0 %v5466
        %5500 = vmatprep.subr.bf16.mxu0 %v5469
        %5501 = vmatpush1.bf16.msra.mxu0 %v5468
        %5502 = vmatprep.subr.bf16.mxu0 %v5471
        %5503 = vmatpush1.bf16.msra.mxu0 %v5470
        %5504 = vmatprep.subr.bf16.mxu0 %v5473
        %5505 = vmatpush1.bf16.msra.mxu0 %v5472
        %5506 = vmatprep.subr.bf16.mxu0 %v5475
        %5507 = vmatpush1.bf16.msra.mxu0 %v5474
        %5508 = vmatprep.subr.bf16.mxu0 %v5477
        %5509 = vmatpush1.bf16.msra.mxu0 %v5476
        %5510 = vmatprep.subr.bf16.mxu0 %v5479
        %5511 = vmatpush1.bf16.msra.mxu0 %v5478
        %5512 = vmatprep.mubr.bf16.mxu0 %v4766
        %5513 = vmatmul.mubr.bf16.gmra.mrb[0].mxu0 %v4765
        %v5514 = vpop.f32.mrb[0].mxu0
        %v5515 = vadd.f32 0.0, %v5514
        %v5516 = vpop.f32.mrb[0].mxu0
        %v5517 = vadd.f32 0.0, %v5516
        %v5518 = vpop.f32.mrb[0].mxu0
        %v5519 = vadd.f32 0.0, %v5518
        %v5520 = vpop.f32.mrb[0].mxu0
        %v5521 = vadd.f32 0.0, %v5520
        %5522 = vmatprep.mubr.bf16.mxu0 %v4768
        %5523 = vmatmul.mubr.bf16.gmra.mrb[0].mxu0 %v4767
        %v5524 = vpop.f32.mrb[0].mxu0
        %v5525 = vadd.f32 0.0, %v5524
        %v5526 = vpop.f32.mrb[0].mxu0
        %v5527 = vadd.f32 0.0, %v5526
        %v5528 = vpop.f32.mrb[0].mxu0
        %v5529 = vadd.f32 0.0, %v5528
        %v5530 = vpop.f32.mrb[0].mxu0
        %v5531 = vadd.f32 0.0, %v5530
        %5532 = vdwg.mxu0
        %5533 = vst [vmem:[#allocation3 + $0x100] sm:$0xff] %v5515
        %5534 = vst [vmem:[#allocation3 + $0x108] sm:$0xff] %v5517
        %5535 = vst [vmem:[#allocation3 + $0x120] sm:$0xff] %v5519
        %5536 = vst [vmem:[#allocation3 + $0x128] sm:$0xff] %v5521
        %5537 = vst [vmem:[#allocation3 + $0x140] sm:$0xff] %v5525
        %5538 = vst [vmem:[#allocation3 + $0x148] sm:$0xff] %v5527
        %5539 = vst [vmem:[#allocation3 + $0x160] sm:$0xff] %v5529
        %5540 = vst [vmem:[#allocation3 + $0x168] sm:$0xff] %v5531
        %v5541 = vld [vmem:[#allocation2 + $0x90] sm:$0xff]
        %v5542 = vld [vmem:[#allocation2 + $0x98] sm:$0xff]
        %v5543 = vld [vmem:[#allocation2 + $0xb0] sm:$0xff]
        %v5544 = vld [vmem:[#allocation2 + $0xb8] sm:$0xff]
        %v5545 = vld [vmem:[#allocation2 + $0x190] sm:$0xff]
        %v5546 = vld [vmem:[#allocation2 + $0x198] sm:$0xff]
        %v5547 = vld [vmem:[#allocation2 + $0x1b0] sm:$0xff]
        %v5548 = vld [vmem:[#allocation2 + $0x1b8] sm:$0xff]
        %v5549 = vld [vmem:[#allocation2 + $0x290] sm:$0xff]
        %v5550 = vld [vmem:[#allocation2 + $0x298] sm:$0xff]
        %v5551 = vld [vmem:[#allocation2 + $0x2b0] sm:$0xff]
        %v5552 = vld [vmem:[#allocation2 + $0x2b8] sm:$0xff]
        %5553 = vxpose.xlu0.c.b16.start [1/8] %v5545, 128
        %5554 = vxpose.xlu0.c.b16.cont [2/8] %v5547, 128
        %5555 = vxpose.xlu0.c.b16.cont [3/8] 0, 128
        %5556 = vxpose.xlu0.c.b16.cont [4/8] 0, 128
        %5557 = vxpose.xlu0.c.b16.cont [5/8] 0, 128
        %5558 = vxpose.xlu0.c.b16.cont [6/8] 0, 128
        %5559 = vxpose.xlu0.c.b16.cont [7/8] 0, 128
        %5560 = vxpose.xlu0.c.b16.end [8/8] 0, 128
        %v5561 = vpop.trf.xlu0
        %v5562 = vpop.trf.xlu0
        %v5563 = vpop.trf.xlu0
        %v5564 = vpop.trf.xlu0
        %v5565 = vpop.trf.xlu0
        %v5566 = vpop.trf.xlu0
        %v5567 = vpop.trf.xlu0
        %v5568 = vpop.trf.xlu0
        %5569 = vxpose.xlu0.c.b16.start [1/8] %v5546, 128
        %5570 = vxpose.xlu0.c.b16.cont [2/8] %v5548, 128
        %5571 = vxpose.xlu0.c.b16.cont [3/8] 0, 128
        %5572 = vxpose.xlu0.c.b16.cont [4/8] 0, 128
        %5573 = vxpose.xlu0.c.b16.cont [5/8] 0, 128
        %5574 = vxpose.xlu0.c.b16.cont [6/8] 0, 128
        %5575 = vxpose.xlu0.c.b16.cont [7/8] 0, 128
        %5576 = vxpose.xlu0.c.b16.end [8/8] 0, 128
        %v5577 = vpop.trf.xlu0
        %v5578 = vpop.trf.xlu0
        %v5579 = vpop.trf.xlu0
        %v5580 = vpop.trf.xlu0
        %v5581 = vpop.trf.xlu0
        %v5582 = vpop.trf.xlu0
        %v5583 = vpop.trf.xlu0
        %v5584 = vpop.trf.xlu0
        %v5586 = vsel %vm1664, %v5561, 0
        %v5589 = vsel %vm1664, %v5562, 0
        %v5592 = vsel %vm1664, %v5563, 0
        %v5595 = vsel %vm1664, %v5564, 0
        %v5598 = vsel %vm1664, %v5565, 0
        %v5601 = vsel %vm1664, %v5566, 0
        %v5604 = vsel %vm1664, %v5567, 0
        %v5607 = vsel %vm1664, %v5568, 0
        %v5610 = vsel %vm1664, %v5577, 0
        %v5613 = vsel %vm1664, %v5578, 0
        %v5616 = vsel %vm1664, %v5579, 0
        %v5619 = vsel %vm1664, %v5580, 0
        %v5622 = vsel %vm1664, %v5581, 0
        %v5625 = vsel %vm1664, %v5582, 0
        %v5628 = vsel %vm1664, %v5583, 0
        %v5631 = vsel %vm1664, %v5584, 0
        %5633 = vmatprep.subr.bf16.mxu0 %v5542
        %5634 = vmatpush1.bf16.msra.mxu0 %v5541
        %5635 = vmatprep.subr.bf16.mxu0 %v5544
        %5636 = vmatpush1.bf16.msra.mxu0 %v5543
        %5637 = vmatprep.subr.bf16.mxu0 0
        %5638 = vmatpush1.bf16.msra.mxu0 0
        %5639 = vmatprep.subr.bf16.mxu0 0
        %5640 = vmatpush1.bf16.msra.mxu0 0
        %5641 = vmatprep.subr.bf16.mxu0 0
        %5642 = vmatpush1.bf16.msra.mxu0 0
        %5643 = vmatprep.subr.bf16.mxu0 0
        %5644 = vmatpush1.bf16.msra.mxu0 0
        %5645 = vmatprep.subr.bf16.mxu0 0
        %5646 = vmatpush1.bf16.msra.mxu0 0
        %5647 = vmatprep.subr.bf16.mxu0 0
        %5648 = vmatpush1.bf16.msra.mxu0 0
        %5649 = vmatprep.subr.bf16.mxu0 0
        %5650 = vmatpush1.bf16.msra.mxu0 0
        %5651 = vmatprep.subr.bf16.mxu0 0
        %5652 = vmatpush1.bf16.msra.mxu0 0
        %5653 = vmatprep.subr.bf16.mxu0 0
        %5654 = vmatpush1.bf16.msra.mxu0 0
        %5655 = vmatprep.subr.bf16.mxu0 0
        %5656 = vmatpush1.bf16.msra.mxu0 0
        %5657 = vmatprep.subr.bf16.mxu0 0
        %5658 = vmatpush1.bf16.msra.mxu0 0
        %5659 = vmatprep.subr.bf16.mxu0 0
        %5660 = vmatpush1.bf16.msra.mxu0 0
        %5661 = vmatprep.subr.bf16.mxu0 0
        %5662 = vmatpush1.bf16.msra.mxu0 0
        %5663 = vmatprep.subr.bf16.mxu0 0
        %5664 = vmatpush1.bf16.msra.mxu0 0
        %5665 = vmatprep.mubr.bf16.mxu0 0
        %5666 = vmatmul.mubr.bf16.gmra.mrb[0].mxu0 %v5586
        %v5667 = vpop.f32.mrb[0].mxu0
        %v5668 = vadd.f32 0.0, %v5667
        %v5669 = vpop.f32.mrb[0].mxu0
        %v5670 = vadd.f32 0.0, %v5669
        %v5671 = vpop.f32.mrb[0].mxu0
        %v5672 = vadd.f32 0.0, %v5671
        %v5673 = vpop.f32.mrb[0].mxu0
        %v5674 = vadd.f32 0.0, %v5673
        %5675 = vmatprep.mubr.bf16.mxu0 0
        %5676 = vmatmul.mubr.bf16.gmra.mrb[0].mxu0 %v5589
        %v5677 = vpop.f32.mrb[0].mxu0
        %v5678 = vadd.f32 0.0, %v5677
        %v5679 = vpop.f32.mrb[0].mxu0
        %v5680 = vadd.f32 0.0, %v5679
        %v5681 = vpop.f32.mrb[0].mxu0
        %v5682 = vadd.f32 0.0, %v5681
        %v5683 = vpop.f32.mrb[0].mxu0
        %v5684 = vadd.f32 0.0, %v5683
        %5685 = vmatprep.mubr.bf16.mxu0 0
        %5686 = vmatmul.mubr.bf16.gmra.mrb[0].mxu0 %v5592
        %v5687 = vpop.f32.mrb[0].mxu0
        %v5688 = vadd.f32 0.0, %v5687
        %v5689 = vpop.f32.mrb[0].mxu0
        %v5690 = vadd.f32 0.0, %v5689
        %v5691 = vpop.f32.mrb[0].mxu0
        %v5692 = vadd.f32 0.0, %v5691
        %v5693 = vpop.f32.mrb[0].mxu0
        %v5694 = vadd.f32 0.0, %v5693
        %5695 = vmatprep.mubr.bf16.mxu0 0
        %5696 = vmatmul.mubr.bf16.gmra.mrb[0].mxu0 %v5595
        %v5697 = vpop.f32.mrb[0].mxu0
        %v5698 = vadd.f32 0.0, %v5697
        %v5699 = vpop.f32.mrb[0].mxu0
        %v5700 = vadd.f32 0.0, %v5699
        %v5701 = vpop.f32.mrb[0].mxu0
        %v5702 = vadd.f32 0.0, %v5701
        %v5703 = vpop.f32.mrb[0].mxu0
        %v5704 = vadd.f32 0.0, %v5703
        %5705 = vmatprep.mubr.bf16.mxu0 0
        %5706 = vmatmul.mubr.bf16.gmra.mrb[0].mxu0 %v5598
        %v5707 = vpop.f32.mrb[0].mxu0
        %v5708 = vadd.f32 0.0, %v5707
        %v5709 = vpop.f32.mrb[0].mxu0
        %v5710 = vadd.f32 0.0, %v5709
        %v5711 = vpop.f32.mrb[0].mxu0
        %v5712 = vadd.f32 0.0, %v5711
        %v5713 = vpop.f32.mrb[0].mxu0
        %v5714 = vadd.f32 0.0, %v5713
        %5715 = vmatprep.mubr.bf16.mxu0 0
        %5716 = vmatmul.mubr.bf16.gmra.mrb[0].mxu0 %v5601
        %v5717 = vpop.f32.mrb[0].mxu0
        %v5718 = vadd.f32 0.0, %v5717
        %v5719 = vpop.f32.mrb[0].mxu0
        %v5720 = vadd.f32 0.0, %v5719
        %v5721 = vpop.f32.mrb[0].mxu0
        %v5722 = vadd.f32 0.0, %v5721
        %v5723 = vpop.f32.mrb[0].mxu0
        %v5724 = vadd.f32 0.0, %v5723
        %5725 = vmatprep.mubr.bf16.mxu0 0
        %5726 = vmatmul.mubr.bf16.gmra.mrb[0].mxu0 %v5604
        %v5727 = vpop.f32.mrb[0].mxu0
        %v5728 = vadd.f32 0.0, %v5727
        %v5729 = vpop.f32.mrb[0].mxu0
        %v5730 = vadd.f32 0.0, %v5729
        %v5731 = vpop.f32.mrb[0].mxu0
        %v5732 = vadd.f32 0.0, %v5731
        %v5733 = vpop.f32.mrb[0].mxu0
        %v5734 = vadd.f32 0.0, %v5733
        %5735 = vmatprep.mubr.bf16.mxu0 0
        %5736 = vmatmul.mubr.bf16.gmra.mrb[0].mxu0 %v5607
        %v5737 = vpop.f32.mrb[0].mxu0
        %v5738 = vadd.f32 0.0, %v5737
        %v5739 = vpop.f32.mrb[0].mxu0
        %v5740 = vadd.f32 0.0, %v5739
        %v5741 = vpop.f32.mrb[0].mxu0
        %v5742 = vadd.f32 0.0, %v5741
        %v5743 = vpop.f32.mrb[0].mxu0
        %v5744 = vadd.f32 0.0, %v5743
        %5745 = vmatprep.mubr.bf16.mxu0 0
        %5746 = vmatmul.mubr.bf16.gmra.mrb[0].mxu0 %v5610
        %v5747 = vpop.f32.mrb[0].mxu0
        %v5748 = vadd.f32 0.0, %v5747
        %v5749 = vpop.f32.mrb[0].mxu0
        %v5750 = vadd.f32 0.0, %v5749
        %v5751 = vpop.f32.mrb[0].mxu0
        %v5752 = vadd.f32 0.0, %v5751
        %v5753 = vpop.f32.mrb[0].mxu0
        %v5754 = vadd.f32 0.0, %v5753
        %5755 = vmatprep.mubr.bf16.mxu0 0
        %5756 = vmatmul.mubr.bf16.gmra.mrb[0].mxu0 %v5613
        %v5757 = vpop.f32.mrb[0].mxu0
        %v5758 = vadd.f32 0.0, %v5757
        %v5759 = vpop.f32.mrb[0].mxu0
        %v5760 = vadd.f32 0.0, %v5759
        %v5761 = vpop.f32.mrb[0].mxu0
        %v5762 = vadd.f32 0.0, %v5761
        %v5763 = vpop.f32.mrb[0].mxu0
        %v5764 = vadd.f32 0.0, %v5763
        %5765 = vmatprep.mubr.bf16.mxu0 0
        %5766 = vmatmul.mubr.bf16.gmra.mrb[0].mxu0 %v5616
        %v5767 = vpop.f32.mrb[0].mxu0
        %v5768 = vadd.f32 0.0, %v5767
        %v5769 = vpop.f32.mrb[0].mxu0
        %v5770 = vadd.f32 0.0, %v5769
        %v5771 = vpop.f32.mrb[0].mxu0
        %v5772 = vadd.f32 0.0, %v5771
        %v5773 = vpop.f32.mrb[0].mxu0
        %v5774 = vadd.f32 0.0, %v5773
        %5775 = vmatprep.mubr.bf16.mxu0 0
        %5776 = vmatmul.mubr.bf16.gmra.mrb[0].mxu0 %v5619
        %v5777 = vpop.f32.mrb[0].mxu0
        %v5778 = vadd.f32 0.0, %v5777
        %v5779 = vpop.f32.mrb[0].mxu0
        %v5780 = vadd.f32 0.0, %v5779
        %v5781 = vpop.f32.mrb[0].mxu0
        %v5782 = vadd.f32 0.0, %v5781
        %v5783 = vpop.f32.mrb[0].mxu0
        %v5784 = vadd.f32 0.0, %v5783
        %5785 = vmatprep.mubr.bf16.mxu0 0
        %5786 = vmatmul.mubr.bf16.gmra.mrb[0].mxu0 %v5622
        %v5787 = vpop.f32.mrb[0].mxu0
        %v5788 = vadd.f32 0.0, %v5787
        %v5789 = vpop.f32.mrb[0].mxu0
        %v5790 = vadd.f32 0.0, %v5789
        %v5791 = vpop.f32.mrb[0].mxu0
        %v5792 = vadd.f32 0.0, %v5791
        %v5793 = vpop.f32.mrb[0].mxu0
        %v5794 = vadd.f32 0.0, %v5793
        %5795 = vmatprep.mubr.bf16.mxu0 0
        %5796 = vmatmul.mubr.bf16.gmra.mrb[0].mxu0 %v5625
        %v5797 = vpop.f32.mrb[0].mxu0
        %v5798 = vadd.f32 0.0, %v5797
        %v5799 = vpop.f32.mrb[0].mxu0
        %v5800 = vadd.f32 0.0, %v5799
        %v5801 = vpop.f32.mrb[0].mxu0
        %v5802 = vadd.f32 0.0, %v5801
        %v5803 = vpop.f32.mrb[0].mxu0
        %v5804 = vadd.f32 0.0, %v5803
        %5805 = vmatprep.mubr.bf16.mxu0 0
        %5806 = vmatmul.mubr.bf16.gmra.mrb[0].mxu0 %v5628
        %v5807 = vpop.f32.mrb[0].mxu0
        %v5808 = vadd.f32 0.0, %v5807
        %v5809 = vpop.f32.mrb[0].mxu0
        %v5810 = vadd.f32 0.0, %v5809
        %v5811 = vpop.f32.mrb[0].mxu0
        %v5812 = vadd.f32 0.0, %v5811
        %v5813 = vpop.f32.mrb[0].mxu0
        %v5814 = vadd.f32 0.0, %v5813
        %5815 = vmatprep.mubr.bf16.mxu0 0
        %5816 = vmatmul.mubr.bf16.gmra.mrb[0].mxu0 %v5631
        %v5817 = vpop.f32.mrb[0].mxu0
        %v5818 = vadd.f32 0.0, %v5817
        %v5819 = vpop.f32.mrb[0].mxu0
        %v5820 = vadd.f32 0.0, %v5819
        %v5821 = vpop.f32.mrb[0].mxu0
        %v5822 = vadd.f32 0.0, %v5821
        %v5823 = vpop.f32.mrb[0].mxu0
        %v5824 = vadd.f32 0.0, %v5823
        %5825 = vdwg.mxu0
        %v5826 = vmax.f32 %v5668, %v5678
        %v5827 = vmax.f32 %v5672, %v5682
        %v5828 = vmax.f32 %v5826, %v5688
        %v5829 = vmax.f32 %v5827, %v5692
        %v5830 = vmax.f32 %v5828, %v5698
        %v5831 = vmax.f32 %v5829, %v5702
        %v5832 = vmax.f32 %v5830, %v5708
        %v5833 = vmax.f32 %v5831, %v5712
        %v5834 = vmax.f32 %v5832, %v5718
        %v5835 = vmax.f32 %v5833, %v5722
        %v5836 = vmax.f32 %v5834, %v5728
        %v5837 = vmax.f32 %v5835, %v5732
        %v5838 = vmax.f32 %v5836, %v5738
        %v5839 = vmax.f32 %v5837, %v5742
        %v5840 = vmax.f32 %v5838, %v5748
        %v5841 = vmax.f32 %v5839, %v5752
        %v5842 = vmax.f32 %v5840, %v5758
        %v5843 = vmax.f32 %v5841, %v5762
        %v5844 = vmax.f32 %v5842, %v5768
        %v5845 = vmax.f32 %v5843, %v5772
        %v5846 = vmax.f32 %v5844, %v5778
        %v5847 = vmax.f32 %v5845, %v5782
        %v5848 = vmax.f32 %v5846, %v5788
        %v5849 = vmax.f32 %v5847, %v5792
        %v5850 = vmax.f32 %v5848, %v5798
        %v5851 = vmax.f32 %v5849, %v5802
        %v5852 = vmax.f32 %v5850, %v5808
        %v5853 = vmax.f32 %v5851, %v5812
        %v5854 = vmax.f32 %v5852, %v5818
        %v5855 = vmax.f32 %v5853, %v5822
        %v5856 = vmax.f32 %v5854, %v5855
        %v5857 = vrot.slane %v5856, 4
        %v5858 = vmax.f32 %v5856, %v5857
        %v5859 = vrot.slane %v5858, 2
        %v5860 = vmax.f32 %v5858, %v5859
        %v5861 = vrot.slane %v5860, 1
        %v5862 = vmax.f32 %v5860, %v5861
        %v5863 = vmax.f32 %v5670, %v5680
        %v5864 = vmax.f32 %v5674, %v5684
        %v5865 = vmax.f32 %v5863, %v5690
        %v5866 = vmax.f32 %v5864, %v5694
        %v5867 = vmax.f32 %v5865, %v5700
        %v5868 = vmax.f32 %v5866, %v5704
        %v5869 = vmax.f32 %v5867, %v5710
        %v5870 = vmax.f32 %v5868, %v5714
        %v5871 = vmax.f32 %v5869, %v5720
        %v5872 = vmax.f32 %v5870, %v5724
        %v5873 = vmax.f32 %v5871, %v5730
        %v5874 = vmax.f32 %v5872, %v5734
        %v5875 = vmax.f32 %v5873, %v5740
        %v5876 = vmax.f32 %v5874, %v5744
        %v5877 = vmax.f32 %v5875, %v5750
        %v5878 = vmax.f32 %v5876, %v5754
        %v5879 = vmax.f32 %v5877, %v5760
        %v5880 = vmax.f32 %v5878, %v5764
        %v5881 = vmax.f32 %v5879, %v5770
        %v5882 = vmax.f32 %v5880, %v5774
        %v5883 = vmax.f32 %v5881, %v5780
        %v5884 = vmax.f32 %v5882, %v5784
        %v5885 = vmax.f32 %v5883, %v5790
        %v5886 = vmax.f32 %v5884, %v5794
        %v5887 = vmax.f32 %v5885, %v5800
        %v5888 = vmax.f32 %v5886, %v5804
        %v5889 = vmax.f32 %v5887, %v5810
        %v5890 = vmax.f32 %v5888, %v5814
        %v5891 = vmax.f32 %v5889, %v5820
        %v5892 = vmax.f32 %v5890, %v5824
        %v5893 = vmax.f32 %v5891, %v5892
        %v5894 = vrot.slane %v5893, 4
        %v5895 = vmax.f32 %v5893, %v5894
        %v5896 = vrot.slane %v5895, 2
        %v5897 = vmax.f32 %v5895, %v5896
        %v5898 = vrot.slane %v5897, 1
        %v5899 = vmax.f32 %v5897, %v5898
        %v5900 = vsub.f32 %v5668, %v5862
        %v5901 = vsub.f32 %v5670, %v5899
        %v5902 = vsub.f32 %v5672, %v5862
        %v5903 = vsub.f32 %v5674, %v5899
        %v5904 = vsub.f32 %v5678, %v5862
        %v5905 = vsub.f32 %v5680, %v5899
        %v5906 = vsub.f32 %v5682, %v5862
        %v5907 = vsub.f32 %v5684, %v5899
        %v5908 = vsub.f32 %v5688, %v5862
        %v5909 = vsub.f32 %v5690, %v5899
        %v5910 = vsub.f32 %v5692, %v5862
        %v5911 = vsub.f32 %v5694, %v5899
        %v5912 = vsub.f32 %v5698, %v5862
        %v5913 = vsub.f32 %v5700, %v5899
        %v5914 = vsub.f32 %v5702, %v5862
        %v5915 = vsub.f32 %v5704, %v5899
        %v5916 = vsub.f32 %v5708, %v5862
        %v5917 = vsub.f32 %v5710, %v5899
        %v5918 = vsub.f32 %v5712, %v5862
        %v5919 = vsub.f32 %v5714, %v5899
        %v5920 = vsub.f32 %v5718, %v5862
        %v5921 = vsub.f32 %v5720, %v5899
        %v5922 = vsub.f32 %v5722, %v5862
        %v5923 = vsub.f32 %v5724, %v5899
        %v5924 = vsub.f32 %v5728, %v5862
        %v5925 = vsub.f32 %v5730, %v5899
        %v5926 = vsub.f32 %v5732, %v5862
        %v5927 = vsub.f32 %v5734, %v5899
        %v5928 = vsub.f32 %v5738, %v5862
        %v5929 = vsub.f32 %v5740, %v5899
        %v5930 = vsub.f32 %v5742, %v5862
        %v5931 = vsub.f32 %v5744, %v5899
        %v5932 = vsub.f32 %v5748, %v5862
        %v5933 = vsub.f32 %v5750, %v5899
        %v5934 = vsub.f32 %v5752, %v5862
        %v5935 = vsub.f32 %v5754, %v5899
        %v5936 = vsub.f32 %v5758, %v5862
        %v5937 = vsub.f32 %v5760, %v5899
        %v5938 = vsub.f32 %v5762, %v5862
        %v5939 = vsub.f32 %v5764, %v5899
        %v5940 = vsub.f32 %v5768, %v5862
        %v5941 = vsub.f32 %v5770, %v5899
        %v5942 = vsub.f32 %v5772, %v5862
        %v5943 = vsub.f32 %v5774, %v5899
        %v5944 = vsub.f32 %v5778, %v5862
        %v5945 = vsub.f32 %v5780, %v5899
        %v5946 = vsub.f32 %v5782, %v5862
        %v5947 = vsub.f32 %v5784, %v5899
        %v5948 = vsub.f32 %v5788, %v5862
        %v5949 = vsub.f32 %v5790, %v5899
        %v5950 = vsub.f32 %v5792, %v5862
        %v5951 = vsub.f32 %v5794, %v5899
        %v5952 = vsub.f32 %v5798, %v5862
        %v5953 = vsub.f32 %v5800, %v5899
        %v5954 = vsub.f32 %v5802, %v5862
        %v5955 = vsub.f32 %v5804, %v5899
        %v5956 = vsub.f32 %v5808, %v5862
        %v5957 = vsub.f32 %v5810, %v5899
        %v5958 = vsub.f32 %v5812, %v5862
        %v5959 = vsub.f32 %v5814, %v5899
        %v5960 = vsub.f32 %v5818, %v5862
        %v5961 = vsub.f32 %v5820, %v5899
        %v5962 = vsub.f32 %v5822, %v5862
        %v5963 = vsub.f32 %v5824, %v5899
        %v5964 = vmul.f32 %v5900, 1.442695
        %v5965 = vpow.pop %v5964
        %v5966 = vmul.f32 %v5901, 1.442695
        %v5967 = vpow.pop %v5966
        %v5968 = vmul.f32 %v5902, 1.442695
        %v5969 = vpow.pop %v5968
        %v5970 = vmul.f32 %v5903, 1.442695
        %v5971 = vpow.pop %v5970
        %v5972 = vmul.f32 %v5904, 1.442695
        %v5973 = vpow.pop %v5972
        %v5974 = vmul.f32 %v5905, 1.442695
        %v5975 = vpow.pop %v5974
        %v5976 = vmul.f32 %v5906, 1.442695
        %v5977 = vpow.pop %v5976
        %v5978 = vmul.f32 %v5907, 1.442695
        %v5979 = vpow.pop %v5978
        %v5980 = vmul.f32 %v5908, 1.442695
        %v5981 = vpow.pop %v5980
        %v5982 = vmul.f32 %v5909, 1.442695
        %v5983 = vpow.pop %v5982
        %v5984 = vmul.f32 %v5910, 1.442695
        %v5985 = vpow.pop %v5984
        %v5986 = vmul.f32 %v5911, 1.442695
        %v5987 = vpow.pop %v5986
        %v5988 = vmul.f32 %v5912, 1.442695
        %v5989 = vpow.pop %v5988
        %v5990 = vmul.f32 %v5913, 1.442695
        %v5991 = vpow.pop %v5990
        %v5992 = vmul.f32 %v5914, 1.442695
        %v5993 = vpow.pop %v5992
        %v5994 = vmul.f32 %v5915, 1.442695
        %v5995 = vpow.pop %v5994
        %v5996 = vmul.f32 %v5916, 1.442695
        %v5997 = vpow.pop %v5996
        %v5998 = vmul.f32 %v5917, 1.442695
        %v5999 = vpow.pop %v5998
        %v6000 = vmul.f32 %v5918, 1.442695
        %v6001 = vpow.pop %v6000
        %v6002 = vmul.f32 %v5919, 1.442695
        %v6003 = vpow.pop %v6002
        %v6004 = vmul.f32 %v5920, 1.442695
        %v6005 = vpow.pop %v6004
        %v6006 = vmul.f32 %v5921, 1.442695
        %v6007 = vpow.pop %v6006
        %v6008 = vmul.f32 %v5922, 1.442695
        %v6009 = vpow.pop %v6008
        %v6010 = vmul.f32 %v5923, 1.442695
        %v6011 = vpow.pop %v6010
        %v6012 = vmul.f32 %v5924, 1.442695
        %v6013 = vpow.pop %v6012
        %v6014 = vmul.f32 %v5925, 1.442695
        %v6015 = vpow.pop %v6014
        %v6016 = vmul.f32 %v5926, 1.442695
        %v6017 = vpow.pop %v6016
        %v6018 = vmul.f32 %v5927, 1.442695
        %v6019 = vpow.pop %v6018
        %v6020 = vmul.f32 %v5928, 1.442695
        %v6021 = vpow.pop %v6020
        %v6022 = vmul.f32 %v5929, 1.442695
        %v6023 = vpow.pop %v6022
        %v6024 = vmul.f32 %v5930, 1.442695
        %v6025 = vpow.pop %v6024
        %v6026 = vmul.f32 %v5931, 1.442695
        %v6027 = vpow.pop %v6026
        %v6028 = vmul.f32 %v5932, 1.442695
        %v6029 = vpow.pop %v6028
        %v6030 = vmul.f32 %v5933, 1.442695
        %v6031 = vpow.pop %v6030
        %v6032 = vmul.f32 %v5934, 1.442695
        %v6033 = vpow.pop %v6032
        %v6034 = vmul.f32 %v5935, 1.442695
        %v6035 = vpow.pop %v6034
        %v6036 = vmul.f32 %v5936, 1.442695
        %v6037 = vpow.pop %v6036
        %v6038 = vmul.f32 %v5937, 1.442695
        %v6039 = vpow.pop %v6038
        %v6040 = vmul.f32 %v5938, 1.442695
        %v6041 = vpow.pop %v6040
        %v6042 = vmul.f32 %v5939, 1.442695
        %v6043 = vpow.pop %v6042
        %v6044 = vmul.f32 %v5940, 1.442695
        %v6045 = vpow.pop %v6044
        %v6046 = vmul.f32 %v5941, 1.442695
        %v6047 = vpow.pop %v6046
        %v6048 = vmul.f32 %v5942, 1.442695
        %v6049 = vpow.pop %v6048
        %v6050 = vmul.f32 %v5943, 1.442695
        %v6051 = vpow.pop %v6050
        %v6052 = vmul.f32 %v5944, 1.442695
        %v6053 = vpow.pop %v6052
        %v6054 = vmul.f32 %v5945, 1.442695
        %v6055 = vpow.pop %v6054
        %v6056 = vmul.f32 %v5946, 1.442695
        %v6057 = vpow.pop %v6056
        %v6058 = vmul.f32 %v5947, 1.442695
        %v6059 = vpow.pop %v6058
        %v6060 = vmul.f32 %v5948, 1.442695
        %v6061 = vpow.pop %v6060
        %v6062 = vmul.f32 %v5949, 1.442695
        %v6063 = vpow.pop %v6062
        %v6064 = vmul.f32 %v5950, 1.442695
        %v6065 = vpow.pop %v6064
        %v6066 = vmul.f32 %v5951, 1.442695
        %v6067 = vpow.pop %v6066
        %v6068 = vmul.f32 %v5952, 1.442695
        %v6069 = vpow.pop %v6068
        %v6070 = vmul.f32 %v5953, 1.442695
        %v6071 = vpow.pop %v6070
        %v6072 = vmul.f32 %v5954, 1.442695
        %v6073 = vpow.pop %v6072
        %v6074 = vmul.f32 %v5955, 1.442695
        %v6075 = vpow.pop %v6074
        %v6076 = vmul.f32 %v5956, 1.442695
        %v6077 = vpow.pop %v6076
        %v6078 = vmul.f32 %v5957, 1.442695
        %v6079 = vpow.pop %v6078
        %v6080 = vmul.f32 %v5958, 1.442695
        %v6081 = vpow.pop %v6080
        %v6082 = vmul.f32 %v5959, 1.442695
        %v6083 = vpow.pop %v6082
        %v6084 = vmul.f32 %v5960, 1.442695
        %v6085 = vpow.pop %v6084
        %v6086 = vmul.f32 %v5961, 1.442695
        %v6087 = vpow.pop %v6086
        %v6088 = vmul.f32 %v5962, 1.442695
        %v6089 = vpow.pop %v6088
        %v6090 = vmul.f32 %v5963, 1.442695
        %v6091 = vpow.pop %v6090
        %v6092 = vadd.f32 %v5965, %v5969
        %v6093 = vadd.f32 %v6092, %v5973
        %v6094 = vadd.f32 %v6093, %v5977
        %v6095 = vadd.f32 %v6094, %v5981
        %v6096 = vadd.f32 %v6095, %v5985
        %v6097 = vadd.f32 %v6096, %v5989
        %v6098 = vadd.f32 %v6097, %v5993
        %v6099 = vadd.f32 %v6098, %v5997
        %v6100 = vadd.f32 %v6099, %v6001
        %v6101 = vadd.f32 %v6100, %v6005
        %v6102 = vadd.f32 %v6101, %v6009
        %v6103 = vadd.f32 %v6102, %v6013
        %v6104 = vadd.f32 %v6103, %v6017
        %v6105 = vadd.f32 %v6104, %v6021
        %v6106 = vadd.f32 %v6105, %v6025
        %v6107 = vadd.f32 %v6106, %v6029
        %v6108 = vadd.f32 %v6107, %v6033
        %v6109 = vadd.f32 %v6108, %v6037
        %v6110 = vadd.f32 %v6109, %v6041
        %v6111 = vadd.f32 %v6110, %v6045
        %v6112 = vadd.f32 %v6111, %v6049
        %v6113 = vadd.f32 %v6112, %v6053
        %v6114 = vadd.f32 %v6113, %v6057
        %v6115 = vadd.f32 %v6114, %v6061
        %v6116 = vadd.f32 %v6115, %v6065
        %v6117 = vadd.f32 %v6116, %v6069
        %v6118 = vadd.f32 %v6117, %v6073
        %v6119 = vadd.f32 %v6118, %v6077
        %v6120 = vadd.f32 %v6119, %v6081
        %v6121 = vadd.f32 %v6120, %v6085
        %v6122 = vadd.f32 %v6121, %v6089
        %v6123 = vrot.slane %v6122, 4
        %v6124 = vadd.f32 %v6122, %v6123
        %v6125 = vrot.slane %v6124, 2
        %v6126 = vadd.f32 %v6124, %v6125
        %v6127 = vrot.slane %v6126, 1
        %v6128 = vadd.f32 %v6126, %v6127
        %v6129 = vadd.f32 %v5967, %v5971
        %v6130 = vadd.f32 %v6129, %v5975
        %v6131 = vadd.f32 %v6130, %v5979
        %v6132 = vadd.f32 %v6131, %v5983
        %v6133 = vadd.f32 %v6132, %v5987
        %v6134 = vadd.f32 %v6133, %v5991
        %v6135 = vadd.f32 %v6134, %v5995
        %v6136 = vadd.f32 %v6135, %v5999
        %v6137 = vadd.f32 %v6136, %v6003
        %v6138 = vadd.f32 %v6137, %v6007
        %v6139 = vadd.f32 %v6138, %v6011
        %v6140 = vadd.f32 %v6139, %v6015
        %v6141 = vadd.f32 %v6140, %v6019
        %v6142 = vadd.f32 %v6141, %v6023
        %v6143 = vadd.f32 %v6142, %v6027
        %v6144 = vadd.f32 %v6143, %v6031
        %v6145 = vadd.f32 %v6144, %v6035
        %v6146 = vadd.f32 %v6145, %v6039
        %v6147 = vadd.f32 %v6146, %v6043
        %v6148 = vadd.f32 %v6147, %v6047
        %v6149 = vadd.f32 %v6148, %v6051
        %v6150 = vadd.f32 %v6149, %v6055
        %v6151 = vadd.f32 %v6150, %v6059
        %v6152 = vadd.f32 %v6151, %v6063
        %v6153 = vadd.f32 %v6152, %v6067
        %v6154 = vadd.f32 %v6153, %v6071
        %v6155 = vadd.f32 %v6154, %v6075
        %v6156 = vadd.f32 %v6155, %v6079
        %v6157 = vadd.f32 %v6156, %v6083
        %v6158 = vadd.f32 %v6157, %v6087
        %v6159 = vadd.f32 %v6158, %v6091
        %v6160 = vrot.slane %v6159, 4
        %v6161 = vadd.f32 %v6159, %v6160
        %v6162 = vrot.slane %v6161, 2
        %v6163 = vadd.f32 %v6161, %v6162
        %v6164 = vrot.slane %v6163, 1
        %v6165 = vadd.f32 %v6163, %v6164
        %v6166 = vrcp.pop %v6128
        %v6167 = vrcp.pop %v6165
        %v6168 = vmul.f32 %v5965, %v6166
        %v6169 = vmul.f32 %v5967, %v6167
        %v6170 = vmul.f32 %v5969, %v6166
        %v6171 = vmul.f32 %v5971, %v6167
        %v6172 = vmul.f32 %v5973, %v6166
        %v6173 = vmul.f32 %v5975, %v6167
        %v6174 = vmul.f32 %v5977, %v6166
        %v6175 = vmul.f32 %v5979, %v6167
        %v6176 = vmul.f32 %v5981, %v6166
        %v6177 = vmul.f32 %v5983, %v6167
        %v6178 = vmul.f32 %v5985, %v6166
        %v6179 = vmul.f32 %v5987, %v6167
        %v6180 = vmul.f32 %v5989, %v6166
        %v6181 = vmul.f32 %v5991, %v6167
        %v6182 = vmul.f32 %v5993, %v6166
        %v6183 = vmul.f32 %v5995, %v6167
        %v6184 = vmul.f32 %v5997, %v6166
        %v6185 = vmul.f32 %v5999, %v6167
        %v6186 = vmul.f32 %v6001, %v6166
        %v6187 = vmul.f32 %v6003, %v6167
        %v6188 = vmul.f32 %v6005, %v6166
        %v6189 = vmul.f32 %v6007, %v6167
        %v6190 = vmul.f32 %v6009, %v6166
        %v6191 = vmul.f32 %v6011, %v6167
        %v6192 = vmul.f32 %v6013, %v6166
        %v6193 = vmul.f32 %v6015, %v6167
        %v6194 = vmul.f32 %v6017, %v6166
        %v6195 = vmul.f32 %v6019, %v6167
        %v6196 = vmul.f32 %v6021, %v6166
        %v6197 = vmul.f32 %v6023, %v6167
        %v6198 = vmul.f32 %v6025, %v6166
        %v6199 = vmul.f32 %v6027, %v6167
        %v6200 = vmul.f32 %v6029, %v6166
        %v6201 = vmul.f32 %v6031, %v6167
        %v6202 = vmul.f32 %v6033, %v6166
        %v6203 = vmul.f32 %v6035, %v6167
        %v6204 = vmul.f32 %v6037, %v6166
        %v6205 = vmul.f32 %v6039, %v6167
        %v6206 = vmul.f32 %v6041, %v6166
        %v6207 = vmul.f32 %v6043, %v6167
        %v6208 = vmul.f32 %v6045, %v6166
        %v6209 = vmul.f32 %v6047, %v6167
        %v6210 = vmul.f32 %v6049, %v6166
        %v6211 = vmul.f32 %v6051, %v6167
        %v6212 = vmul.f32 %v6053, %v6166
        %v6213 = vmul.f32 %v6055, %v6167
        %v6214 = vmul.f32 %v6057, %v6166
        %v6215 = vmul.f32 %v6059, %v6167
        %v6216 = vmul.f32 %v6061, %v6166
        %v6217 = vmul.f32 %v6063, %v6167
        %v6218 = vmul.f32 %v6065, %v6166
        %v6219 = vmul.f32 %v6067, %v6167
        %v6220 = vmul.f32 %v6069, %v6166
        %v6221 = vmul.f32 %v6071, %v6167
        %v6222 = vmul.f32 %v6073, %v6166
        %v6223 = vmul.f32 %v6075, %v6167
        %v6224 = vmul.f32 %v6077, %v6166
        %v6225 = vmul.f32 %v6079, %v6167
        %v6226 = vmul.f32 %v6081, %v6166
        %v6227 = vmul.f32 %v6083, %v6167
        %v6228 = vmul.f32 %v6085, %v6166
        %v6229 = vmul.f32 %v6087, %v6167
        %v6230 = vmul.f32 %v6089, %v6166
        %v6231 = vmul.f32 %v6091, %v6167
        %v6232 = vpack.c.bf16 %v6170, %v6168
        %v6233 = vpack.c.bf16 %v6171, %v6169
        %v6234 = vpack.c.bf16 %v6174, %v6172
        %v6235 = vpack.c.bf16 %v6175, %v6173
        %v6236 = vpack.c.bf16 %v6178, %v6176
        %v6237 = vpack.c.bf16 %v6179, %v6177
        %v6238 = vpack.c.bf16 %v6182, %v6180
        %v6239 = vpack.c.bf16 %v6183, %v6181
        %v6240 = vpack.c.bf16 %v6186, %v6184
        %v6241 = vpack.c.bf16 %v6187, %v6185
        %v6242 = vpack.c.bf16 %v6190, %v6188
        %v6243 = vpack.c.bf16 %v6191, %v6189
        %v6244 = vpack.c.bf16 %v6194, %v6192
        %v6245 = vpack.c.bf16 %v6195, %v6193
        %v6246 = vpack.c.bf16 %v6198, %v6196
        %v6247 = vpack.c.bf16 %v6199, %v6197
        %v6248 = vpack.c.bf16 %v6202, %v6200
        %v6249 = vpack.c.bf16 %v6203, %v6201
        %v6250 = vpack.c.bf16 %v6206, %v6204
        %v6251 = vpack.c.bf16 %v6207, %v6205
        %v6252 = vpack.c.bf16 %v6210, %v6208
        %v6253 = vpack.c.bf16 %v6211, %v6209
        %v6254 = vpack.c.bf16 %v6214, %v6212
        %v6255 = vpack.c.bf16 %v6215, %v6213
        %v6256 = vpack.c.bf16 %v6218, %v6216
        %v6257 = vpack.c.bf16 %v6219, %v6217
        %v6258 = vpack.c.bf16 %v6222, %v6220
        %v6259 = vpack.c.bf16 %v6223, %v6221
        %v6260 = vpack.c.bf16 %v6226, %v6224
        %v6261 = vpack.c.bf16 %v6227, %v6225
        %v6262 = vpack.c.bf16 %v6230, %v6228
        %v6263 = vpack.c.bf16 %v6231, %v6229
        %6264 = vmatprep.subr.bf16.mxu0 %v6233
        %6265 = vmatpush1.bf16.msra.mxu0 %v6232
        %6266 = vmatprep.subr.bf16.mxu0 %v6235
        %6267 = vmatpush1.bf16.msra.mxu0 %v6234
        %6268 = vmatprep.subr.bf16.mxu0 %v6237
        %6269 = vmatpush1.bf16.msra.mxu0 %v6236
        %6270 = vmatprep.subr.bf16.mxu0 %v6239
        %6271 = vmatpush1.bf16.msra.mxu0 %v6238
        %6272 = vmatprep.subr.bf16.mxu0 %v6241
        %6273 = vmatpush1.bf16.msra.mxu0 %v6240
        %6274 = vmatprep.subr.bf16.mxu0 %v6243
        %6275 = vmatpush1.bf16.msra.mxu0 %v6242
        %6276 = vmatprep.subr.bf16.mxu0 %v6245
        %6277 = vmatpush1.bf16.msra.mxu0 %v6244
        %6278 = vmatprep.subr.bf16.mxu0 %v6247
        %6279 = vmatpush1.bf16.msra.mxu0 %v6246
        %6280 = vmatprep.subr.bf16.mxu0 %v6249
        %6281 = vmatpush1.bf16.msra.mxu0 %v6248
        %6282 = vmatprep.subr.bf16.mxu0 %v6251
        %6283 = vmatpush1.bf16.msra.mxu0 %v6250
        %6284 = vmatprep.subr.bf16.mxu0 %v6253
        %6285 = vmatpush1.bf16.msra.mxu0 %v6252
        %6286 = vmatprep.subr.bf16.mxu0 %v6255
        %6287 = vmatpush1.bf16.msra.mxu0 %v6254
        %6288 = vmatprep.subr.bf16.mxu0 %v6257
        %6289 = vmatpush1.bf16.msra.mxu0 %v6256
        %6290 = vmatprep.subr.bf16.mxu0 %v6259
        %6291 = vmatpush1.bf16.msra.mxu0 %v6258
        %6292 = vmatprep.subr.bf16.mxu0 %v6261
        %6293 = vmatpush1.bf16.msra.mxu0 %v6260
        %6294 = vmatprep.subr.bf16.mxu0 %v6263
        %6295 = vmatpush1.bf16.msra.mxu0 %v6262
        %6296 = vmatprep.mubr.bf16.mxu0 %v5550
        %6297 = vmatmul.mubr.bf16.gmra.mrb[0].mxu0 %v5549
        %v6298 = vpop.f32.mrb[0].mxu0
        %v6299 = vadd.f32 0.0, %v6298
        %v6300 = vpop.f32.mrb[0].mxu0
        %v6301 = vadd.f32 0.0, %v6300
        %v6302 = vpop.f32.mrb[0].mxu0
        %v6303 = vadd.f32 0.0, %v6302
        %v6304 = vpop.f32.mrb[0].mxu0
        %v6305 = vadd.f32 0.0, %v6304
        %6306 = vmatprep.mubr.bf16.mxu0 %v5552
        %6307 = vmatmul.mubr.bf16.gmra.mrb[0].mxu0 %v5551
        %v6308 = vpop.f32.mrb[0].mxu0
        %v6309 = vadd.f32 0.0, %v6308
        %v6310 = vpop.f32.mrb[0].mxu0
        %v6311 = vadd.f32 0.0, %v6310
        %v6312 = vpop.f32.mrb[0].mxu0
        %v6313 = vadd.f32 0.0, %v6312
        %v6314 = vpop.f32.mrb[0].mxu0
        %v6315 = vadd.f32 0.0, %v6314
        %6316 = vdwg.mxu0
        %6317 = vst [vmem:[#allocation3 + $0x110] sm:$0xff] %v6299
        %6318 = vst [vmem:[#allocation3 + $0x118] sm:$0xff] %v6301
        %6319 = vst [vmem:[#allocation3 + $0x130] sm:$0xff] %v6303
        %6320 = vst [vmem:[#allocation3 + $0x138] sm:$0xff] %v6305
        %6321 = vst [vmem:[#allocation3 + $0x150] sm:$0xff] %v6309
        %6322 = vst [vmem:[#allocation3 + $0x158] sm:$0xff] %v6311
        %6323 = vst [vmem:[#allocation3 + $0x170] sm:$0xff] %v6313
        %6324 = vst [vmem:[#allocation3 + $0x178] sm:$0xff] %v6315
        %v6325 = vld [vmem:[#allocation2 + $0xc0] sm:$0xff]
        %v6326 = vld [vmem:[#allocation2 + $0xc8] sm:$0xff]
        %v6327 = vld [vmem:[#allocation2 + $0xe0] sm:$0xff]
        %v6328 = vld [vmem:[#allocation2 + $0xe8] sm:$0xff]
        %v6329 = vld [vmem:[#allocation2 + $0x1c0] sm:$0xff]
        %v6330 = vld [vmem:[#allocation2 + $0x1c8] sm:$0xff]
        %v6331 = vld [vmem:[#allocation2 + $0x1e0] sm:$0xff]
        %v6332 = vld [vmem:[#allocation2 + $0x1e8] sm:$0xff]
        %v6333 = vld [vmem:[#allocation2 + $0x2c0] sm:$0xff]
        %v6334 = vld [vmem:[#allocation2 + $0x2c8] sm:$0xff]
        %v6335 = vld [vmem:[#allocation2 + $0x2e0] sm:$0xff]
        %v6336 = vld [vmem:[#allocation2 + $0x2e8] sm:$0xff]
        %6337 = vxpose.xlu0.c.b16.start [1/8] %v6329, 128
        %6338 = vxpose.xlu0.c.b16.cont [2/8] %v6331, 128
        %6339 = vxpose.xlu0.c.b16.cont [3/8] 0, 128
        %6340 = vxpose.xlu0.c.b16.cont [4/8] 0, 128
        %6341 = vxpose.xlu0.c.b16.cont [5/8] 0, 128
        %6342 = vxpose.xlu0.c.b16.cont [6/8] 0, 128
        %6343 = vxpose.xlu0.c.b16.cont [7/8] 0, 128
        %6344 = vxpose.xlu0.c.b16.end [8/8] 0, 128
        %v6345 = vpop.trf.xlu0
        %v6346 = vpop.trf.xlu0
        %v6347 = vpop.trf.xlu0
        %v6348 = vpop.trf.xlu0
        %v6349 = vpop.trf.xlu0
        %v6350 = vpop.trf.xlu0
        %v6351 = vpop.trf.xlu0
        %v6352 = vpop.trf.xlu0
        %6353 = vxpose.xlu0.c.b16.start [1/8] %v6330, 128
        %6354 = vxpose.xlu0.c.b16.cont [2/8] %v6332, 128
        %6355 = vxpose.xlu0.c.b16.cont [3/8] 0, 128
        %6356 = vxpose.xlu0.c.b16.cont [4/8] 0, 128
        %6357 = vxpose.xlu0.c.b16.cont [5/8] 0, 128
        %6358 = vxpose.xlu0.c.b16.cont [6/8] 0, 128
        %6359 = vxpose.xlu0.c.b16.cont [7/8] 0, 128
        %6360 = vxpose.xlu0.c.b16.end [8/8] 0, 128
        %v6361 = vpop.trf.xlu0
        %v6362 = vpop.trf.xlu0
        %v6363 = vpop.trf.xlu0
        %v6364 = vpop.trf.xlu0
        %v6365 = vpop.trf.xlu0
        %v6366 = vpop.trf.xlu0
        %v6367 = vpop.trf.xlu0
        %v6368 = vpop.trf.xlu0
        %v6370 = vsel %vm1664, %v6345, 0
        %v6373 = vsel %vm1664, %v6346, 0
        %v6376 = vsel %vm1664, %v6347, 0
        %v6379 = vsel %vm1664, %v6348, 0
        %v6382 = vsel %vm1664, %v6349, 0
        %v6385 = vsel %vm1664, %v6350, 0
        %v6388 = vsel %vm1664, %v6351, 0
        %v6391 = vsel %vm1664, %v6352, 0
        %v6394 = vsel %vm1664, %v6361, 0
        %v6397 = vsel %vm1664, %v6362, 0
        %v6400 = vsel %vm1664, %v6363, 0
        %v6403 = vsel %vm1664, %v6364, 0
        %v6406 = vsel %vm1664, %v6365, 0
        %v6409 = vsel %vm1664, %v6366, 0
        %v6412 = vsel %vm1664, %v6367, 0
        %v6415 = vsel %vm1664, %v6368, 0
        %6417 = vmatprep.subr.bf16.mxu0 %v6326
        %6418 = vmatpush1.bf16.msra.mxu0 %v6325
        %6419 = vmatprep.subr.bf16.mxu0 %v6328
        %6420 = vmatpush1.bf16.msra.mxu0 %v6327
        %6421 = vmatprep.subr.bf16.mxu0 0
        %6422 = vmatpush1.bf16.msra.mxu0 0
        %6423 = vmatprep.subr.bf16.mxu0 0
        %6424 = vmatpush1.bf16.msra.mxu0 0
        %6425 = vmatprep.subr.bf16.mxu0 0
        %6426 = vmatpush1.bf16.msra.mxu0 0
        %6427 = vmatprep.subr.bf16.mxu0 0
        %6428 = vmatpush1.bf16.msra.mxu0 0
        %6429 = vmatprep.subr.bf16.mxu0 0
        %6430 = vmatpush1.bf16.msra.mxu0 0
        %6431 = vmatprep.subr.bf16.mxu0 0
        %6432 = vmatpush1.bf16.msra.mxu0 0
        %6433 = vmatprep.subr.bf16.mxu0 0
        %6434 = vmatpush1.bf16.msra.mxu0 0
        %6435 = vmatprep.subr.bf16.mxu0 0
        %6436 = vmatpush1.bf16.msra.mxu0 0
        %6437 = vmatprep.subr.bf16.mxu0 0
        %6438 = vmatpush1.bf16.msra.mxu0 0
        %6439 = vmatprep.subr.bf16.mxu0 0
        %6440 = vmatpush1.bf16.msra.mxu0 0
        %6441 = vmatprep.subr.bf16.mxu0 0
        %6442 = vmatpush1.bf16.msra.mxu0 0
        %6443 = vmatprep.subr.bf16.mxu0 0
        %6444 = vmatpush1.bf16.msra.mxu0 0
        %6445 = vmatprep.subr.bf16.mxu0 0
        %6446 = vmatpush1.bf16.msra.mxu0 0
        %6447 = vmatprep.subr.bf16.mxu0 0
        %6448 = vmatpush1.bf16.msra.mxu0 0
        %6449 = vmatprep.mubr.bf16.mxu0 0
        %6450 = vmatmul.mubr.bf16.gmra.mrb[0].mxu0 %v6370
        %v6451 = vpop.f32.mrb[0].mxu0
        %v6452 = vadd.f32 0.0, %v6451
        %v6453 = vpop.f32.mrb[0].mxu0
        %v6454 = vadd.f32 0.0, %v6453
        %v6455 = vpop.f32.mrb[0].mxu0
        %v6456 = vadd.f32 0.0, %v6455
        %v6457 = vpop.f32.mrb[0].mxu0
        %v6458 = vadd.f32 0.0, %v6457
        %6459 = vmatprep.mubr.bf16.mxu0 0
        %6460 = vmatmul.mubr.bf16.gmra.mrb[0].mxu0 %v6373
        %v6461 = vpop.f32.mrb[0].mxu0
        %v6462 = vadd.f32 0.0, %v6461
        %v6463 = vpop.f32.mrb[0].mxu0
        %v6464 = vadd.f32 0.0, %v6463
        %v6465 = vpop.f32.mrb[0].mxu0
        %v6466 = vadd.f32 0.0, %v6465
        %v6467 = vpop.f32.mrb[0].mxu0
        %v6468 = vadd.f32 0.0, %v6467
        %6469 = vmatprep.mubr.bf16.mxu0 0
        %6470 = vmatmul.mubr.bf16.gmra.mrb[0].mxu0 %v6376
        %v6471 = vpop.f32.mrb[0].mxu0
        %v6472 = vadd.f32 0.0, %v6471
        %v6473 = vpop.f32.mrb[0].mxu0
        %v6474 = vadd.f32 0.0, %v6473
        %v6475 = vpop.f32.mrb[0].mxu0
        %v6476 = vadd.f32 0.0, %v6475
        %v6477 = vpop.f32.mrb[0].mxu0
        %v6478 = vadd.f32 0.0, %v6477
        %6479 = vmatprep.mubr.bf16.mxu0 0
        %6480 = vmatmul.mubr.bf16.gmra.mrb[0].mxu0 %v6379
        %v6481 = vpop.f32.mrb[0].mxu0
        %v6482 = vadd.f32 0.0, %v6481
        %v6483 = vpop.f32.mrb[0].mxu0
        %v6484 = vadd.f32 0.0, %v6483
        %v6485 = vpop.f32.mrb[0].mxu0
        %v6486 = vadd.f32 0.0, %v6485
        %v6487 = vpop.f32.mrb[0].mxu0
        %v6488 = vadd.f32 0.0, %v6487
        %6489 = vmatprep.mubr.bf16.mxu0 0
        %6490 = vmatmul.mubr.bf16.gmra.mrb[0].mxu0 %v6382
        %v6491 = vpop.f32.mrb[0].mxu0
        %v6492 = vadd.f32 0.0, %v6491
        %v6493 = vpop.f32.mrb[0].mxu0
        %v6494 = vadd.f32 0.0, %v6493
        %v6495 = vpop.f32.mrb[0].mxu0
        %v6496 = vadd.f32 0.0, %v6495
        %v6497 = vpop.f32.mrb[0].mxu0
        %v6498 = vadd.f32 0.0, %v6497
        %6499 = vmatprep.mubr.bf16.mxu0 0
        %6500 = vmatmul.mubr.bf16.gmra.mrb[0].mxu0 %v6385
        %v6501 = vpop.f32.mrb[0].mxu0
        %v6502 = vadd.f32 0.0, %v6501
        %v6503 = vpop.f32.mrb[0].mxu0
        %v6504 = vadd.f32 0.0, %v6503
        %v6505 = vpop.f32.mrb[0].mxu0
        %v6506 = vadd.f32 0.0, %v6505
        %v6507 = vpop.f32.mrb[0].mxu0
        %v6508 = vadd.f32 0.0, %v6507
        %6509 = vmatprep.mubr.bf16.mxu0 0
        %6510 = vmatmul.mubr.bf16.gmra.mrb[0].mxu0 %v6388
        %v6511 = vpop.f32.mrb[0].mxu0
        %v6512 = vadd.f32 0.0, %v6511
        %v6513 = vpop.f32.mrb[0].mxu0
        %v6514 = vadd.f32 0.0, %v6513
        %v6515 = vpop.f32.mrb[0].mxu0
        %v6516 = vadd.f32 0.0, %v6515
        %v6517 = vpop.f32.mrb[0].mxu0
        %v6518 = vadd.f32 0.0, %v6517
        %6519 = vmatprep.mubr.bf16.mxu0 0
        %6520 = vmatmul.mubr.bf16.gmra.mrb[0].mxu0 %v6391
        %v6521 = vpop.f32.mrb[0].mxu0
        %v6522 = vadd.f32 0.0, %v6521
        %v6523 = vpop.f32.mrb[0].mxu0
        %v6524 = vadd.f32 0.0, %v6523
        %v6525 = vpop.f32.mrb[0].mxu0
        %v6526 = vadd.f32 0.0, %v6525
        %v6527 = vpop.f32.mrb[0].mxu0
        %v6528 = vadd.f32 0.0, %v6527
        %6529 = vmatprep.mubr.bf16.mxu0 0
        %6530 = vmatmul.mubr.bf16.gmra.mrb[0].mxu0 %v6394
        %v6531 = vpop.f32.mrb[0].mxu0
        %v6532 = vadd.f32 0.0, %v6531
        %v6533 = vpop.f32.mrb[0].mxu0
        %v6534 = vadd.f32 0.0, %v6533
        %v6535 = vpop.f32.mrb[0].mxu0
        %v6536 = vadd.f32 0.0, %v6535
        %v6537 = vpop.f32.mrb[0].mxu0
        %v6538 = vadd.f32 0.0, %v6537
        %6539 = vmatprep.mubr.bf16.mxu0 0
        %6540 = vmatmul.mubr.bf16.gmra.mrb[0].mxu0 %v6397
        %v6541 = vpop.f32.mrb[0].mxu0
        %v6542 = vadd.f32 0.0, %v6541
        %v6543 = vpop.f32.mrb[0].mxu0
        %v6544 = vadd.f32 0.0, %v6543
        %v6545 = vpop.f32.mrb[0].mxu0
        %v6546 = vadd.f32 0.0, %v6545
        %v6547 = vpop.f32.mrb[0].mxu0
        %v6548 = vadd.f32 0.0, %v6547
        %6549 = vmatprep.mubr.bf16.mxu0 0
        %6550 = vmatmul.mubr.bf16.gmra.mrb[0].mxu0 %v6400
        %v6551 = vpop.f32.mrb[0].mxu0
        %v6552 = vadd.f32 0.0, %v6551
        %v6553 = vpop.f32.mrb[0].mxu0
        %v6554 = vadd.f32 0.0, %v6553
        %v6555 = vpop.f32.mrb[0].mxu0
        %v6556 = vadd.f32 0.0, %v6555
        %v6557 = vpop.f32.mrb[0].mxu0
        %v6558 = vadd.f32 0.0, %v6557
        %6559 = vmatprep.mubr.bf16.mxu0 0
        %6560 = vmatmul.mubr.bf16.gmra.mrb[0].mxu0 %v6403
        %v6561 = vpop.f32.mrb[0].mxu0
        %v6562 = vadd.f32 0.0, %v6561
        %v6563 = vpop.f32.mrb[0].mxu0
        %v6564 = vadd.f32 0.0, %v6563
        %v6565 = vpop.f32.mrb[0].mxu0
        %v6566 = vadd.f32 0.0, %v6565
        %v6567 = vpop.f32.mrb[0].mxu0
        %v6568 = vadd.f32 0.0, %v6567
        %6569 = vmatprep.mubr.bf16.mxu0 0
        %6570 = vmatmul.mubr.bf16.gmra.mrb[0].mxu0 %v6406
        %v6571 = vpop.f32.mrb[0].mxu0
        %v6572 = vadd.f32 0.0, %v6571
        %v6573 = vpop.f32.mrb[0].mxu0
        %v6574 = vadd.f32 0.0, %v6573
        %v6575 = vpop.f32.mrb[0].mxu0
        %v6576 = vadd.f32 0.0, %v6575
        %v6577 = vpop.f32.mrb[0].mxu0
        %v6578 = vadd.f32 0.0, %v6577
        %6579 = vmatprep.mubr.bf16.mxu0 0
        %6580 = vmatmul.mubr.bf16.gmra.mrb[0].mxu0 %v6409
        %v6581 = vpop.f32.mrb[0].mxu0
        %v6582 = vadd.f32 0.0, %v6581
        %v6583 = vpop.f32.mrb[0].mxu0
        %v6584 = vadd.f32 0.0, %v6583
        %v6585 = vpop.f32.mrb[0].mxu0
        %v6586 = vadd.f32 0.0, %v6585
        %v6587 = vpop.f32.mrb[0].mxu0
        %v6588 = vadd.f32 0.0, %v6587
        %6589 = vmatprep.mubr.bf16.mxu0 0
        %6590 = vmatmul.mubr.bf16.gmra.mrb[0].mxu0 %v6412
        %v6591 = vpop.f32.mrb[0].mxu0
        %v6592 = vadd.f32 0.0, %v6591
        %v6593 = vpop.f32.mrb[0].mxu0
        %v6594 = vadd.f32 0.0, %v6593
        %v6595 = vpop.f32.mrb[0].mxu0
        %v6596 = vadd.f32 0.0, %v6595
        %v6597 = vpop.f32.mrb[0].mxu0
        %v6598 = vadd.f32 0.0, %v6597
        %6599 = vmatprep.mubr.bf16.mxu0 0
        %6600 = vmatmul.mubr.bf16.gmra.mrb[0].mxu0 %v6415
        %v6601 = vpop.f32.mrb[0].mxu0
        %v6602 = vadd.f32 0.0, %v6601
        %v6603 = vpop.f32.mrb[0].mxu0
        %v6604 = vadd.f32 0.0, %v6603
        %v6605 = vpop.f32.mrb[0].mxu0
        %v6606 = vadd.f32 0.0, %v6605
        %v6607 = vpop.f32.mrb[0].mxu0
        %v6608 = vadd.f32 0.0, %v6607
        %6609 = vdwg.mxu0
        %v6610 = vmax.f32 %v6452, %v6462
        %v6611 = vmax.f32 %v6456, %v6466
        %v6612 = vmax.f32 %v6610, %v6472
        %v6613 = vmax.f32 %v6611, %v6476
        %v6614 = vmax.f32 %v6612, %v6482
        %v6615 = vmax.f32 %v6613, %v6486
        %v6616 = vmax.f32 %v6614, %v6492
        %v6617 = vmax.f32 %v6615, %v6496
        %v6618 = vmax.f32 %v6616, %v6502
        %v6619 = vmax.f32 %v6617, %v6506
        %v6620 = vmax.f32 %v6618, %v6512
        %v6621 = vmax.f32 %v6619, %v6516
        %v6622 = vmax.f32 %v6620, %v6522
        %v6623 = vmax.f32 %v6621, %v6526
        %v6624 = vmax.f32 %v6622, %v6532
        %v6625 = vmax.f32 %v6623, %v6536
        %v6626 = vmax.f32 %v6624, %v6542
        %v6627 = vmax.f32 %v6625, %v6546
        %v6628 = vmax.f32 %v6626, %v6552
        %v6629 = vmax.f32 %v6627, %v6556
        %v6630 = vmax.f32 %v6628, %v6562
        %v6631 = vmax.f32 %v6629, %v6566
        %v6632 = vmax.f32 %v6630, %v6572
        %v6633 = vmax.f32 %v6631, %v6576
        %v6634 = vmax.f32 %v6632, %v6582
        %v6635 = vmax.f32 %v6633, %v6586
        %v6636 = vmax.f32 %v6634, %v6592
        %v6637 = vmax.f32 %v6635, %v6596
        %v6638 = vmax.f32 %v6636, %v6602
        %v6639 = vmax.f32 %v6637, %v6606
        %v6640 = vmax.f32 %v6638, %v6639
        %v6641 = vrot.slane %v6640, 4
        %v6642 = vmax.f32 %v6640, %v6641
        %v6643 = vrot.slane %v6642, 2
        %v6644 = vmax.f32 %v6642, %v6643
        %v6645 = vrot.slane %v6644, 1
        %v6646 = vmax.f32 %v6644, %v6645
        %v6647 = vmax.f32 %v6454, %v6464
        %v6648 = vmax.f32 %v6458, %v6468
        %v6649 = vmax.f32 %v6647, %v6474
        %v6650 = vmax.f32 %v6648, %v6478
        %v6651 = vmax.f32 %v6649, %v6484
        %v6652 = vmax.f32 %v6650, %v6488
        %v6653 = vmax.f32 %v6651, %v6494
        %v6654 = vmax.f32 %v6652, %v6498
        %v6655 = vmax.f32 %v6653, %v6504
        %v6656 = vmax.f32 %v6654, %v6508
        %v6657 = vmax.f32 %v6655, %v6514
        %v6658 = vmax.f32 %v6656, %v6518
        %v6659 = vmax.f32 %v6657, %v6524
        %v6660 = vmax.f32 %v6658, %v6528
        %v6661 = vmax.f32 %v6659, %v6534
        %v6662 = vmax.f32 %v6660, %v6538
        %v6663 = vmax.f32 %v6661, %v6544
        %v6664 = vmax.f32 %v6662, %v6548
        %v6665 = vmax.f32 %v6663, %v6554
        %v6666 = vmax.f32 %v6664, %v6558
        %v6667 = vmax.f32 %v6665, %v6564
        %v6668 = vmax.f32 %v6666, %v6568
        %v6669 = vmax.f32 %v6667, %v6574
        %v6670 = vmax.f32 %v6668, %v6578
        %v6671 = vmax.f32 %v6669, %v6584
        %v6672 = vmax.f32 %v6670, %v6588
        %v6673 = vmax.f32 %v6671, %v6594
        %v6674 = vmax.f32 %v6672, %v6598
        %v6675 = vmax.f32 %v6673, %v6604
        %v6676 = vmax.f32 %v6674, %v6608
        %v6677 = vmax.f32 %v6675, %v6676
        %v6678 = vrot.slane %v6677, 4
        %v6679 = vmax.f32 %v6677, %v6678
        %v6680 = vrot.slane %v6679, 2
        %v6681 = vmax.f32 %v6679, %v6680
        %v6682 = vrot.slane %v6681, 1
        %v6683 = vmax.f32 %v6681, %v6682
        %v6684 = vsub.f32 %v6452, %v6646
        %v6685 = vsub.f32 %v6454, %v6683
        %v6686 = vsub.f32 %v6456, %v6646
        %v6687 = vsub.f32 %v6458, %v6683
        %v6688 = vsub.f32 %v6462, %v6646
        %v6689 = vsub.f32 %v6464, %v6683
        %v6690 = vsub.f32 %v6466, %v6646
        %v6691 = vsub.f32 %v6468, %v6683
        %v6692 = vsub.f32 %v6472, %v6646
        %v6693 = vsub.f32 %v6474, %v6683
        %v6694 = vsub.f32 %v6476, %v6646
        %v6695 = vsub.f32 %v6478, %v6683
        %v6696 = vsub.f32 %v6482, %v6646
        %v6697 = vsub.f32 %v6484, %v6683
        %v6698 = vsub.f32 %v6486, %v6646
        %v6699 = vsub.f32 %v6488, %v6683
        %v6700 = vsub.f32 %v6492, %v6646
        %v6701 = vsub.f32 %v6494, %v6683
        %v6702 = vsub.f32 %v6496, %v6646
        %v6703 = vsub.f32 %v6498, %v6683
        %v6704 = vsub.f32 %v6502, %v6646
        %v6705 = vsub.f32 %v6504, %v6683
        %v6706 = vsub.f32 %v6506, %v6646
        %v6707 = vsub.f32 %v6508, %v6683
        %v6708 = vsub.f32 %v6512, %v6646
        %v6709 = vsub.f32 %v6514, %v6683
        %v6710 = vsub.f32 %v6516, %v6646
        %v6711 = vsub.f32 %v6518, %v6683
        %v6712 = vsub.f32 %v6522, %v6646
        %v6713 = vsub.f32 %v6524, %v6683
        %v6714 = vsub.f32 %v6526, %v6646
        %v6715 = vsub.f32 %v6528, %v6683
        %v6716 = vsub.f32 %v6532, %v6646
        %v6717 = vsub.f32 %v6534, %v6683
        %v6718 = vsub.f32 %v6536, %v6646
        %v6719 = vsub.f32 %v6538, %v6683
        %v6720 = vsub.f32 %v6542, %v6646
        %v6721 = vsub.f32 %v6544, %v6683
        %v6722 = vsub.f32 %v6546, %v6646
        %v6723 = vsub.f32 %v6548, %v6683
        %v6724 = vsub.f32 %v6552, %v6646
        %v6725 = vsub.f32 %v6554, %v6683
        %v6726 = vsub.f32 %v6556, %v6646
        %v6727 = vsub.f32 %v6558, %v6683
        %v6728 = vsub.f32 %v6562, %v6646
        %v6729 = vsub.f32 %v6564, %v6683
        %v6730 = vsub.f32 %v6566, %v6646
        %v6731 = vsub.f32 %v6568, %v6683
        %v6732 = vsub.f32 %v6572, %v6646
        %v6733 = vsub.f32 %v6574, %v6683
        %v6734 = vsub.f32 %v6576, %v6646
        %v6735 = vsub.f32 %v6578, %v6683
        %v6736 = vsub.f32 %v6582, %v6646
        %v6737 = vsub.f32 %v6584, %v6683
        %v6738 = vsub.f32 %v6586, %v6646
        %v6739 = vsub.f32 %v6588, %v6683
        %v6740 = vsub.f32 %v6592, %v6646
        %v6741 = vsub.f32 %v6594, %v6683
        %v6742 = vsub.f32 %v6596, %v6646
        %v6743 = vsub.f32 %v6598, %v6683
        %v6744 = vsub.f32 %v6602, %v6646
        %v6745 = vsub.f32 %v6604, %v6683
        %v6746 = vsub.f32 %v6606, %v6646
        %v6747 = vsub.f32 %v6608, %v6683
        %v6748 = vmul.f32 %v6684, 1.442695
        %v6749 = vpow.pop %v6748
        %v6750 = vmul.f32 %v6685, 1.442695
        %v6751 = vpow.pop %v6750
        %v6752 = vmul.f32 %v6686, 1.442695
        %v6753 = vpow.pop %v6752
        %v6754 = vmul.f32 %v6687, 1.442695
        %v6755 = vpow.pop %v6754
        %v6756 = vmul.f32 %v6688, 1.442695
        %v6757 = vpow.pop %v6756
        %v6758 = vmul.f32 %v6689, 1.442695
        %v6759 = vpow.pop %v6758
        %v6760 = vmul.f32 %v6690, 1.442695
        %v6761 = vpow.pop %v6760
        %v6762 = vmul.f32 %v6691, 1.442695
        %v6763 = vpow.pop %v6762
        %v6764 = vmul.f32 %v6692, 1.442695
        %v6765 = vpow.pop %v6764
        %v6766 = vmul.f32 %v6693, 1.442695
        %v6767 = vpow.pop %v6766
        %v6768 = vmul.f32 %v6694, 1.442695
        %v6769 = vpow.pop %v6768
        %v6770 = vmul.f32 %v6695, 1.442695
        %v6771 = vpow.pop %v6770
        %v6772 = vmul.f32 %v6696, 1.442695
        %v6773 = vpow.pop %v6772
        %v6774 = vmul.f32 %v6697, 1.442695
        %v6775 = vpow.pop %v6774
        %v6776 = vmul.f32 %v6698, 1.442695
        %v6777 = vpow.pop %v6776
        %v6778 = vmul.f32 %v6699, 1.442695
        %v6779 = vpow.pop %v6778
        %v6780 = vmul.f32 %v6700, 1.442695
        %v6781 = vpow.pop %v6780
        %v6782 = vmul.f32 %v6701, 1.442695
        %v6783 = vpow.pop %v6782
        %v6784 = vmul.f32 %v6702, 1.442695
        %v6785 = vpow.pop %v6784
        %v6786 = vmul.f32 %v6703, 1.442695
        %v6787 = vpow.pop %v6786
        %v6788 = vmul.f32 %v6704, 1.442695
        %v6789 = vpow.pop %v6788
        %v6790 = vmul.f32 %v6705, 1.442695
        %v6791 = vpow.pop %v6790
        %v6792 = vmul.f32 %v6706, 1.442695
        %v6793 = vpow.pop %v6792
        %v6794 = vmul.f32 %v6707, 1.442695
        %v6795 = vpow.pop %v6794
        %v6796 = vmul.f32 %v6708, 1.442695
        %v6797 = vpow.pop %v6796
        %v6798 = vmul.f32 %v6709, 1.442695
        %v6799 = vpow.pop %v6798
        %v6800 = vmul.f32 %v6710, 1.442695
        %v6801 = vpow.pop %v6800
        %v6802 = vmul.f32 %v6711, 1.442695
        %v6803 = vpow.pop %v6802
        %v6804 = vmul.f32 %v6712, 1.442695
        %v6805 = vpow.pop %v6804
        %v6806 = vmul.f32 %v6713, 1.442695
        %v6807 = vpow.pop %v6806
        %v6808 = vmul.f32 %v6714, 1.442695
        %v6809 = vpow.pop %v6808
        %v6810 = vmul.f32 %v6715, 1.442695
        %v6811 = vpow.pop %v6810
        %v6812 = vmul.f32 %v6716, 1.442695
        %v6813 = vpow.pop %v6812
        %v6814 = vmul.f32 %v6717, 1.442695
        %v6815 = vpow.pop %v6814
        %v6816 = vmul.f32 %v6718, 1.442695
        %v6817 = vpow.pop %v6816
        %v6818 = vmul.f32 %v6719, 1.442695
        %v6819 = vpow.pop %v6818
        %v6820 = vmul.f32 %v6720, 1.442695
        %v6821 = vpow.pop %v6820
        %v6822 = vmul.f32 %v6721, 1.442695
        %v6823 = vpow.pop %v6822
        %v6824 = vmul.f32 %v6722, 1.442695
        %v6825 = vpow.pop %v6824
        %v6826 = vmul.f32 %v6723, 1.442695
        %v6827 = vpow.pop %v6826
        %v6828 = vmul.f32 %v6724, 1.442695
        %v6829 = vpow.pop %v6828
        %v6830 = vmul.f32 %v6725, 1.442695
        %v6831 = vpow.pop %v6830
        %v6832 = vmul.f32 %v6726, 1.442695
        %v6833 = vpow.pop %v6832
        %v6834 = vmul.f32 %v6727, 1.442695
        %v6835 = vpow.pop %v6834
        %v6836 = vmul.f32 %v6728, 1.442695
        %v6837 = vpow.pop %v6836
        %v6838 = vmul.f32 %v6729, 1.442695
        %v6839 = vpow.pop %v6838
        %v6840 = vmul.f32 %v6730, 1.442695
        %v6841 = vpow.pop %v6840
        %v6842 = vmul.f32 %v6731, 1.442695
        %v6843 = vpow.pop %v6842
        %v6844 = vmul.f32 %v6732, 1.442695
        %v6845 = vpow.pop %v6844
        %v6846 = vmul.f32 %v6733, 1.442695
        %v6847 = vpow.pop %v6846
        %v6848 = vmul.f32 %v6734, 1.442695
        %v6849 = vpow.pop %v6848
        %v6850 = vmul.f32 %v6735, 1.442695
        %v6851 = vpow.pop %v6850
        %v6852 = vmul.f32 %v6736, 1.442695
        %v6853 = vpow.pop %v6852
        %v6854 = vmul.f32 %v6737, 1.442695
        %v6855 = vpow.pop %v6854
        %v6856 = vmul.f32 %v6738, 1.442695
        %v6857 = vpow.pop %v6856
        %v6858 = vmul.f32 %v6739, 1.442695
        %v6859 = vpow.pop %v6858
        %v6860 = vmul.f32 %v6740, 1.442695
        %v6861 = vpow.pop %v6860
        %v6862 = vmul.f32 %v6741, 1.442695
        %v6863 = vpow.pop %v6862
        %v6864 = vmul.f32 %v6742, 1.442695
        %v6865 = vpow.pop %v6864
        %v6866 = vmul.f32 %v6743, 1.442695
        %v6867 = vpow.pop %v6866
        %v6868 = vmul.f32 %v6744, 1.442695
        %v6869 = vpow.pop %v6868
        %v6870 = vmul.f32 %v6745, 1.442695
        %v6871 = vpow.pop %v6870
        %v6872 = vmul.f32 %v6746, 1.442695
        %v6873 = vpow.pop %v6872
        %v6874 = vmul.f32 %v6747, 1.442695
        %v6875 = vpow.pop %v6874
        %v6876 = vadd.f32 %v6749, %v6753
        %v6877 = vadd.f32 %v6876, %v6757
        %v6878 = vadd.f32 %v6877, %v6761
        %v6879 = vadd.f32 %v6878, %v6765
        %v6880 = vadd.f32 %v6879, %v6769
        %v6881 = vadd.f32 %v6880, %v6773
        %v6882 = vadd.f32 %v6881, %v6777
        %v6883 = vadd.f32 %v6882, %v6781
        %v6884 = vadd.f32 %v6883, %v6785
        %v6885 = vadd.f32 %v6884, %v6789
        %v6886 = vadd.f32 %v6885, %v6793
        %v6887 = vadd.f32 %v6886, %v6797
        %v6888 = vadd.f32 %v6887, %v6801
        %v6889 = vadd.f32 %v6888, %v6805
        %v6890 = vadd.f32 %v6889, %v6809
        %v6891 = vadd.f32 %v6890, %v6813
        %v6892 = vadd.f32 %v6891, %v6817
        %v6893 = vadd.f32 %v6892, %v6821
        %v6894 = vadd.f32 %v6893, %v6825
        %v6895 = vadd.f32 %v6894, %v6829
        %v6896 = vadd.f32 %v6895, %v6833
        %v6897 = vadd.f32 %v6896, %v6837
        %v6898 = vadd.f32 %v6897, %v6841
        %v6899 = vadd.f32 %v6898, %v6845
        %v6900 = vadd.f32 %v6899, %v6849
        %v6901 = vadd.f32 %v6900, %v6853
        %v6902 = vadd.f32 %v6901, %v6857
        %v6903 = vadd.f32 %v6902, %v6861
        %v6904 = vadd.f32 %v6903, %v6865
        %v6905 = vadd.f32 %v6904, %v6869
        %v6906 = vadd.f32 %v6905, %v6873
        %v6907 = vrot.slane %v6906, 4
        %v6908 = vadd.f32 %v6906, %v6907
        %v6909 = vrot.slane %v6908, 2
        %v6910 = vadd.f32 %v6908, %v6909
        %v6911 = vrot.slane %v6910, 1
        %v6912 = vadd.f32 %v6910, %v6911
        %v6913 = vadd.f32 %v6751, %v6755
        %v6914 = vadd.f32 %v6913, %v6759
        %v6915 = vadd.f32 %v6914, %v6763
        %v6916 = vadd.f32 %v6915, %v6767
        %v6917 = vadd.f32 %v6916, %v6771
        %v6918 = vadd.f32 %v6917, %v6775
        %v6919 = vadd.f32 %v6918, %v6779
        %v6920 = vadd.f32 %v6919, %v6783
        %v6921 = vadd.f32 %v6920, %v6787
        %v6922 = vadd.f32 %v6921, %v6791
        %v6923 = vadd.f32 %v6922, %v6795
        %v6924 = vadd.f32 %v6923, %v6799
        %v6925 = vadd.f32 %v6924, %v6803
        %v6926 = vadd.f32 %v6925, %v6807
        %v6927 = vadd.f32 %v6926, %v6811
        %v6928 = vadd.f32 %v6927, %v6815
        %v6929 = vadd.f32 %v6928, %v6819
        %v6930 = vadd.f32 %v6929, %v6823
        %v6931 = vadd.f32 %v6930, %v6827
        %v6932 = vadd.f32 %v6931, %v6831
        %v6933 = vadd.f32 %v6932, %v6835
        %v6934 = vadd.f32 %v6933, %v6839
        %v6935 = vadd.f32 %v6934, %v6843
        %v6936 = vadd.f32 %v6935, %v6847
        %v6937 = vadd.f32 %v6936, %v6851
        %v6938 = vadd.f32 %v6937, %v6855
        %v6939 = vadd.f32 %v6938, %v6859
        %v6940 = vadd.f32 %v6939, %v6863
        %v6941 = vadd.f32 %v6940, %v6867
        %v6942 = vadd.f32 %v6941, %v6871
        %v6943 = vadd.f32 %v6942, %v6875
        %v6944 = vrot.slane %v6943, 4
        %v6945 = vadd.f32 %v6943, %v6944
        %v6946 = vrot.slane %v6945, 2
        %v6947 = vadd.f32 %v6945, %v6946
        %v6948 = vrot.slane %v6947, 1
        %v6949 = vadd.f32 %v6947, %v6948
        %v6950 = vrcp.pop %v6912
        %v6951 = vrcp.pop %v6949
        %v6952 = vmul.f32 %v6749, %v6950
        %v6953 = vmul.f32 %v6751, %v6951
        %v6954 = vmul.f32 %v6753, %v6950
        %v6955 = vmul.f32 %v6755, %v6951
        %v6956 = vmul.f32 %v6757, %v6950
        %v6957 = vmul.f32 %v6759, %v6951
        %v6958 = vmul.f32 %v6761, %v6950
        %v6959 = vmul.f32 %v6763, %v6951
        %v6960 = vmul.f32 %v6765, %v6950
        %v6961 = vmul.f32 %v6767, %v6951
        %v6962 = vmul.f32 %v6769, %v6950
        %v6963 = vmul.f32 %v6771, %v6951
        %v6964 = vmul.f32 %v6773, %v6950
        %v6965 = vmul.f32 %v6775, %v6951
        %v6966 = vmul.f32 %v6777, %v6950
        %v6967 = vmul.f32 %v6779, %v6951
        %v6968 = vmul.f32 %v6781, %v6950
        %v6969 = vmul.f32 %v6783, %v6951
        %v6970 = vmul.f32 %v6785, %v6950
        %v6971 = vmul.f32 %v6787, %v6951
        %v6972 = vmul.f32 %v6789, %v6950
        %v6973 = vmul.f32 %v6791, %v6951
        %v6974 = vmul.f32 %v6793, %v6950
        %v6975 = vmul.f32 %v6795, %v6951
        %v6976 = vmul.f32 %v6797, %v6950
        %v6977 = vmul.f32 %v6799, %v6951
        %v6978 = vmul.f32 %v6801, %v6950
        %v6979 = vmul.f32 %v6803, %v6951
        %v6980 = vmul.f32 %v6805, %v6950
        %v6981 = vmul.f32 %v6807, %v6951
        %v6982 = vmul.f32 %v6809, %v6950
        %v6983 = vmul.f32 %v6811, %v6951
        %v6984 = vmul.f32 %v6813, %v6950
        %v6985 = vmul.f32 %v6815, %v6951
        %v6986 = vmul.f32 %v6817, %v6950
        %v6987 = vmul.f32 %v6819, %v6951
        %v6988 = vmul.f32 %v6821, %v6950
        %v6989 = vmul.f32 %v6823, %v6951
        %v6990 = vmul.f32 %v6825, %v6950
        %v6991 = vmul.f32 %v6827, %v6951
        %v6992 = vmul.f32 %v6829, %v6950
        %v6993 = vmul.f32 %v6831, %v6951
        %v6994 = vmul.f32 %v6833, %v6950
        %v6995 = vmul.f32 %v6835, %v6951
        %v6996 = vmul.f32 %v6837, %v6950
        %v6997 = vmul.f32 %v6839, %v6951
        %v6998 = vmul.f32 %v6841, %v6950
        %v6999 = vmul.f32 %v6843, %v6951
        %v7000 = vmul.f32 %v6845, %v6950
        %v7001 = vmul.f32 %v6847, %v6951
        %v7002 = vmul.f32 %v6849, %v6950
        %v7003 = vmul.f32 %v6851, %v6951
        %v7004 = vmul.f32 %v6853, %v6950
        %v7005 = vmul.f32 %v6855, %v6951
        %v7006 = vmul.f32 %v6857, %v6950
        %v7007 = vmul.f32 %v6859, %v6951
        %v7008 = vmul.f32 %v6861, %v6950
        %v7009 = vmul.f32 %v6863, %v6951
        %v7010 = vmul.f32 %v6865, %v6950
        %v7011 = vmul.f32 %v6867, %v6951
        %v7012 = vmul.f32 %v6869, %v6950
        %v7013 = vmul.f32 %v6871, %v6951
        %v7014 = vmul.f32 %v6873, %v6950
        %v7015 = vmul.f32 %v6875, %v6951
        %v7016 = vpack.c.bf16 %v6954, %v6952
        %v7017 = vpack.c.bf16 %v6955, %v6953
        %v7018 = vpack.c.bf16 %v6958, %v6956
        %v7019 = vpack.c.bf16 %v6959, %v6957
        %v7020 = vpack.c.bf16 %v6962, %v6960
        %v7021 = vpack.c.bf16 %v6963, %v6961
        %v7022 = vpack.c.bf16 %v6966, %v6964
        %v7023 = vpack.c.bf16 %v6967, %v6965
        %v7024 = vpack.c.bf16 %v6970, %v6968
        %v7025 = vpack.c.bf16 %v6971, %v6969
        %v7026 = vpack.c.bf16 %v6974, %v6972
        %v7027 = vpack.c.bf16 %v6975, %v6973
        %v7028 = vpack.c.bf16 %v6978, %v6976
        %v7029 = vpack.c.bf16 %v6979, %v6977
        %v7030 = vpack.c.bf16 %v6982, %v6980
        %v7031 = vpack.c.bf16 %v6983, %v6981
        %v7032 = vpack.c.bf16 %v6986, %v6984
        %v7033 = vpack.c.bf16 %v6987, %v6985
        %v7034 = vpack.c.bf16 %v6990, %v6988
        %v7035 = vpack.c.bf16 %v6991, %v6989
        %v7036 = vpack.c.bf16 %v6994, %v6992
        %v7037 = vpack.c.bf16 %v6995, %v6993
        %v7038 = vpack.c.bf16 %v6998, %v6996
        %v7039 = vpack.c.bf16 %v6999, %v6997
        %v7040 = vpack.c.bf16 %v7002, %v7000
        %v7041 = vpack.c.bf16 %v7003, %v7001
        %v7042 = vpack.c.bf16 %v7006, %v7004
        %v7043 = vpack.c.bf16 %v7007, %v7005
        %v7044 = vpack.c.bf16 %v7010, %v7008
        %v7045 = vpack.c.bf16 %v7011, %v7009
        %v7046 = vpack.c.bf16 %v7014, %v7012
        %v7047 = vpack.c.bf16 %v7015, %v7013
        %7048 = vmatprep.subr.bf16.mxu0 %v7017
        %7049 = vmatpush1.bf16.msra.mxu0 %v7016
        %7050 = vmatprep.subr.bf16.mxu0 %v7019
        %7051 = vmatpush1.bf16.msra.mxu0 %v7018
        %7052 = vmatprep.subr.bf16.mxu0 %v7021
        %7053 = vmatpush1.bf16.msra.mxu0 %v7020
        %7054 = vmatprep.subr.bf16.mxu0 %v7023
        %7055 = vmatpush1.bf16.msra.mxu0 %v7022
        %7056 = vmatprep.subr.bf16.mxu0 %v7025
        %7057 = vmatpush1.bf16.msra.mxu0 %v7024
        %7058 = vmatprep.subr.bf16.mxu0 %v7027
        %7059 = vmatpush1.bf16.msra.mxu0 %v7026
        %7060 = vmatprep.subr.bf16.mxu0 %v7029
        %7061 = vmatpush1.bf16.msra.mxu0 %v7028
        %7062 = vmatprep.subr.bf16.mxu0 %v7031
        %7063 = vmatpush1.bf16.msra.mxu0 %v7030
        %7064 = vmatprep.subr.bf16.mxu0 %v7033
        %7065 = vmatpush1.bf16.msra.mxu0 %v7032
        %7066 = vmatprep.subr.bf16.mxu0 %v7035
        %7067 = vmatpush1.bf16.msra.mxu0 %v7034
        %7068 = vmatprep.subr.bf16.mxu0 %v7037
        %7069 = vmatpush1.bf16.msra.mxu0 %v7036
        %7070 = vmatprep.subr.bf16.mxu0 %v7039
        %7071 = vmatpush1.bf16.msra.mxu0 %v7038
        %7072 = vmatprep.subr.bf16.mxu0 %v7041
        %7073 = vmatpush1.bf16.msra.mxu0 %v7040
        %7074 = vmatprep.subr.bf16.mxu0 %v7043
        %7075 = vmatpush1.bf16.msra.mxu0 %v7042
        %7076 = vmatprep.subr.bf16.mxu0 %v7045
        %7077 = vmatpush1.bf16.msra.mxu0 %v7044
        %7078 = vmatprep.subr.bf16.mxu0 %v7047
        %7079 = vmatpush1.bf16.msra.mxu0 %v7046
        %7080 = vmatprep.mubr.bf16.mxu0 %v6334
        %7081 = vmatmul.mubr.bf16.gmra.mrb[0].mxu0 %v6333
        %v7082 = vpop.f32.mrb[0].mxu0
        %v7083 = vadd.f32 0.0, %v7082
        %v7084 = vpop.f32.mrb[0].mxu0
        %v7085 = vadd.f32 0.0, %v7084
        %v7086 = vpop.f32.mrb[0].mxu0
        %v7087 = vadd.f32 0.0, %v7086
        %v7088 = vpop.f32.mrb[0].mxu0
        %v7089 = vadd.f32 0.0, %v7088
        %7090 = vmatprep.mubr.bf16.mxu0 %v6336
        %7091 = vmatmul.mubr.bf16.gmra.mrb[0].mxu0 %v6335
        %v7092 = vpop.f32.mrb[0].mxu0
        %v7093 = vadd.f32 0.0, %v7092
        %v7094 = vpop.f32.mrb[0].mxu0
        %v7095 = vadd.f32 0.0, %v7094
        %v7096 = vpop.f32.mrb[0].mxu0
        %v7097 = vadd.f32 0.0, %v7096
        %v7098 = vpop.f32.mrb[0].mxu0
        %v7099 = vadd.f32 0.0, %v7098
        %7100 = vdwg.mxu0
        %7101 = vst [vmem:[#allocation3 + $0x180] sm:$0xff] %v7083
        %7102 = vst [vmem:[#allocation3 + $0x188] sm:$0xff] %v7085
        %7103 = vst [vmem:[#allocation3 + $0x1a0] sm:$0xff] %v7087
        %7104 = vst [vmem:[#allocation3 + $0x1a8] sm:$0xff] %v7089
        %7105 = vst [vmem:[#allocation3 + $0x1c0] sm:$0xff] %v7093
        %7106 = vst [vmem:[#allocation3 + $0x1c8] sm:$0xff] %v7095
        %7107 = vst [vmem:[#allocation3 + $0x1e0] sm:$0xff] %v7097
        %7108 = vst [vmem:[#allocation3 + $0x1e8] sm:$0xff] %v7099
        %v7109 = vld [vmem:[#allocation2 + $0xd0] sm:$0xff]
        %v7110 = vld [vmem:[#allocation2 + $0xd8] sm:$0xff]
        %v7111 = vld [vmem:[#allocation2 + $0xf0] sm:$0xff]
        %v7112 = vld [vmem:[#allocation2 + $0xf8] sm:$0xff]
        %v7113 = vld [vmem:[#allocation2 + $0x1d0] sm:$0xff]
        %v7114 = vld [vmem:[#allocation2 + $0x1d8] sm:$0xff]
        %v7115 = vld [vmem:[#allocation2 + $0x1f0] sm:$0xff]
        %v7116 = vld [vmem:[#allocation2 + $0x1f8] sm:$0xff]
        %v7117 = vld [vmem:[#allocation2 + $0x2d0] sm:$0xff]
        %v7118 = vld [vmem:[#allocation2 + $0x2d8] sm:$0xff]
        %v7119 = vld [vmem:[#allocation2 + $0x2f0] sm:$0xff]
        %v7120 = vld [vmem:[#allocation2 + $0x2f8] sm:$0xff]
        %7121 = vxpose.xlu0.c.b16.start [1/8] %v7113, 128
        %7122 = vxpose.xlu0.c.b16.cont [2/8] %v7115, 128
        %7123 = vxpose.xlu0.c.b16.cont [3/8] 0, 128
        %7124 = vxpose.xlu0.c.b16.cont [4/8] 0, 128
        %7125 = vxpose.xlu0.c.b16.cont [5/8] 0, 128
        %7126 = vxpose.xlu0.c.b16.cont [6/8] 0, 128
        %7127 = vxpose.xlu0.c.b16.cont [7/8] 0, 128
        %7128 = vxpose.xlu0.c.b16.end [8/8] 0, 128
        %v7129 = vpop.trf.xlu0
        %v7130 = vpop.trf.xlu0
        %v7131 = vpop.trf.xlu0
        %v7132 = vpop.trf.xlu0
        %v7133 = vpop.trf.xlu0
        %v7134 = vpop.trf.xlu0
        %v7135 = vpop.trf.xlu0
        %v7136 = vpop.trf.xlu0
        %7137 = vxpose.xlu0.c.b16.start [1/8] %v7114, 128
        %7138 = vxpose.xlu0.c.b16.cont [2/8] %v7116, 128
        %7139 = vxpose.xlu0.c.b16.cont [3/8] 0, 128
        %7140 = vxpose.xlu0.c.b16.cont [4/8] 0, 128
        %7141 = vxpose.xlu0.c.b16.cont [5/8] 0, 128
        %7142 = vxpose.xlu0.c.b16.cont [6/8] 0, 128
        %7143 = vxpose.xlu0.c.b16.cont [7/8] 0, 128
        %7144 = vxpose.xlu0.c.b16.end [8/8] 0, 128
        %v7145 = vpop.trf.xlu0
        %v7146 = vpop.trf.xlu0
        %v7147 = vpop.trf.xlu0
        %v7148 = vpop.trf.xlu0
        %v7149 = vpop.trf.xlu0
        %v7150 = vpop.trf.xlu0
        %v7151 = vpop.trf.xlu0
        %v7152 = vpop.trf.xlu0
        %v7154 = vsel %vm1664, %v7129, 0
        %v7157 = vsel %vm1664, %v7130, 0
        %v7160 = vsel %vm1664, %v7131, 0
        %v7163 = vsel %vm1664, %v7132, 0
        %v7166 = vsel %vm1664, %v7133, 0
        %v7169 = vsel %vm1664, %v7134, 0
        %v7172 = vsel %vm1664, %v7135, 0
        %v7175 = vsel %vm1664, %v7136, 0
        %v7178 = vsel %vm1664, %v7145, 0
        %v7181 = vsel %vm1664, %v7146, 0
        %v7184 = vsel %vm1664, %v7147, 0
        %v7187 = vsel %vm1664, %v7148, 0
        %v7190 = vsel %vm1664, %v7149, 0
        %v7193 = vsel %vm1664, %v7150, 0
        %v7196 = vsel %vm1664, %v7151, 0
        %v7199 = vsel %vm1664, %v7152, 0
        %7201 = vmatprep.subr.bf16.mxu0 %v7110
        %7202 = vmatpush1.bf16.msra.mxu0 %v7109
        %7203 = vmatprep.subr.bf16.mxu0 %v7112
        %7204 = vmatpush1.bf16.msra.mxu0 %v7111
        %7205 = vmatprep.subr.bf16.mxu0 0
        %7206 = vmatpush1.bf16.msra.mxu0 0
        %7207 = vmatprep.subr.bf16.mxu0 0
        %7208 = vmatpush1.bf16.msra.mxu0 0
        %7209 = vmatprep.subr.bf16.mxu0 0
        %7210 = vmatpush1.bf16.msra.mxu0 0
        %7211 = vmatprep.subr.bf16.mxu0 0
        %7212 = vmatpush1.bf16.msra.mxu0 0
        %7213 = vmatprep.subr.bf16.mxu0 0
        %7214 = vmatpush1.bf16.msra.mxu0 0
        %7215 = vmatprep.subr.bf16.mxu0 0
        %7216 = vmatpush1.bf16.msra.mxu0 0
        %7217 = vmatprep.subr.bf16.mxu0 0
        %7218 = vmatpush1.bf16.msra.mxu0 0
        %7219 = vmatprep.subr.bf16.mxu0 0
        %7220 = vmatpush1.bf16.msra.mxu0 0
        %7221 = vmatprep.subr.bf16.mxu0 0
        %7222 = vmatpush1.bf16.msra.mxu0 0
        %7223 = vmatprep.subr.bf16.mxu0 0
        %7224 = vmatpush1.bf16.msra.mxu0 0
        %7225 = vmatprep.subr.bf16.mxu0 0
        %7226 = vmatpush1.bf16.msra.mxu0 0
        %7227 = vmatprep.subr.bf16.mxu0 0
        %7228 = vmatpush1.bf16.msra.mxu0 0
        %7229 = vmatprep.subr.bf16.mxu0 0
        %7230 = vmatpush1.bf16.msra.mxu0 0
        %7231 = vmatprep.subr.bf16.mxu0 0
        %7232 = vmatpush1.bf16.msra.mxu0 0
        %7233 = vmatprep.mubr.bf16.mxu0 0
        %7234 = vmatmul.mubr.bf16.gmra.mrb[0].mxu0 %v7154
        %v7235 = vpop.f32.mrb[0].mxu0
        %v7236 = vadd.f32 0.0, %v7235
        %v7237 = vpop.f32.mrb[0].mxu0
        %v7238 = vadd.f32 0.0, %v7237
        %v7239 = vpop.f32.mrb[0].mxu0
        %v7240 = vadd.f32 0.0, %v7239
        %v7241 = vpop.f32.mrb[0].mxu0
        %v7242 = vadd.f32 0.0, %v7241
        %7243 = vmatprep.mubr.bf16.mxu0 0
        %7244 = vmatmul.mubr.bf16.gmra.mrb[0].mxu0 %v7157
        %v7245 = vpop.f32.mrb[0].mxu0
        %v7246 = vadd.f32 0.0, %v7245
        %v7247 = vpop.f32.mrb[0].mxu0
        %v7248 = vadd.f32 0.0, %v7247
        %v7249 = vpop.f32.mrb[0].mxu0
        %v7250 = vadd.f32 0.0, %v7249
        %v7251 = vpop.f32.mrb[0].mxu0
        %v7252 = vadd.f32 0.0, %v7251
        %7253 = vmatprep.mubr.bf16.mxu0 0
        %7254 = vmatmul.mubr.bf16.gmra.mrb[0].mxu0 %v7160
        %v7255 = vpop.f32.mrb[0].mxu0
        %v7256 = vadd.f32 0.0, %v7255
        %v7257 = vpop.f32.mrb[0].mxu0
        %v7258 = vadd.f32 0.0, %v7257
        %v7259 = vpop.f32.mrb[0].mxu0
        %v7260 = vadd.f32 0.0, %v7259
        %v7261 = vpop.f32.mrb[0].mxu0
        %v7262 = vadd.f32 0.0, %v7261
        %7263 = vmatprep.mubr.bf16.mxu0 0
        %7264 = vmatmul.mubr.bf16.gmra.mrb[0].mxu0 %v7163
        %v7265 = vpop.f32.mrb[0].mxu0
        %v7266 = vadd.f32 0.0, %v7265
        %v7267 = vpop.f32.mrb[0].mxu0
        %v7268 = vadd.f32 0.0, %v7267
        %v7269 = vpop.f32.mrb[0].mxu0
        %v7270 = vadd.f32 0.0, %v7269
        %v7271 = vpop.f32.mrb[0].mxu0
        %v7272 = vadd.f32 0.0, %v7271
        %7273 = vmatprep.mubr.bf16.mxu0 0
        %7274 = vmatmul.mubr.bf16.gmra.mrb[0].mxu0 %v7166
        %v7275 = vpop.f32.mrb[0].mxu0
        %v7276 = vadd.f32 0.0, %v7275
        %v7277 = vpop.f32.mrb[0].mxu0
        %v7278 = vadd.f32 0.0, %v7277
        %v7279 = vpop.f32.mrb[0].mxu0
        %v7280 = vadd.f32 0.0, %v7279
        %v7281 = vpop.f32.mrb[0].mxu0
        %v7282 = vadd.f32 0.0, %v7281
        %7283 = vmatprep.mubr.bf16.mxu0 0
        %7284 = vmatmul.mubr.bf16.gmra.mrb[0].mxu0 %v7169
        %v7285 = vpop.f32.mrb[0].mxu0
        %v7286 = vadd.f32 0.0, %v7285
        %v7287 = vpop.f32.mrb[0].mxu0
        %v7288 = vadd.f32 0.0, %v7287
        %v7289 = vpop.f32.mrb[0].mxu0
        %v7290 = vadd.f32 0.0, %v7289
        %v7291 = vpop.f32.mrb[0].mxu0
        %v7292 = vadd.f32 0.0, %v7291
        %7293 = vmatprep.mubr.bf16.mxu0 0
        %7294 = vmatmul.mubr.bf16.gmra.mrb[0].mxu0 %v7172
        %v7295 = vpop.f32.mrb[0].mxu0
        %v7296 = vadd.f32 0.0, %v7295
        %v7297 = vpop.f32.mrb[0].mxu0
        %v7298 = vadd.f32 0.0, %v7297
        %v7299 = vpop.f32.mrb[0].mxu0
        %v7300 = vadd.f32 0.0, %v7299
        %v7301 = vpop.f32.mrb[0].mxu0
        %v7302 = vadd.f32 0.0, %v7301
        %7303 = vmatprep.mubr.bf16.mxu0 0
        %7304 = vmatmul.mubr.bf16.gmra.mrb[0].mxu0 %v7175
        %v7305 = vpop.f32.mrb[0].mxu0
        %v7306 = vadd.f32 0.0, %v7305
        %v7307 = vpop.f32.mrb[0].mxu0
        %v7308 = vadd.f32 0.0, %v7307
        %v7309 = vpop.f32.mrb[0].mxu0
        %v7310 = vadd.f32 0.0, %v7309
        %v7311 = vpop.f32.mrb[0].mxu0
        %v7312 = vadd.f32 0.0, %v7311
        %7313 = vmatprep.mubr.bf16.mxu0 0
        %7314 = vmatmul.mubr.bf16.gmra.mrb[0].mxu0 %v7178
        %v7315 = vpop.f32.mrb[0].mxu0
        %v7316 = vadd.f32 0.0, %v7315
        %v7317 = vpop.f32.mrb[0].mxu0
        %v7318 = vadd.f32 0.0, %v7317
        %v7319 = vpop.f32.mrb[0].mxu0
        %v7320 = vadd.f32 0.0, %v7319
        %v7321 = vpop.f32.mrb[0].mxu0
        %v7322 = vadd.f32 0.0, %v7321
        %7323 = vmatprep.mubr.bf16.mxu0 0
        %7324 = vmatmul.mubr.bf16.gmra.mrb[0].mxu0 %v7181
        %v7325 = vpop.f32.mrb[0].mxu0
        %v7326 = vadd.f32 0.0, %v7325
        %v7327 = vpop.f32.mrb[0].mxu0
        %v7328 = vadd.f32 0.0, %v7327
        %v7329 = vpop.f32.mrb[0].mxu0
        %v7330 = vadd.f32 0.0, %v7329
        %v7331 = vpop.f32.mrb[0].mxu0
        %v7332 = vadd.f32 0.0, %v7331
        %7333 = vmatprep.mubr.bf16.mxu0 0
        %7334 = vmatmul.mubr.bf16.gmra.mrb[0].mxu0 %v7184
        %v7335 = vpop.f32.mrb[0].mxu0
        %v7336 = vadd.f32 0.0, %v7335
        %v7337 = vpop.f32.mrb[0].mxu0
        %v7338 = vadd.f32 0.0, %v7337
        %v7339 = vpop.f32.mrb[0].mxu0
        %v7340 = vadd.f32 0.0, %v7339
        %v7341 = vpop.f32.mrb[0].mxu0
        %v7342 = vadd.f32 0.0, %v7341
        %7343 = vmatprep.mubr.bf16.mxu0 0
        %7344 = vmatmul.mubr.bf16.gmra.mrb[0].mxu0 %v7187
        %v7345 = vpop.f32.mrb[0].mxu0
        %v7346 = vadd.f32 0.0, %v7345
        %v7347 = vpop.f32.mrb[0].mxu0
        %v7348 = vadd.f32 0.0, %v7347
        %v7349 = vpop.f32.mrb[0].mxu0
        %v7350 = vadd.f32 0.0, %v7349
        %v7351 = vpop.f32.mrb[0].mxu0
        %v7352 = vadd.f32 0.0, %v7351
        %7353 = vmatprep.mubr.bf16.mxu0 0
        %7354 = vmatmul.mubr.bf16.gmra.mrb[0].mxu0 %v7190
        %v7355 = vpop.f32.mrb[0].mxu0
        %v7356 = vadd.f32 0.0, %v7355
        %v7357 = vpop.f32.mrb[0].mxu0
        %v7358 = vadd.f32 0.0, %v7357
        %v7359 = vpop.f32.mrb[0].mxu0
        %v7360 = vadd.f32 0.0, %v7359
        %v7361 = vpop.f32.mrb[0].mxu0
        %v7362 = vadd.f32 0.0, %v7361
        %7363 = vmatprep.mubr.bf16.mxu0 0
        %7364 = vmatmul.mubr.bf16.gmra.mrb[0].mxu0 %v7193
        %v7365 = vpop.f32.mrb[0].mxu0
        %v7366 = vadd.f32 0.0, %v7365
        %v7367 = vpop.f32.mrb[0].mxu0
        %v7368 = vadd.f32 0.0, %v7367
        %v7369 = vpop.f32.mrb[0].mxu0
        %v7370 = vadd.f32 0.0, %v7369
        %v7371 = vpop.f32.mrb[0].mxu0
        %v7372 = vadd.f32 0.0, %v7371
        %7373 = vmatprep.mubr.bf16.mxu0 0
        %7374 = vmatmul.mubr.bf16.gmra.mrb[0].mxu0 %v7196
        %v7375 = vpop.f32.mrb[0].mxu0
        %v7376 = vadd.f32 0.0, %v7375
        %v7377 = vpop.f32.mrb[0].mxu0
        %v7378 = vadd.f32 0.0, %v7377
        %v7379 = vpop.f32.mrb[0].mxu0
        %v7380 = vadd.f32 0.0, %v7379
        %v7381 = vpop.f32.mrb[0].mxu0
        %v7382 = vadd.f32 0.0, %v7381
        %7383 = vmatprep.mubr.bf16.mxu0 0
        %7384 = vmatmul.mubr.bf16.gmra.mrb[0].mxu0 %v7199
        %v7385 = vpop.f32.mrb[0].mxu0
        %v7386 = vadd.f32 0.0, %v7385
        %v7387 = vpop.f32.mrb[0].mxu0
        %v7388 = vadd.f32 0.0, %v7387
        %v7389 = vpop.f32.mrb[0].mxu0
        %v7390 = vadd.f32 0.0, %v7389
        %v7391 = vpop.f32.mrb[0].mxu0
        %v7392 = vadd.f32 0.0, %v7391
        %7393 = vdwg.mxu0
        %v7394 = vmax.f32 %v7236, %v7246
        %v7395 = vmax.f32 %v7240, %v7250
        %v7396 = vmax.f32 %v7394, %v7256
        %v7397 = vmax.f32 %v7395, %v7260
        %v7398 = vmax.f32 %v7396, %v7266
        %v7399 = vmax.f32 %v7397, %v7270
        %v7400 = vmax.f32 %v7398, %v7276
        %v7401 = vmax.f32 %v7399, %v7280
        %v7402 = vmax.f32 %v7400, %v7286
        %v7403 = vmax.f32 %v7401, %v7290
        %v7404 = vmax.f32 %v7402, %v7296
        %v7405 = vmax.f32 %v7403, %v7300
        %v7406 = vmax.f32 %v7404, %v7306
        %v7407 = vmax.f32 %v7405, %v7310
        %v7408 = vmax.f32 %v7406, %v7316
        %v7409 = vmax.f32 %v7407, %v7320
        %v7410 = vmax.f32 %v7408, %v7326
        %v7411 = vmax.f32 %v7409, %v7330
        %v7412 = vmax.f32 %v7410, %v7336
        %v7413 = vmax.f32 %v7411, %v7340
        %v7414 = vmax.f32 %v7412, %v7346
        %v7415 = vmax.f32 %v7413, %v7350
        %v7416 = vmax.f32 %v7414, %v7356
        %v7417 = vmax.f32 %v7415, %v7360
        %v7418 = vmax.f32 %v7416, %v7366
        %v7419 = vmax.f32 %v7417, %v7370
        %v7420 = vmax.f32 %v7418, %v7376
        %v7421 = vmax.f32 %v7419, %v7380
        %v7422 = vmax.f32 %v7420, %v7386
        %v7423 = vmax.f32 %v7421, %v7390
        %v7424 = vmax.f32 %v7422, %v7423
        %v7425 = vrot.slane %v7424, 4
        %v7426 = vmax.f32 %v7424, %v7425
        %v7427 = vrot.slane %v7426, 2
        %v7428 = vmax.f32 %v7426, %v7427
        %v7429 = vrot.slane %v7428, 1
        %v7430 = vmax.f32 %v7428, %v7429
        %v7431 = vmax.f32 %v7238, %v7248
        %v7432 = vmax.f32 %v7242, %v7252
        %v7433 = vmax.f32 %v7431, %v7258
        %v7434 = vmax.f32 %v7432, %v7262
        %v7435 = vmax.f32 %v7433, %v7268
        %v7436 = vmax.f32 %v7434, %v7272
        %v7437 = vmax.f32 %v7435, %v7278
        %v7438 = vmax.f32 %v7436, %v7282
        %v7439 = vmax.f32 %v7437, %v7288
        %v7440 = vmax.f32 %v7438, %v7292
        %v7441 = vmax.f32 %v7439, %v7298
        %v7442 = vmax.f32 %v7440, %v7302
        %v7443 = vmax.f32 %v7441, %v7308
        %v7444 = vmax.f32 %v7442, %v7312
        %v7445 = vmax.f32 %v7443, %v7318
        %v7446 = vmax.f32 %v7444, %v7322
        %v7447 = vmax.f32 %v7445, %v7328
        %v7448 = vmax.f32 %v7446, %v7332
        %v7449 = vmax.f32 %v7447, %v7338
        %v7450 = vmax.f32 %v7448, %v7342
        %v7451 = vmax.f32 %v7449, %v7348
        %v7452 = vmax.f32 %v7450, %v7352
        %v7453 = vmax.f32 %v7451, %v7358
        %v7454 = vmax.f32 %v7452, %v7362
        %v7455 = vmax.f32 %v7453, %v7368
        %v7456 = vmax.f32 %v7454, %v7372
        %v7457 = vmax.f32 %v7455, %v7378
        %v7458 = vmax.f32 %v7456, %v7382
        %v7459 = vmax.f32 %v7457, %v7388
        %v7460 = vmax.f32 %v7458, %v7392
        %v7461 = vmax.f32 %v7459, %v7460
        %v7462 = vrot.slane %v7461, 4
        %v7463 = vmax.f32 %v7461, %v7462
        %v7464 = vrot.slane %v7463, 2
        %v7465 = vmax.f32 %v7463, %v7464
        %v7466 = vrot.slane %v7465, 1
        %v7467 = vmax.f32 %v7465, %v7466
        %v7468 = vsub.f32 %v7236, %v7430
        %v7469 = vsub.f32 %v7238, %v7467
        %v7470 = vsub.f32 %v7240, %v7430
        %v7471 = vsub.f32 %v7242, %v7467
        %v7472 = vsub.f32 %v7246, %v7430
        %v7473 = vsub.f32 %v7248, %v7467
        %v7474 = vsub.f32 %v7250, %v7430
        %v7475 = vsub.f32 %v7252, %v7467
        %v7476 = vsub.f32 %v7256, %v7430
        %v7477 = vsub.f32 %v7258, %v7467
        %v7478 = vsub.f32 %v7260, %v7430
        %v7479 = vsub.f32 %v7262, %v7467
        %v7480 = vsub.f32 %v7266, %v7430
        %v7481 = vsub.f32 %v7268, %v7467
        %v7482 = vsub.f32 %v7270, %v7430
        %v7483 = vsub.f32 %v7272, %v7467
        %v7484 = vsub.f32 %v7276, %v7430
        %v7485 = vsub.f32 %v7278, %v7467
        %v7486 = vsub.f32 %v7280, %v7430
        %v7487 = vsub.f32 %v7282, %v7467
        %v7488 = vsub.f32 %v7286, %v7430
        %v7489 = vsub.f32 %v7288, %v7467
        %v7490 = vsub.f32 %v7290, %v7430
        %v7491 = vsub.f32 %v7292, %v7467
        %v7492 = vsub.f32 %v7296, %v7430
        %v7493 = vsub.f32 %v7298, %v7467
        %v7494 = vsub.f32 %v7300, %v7430
        %v7495 = vsub.f32 %v7302, %v7467
        %v7496 = vsub.f32 %v7306, %v7430
        %v7497 = vsub.f32 %v7308, %v7467
        %v7498 = vsub.f32 %v7310, %v7430
        %v7499 = vsub.f32 %v7312, %v7467
        %v7500 = vsub.f32 %v7316, %v7430
        %v7501 = vsub.f32 %v7318, %v7467
        %v7502 = vsub.f32 %v7320, %v7430
        %v7503 = vsub.f32 %v7322, %v7467
        %v7504 = vsub.f32 %v7326, %v7430
        %v7505 = vsub.f32 %v7328, %v7467
        %v7506 = vsub.f32 %v7330, %v7430
        %v7507 = vsub.f32 %v7332, %v7467
        %v7508 = vsub.f32 %v7336, %v7430
        %v7509 = vsub.f32 %v7338, %v7467
        %v7510 = vsub.f32 %v7340, %v7430
        %v7511 = vsub.f32 %v7342, %v7467
        %v7512 = vsub.f32 %v7346, %v7430
        %v7513 = vsub.f32 %v7348, %v7467
        %v7514 = vsub.f32 %v7350, %v7430
        %v7515 = vsub.f32 %v7352, %v7467
        %v7516 = vsub.f32 %v7356, %v7430
        %v7517 = vsub.f32 %v7358, %v7467
        %v7518 = vsub.f32 %v7360, %v7430
        %v7519 = vsub.f32 %v7362, %v7467
        %v7520 = vsub.f32 %v7366, %v7430
        %v7521 = vsub.f32 %v7368, %v7467
        %v7522 = vsub.f32 %v7370, %v7430
        %v7523 = vsub.f32 %v7372, %v7467
        %v7524 = vsub.f32 %v7376, %v7430
        %v7525 = vsub.f32 %v7378, %v7467
        %v7526 = vsub.f32 %v7380, %v7430
        %v7527 = vsub.f32 %v7382, %v7467
        %v7528 = vsub.f32 %v7386, %v7430
        %v7529 = vsub.f32 %v7388, %v7467
        %v7530 = vsub.f32 %v7390, %v7430
        %v7531 = vsub.f32 %v7392, %v7467
        %v7532 = vmul.f32 %v7468, 1.442695
        %v7533 = vpow.pop %v7532
        %v7534 = vmul.f32 %v7469, 1.442695
        %v7535 = vpow.pop %v7534
        %v7536 = vmul.f32 %v7470, 1.442695
        %v7537 = vpow.pop %v7536
        %v7538 = vmul.f32 %v7471, 1.442695
        %v7539 = vpow.pop %v7538
        %v7540 = vmul.f32 %v7472, 1.442695
        %v7541 = vpow.pop %v7540
        %v7542 = vmul.f32 %v7473, 1.442695
        %v7543 = vpow.pop %v7542
        %v7544 = vmul.f32 %v7474, 1.442695
        %v7545 = vpow.pop %v7544
        %v7546 = vmul.f32 %v7475, 1.442695
        %v7547 = vpow.pop %v7546
        %v7548 = vmul.f32 %v7476, 1.442695
        %v7549 = vpow.pop %v7548
        %v7550 = vmul.f32 %v7477, 1.442695
        %v7551 = vpow.pop %v7550
        %v7552 = vmul.f32 %v7478, 1.442695
        %v7553 = vpow.pop %v7552
        %v7554 = vmul.f32 %v7479, 1.442695
        %v7555 = vpow.pop %v7554
        %v7556 = vmul.f32 %v7480, 1.442695
        %v7557 = vpow.pop %v7556
        %v7558 = vmul.f32 %v7481, 1.442695
        %v7559 = vpow.pop %v7558
        %v7560 = vmul.f32 %v7482, 1.442695
        %v7561 = vpow.pop %v7560
        %v7562 = vmul.f32 %v7483, 1.442695
        %v7563 = vpow.pop %v7562
        %v7564 = vmul.f32 %v7484, 1.442695
        %v7565 = vpow.pop %v7564
        %v7566 = vmul.f32 %v7485, 1.442695
        %v7567 = vpow.pop %v7566
        %v7568 = vmul.f32 %v7486, 1.442695
        %v7569 = vpow.pop %v7568
        %v7570 = vmul.f32 %v7487, 1.442695
        %v7571 = vpow.pop %v7570
        %v7572 = vmul.f32 %v7488, 1.442695
        %v7573 = vpow.pop %v7572
        %v7574 = vmul.f32 %v7489, 1.442695
        %v7575 = vpow.pop %v7574
        %v7576 = vmul.f32 %v7490, 1.442695
        %v7577 = vpow.pop %v7576
        %v7578 = vmul.f32 %v7491, 1.442695
        %v7579 = vpow.pop %v7578
        %v7580 = vmul.f32 %v7492, 1.442695
        %v7581 = vpow.pop %v7580
        %v7582 = vmul.f32 %v7493, 1.442695
        %v7583 = vpow.pop %v7582
        %v7584 = vmul.f32 %v7494, 1.442695
        %v7585 = vpow.pop %v7584
        %v7586 = vmul.f32 %v7495, 1.442695
        %v7587 = vpow.pop %v7586
        %v7588 = vmul.f32 %v7496, 1.442695
        %v7589 = vpow.pop %v7588
        %v7590 = vmul.f32 %v7497, 1.442695
        %v7591 = vpow.pop %v7590
        %v7592 = vmul.f32 %v7498, 1.442695
        %v7593 = vpow.pop %v7592
        %v7594 = vmul.f32 %v7499, 1.442695
        %v7595 = vpow.pop %v7594
        %v7596 = vmul.f32 %v7500, 1.442695
        %v7597 = vpow.pop %v7596
        %v7598 = vmul.f32 %v7501, 1.442695
        %v7599 = vpow.pop %v7598
        %v7600 = vmul.f32 %v7502, 1.442695
        %v7601 = vpow.pop %v7600
        %v7602 = vmul.f32 %v7503, 1.442695
        %v7603 = vpow.pop %v7602
        %v7604 = vmul.f32 %v7504, 1.442695
        %v7605 = vpow.pop %v7604
        %v7606 = vmul.f32 %v7505, 1.442695
        %v7607 = vpow.pop %v7606
        %v7608 = vmul.f32 %v7506, 1.442695
        %v7609 = vpow.pop %v7608
        %v7610 = vmul.f32 %v7507, 1.442695
        %v7611 = vpow.pop %v7610
        %v7612 = vmul.f32 %v7508, 1.442695
        %v7613 = vpow.pop %v7612
        %v7614 = vmul.f32 %v7509, 1.442695
        %v7615 = vpow.pop %v7614
        %v7616 = vmul.f32 %v7510, 1.442695
        %v7617 = vpow.pop %v7616
        %v7618 = vmul.f32 %v7511, 1.442695
        %v7619 = vpow.pop %v7618
        %v7620 = vmul.f32 %v7512, 1.442695
        %v7621 = vpow.pop %v7620
        %v7622 = vmul.f32 %v7513, 1.442695
        %v7623 = vpow.pop %v7622
        %v7624 = vmul.f32 %v7514, 1.442695
        %v7625 = vpow.pop %v7624
        %v7626 = vmul.f32 %v7515, 1.442695
        %v7627 = vpow.pop %v7626
        %v7628 = vmul.f32 %v7516, 1.442695
        %v7629 = vpow.pop %v7628
        %v7630 = vmul.f32 %v7517, 1.442695
        %v7631 = vpow.pop %v7630
        %v7632 = vmul.f32 %v7518, 1.442695
        %v7633 = vpow.pop %v7632
        %v7634 = vmul.f32 %v7519, 1.442695
        %v7635 = vpow.pop %v7634
        %v7636 = vmul.f32 %v7520, 1.442695
        %v7637 = vpow.pop %v7636
        %v7638 = vmul.f32 %v7521, 1.442695
        %v7639 = vpow.pop %v7638
        %v7640 = vmul.f32 %v7522, 1.442695
        %v7641 = vpow.pop %v7640
        %v7642 = vmul.f32 %v7523, 1.442695
        %v7643 = vpow.pop %v7642
        %v7644 = vmul.f32 %v7524, 1.442695
        %v7645 = vpow.pop %v7644
        %v7646 = vmul.f32 %v7525, 1.442695
        %v7647 = vpow.pop %v7646
        %v7648 = vmul.f32 %v7526, 1.442695
        %v7649 = vpow.pop %v7648
        %v7650 = vmul.f32 %v7527, 1.442695
        %v7651 = vpow.pop %v7650
        %v7652 = vmul.f32 %v7528, 1.442695
        %v7653 = vpow.pop %v7652
        %v7654 = vmul.f32 %v7529, 1.442695
        %v7655 = vpow.pop %v7654
        %v7656 = vmul.f32 %v7530, 1.442695
        %v7657 = vpow.pop %v7656
        %v7658 = vmul.f32 %v7531, 1.442695
        %v7659 = vpow.pop %v7658
        %v7660 = vadd.f32 %v7533, %v7537
        %v7661 = vadd.f32 %v7660, %v7541
        %v7662 = vadd.f32 %v7661, %v7545
        %v7663 = vadd.f32 %v7662, %v7549
        %v7664 = vadd.f32 %v7663, %v7553
        %v7665 = vadd.f32 %v7664, %v7557
        %v7666 = vadd.f32 %v7665, %v7561
        %v7667 = vadd.f32 %v7666, %v7565
        %v7668 = vadd.f32 %v7667, %v7569
        %v7669 = vadd.f32 %v7668, %v7573
        %v7670 = vadd.f32 %v7669, %v7577
        %v7671 = vadd.f32 %v7670, %v7581
        %v7672 = vadd.f32 %v7671, %v7585
        %v7673 = vadd.f32 %v7672, %v7589
        %v7674 = vadd.f32 %v7673, %v7593
        %v7675 = vadd.f32 %v7674, %v7597
        %v7676 = vadd.f32 %v7675, %v7601
        %v7677 = vadd.f32 %v7676, %v7605
        %v7678 = vadd.f32 %v7677, %v7609
        %v7679 = vadd.f32 %v7678, %v7613
        %v7680 = vadd.f32 %v7679, %v7617
        %v7681 = vadd.f32 %v7680, %v7621
        %v7682 = vadd.f32 %v7681, %v7625
        %v7683 = vadd.f32 %v7682, %v7629
        %v7684 = vadd.f32 %v7683, %v7633
        %v7685 = vadd.f32 %v7684, %v7637
        %v7686 = vadd.f32 %v7685, %v7641
        %v7687 = vadd.f32 %v7686, %v7645
        %v7688 = vadd.f32 %v7687, %v7649
        %v7689 = vadd.f32 %v7688, %v7653
        %v7690 = vadd.f32 %v7689, %v7657
        %v7691 = vrot.slane %v7690, 4
        %v7692 = vadd.f32 %v7690, %v7691
        %v7693 = vrot.slane %v7692, 2
        %v7694 = vadd.f32 %v7692, %v7693
        %v7695 = vrot.slane %v7694, 1
        %v7696 = vadd.f32 %v7694, %v7695
        %v7697 = vadd.f32 %v7535, %v7539
        %v7698 = vadd.f32 %v7697, %v7543
        %v7699 = vadd.f32 %v7698, %v7547
        %v7700 = vadd.f32 %v7699, %v7551
        %v7701 = vadd.f32 %v7700, %v7555
        %v7702 = vadd.f32 %v7701, %v7559
        %v7703 = vadd.f32 %v7702, %v7563
        %v7704 = vadd.f32 %v7703, %v7567
        %v7705 = vadd.f32 %v7704, %v7571
        %v7706 = vadd.f32 %v7705, %v7575
        %v7707 = vadd.f32 %v7706, %v7579
        %v7708 = vadd.f32 %v7707, %v7583
        %v7709 = vadd.f32 %v7708, %v7587
        %v7710 = vadd.f32 %v7709, %v7591
        %v7711 = vadd.f32 %v7710, %v7595
        %v7712 = vadd.f32 %v7711, %v7599
        %v7713 = vadd.f32 %v7712, %v7603
        %v7714 = vadd.f32 %v7713, %v7607
        %v7715 = vadd.f32 %v7714, %v7611
        %v7716 = vadd.f32 %v7715, %v7615
        %v7717 = vadd.f32 %v7716, %v7619
        %v7718 = vadd.f32 %v7717, %v7623
        %v7719 = vadd.f32 %v7718, %v7627
        %v7720 = vadd.f32 %v7719, %v7631
        %v7721 = vadd.f32 %v7720, %v7635
        %v7722 = vadd.f32 %v7721, %v7639
        %v7723 = vadd.f32 %v7722, %v7643
        %v7724 = vadd.f32 %v7723, %v7647
        %v7725 = vadd.f32 %v7724, %v7651
        %v7726 = vadd.f32 %v7725, %v7655
        %v7727 = vadd.f32 %v7726, %v7659
        %v7728 = vrot.slane %v7727, 4
        %v7729 = vadd.f32 %v7727, %v7728
        %v7730 = vrot.slane %v7729, 2
        %v7731 = vadd.f32 %v7729, %v7730
        %v7732 = vrot.slane %v7731, 1
        %v7733 = vadd.f32 %v7731, %v7732
        %v7734 = vrcp.pop %v7696
        %v7735 = vrcp.pop %v7733
        %v7736 = vmul.f32 %v7533, %v7734
        %v7737 = vmul.f32 %v7535, %v7735
        %v7738 = vmul.f32 %v7537, %v7734
        %v7739 = vmul.f32 %v7539, %v7735
        %v7740 = vmul.f32 %v7541, %v7734
        %v7741 = vmul.f32 %v7543, %v7735
        %v7742 = vmul.f32 %v7545, %v7734
        %v7743 = vmul.f32 %v7547, %v7735
        %v7744 = vmul.f32 %v7549, %v7734
        %v7745 = vmul.f32 %v7551, %v7735
        %v7746 = vmul.f32 %v7553, %v7734
        %v7747 = vmul.f32 %v7555, %v7735
        %v7748 = vmul.f32 %v7557, %v7734
        %v7749 = vmul.f32 %v7559, %v7735
        %v7750 = vmul.f32 %v7561, %v7734
        %v7751 = vmul.f32 %v7563, %v7735
        %v7752 = vmul.f32 %v7565, %v7734
        %v7753 = vmul.f32 %v7567, %v7735
        %v7754 = vmul.f32 %v7569, %v7734
        %v7755 = vmul.f32 %v7571, %v7735
        %v7756 = vmul.f32 %v7573, %v7734
        %v7757 = vmul.f32 %v7575, %v7735
        %v7758 = vmul.f32 %v7577, %v7734
        %v7759 = vmul.f32 %v7579, %v7735
        %v7760 = vmul.f32 %v7581, %v7734
        %v7761 = vmul.f32 %v7583, %v7735
        %v7762 = vmul.f32 %v7585, %v7734
        %v7763 = vmul.f32 %v7587, %v7735
        %v7764 = vmul.f32 %v7589, %v7734
        %v7765 = vmul.f32 %v7591, %v7735
        %v7766 = vmul.f32 %v7593, %v7734
        %v7767 = vmul.f32 %v7595, %v7735
        %v7768 = vmul.f32 %v7597, %v7734
        %v7769 = vmul.f32 %v7599, %v7735
        %v7770 = vmul.f32 %v7601, %v7734
        %v7771 = vmul.f32 %v7603, %v7735
        %v7772 = vmul.f32 %v7605, %v7734
        %v7773 = vmul.f32 %v7607, %v7735
        %v7774 = vmul.f32 %v7609, %v7734
        %v7775 = vmul.f32 %v7611, %v7735
        %v7776 = vmul.f32 %v7613, %v7734
        %v7777 = vmul.f32 %v7615, %v7735
        %v7778 = vmul.f32 %v7617, %v7734
        %v7779 = vmul.f32 %v7619, %v7735
        %v7780 = vmul.f32 %v7621, %v7734
        %v7781 = vmul.f32 %v7623, %v7735
        %v7782 = vmul.f32 %v7625, %v7734
        %v7783 = vmul.f32 %v7627, %v7735
        %v7784 = vmul.f32 %v7629, %v7734
        %v7785 = vmul.f32 %v7631, %v7735
        %v7786 = vmul.f32 %v7633, %v7734
        %v7787 = vmul.f32 %v7635, %v7735
        %v7788 = vmul.f32 %v7637, %v7734
        %v7789 = vmul.f32 %v7639, %v7735
        %v7790 = vmul.f32 %v7641, %v7734
        %v7791 = vmul.f32 %v7643, %v7735
        %v7792 = vmul.f32 %v7645, %v7734
        %v7793 = vmul.f32 %v7647, %v7735
        %v7794 = vmul.f32 %v7649, %v7734
        %v7795 = vmul.f32 %v7651, %v7735
        %v7796 = vmul.f32 %v7653, %v7734
        %v7797 = vmul.f32 %v7655, %v7735
        %v7798 = vmul.f32 %v7657, %v7734
        %v7799 = vmul.f32 %v7659, %v7735
        %v7800 = vpack.c.bf16 %v7738, %v7736
        %v7801 = vpack.c.bf16 %v7739, %v7737
        %v7802 = vpack.c.bf16 %v7742, %v7740
        %v7803 = vpack.c.bf16 %v7743, %v7741
        %v7804 = vpack.c.bf16 %v7746, %v7744
        %v7805 = vpack.c.bf16 %v7747, %v7745
        %v7806 = vpack.c.bf16 %v7750, %v7748
        %v7807 = vpack.c.bf16 %v7751, %v7749
        %v7808 = vpack.c.bf16 %v7754, %v7752
        %v7809 = vpack.c.bf16 %v7755, %v7753
        %v7810 = vpack.c.bf16 %v7758, %v7756
        %v7811 = vpack.c.bf16 %v7759, %v7757
        %v7812 = vpack.c.bf16 %v7762, %v7760
        %v7813 = vpack.c.bf16 %v7763, %v7761
        %v7814 = vpack.c.bf16 %v7766, %v7764
        %v7815 = vpack.c.bf16 %v7767, %v7765
        %v7816 = vpack.c.bf16 %v7770, %v7768
        %v7817 = vpack.c.bf16 %v7771, %v7769
        %v7818 = vpack.c.bf16 %v7774, %v7772
        %v7819 = vpack.c.bf16 %v7775, %v7773
        %v7820 = vpack.c.bf16 %v7778, %v7776
        %v7821 = vpack.c.bf16 %v7779, %v7777
        %v7822 = vpack.c.bf16 %v7782, %v7780
        %v7823 = vpack.c.bf16 %v7783, %v7781
        %v7824 = vpack.c.bf16 %v7786, %v7784
        %v7825 = vpack.c.bf16 %v7787, %v7785
        %v7826 = vpack.c.bf16 %v7790, %v7788
        %v7827 = vpack.c.bf16 %v7791, %v7789
        %v7828 = vpack.c.bf16 %v7794, %v7792
        %v7829 = vpack.c.bf16 %v7795, %v7793
        %v7830 = vpack.c.bf16 %v7798, %v7796
        %v7831 = vpack.c.bf16 %v7799, %v7797
        %7832 = vmatprep.subr.bf16.mxu0 %v7801
        %7833 = vmatpush1.bf16.msra.mxu0 %v7800
        %7834 = vmatprep.subr.bf16.mxu0 %v7803
        %7835 = vmatpush1.bf16.msra.mxu0 %v7802
        %7836 = vmatprep.subr.bf16.mxu0 %v7805
        %7837 = vmatpush1.bf16.msra.mxu0 %v7804
        %7838 = vmatprep.subr.bf16.mxu0 %v7807
        %7839 = vmatpush1.bf16.msra.mxu0 %v7806
        %7840 = vmatprep.subr.bf16.mxu0 %v7809
        %7841 = vmatpush1.bf16.msra.mxu0 %v7808
        %7842 = vmatprep.subr.bf16.mxu0 %v7811
        %7843 = vmatpush1.bf16.msra.mxu0 %v7810
        %7844 = vmatprep.subr.bf16.mxu0 %v7813
        %7845 = vmatpush1.bf16.msra.mxu0 %v7812
        %7846 = vmatprep.subr.bf16.mxu0 %v7815
        %7847 = vmatpush1.bf16.msra.mxu0 %v7814
        %7848 = vmatprep.subr.bf16.mxu0 %v7817
        %7849 = vmatpush1.bf16.msra.mxu0 %v7816
        %7850 = vmatprep.subr.bf16.mxu0 %v7819
        %7851 = vmatpush1.bf16.msra.mxu0 %v7818
        %7852 = vmatprep.subr.bf16.mxu0 %v7821
        %7853 = vmatpush1.bf16.msra.mxu0 %v7820
        %7854 = vmatprep.subr.bf16.mxu0 %v7823
        %7855 = vmatpush1.bf16.msra.mxu0 %v7822
        %7856 = vmatprep.subr.bf16.mxu0 %v7825
        %7857 = vmatpush1.bf16.msra.mxu0 %v7824
        %7858 = vmatprep.subr.bf16.mxu0 %v7827
        %7859 = vmatpush1.bf16.msra.mxu0 %v7826
        %7860 = vmatprep.subr.bf16.mxu0 %v7829
        %7861 = vmatpush1.bf16.msra.mxu0 %v7828
        %7862 = vmatprep.subr.bf16.mxu0 %v7831
        %7863 = vmatpush1.bf16.msra.mxu0 %v7830
        %7864 = vmatprep.mubr.bf16.mxu0 %v7118
        %7865 = vmatmul.mubr.bf16.gmra.mrb[0].mxu0 %v7117
        %v7866 = vpop.f32.mrb[0].mxu0
        %v7867 = vadd.f32 0.0, %v7866
        %v7868 = vpop.f32.mrb[0].mxu0
        %v7869 = vadd.f32 0.0, %v7868
        %v7870 = vpop.f32.mrb[0].mxu0
        %v7871 = vadd.f32 0.0, %v7870
        %v7872 = vpop.f32.mrb[0].mxu0
        %v7873 = vadd.f32 0.0, %v7872
        %7874 = vmatprep.mubr.bf16.mxu0 %v7120
        %7875 = vmatmul.mubr.bf16.gmra.mrb[0].mxu0 %v7119
        %v7876 = vpop.f32.mrb[0].mxu0
        %v7877 = vadd.f32 0.0, %v7876
        %v7878 = vpop.f32.mrb[0].mxu0
        %v7879 = vadd.f32 0.0, %v7878
        %v7880 = vpop.f32.mrb[0].mxu0
        %v7881 = vadd.f32 0.0, %v7880
        %v7882 = vpop.f32.mrb[0].mxu0
        %v7883 = vadd.f32 0.0, %v7882
        %7884 = vdwg.mxu0
        %7885 = vst [vmem:[#allocation3 + $0x190] sm:$0xff] %v7867
        %7886 = vst [vmem:[#allocation3 + $0x198] sm:$0xff] %v7869
        %7887 = vst [vmem:[#allocation3 + $0x1b0] sm:$0xff] %v7871
        %7888 = vst [vmem:[#allocation3 + $0x1b8] sm:$0xff] %v7873
        %7889 = vst [vmem:[#allocation3 + $0x1d0] sm:$0xff] %v7877
        %7890 = vst [vmem:[#allocation3 + $0x1d8] sm:$0xff] %v7879
        %7891 = vst [vmem:[#allocation3 + $0x1f0] sm:$0xff] %v7881
        %7892 = vst [vmem:[#allocation3 + $0x1f8] sm:$0xff] %v7883
        %v7893 = vld [vmem:[#allocation3] sm:$0xff]
        %v7894 = vld [vmem:[#allocation3 + $0x8] sm:$0xff]
        %v7895 = vld [vmem:[#allocation3 + $0x10] sm:$0xff]
        %v7896 = vld [vmem:[#allocation3 + $0x18] sm:$0xff]
        %v7897 = vld [vmem:[#allocation3 + $0x20] sm:$0xff]
        %v7898 = vld [vmem:[#allocation3 + $0x28] sm:$0xff]
        %v7899 = vld [vmem:[#allocation3 + $0x30] sm:$0xff]
        %v7900 = vld [vmem:[#allocation3 + $0x38] sm:$0xff]
        %v7901 = vld [vmem:[#allocation3 + $0x40] sm:$0xff]
        %v7902 = vld [vmem:[#allocation3 + $0x48] sm:$0xff]
        %v7903 = vld [vmem:[#allocation3 + $0x50] sm:$0xff]
        %v7904 = vld [vmem:[#allocation3 + $0x58] sm:$0xff]
        %v7905 = vld [vmem:[#allocation3 + $0x60] sm:$0xff]
        %v7906 = vld [vmem:[#allocation3 + $0x68] sm:$0xff]
        %v7907 = vld [vmem:[#allocation3 + $0x70] sm:$0xff]
        %v7908 = vld [vmem:[#allocation3 + $0x78] sm:$0xff]
        %v7909 = vld [vmem:[#allocation3 + $0x80] sm:$0xff]
        %v7910 = vld [vmem:[#allocation3 + $0x88] sm:$0xff]
        %v7911 = vld [vmem:[#allocation3 + $0x90] sm:$0xff]
        %v7912 = vld [vmem:[#allocation3 + $0x98] sm:$0xff]
        %v7913 = vld [vmem:[#allocation3 + $0xa0] sm:$0xff]
        %v7914 = vld [vmem:[#allocation3 + $0xa8] sm:$0xff]
        %v7915 = vld [vmem:[#allocation3 + $0xb0] sm:$0xff]
        %v7916 = vld [vmem:[#allocation3 + $0xb8] sm:$0xff]
        %v7917 = vld [vmem:[#allocation3 + $0xc0] sm:$0xff]
        %v7918 = vld [vmem:[#allocation3 + $0xc8] sm:$0xff]
        %v7919 = vld [vmem:[#allocation3 + $0xd0] sm:$0xff]
        %v7920 = vld [vmem:[#allocation3 + $0xd8] sm:$0xff]
        %v7921 = vld [vmem:[#allocation3 + $0xe0] sm:$0xff]
        %v7922 = vld [vmem:[#allocation3 + $0xe8] sm:$0xff]
        %v7923 = vld [vmem:[#allocation3 + $0xf0] sm:$0xff]
        %v7924 = vld [vmem:[#allocation3 + $0xf8] sm:$0xff]
        %v7925 = vld [vmem:[#allocation3 + $0x100] sm:$0xff]
        %v7926 = vld [vmem:[#allocation3 + $0x108] sm:$0xff]
        %v7927 = vld [vmem:[#allocation3 + $0x110] sm:$0xff]
        %v7928 = vld [vmem:[#allocation3 + $0x118] sm:$0xff]
        %v7929 = vld [vmem:[#allocation3 + $0x120] sm:$0xff]
        %v7930 = vld [vmem:[#allocation3 + $0x128] sm:$0xff]
        %v7931 = vld [vmem:[#allocation3 + $0x130] sm:$0xff]
        %v7932 = vld [vmem:[#allocation3 + $0x138] sm:$0xff]
        %v7933 = vld [vmem:[#allocation3 + $0x140] sm:$0xff]
        %v7934 = vld [vmem:[#allocation3 + $0x148] sm:$0xff]
        %v7935 = vld [vmem:[#allocation3 + $0x150] sm:$0xff]
        %v7936 = vld [vmem:[#allocation3 + $0x158] sm:$0xff]
        %v7937 = vld [vmem:[#allocation3 + $0x160] sm:$0xff]
        %v7938 = vld [vmem:[#allocation3 + $0x168] sm:$0xff]
        %v7939 = vld [vmem:[#allocation3 + $0x170] sm:$0xff]
        %v7940 = vld [vmem:[#allocation3 + $0x178] sm:$0xff]
        %v7941 = vld [vmem:[#allocation3 + $0x180] sm:$0xff]
        %v7942 = vld [vmem:[#allocation3 + $0x188] sm:$0xff]
        %v7943 = vld [vmem:[#allocation3 + $0x190] sm:$0xff]
        %v7944 = vld [vmem:[#allocation3 + $0x198] sm:$0xff]
        %v7945 = vld [vmem:[#allocation3 + $0x1a0] sm:$0xff]
        %v7946 = vld [vmem:[#allocation3 + $0x1a8] sm:$0xff]
        %v7947 = vld [vmem:[#allocation3 + $0x1b0] sm:$0xff]
        %v7948 = vld [vmem:[#allocation3 + $0x1b8] sm:$0xff]
        %v7949 = vld [vmem:[#allocation3 + $0x1c0] sm:$0xff]
        %v7950 = vld [vmem:[#allocation3 + $0x1c8] sm:$0xff]
        %v7951 = vld [vmem:[#allocation3 + $0x1d0] sm:$0xff]
        %v7952 = vld [vmem:[#allocation3 + $0x1d8] sm:$0xff]
        %v7953 = vld [vmem:[#allocation3 + $0x1e0] sm:$0xff]
        %v7954 = vld [vmem:[#allocation3 + $0x1e8] sm:$0xff]
        %v7955 = vld [vmem:[#allocation3 + $0x1f0] sm:$0xff]
        %v7956 = vld [vmem:[#allocation3 + $0x1f8] sm:$0xff]
        %v7957 = vld [vmem:[%s5] sm:$0xff]
        %v7958 = vld [vmem:[%s5 + $0x8] sm:$0xff]
        %v7959 = vld [vmem:[%s5 + $0x10] sm:$0xff]
        %v7960 = vld [vmem:[%s5 + $0x18] sm:$0xff]
        %v7961 = vld [vmem:[%s5 + $0x20] sm:$0xff]
        %v7962 = vld [vmem:[%s5 + $0x28] sm:$0xff]
        %v7963 = vld [vmem:[%s5 + $0x30] sm:$0xff]
        %v7964 = vld [vmem:[%s5 + $0x38] sm:$0xff]
        %v7965 = vld [vmem:[%s5 + $0x40] sm:$0xff]
        %v7966 = vld [vmem:[%s5 + $0x48] sm:$0xff]
        %v7967 = vld [vmem:[%s5 + $0x50] sm:$0xff]
        %v7968 = vld [vmem:[%s5 + $0x58] sm:$0xff]
        %v7969 = vld [vmem:[%s5 + $0x60] sm:$0xff]
        %v7970 = vld [vmem:[%s5 + $0x68] sm:$0xff]
        %v7971 = vld [vmem:[%s5 + $0x70] sm:$0xff]
        %v7972 = vld [vmem:[%s5 + $0x78] sm:$0xff]
        %7974 = vset.pattern.permute.xlu0 0
        %7975 = vperm.xlu0 %7974, %v7957
        %v7976 = vpop.permute.xlu0 %7975
        %7979 = vset.pattern.permute.xlu0 0
        %7980 = vperm.xlu0 %7979, %v7958
        %v7981 = vpop.permute.xlu0 %7980
        %7984 = vset.pattern.permute.xlu0 0
        %7985 = vperm.xlu0 %7984, %v7959
        %v7986 = vpop.permute.xlu0 %7985
        %7989 = vset.pattern.permute.xlu0 0
        %7990 = vperm.xlu0 %7989, %v7960
        %v7991 = vpop.permute.xlu0 %7990
        %7994 = vset.pattern.permute.xlu0 0
        %7995 = vperm.xlu0 %7994, %v7961
        %v7996 = vpop.permute.xlu0 %7995
        %7999 = vset.pattern.permute.xlu0 0
        %8000 = vperm.xlu0 %7999, %v7962
        %v8001 = vpop.permute.xlu0 %8000
        %8004 = vset.pattern.permute.xlu0 0
        %8005 = vperm.xlu0 %8004, %v7963
        %v8006 = vpop.permute.xlu0 %8005
        %8009 = vset.pattern.permute.xlu0 0
        %8010 = vperm.xlu0 %8009, %v7964
        %v8011 = vpop.permute.xlu0 %8010
        %8014 = vset.pattern.permute.xlu0 0
        %8015 = vperm.xlu0 %8014, %v7965
        %v8016 = vpop.permute.xlu0 %8015
        %8019 = vset.pattern.permute.xlu0 0
        %8020 = vperm.xlu0 %8019, %v7966
        %v8021 = vpop.permute.xlu0 %8020
        %8024 = vset.pattern.permute.xlu0 0
        %8025 = vperm.xlu0 %8024, %v7967
        %v8026 = vpop.permute.xlu0 %8025
        %8029 = vset.pattern.permute.xlu0 0
        %8030 = vperm.xlu0 %8029, %v7968
        %v8031 = vpop.permute.xlu0 %8030
        %8034 = vset.pattern.permute.xlu0 0
        %8035 = vperm.xlu0 %8034, %v7969
        %v8036 = vpop.permute.xlu0 %8035
        %8039 = vset.pattern.permute.xlu0 0
        %8040 = vperm.xlu0 %8039, %v7970
        %v8041 = vpop.permute.xlu0 %8040
        %8044 = vset.pattern.permute.xlu0 0
        %8045 = vperm.xlu0 %8044, %v7971
        %v8046 = vpop.permute.xlu0 %8045
        %8049 = vset.pattern.permute.xlu0 0
        %8050 = vperm.xlu0 %8049, %v7972
        %v8051 = vpop.permute.xlu0 %8050
        %v8053 = vadd.f32 %v7893, %v7976
        %v8054 = vadd.f32 %v7894, %v7976
        %v8055 = vadd.f32 %v7895, %v7976
        %v8056 = vadd.f32 %v7896, %v7976
        %v8057 = vadd.f32 %v7897, %v7981
        %v8058 = vadd.f32 %v7898, %v7981
        %v8059 = vadd.f32 %v7899, %v7981
        %v8060 = vadd.f32 %v7900, %v7981
        %v8061 = vadd.f32 %v7901, %v7986
        %v8062 = vadd.f32 %v7902, %v7986
        %v8063 = vadd.f32 %v7903, %v7986
        %v8064 = vadd.f32 %v7904, %v7986
        %v8065 = vadd.f32 %v7905, %v7991
        %v8066 = vadd.f32 %v7906, %v7991
        %v8067 = vadd.f32 %v7907, %v7991
        %v8068 = vadd.f32 %v7908, %v7991
        %v8069 = vadd.f32 %v7909, %v7996
        %v8070 = vadd.f32 %v7910, %v7996
        %v8071 = vadd.f32 %v7911, %v7996
        %v8072 = vadd.f32 %v7912, %v7996
        %v8073 = vadd.f32 %v7913, %v8001
        %v8074 = vadd.f32 %v7914, %v8001
        %v8075 = vadd.f32 %v7915, %v8001
        %v8076 = vadd.f32 %v7916, %v8001
        %v8077 = vadd.f32 %v7917, %v8006
        %v8078 = vadd.f32 %v7918, %v8006
        %v8079 = vadd.f32 %v7919, %v8006
        %v8080 = vadd.f32 %v7920, %v8006
        %v8081 = vadd.f32 %v7921, %v8011
        %v8082 = vadd.f32 %v7922, %v8011
        %v8083 = vadd.f32 %v7923, %v8011
        %v8084 = vadd.f32 %v7924, %v8011
        %v8085 = vadd.f32 %v7925, %v8016
        %v8086 = vadd.f32 %v7926, %v8016
        %v8087 = vadd.f32 %v7927, %v8016
        %v8088 = vadd.f32 %v7928, %v8016
        %v8089 = vadd.f32 %v7929, %v8021
        %v8090 = vadd.f32 %v7930, %v8021
        %v8091 = vadd.f32 %v7931, %v8021
        %v8092 = vadd.f32 %v7932, %v8021
        %v8093 = vadd.f32 %v7933, %v8026
        %v8094 = vadd.f32 %v7934, %v8026
        %v8095 = vadd.f32 %v7935, %v8026
        %v8096 = vadd.f32 %v7936, %v8026
        %v8097 = vadd.f32 %v7937, %v8031
        %v8098 = vadd.f32 %v7938, %v8031
        %v8099 = vadd.f32 %v7939, %v8031
        %v8100 = vadd.f32 %v7940, %v8031
        %v8101 = vadd.f32 %v7941, %v8036
        %v8102 = vadd.f32 %v7942, %v8036
        %v8103 = vadd.f32 %v7943, %v8036
        %v8104 = vadd.f32 %v7944, %v8036
        %v8105 = vadd.f32 %v7945, %v8041
        %v8106 = vadd.f32 %v7946, %v8041
        %v8107 = vadd.f32 %v7947, %v8041
        %v8108 = vadd.f32 %v7948, %v8041
        %v8109 = vadd.f32 %v7949, %v8046
        %v8110 = vadd.f32 %v7950, %v8046
        %v8111 = vadd.f32 %v7951, %v8046
        %v8112 = vadd.f32 %v7952, %v8046
        %v8113 = vadd.f32 %v7953, %v8051
        %v8114 = vadd.f32 %v7954, %v8051
        %v8115 = vadd.f32 %v7955, %v8051
        %v8116 = vadd.f32 %v7956, %v8051
        %v8117 = vmax.f32 %v8053, 0.0
        %v8118 = vmax.f32 %v8054, 0.0
        %v8119 = vmax.f32 %v8055, 0.0
        %v8120 = vmax.f32 %v8056, 0.0
        %v8121 = vmax.f32 %v8057, 0.0
        %v8122 = vmax.f32 %v8058, 0.0
        %v8123 = vmax.f32 %v8059, 0.0
        %v8124 = vmax.f32 %v8060, 0.0
        %v8125 = vmax.f32 %v8061, 0.0
        %v8126 = vmax.f32 %v8062, 0.0
        %v8127 = vmax.f32 %v8063, 0.0
        %v8128 = vmax.f32 %v8064, 0.0
        %v8129 = vmax.f32 %v8065, 0.0
        %v8130 = vmax.f32 %v8066, 0.0
        %v8131 = vmax.f32 %v8067, 0.0
        %v8132 = vmax.f32 %v8068, 0.0
        %v8133 = vmax.f32 %v8069, 0.0
        %v8134 = vmax.f32 %v8070, 0.0
        %v8135 = vmax.f32 %v8071, 0.0
        %v8136 = vmax.f32 %v8072, 0.0
        %v8137 = vmax.f32 %v8073, 0.0
        %v8138 = vmax.f32 %v8074, 0.0
        %v8139 = vmax.f32 %v8075, 0.0
        %v8140 = vmax.f32 %v8076, 0.0
        %v8141 = vmax.f32 %v8077, 0.0
        %v8142 = vmax.f32 %v8078, 0.0
        %v8143 = vmax.f32 %v8079, 0.0
        %v8144 = vmax.f32 %v8080, 0.0
        %v8145 = vmax.f32 %v8081, 0.0
        %v8146 = vmax.f32 %v8082, 0.0
        %v8147 = vmax.f32 %v8083, 0.0
        %v8148 = vmax.f32 %v8084, 0.0
        %v8149 = vmax.f32 %v8085, 0.0
        %v8150 = vmax.f32 %v8086, 0.0
        %v8151 = vmax.f32 %v8087, 0.0
        %v8152 = vmax.f32 %v8088, 0.0
        %v8153 = vmax.f32 %v8089, 0.0
        %v8154 = vmax.f32 %v8090, 0.0
        %v8155 = vmax.f32 %v8091, 0.0
        %v8156 = vmax.f32 %v8092, 0.0
        %v8157 = vmax.f32 %v8093, 0.0
        %v8158 = vmax.f32 %v8094, 0.0
        %v8159 = vmax.f32 %v8095, 0.0
        %v8160 = vmax.f32 %v8096, 0.0
        %v8161 = vmax.f32 %v8097, 0.0
        %v8162 = vmax.f32 %v8098, 0.0
        %v8163 = vmax.f32 %v8099, 0.0
        %v8164 = vmax.f32 %v8100, 0.0
        %v8165 = vmax.f32 %v8101, 0.0
        %v8166 = vmax.f32 %v8102, 0.0
        %v8167 = vmax.f32 %v8103, 0.0
        %v8168 = vmax.f32 %v8104, 0.0
        %v8169 = vmax.f32 %v8105, 0.0
        %v8170 = vmax.f32 %v8106, 0.0
        %v8171 = vmax.f32 %v8107, 0.0
        %v8172 = vmax.f32 %v8108, 0.0
        %v8173 = vmax.f32 %v8109, 0.0
        %v8174 = vmax.f32 %v8110, 0.0
        %v8175 = vmax.f32 %v8111, 0.0
        %v8176 = vmax.f32 %v8112, 0.0
        %v8177 = vmax.f32 %v8113, 0.0
        %v8178 = vmax.f32 %v8114, 0.0
        %v8179 = vmax.f32 %v8115, 0.0
        %v8180 = vmax.f32 %v8116, 0.0
        %v8181 = vpack.c.bf16 %v8121, %v8117
        %v8182 = vpack.c.bf16 %v8122, %v8118
        %v8183 = vpack.c.bf16 %v8123, %v8119
        %v8184 = vpack.c.bf16 %v8124, %v8120
        %v8185 = vpack.c.bf16 %v8129, %v8125
        %v8186 = vpack.c.bf16 %v8130, %v8126
        %v8187 = vpack.c.bf16 %v8131, %v8127
        %v8188 = vpack.c.bf16 %v8132, %v8128
        %v8189 = vpack.c.bf16 %v8137, %v8133
        %v8190 = vpack.c.bf16 %v8138, %v8134
        %v8191 = vpack.c.bf16 %v8139, %v8135
        %v8192 = vpack.c.bf16 %v8140, %v8136
        %v8193 = vpack.c.bf16 %v8145, %v8141
        %v8194 = vpack.c.bf16 %v8146, %v8142
        %v8195 = vpack.c.bf16 %v8147, %v8143
        %v8196 = vpack.c.bf16 %v8148, %v8144
        %v8197 = vpack.c.bf16 %v8153, %v8149
        %v8198 = vpack.c.bf16 %v8154, %v8150
        %v8199 = vpack.c.bf16 %v8155, %v8151
        %v8200 = vpack.c.bf16 %v8156, %v8152
        %v8201 = vpack.c.bf16 %v8161, %v8157
        %v8202 = vpack.c.bf16 %v8162, %v8158
        %v8203 = vpack.c.bf16 %v8163, %v8159
        %v8204 = vpack.c.bf16 %v8164, %v8160
        %v8205 = vpack.c.bf16 %v8169, %v8165
        %v8206 = vpack.c.bf16 %v8170, %v8166
        %v8207 = vpack.c.bf16 %v8171, %v8167
        %v8208 = vpack.c.bf16 %v8172, %v8168
        %v8209 = vpack.c.bf16 %v8177, %v8173
        %v8210 = vpack.c.bf16 %v8178, %v8174
        %v8211 = vpack.c.bf16 %v8179, %v8175
        %v8212 = vpack.c.bf16 %v8180, %v8176
        %v8213 = vld [vmem:[%s6] sm:$0xf]
        %v8214 = vld [vmem:[%s6 + $0x4] sm:$0xf]
        %v8215 = vld [vmem:[%s7] sm:$0xff]
        %v8216 = vld [vmem:[%s7 + $0x8] sm:$0xff]
        %8218 = vset.pattern.permute.xlu0 0
        %8219 = vperm.xlu0 %8218, %v8215
        %v8220 = vpop.permute.xlu0 %8219
        %8223 = vset.pattern.permute.xlu0 0
        %8224 = vperm.xlu0 %8223, %v8216
        %v8225 = vpop.permute.xlu0 %8224
        %v8229 = vunpack.c.l.b16 %v8213
        %v8230 = vunpack.c.l.b16 %v8214
        %v8231 = vpack.c.b16 %v8230, %v8229
        %8233 = vmatprep.subr.bf16.mxu0 %v8182
        %8234 = vmatpush1.bf16.msra.mxu0 %v8181
        %8235 = vmatprep.subr.bf16.mxu0 %v8186
        %8236 = vmatpush1.bf16.msra.mxu0 %v8185
        %8237 = vmatprep.subr.bf16.mxu0 %v8190
        %8238 = vmatpush1.bf16.msra.mxu0 %v8189
        %8239 = vmatprep.subr.bf16.mxu0 %v8194
        %8240 = vmatpush1.bf16.msra.mxu0 %v8193
        %8241 = vmatprep.subr.bf16.mxu0 %v8198
        %8242 = vmatpush1.bf16.msra.mxu0 %v8197
        %8243 = vmatprep.subr.bf16.mxu0 %v8202
        %8244 = vmatpush1.bf16.msra.mxu0 %v8201
        %8245 = vmatprep.subr.bf16.mxu0 %v8206
        %8246 = vmatpush1.bf16.msra.mxu0 %v8205
        %8247 = vmatprep.subr.bf16.mxu0 %v8210
        %8248 = vmatpush1.bf16.msra.mxu0 %v8209
        %8249 = vmatprep.subr.bf16.mxu0 0
        %8250 = vmatpush1.bf16.msra.mxu0 0
        %8251 = vmatprep.subr.bf16.mxu0 0
        %8252 = vmatpush1.bf16.msra.mxu0 0
        %8253 = vmatprep.subr.bf16.mxu0 0
        %8254 = vmatpush1.bf16.msra.mxu0 0
        %8255 = vmatprep.subr.bf16.mxu0 0
        %8256 = vmatpush1.bf16.msra.mxu0 0
        %8257 = vmatprep.subr.bf16.mxu0 0
        %8258 = vmatpush1.bf16.msra.mxu0 0
        %8259 = vmatprep.subr.bf16.mxu0 0
        %8260 = vmatpush1.bf16.msra.mxu0 0
        %8261 = vmatprep.subr.bf16.mxu0 0
        %8262 = vmatpush1.bf16.msra.mxu0 0
        %8263 = vmatprep.subr.bf16.mxu0 0
        %8264 = vmatpush1.bf16.msra.mxu0 0
        %8265 = vmatprep.mubr.bf16.mxu0 0
        %8266 = vmatmul.mubr.bf16.gmra.mrb[0].mxu0 %v8231
        %v8267 = vpop.f32.mrb[0].mxu0
        %v8268 = vadd.f32 %v8220, %v8267
        %v8269 = vpop.f32.mrb[0].mxu0
        %v8270 = vadd.f32 %v8220, %v8269
        %v8271 = vpop.f32.mrb[0].mxu0
        %v8272 = vadd.f32 %v8225, %v8271
        %v8273 = vpop.f32.mrb[0].mxu0
        %v8274 = vadd.f32 %v8225, %v8273
        %8275 = vdwg.mxu0
        %8276 = vmatprep.subr.bf16.mxu0 %v8184
        %8277 = vmatpush1.bf16.msra.mxu0 %v8183
        %8278 = vmatprep.subr.bf16.mxu0 %v8188
        %8279 = vmatpush1.bf16.msra.mxu0 %v8187
        %8280 = vmatprep.subr.bf16.mxu0 %v8192
        %8281 = vmatpush1.bf16.msra.mxu0 %v8191
        %8282 = vmatprep.subr.bf16.mxu0 %v8196
        %8283 = vmatpush1.bf16.msra.mxu0 %v8195
        %8284 = vmatprep.subr.bf16.mxu0 %v8200
        %8285 = vmatpush1.bf16.msra.mxu0 %v8199
        %8286 = vmatprep.subr.bf16.mxu0 %v8204
        %8287 = vmatpush1.bf16.msra.mxu0 %v8203
        %8288 = vmatprep.subr.bf16.mxu0 %v8208
        %8289 = vmatpush1.bf16.msra.mxu0 %v8207
        %8290 = vmatprep.subr.bf16.mxu0 %v8212
        %8291 = vmatpush1.bf16.msra.mxu0 %v8211
        %8292 = vmatprep.subr.bf16.mxu0 0
        %8293 = vmatpush1.bf16.msra.mxu0 0
        %8294 = vmatprep.subr.bf16.mxu0 0
        %8295 = vmatpush1.bf16.msra.mxu0 0
        %8296 = vmatprep.subr.bf16.mxu0 0
        %8297 = vmatpush1.bf16.msra.mxu0 0
        %8298 = vmatprep.subr.bf16.mxu0 0
        %8299 = vmatpush1.bf16.msra.mxu0 0
        %8300 = vmatprep.subr.bf16.mxu0 0
        %8301 = vmatpush1.bf16.msra.mxu0 0
        %8302 = vmatprep.subr.bf16.mxu0 0
        %8303 = vmatpush1.bf16.msra.mxu0 0
        %8304 = vmatprep.subr.bf16.mxu0 0
        %8305 = vmatpush1.bf16.msra.mxu0 0
        %8306 = vmatprep.subr.bf16.mxu0 0
        %8307 = vmatpush1.bf16.msra.mxu0 0
        %8308 = vmatprep.mubr.bf16.mxu0 0
        %8309 = vmatmul.mubr.bf16.gmra.mrb[0].mxu0 %v8231
        %v8310 = vpop.f32.mrb[0].mxu0
        %v8311 = vadd.f32 %v8220, %v8310
        %v8312 = vpop.f32.mrb[0].mxu0
        %v8313 = vadd.f32 %v8220, %v8312
        %v8314 = vpop.f32.mrb[0].mxu0
        %v8315 = vadd.f32 %v8225, %v8314
        %v8316 = vpop.f32.mrb[0].mxu0
        %v8317 = vadd.f32 %v8225, %v8316
        %8318 = vdwg.mxu0
        %v8319 = vadd.f32 %v8268, %v486
        %v8320 = vadd.f32 %v8270, %v487
        %v8321 = vadd.f32 %v8311, %v488
        %v8322 = vadd.f32 %v8313, %v489
        %v8323 = vadd.f32 %v8272, %v490
        %v8324 = vadd.f32 %v8274, %v491
        %v8325 = vadd.f32 %v8315, %v492
        %v8326 = vadd.f32 %v8317, %v493
        %v8327 = vmax.f32 %v8319, 0.0
        %v8328 = vmax.f32 %v8320, 0.0
        %v8329 = vmax.f32 %v8321, 0.0
        %v8330 = vmax.f32 %v8322, 0.0
        %v8331 = vmax.f32 %v8323, 0.0
        %v8332 = vmax.f32 %v8324, 0.0
        %v8333 = vmax.f32 %v8325, 0.0
        %v8334 = vmax.f32 %v8326, 0.0
        %8335 = vst [vmem:[%s314] sm:$0xff] %v8327
        %8336 = vst [vmem:[%s314 + $0x8] sm:$0xff] %v8328
        %8337 = vst [vmem:[%s314 + $0x10] sm:$0xff] %v8329
        %8338 = vst [vmem:[%s314 + $0x18] sm:$0xff] %v8330
        %8339 = vst [vmem:[%s314 + $0x20] sm:$0xff] %v8331
        %8340 = vst [vmem:[%s314 + $0x28] sm:$0xff] %v8332
        %8341 = vst [vmem:[%s314 + $0x30] sm:$0xff] %v8333
        %8342 = vst [vmem:[%s314 + $0x38] sm:$0xff] %v8334
        %s8343 = sand.u32 %s204, 1
        %s8344 = scalar_lea.sflag [#allocation6], %s8343
        %s8345 = sand.u32 %s204, 1
        %s8346 = smul.addr %s8345, 64
        %s8347 = scalar_lea.vmem [#allocation7], %s8346
        // Predicated region
        $region57: #{tpu_custom_call.1} parent=51 // pred_check
          %p8348 = pneg %p214
        $region58: #{tpu_custom_call.1} parent=51 // pred_check_branch
          %8350 = sbr.rel (%p8348) target = $region60
        $region59: #{tpu_custom_call.1} parent=51 // pred_region
          %s8351 = smul.u32 4, %s23
          %s8353 = ssub.s32 1024, 1024
          %8354 = vsyncadd %s8344, %s8353
          %s8355 = smul.addr %s8351, 128
          %s8356 = scalar_lea.hbm %s8, %s8355
          %s8357 = sshll.u32 %s8347, 4
          %s8358 = int_to_ptr.vmem [resolvable:$true] %s8357
          %8363 = dma.vmem_to_hbm [thread:$0]  %s8358, 1024, %s8356, %s8344, 512, 1024, 32
        $region60: #{tpu_custom_call.1} parent=51 // pred_fallthru
          _
      $region52: #{tpu_custom_call.1} parent=5 // pred_fallthru
        _
      %p8364 = scmp.le.s32.totalorder 2, %s18
      // Predicated region
      $region61: #{tpu_custom_call.1} parent=5 // pred_check
        %p8365 = pneg %p8364
      $region62: #{tpu_custom_call.1} parent=5 // pred_check_branch
        %8367 = sbr.rel (%p8365) target = $region64
      $region63: #{tpu_custom_call.1} parent=5 // pred_region
        %s8368 = ssub.s32 %s18, 2
        // Predicated region
        $region65: #{tpu_custom_call.1} parent=63 // pred_check
          %p8369 = pneg %p220
        $region66: #{tpu_custom_call.1} parent=63 // pred_check_branch
          %8371 = sbr.rel (%p8369) target = $region68
        $region67: #{tpu_custom_call.1} parent=63 // pred_region
          %s8372 = sand.u32 %s205, 1
          %s8373 = scalar_lea.sflag [#allocation6], %s8372
          %s8374 = sand.u32 %s205, 1
          %s8375 = smul.addr %s8374, 64
          %s8376 = scalar_lea.vmem [#allocation7], %s8375
          %8377 = dma.done %s8373, 1024
        $region68: #{tpu_custom_call.1} parent=63 // pred_fallthru
          _
      $region64: #{tpu_custom_call.1} parent=5 // pred_fallthru
        _
    $region6: #{tpu_custom_call.1} parent=1 // loop_footer
      %s22 = sadd.s32 1, %s18
    $region7: #{tpu_custom_call.1} parent=1 // loop_footer_branch
      %17 = sbr.rel target = $region3
    $region8: #{tpu_custom_call.1} parent=1 // loop_exit
      _
    %8378 = vsyncpa [#allocation5], 1
    %s8379 = scalar_lea.sflag [#allocation5], 1
    %8380 = vsyncpa %s8379, 1
    %8381 = vsyncpa [#allocation6], 1
    %s8382 = scalar_lea.sflag [#allocation6], 1
    %8383 = vsyncpa %s8382, 1

</llo_original>
